<compile_context>
chip_gen: v6e
topology: v6e:2x2x1
jax: 0.10.0
libtpu: 0.0.40
codegen_flags: <defaults>
</compile_context>

<pallas_src>
import functools

import jax
import jax.numpy as jnp
from jax.experimental import pallas as pl
from jax.experimental.pallas import tpu as pltpu

EPS = 1e-5
LANE = 128
# Set to jnp.bfloat16 on v6e/v7x for the fast bf16 MXU path (f32 epilogue is
# kept either way).  Default f32 keeps bit-closeness to the PyTorch module.
MXU_COMPUTE_DTYPE = jnp.float32


# ----------------------------------------------------------------------------
# Small helpers
# ----------------------------------------------------------------------------
def _round_up(x, m):
    return (x + m - 1) // m * m


def _pad_last(a, cp):
    c = a.shape[-1]
    if c == cp:
        return a
    pad = [(0, 0)] * (a.ndim - 1) + [(0, cp - c)]
    return jnp.pad(a, pad)


def _pick_row_tile(ho, wo, cp, target_rows=1024, max_block_bytes=4 << 20):
    """Largest divisor of `ho` whose (th*wo, cp) f32 block fits the budget."""
    best = 1
    for d in range(1, ho + 1):
        if ho % d:
            continue
        if d * wo * cp * 4 <= max_block_bytes:
            best = d
        if d * wo >= target_rows:
            break
    return best


def _clamp_vmem(nbytes):
    return int(min(max(2 * nbytes + (8 << 20), 16 << 20), 64 << 20))


# ----------------------------------------------------------------------------
# Pallas kernels
# ----------------------------------------------------------------------------
def _conv3x3_bn_act_kernel(x_ref, w_ref, scale_ref, bias_ref, *rest,
                           stride, th, wo, img_h, img_w, apply_relu,
                           collect_stats, compute_dtype):
    # x_ref:     (1, H, W, CPin)   full (channel-padded) image for this batch n
    # w_ref:     (9, CPin, CPout)  one (CPin, CPout) matrix per 3x3 tap
    # scale_ref: (1, CPout), bias_ref: (1, CPout)  folded BN
    # o_ref:     (1, th, Wo, CPout)
    # stats_ref: (2, CPout)  grid-resident [sum, sum_sq] accumulator (conv3)
    # xpad_ref:  (H+2, W+2, CPin)  VMEM scratch = zero-padded image
    if collect_stats:
        o_ref, stats_ref, xpad_ref = rest
    else:
        o_ref, xpad_ref = rest
        stats_ref = None

    cp_in = x_ref.shape[-1]
    cp_out = o_ref.shape[-1]
    rb = pl.program_id(1)

    # Build the pad=1 image in VMEM; im2col never materializes in HBM.
    xpad_ref[...] = jnp.zeros_like(xpad_ref)
    xpad_ref[1:img_h + 1, 1:img_w + 1, :] = x_ref[0]

    r0 = rb * (th * stride)
    acc = jnp.zeros((th * wo, cp_out), jnp.float32)
    for dy in range(3):
        for dx in range(3):
            if stride == 1:
                tap = xpad_ref[pl.ds(r0 + dy, th), pl.ds(dx, wo), :]
            else:
                tap = xpad_ref[pl.ds(r0 + dy, th, stride=stride),
                               pl.ds(dx, wo, stride=stride), :]
            acc += jnp.dot(tap.reshape(th * wo, cp_in).astype(compute_dtype),
                           w_ref[dy * 3 + dx].astype(compute_dtype),
                           preferred_element_type=jnp.float32)

    y = acc * scale_ref[...] + bias_ref[...]
    if apply_relu:
        y = jnp.maximum(y, 0.0)
    o_ref[...] = y.reshape(1, th, wo, cp_out).astype(o_ref.dtype)

    if collect_stats:
        first = jnp.logical_and(pl.program_id(0) == 0, pl.program_id(1) == 0)

        @pl.when(first)
        def _():
            stats_ref[...] = jnp.zeros_like(stats_ref)

        stats_ref[0:1, :] += jnp.sum(y, axis=0, keepdims=True)
        stats_ref[1:2, :] += jnp.sum(y * y, axis=0, keepdims=True)


def _bn_add_relu_kernel(h_ref, r_ref, scale_ref, bias_ref, o_ref):
    cp = o_ref.shape[-1]
    sc = scale_ref[...].reshape(1, 1, 1, cp)
    bi = bias_ref[...].reshape(1, 1, 1, cp)
    y = h_ref[...] * sc + bi + r_ref[...]
    o_ref[...] = jnp.maximum(y, 0.0).astype(o_ref.dtype)


# ----------------------------------------------------------------------------
# Wrappers around pallas_call
# ----------------------------------------------------------------------------
def conv3x3_bn_act(x, w_oihw, scale, bias, cp_out, *, stride, apply_relu,
                   collect_stats=False):
    """3x3/pad=1 conv fused with per-channel scale/bias (+ReLU, +bn3 stats)."""
    N, H, W, cp_in = x.shape
    cout, cin = w_oihw.shape[0], w_oihw.shape[1]
    Ho = (H + 2 - 3) // stride + 1
    Wo = (W + 2 - 3) // stride + 1

    # [Cout, Cin, 3, 3] -> [9, CPin, CPout] with zero padded channels.
    wmat = jnp.transpose(w_oihw, (2, 3, 1, 0)).reshape(9, cin, cout)
    wmat = jnp.pad(wmat, ((0, 0), (0, cp_in - cin), (0, cp_out - cout)))
    wmat = wmat.astype(x.dtype)
    scale_p = _pad_last(scale.reshape(1, cout).astype(jnp.float32), cp_out)
    bias_p = _pad_last(bias.reshape(1, cout).astype(jnp.float32), cp_out)

    th = _pick_row_tile(Ho, Wo, cp_out)
    grid = (N, Ho // th)

    in_specs = [
        pl.BlockSpec((1, H, W, cp_in), lambda n, rb: (n, 0, 0, 0)),
        pl.BlockSpec((9, cp_in, cp_out), lambda n, rb: (0, 0, 0)),
        pl.BlockSpec((1, cp_out), lambda n, rb: (0, 0)),
        pl.BlockSpec((1, cp_out), lambda n, rb: (0, 0)),
    ]
    out_shape = [jax.ShapeDtypeStruct((N, Ho, Wo, cp_out), jnp.float32)]
    out_specs = [pl.BlockSpec((1, th, Wo, cp_out), lambda n, rb: (n, rb, 0, 0))]
    if collect_stats:
        out_shape.append(jax.ShapeDtypeStruct((2, cp_out), jnp.float32))
        out_specs.append(pl.BlockSpec((2, cp_out), lambda n, rb: (0, 0)))
        # The (2, C) stats output is resident across the whole grid, so the
        # grid must run sequentially.
        semantics = ("arbitrary", "arbitrary")
    else:
        semantics = ("parallel", "parallel")

    vmem_bytes = 4 * (2 * H * W * cp_in + 2 * 9 * cp_in * cp_out
                      + 2 * th * Wo * cp_out + (H + 2) * (W + 2) * cp_in
                      + 8 * cp_out)

    kernel = functools.partial(
        _conv3x3_bn_act_kernel, stride=stride, th=th, wo=Wo, img_h=H, img_w=W,
        apply_relu=apply_relu, collect_stats=collect_stats,
        compute_dtype=MXU_COMPUTE_DTYPE)

    outs = pl.pallas_call(
        kernel,
        grid_spec=pltpu.PrefetchScalarGridSpec(
            num_scalar_prefetch=0,
            grid=grid,
            in_specs=in_specs,
            out_specs=tuple(out_specs),
            scratch_shapes=[pltpu.VMEM((H + 2, W + 2, cp_in), jnp.float32)],
        ),
        out_shape=tuple(out_shape),
        compiler_params=pltpu.CompilerParams(
            dimension_semantics=semantics,
            vmem_limit_bytes=_clamp_vmem(vmem_bytes),
        ),
    )(x, wmat, scale_p, bias_p)

    if collect_stats:
        return outs[0], outs[1]
    return outs[0]


def bn_add_relu(h, res, scale, bias):
    """Tiled, pipelined:  relu(h * scale + bias + res)."""
    N, Ho, Wo, cp = h.shape
    th = _pick_row_tile(Ho, Wo, cp)
    grid = (N, Ho // th)
    blk = pl.BlockSpec((1, th, Wo, cp), lambda n, rb: (n, rb, 0, 0))
    vec = pl.BlockSpec((1, cp), lambda n, rb: (0, 0))
    vmem_bytes = 4 * (6 * th * Wo * cp + 4 * cp)
    return pl.pallas_call(
        _bn_add_relu_kernel,
        grid_spec=pltpu.PrefetchScalarGridSpec(
            num_scalar_prefetch=0,
            grid=grid,
            in_specs=[blk, blk, vec, vec],
            out_specs=blk,
        ),
        out_shape=jax.ShapeDtypeStruct((N, Ho, Wo, cp), jnp.float32),
        compiler_params=pltpu.CompilerParams(
            dimension_semantics=("parallel", "parallel"),
            vmem_limit_bytes=_clamp_vmem(vmem_bytes),
        ),
    )(h, res, scale.reshape(1, cp), bias.reshape(1, cp))


def _fold_bn(gamma, beta, rm, rv, eps=EPS):
    scale = gamma / jnp.sqrt(rv + eps)
    bias = beta - rm * scale
    return scale, bias


def bottleneck_forward(x_nchw, params, *, stride, has_downsample):
    """Matches the PyTorch Bottleneck forward:
       bn1/bn2/downsample-bn: eval-mode running stats (folded into the conv);
       bn3 (track_running_stats=False): batch statistics."""
    x = jnp.transpose(x_nchw, (0, 2, 3, 1)).astype(jnp.float32)  # NCHW -> NHWC
    cin = x.shape[-1]
    cbt = params["conv1_w"].shape[0]
    cout = params["conv3_w"].shape[0]
    cp_in = _round_up(cin, LANE)
    cp_bt = _round_up(cbt, LANE)
    cp_out = _round_up(cout, LANE)

    # Lane-dense channels end-to-end; real channels sliced back at the end.
    xp = _pad_last(x, cp_in)

    s1, b1 = _fold_bn(*params["bn1"])
    h = conv3x3_bn_act(xp, params["conv1_w"], s1, b1, cp_bt,
                       stride=1, apply_relu=True)

    s2, b2 = _fold_bn(*params["bn2"])
    h = conv3x3_bn_act(h, params["conv2_w"], s2, b2, cp_bt,
                       stride=stride, apply_relu=True)

    # conv3: identity scale/bias; per-channel sum & sum-of-squares for bn3 are
    # accumulated inside the same kernel.
    h, stats = conv3x3_bn_act(
        h, params["conv3_w"],
        jnp.ones((cout,), jnp.float32), jnp.zeros((cout,), jnp.float32),
        cp_out, stride=1, apply_relu=False, collect_stats=True)

    if has_downsample:
        sd, bd = _fold_bn(*params["ds_bn"])
        res = conv3x3_bn_act(xp, params["ds_conv_w"], sd, bd, cp_out,
                             stride=stride, apply_relu=False)
    else:
        res = xp

    # bn3 with batch statistics (single-pass sum / sum-of-squares).
    g3, b3 = params["bn3"]
    n_elems = h.shape[0] * h.shape[1] * h.shape[2]
    mean = stats[0] / n_elems
    var = jnp.maximum(stats[1] / n_elems - mean * mean, 0.0)
    scale3 = _pad_last(g3, cp_out) * jax.lax.rsqrt(var + EPS)
    bias3 = _pad_last(b3, cp_out) - mean * scale3

    out = bn_add_relu(h, res, scale3, bias3)
    out = out[..., :cout]
    return jnp.transpose(out, (0, 3, 1, 2))  # NHWC -> NCHW


# ----------------------------------------------------------------------------
# Pure-JAX reference (lax.conv) for correctness checking
# ----------------------------------------------------------------------------
def _ref_conv(x_nhwc, w_oihw, stride):
    w_hwio = jnp.transpose(w_oihw, (2, 3, 1, 0))
    return jax.lax.conv_general_dilated(
        x_nhwc, w_hwio, window_strides=(stride, stride),
        padding=((1, 1), (1, 1)),
        dimension_numbers=("NHWC", "HWIO", "NHWC"))


def _ref_bn_eval(x, gamma, beta, rm, rv, eps=EPS):
    return (x - rm) / jnp.sqrt(rv + eps) * gamma + beta


def bottleneck_reference(x_nchw, params, *, stride, has_downsample):
    x = jnp.transpose(x_nchw, (0, 2, 3, 1))
    h = jnp.maximum(_ref_bn_eval(_ref_conv(x, params["conv1_w"], 1), *params["bn1"]), 0.0)
    h = jnp.maximum(_ref_bn_eval(_ref_conv(h, params["conv2_w"], stride), *params["bn2"]), 0.0)
    h = _ref_conv(h, params["conv3_w"], 1)
    mean = jnp.mean(h, axis=(0, 1, 2), keepdims=True)
    var = jnp.mean(jnp.square(h - mean), axis=(0, 1, 2), keepdims=True)
    g3, b3 = params["bn3"]
    h = (h - mean) / jnp.sqrt(var + EPS) * g3 + b3
    if has_downsample:
        res = _ref_bn_eval(_ref_conv(x, params["ds_conv_w"], stride), *params["ds_bn"])
    else:
        res = x
    out = jnp.maximum(h + res, 0.0)
    return jnp.transpose(out, (0, 3, 1, 2))


# ----------------------------------------------------------------------------
# Deterministic parameter construction
# ----------------------------------------------------------------------------
def make_params(key, kernels_in, kernels_bt, kernels_out, has_downsample):
    ks = jax.random.split(key, 8)

    def conv_w(k, cout, cin):
        return 0.1 * jax.random.normal(k, (cout, cin, 3, 3), jnp.float32)

    def bn_full(k, c):
        k1, k2, k3, k4 = jax.random.split(k, 4)
        gamma = 1.0 + 0.1 * jax.random.normal(k1, (c,), jnp.float32)
        beta = 0.1 * jax.random.normal(k2, (c,), jnp.float32)
        rm = 0.1 * jax.random.normal(k3, (c,), jnp.float32)
        rv = jax.random.uniform(k4, (c,), jnp.float32, 0.5, 1.5)
        return (gamma, beta, rm, rv)

    def bn_affine_only(k, c):  # bn3: track_running_stats=False
        k1, k2 = jax.random.split(k, 2)
        return (1.0 + 0.1 * jax.random.normal(k1, (c,), jnp.float32),
                0.1 * jax.random.normal(k2, (c,), jnp.float32))

    params = {
        "conv1_w": conv_w(ks[0], kernels_bt, kernels_in),
        "bn1": bn_full(ks[1], kernels_bt),
        "conv2_w": conv_w(ks[2], kernels_bt, kernels_bt),
        "bn2": bn_full(ks[3], kernels_bt),
        "conv3_w": conv_w(ks[4], kernels_out, kernels_bt),
        "bn3": bn_affine_only(ks[5], kernels_out),
    }
    if has_downsample:
        params["ds_conv_w"] = conv_w(ks[6], kernels_out, kernels_in)
        params["ds_bn"] = bn_full(ks[7], kernels_out)
    return params


# ----------------------------------------------------------------------------
if __name__ == "__main__":
    key = jax.random.PRNGKey(0)
    kx, kp1, kp2 = jax.random.split(key, 3)

    x = jax.random.normal(kx, (2, 4, 16, 16), jnp.float32)  # NCHW

    # Config A: identity residual (kernels_out == kernels_in, stride=1)
    params_a = make_params(kp1, kernels_in=4, kernels_bt=8, kernels_out=4,
                           has_downsample=False)
    fwd_a = jax.jit(functools.partial(bottleneck_forward, stride=1,
                                      has_downsample=False))
    out_a = fwd_a(x, params_a)
    jax.block_until_ready(out_a)
    ref_a = bottleneck_reference(x, params_a, stride=1, has_downsample=False)
    assert out_a.shape == (2, 4, 16, 16)
    assert jnp.allclose(out_a, ref_a, rtol=2e-4, atol=2e-4), (
        float(jnp.max(jnp.abs(out_a - ref_a))))

    # Config B: strided block with downsample branch
    params_b = make_params(kp2, kernels_in=4, kernels_bt=8, kernels_out=16,
                           has_downsample=True)
    fwd_b = jax.jit(functools.partial(bottleneck_forward, stride=2,
                                      has_downsample=True))
    out_b = fwd_b(x, params_b)
    jax.block_until_ready(out_b)
    ref_b = bottleneck_reference(x, params_b, stride=2, has_downsample=True)
    assert out_b.shape == (2, 16, 8, 8)
    assert jnp.allclose(out_b, ref_b, rtol=2e-4, atol=2e-4), (
        float(jnp.max(jnp.abs(out_b - ref_b))))

    print("KERNEL_OK")
</pallas_src>

<mosaic_0001>
module attributes {stable_mosaic.version = 11 : i64} {
  func.func @_bn_add_relu_kernel(%arg0: i32, %arg1: i32, %arg2: memref<1x16x16x128xf32, #tpu.memory_space<vmem>>, %arg3: memref<1x16x16x128xf32, #tpu.memory_space<vmem>>, %arg4: memref<1x128xf32, #tpu.memory_space<vmem>>, %arg5: memref<1x128xf32, #tpu.memory_space<vmem>>, %arg6: memref<1x16x16x128xf32, #tpu.memory_space<vmem>>) attributes {dimension_semantics = [#tpu.dimension_semantics<parallel>, #tpu.dimension_semantics<parallel>], iteration_bounds = array<i64: 2, 1>, scalar_prefetch = 0 : i64, scratch_operands = 0 : i64, tpu.core_type = #tpu.core_type<tc>, window_params = [{transform_indices = @transform_0, window_bounds = array<i64: 1, 16, 16, 128>}, {transform_indices = @transform_1, window_bounds = array<i64: 1, 16, 16, 128>}, {pipeline_mode = #tpu.pipeline_mode<synchronous>, transform_indices = @transform_2, window_bounds = array<i64: 1, 128>}, {pipeline_mode = #tpu.pipeline_mode<synchronous>, transform_indices = @transform_3, window_bounds = array<i64: 1, 128>}, {transform_indices = @transform_4, window_bounds = array<i64: 1, 16, 16, 128>}]} {
    %c0 = arith.constant 0 : index
    %c0_0 = arith.constant 0 : index
    %0 = vector.load %arg4[%c0, %c0_0] : memref<1x128xf32, #tpu.memory_space<vmem>>, vector<1x128xf32>
    %1 = vector.shape_cast %0 : vector<1x128xf32> to vector<1x1x1x128xf32>
    %c0_1 = arith.constant 0 : index
    %c0_2 = arith.constant 0 : index
    %2 = vector.load %arg5[%c0_1, %c0_2] : memref<1x128xf32, #tpu.memory_space<vmem>>, vector<1x128xf32>
    %3 = vector.shape_cast %2 : vector<1x128xf32> to vector<1x1x1x128xf32>
    %c0_3 = arith.constant 0 : index
    %c0_4 = arith.constant 0 : index
    %c0_5 = arith.constant 0 : index
    %c0_6 = arith.constant 0 : index
    %4 = vector.load %arg2[%c0_3, %c0_4, %c0_5, %c0_6] : memref<1x16x16x128xf32, #tpu.memory_space<vmem>>, vector<1x16x16x128xf32>
    %5 = vector.broadcast %1 : vector<1x1x1x128xf32> to vector<1x16x16x128xf32>
    %6 = arith.mulf %4, %5 : vector<1x16x16x128xf32>
    %7 = vector.broadcast %3 : vector<1x1x1x128xf32> to vector<1x16x16x128xf32>
    %8 = arith.addf %6, %7 : vector<1x16x16x128xf32>
    %c0_7 = arith.constant 0 : index
    %c0_8 = arith.constant 0 : index
    %c0_9 = arith.constant 0 : index
    %c0_10 = arith.constant 0 : index
    %9 = vector.load %arg3[%c0_7, %c0_8, %c0_9, %c0_10] : memref<1x16x16x128xf32, #tpu.memory_space<vmem>>, vector<1x16x16x128xf32>
    %10 = arith.addf %8, %9 : vector<1x16x16x128xf32>
    %cst = arith.constant 0.000000e+00 : f32
    %11 = vector.broadcast %cst : f32 to vector<1x16x16x128xf32>
    %12 = arith.maximumf %10, %11 : vector<1x16x16x128xf32>
    %c0_11 = arith.constant 0 : index
    %c0_12 = arith.constant 0 : index
    %c0_13 = arith.constant 0 : index
    %c0_14 = arith.constant 0 : index
    %13 = vector.load %arg6[%c0_11, %c0_12, %c0_13, %c0_14] : memref<1x16x16x128xf32, #tpu.memory_space<vmem>>, vector<1x16x16x128xf32>
    tpu.vector_store %arg6[%c0_11, %c0_12, %c0_13, %c0_14], %12 {strides = array<i32>} : memref<1x16x16x128xf32, #tpu.memory_space<vmem>>, vector<1x16x16x128xf32>,
    return
  }
  func.func @transform_0(%arg0: i32, %arg1: i32) -> (i32, i32, i32, i32) {
    %c0_i32 = arith.constant 0 : i32
    %c0_i32_0 = arith.constant 0 : i32
    %c0_i32_1 = arith.constant 0 : i32
    return %arg0, %arg1, %c0_i32, %c0_i32_0 : i32, i32, i32, i32
  }
  func.func @transform_1(%arg0: i32, %arg1: i32) -> (i32, i32, i32, i32) {
    %c0_i32 = arith.constant 0 : i32
    %c0_i32_0 = arith.constant 0 : i32
    %c0_i32_1 = arith.constant 0 : i32
    return %arg0, %arg1, %c0_i32, %c0_i32_0 : i32, i32, i32, i32
  }
  func.func @transform_2(%arg0: i32, %arg1: i32) -> (i32, i32) {
    %c0_i32 = arith.constant 0 : i32
    %c0_i32_0 = arith.constant 0 : i32
    %c0_i32_1 = arith.constant 0 : i32
    return %c0_i32, %c0_i32_0 : i32, i32
  }
  func.func @transform_3(%arg0: i32, %arg1: i32) -> (i32, i32) {
    %c0_i32 = arith.constant 0 : i32
    %c0_i32_0 = arith.constant 0 : i32
    %c0_i32_1 = arith.constant 0 : i32
    return %c0_i32, %c0_i32_0 : i32, i32
  }
  func.func @transform_4(%arg0: i32, %arg1: i32) -> (i32, i32, i32, i32) {
    %c0_i32 = arith.constant 0 : i32
    %c0_i32_0 = arith.constant 0 : i32
    %c0_i32_1 = arith.constant 0 : i32
    return %arg0, %arg1, %c0_i32, %c0_i32_0 : i32, i32, i32, i32
  }
}

module attributes {stable_mosaic.version = 11 : i64} {
  func.func @_conv3x3_bn_act_kernel(%arg0: i32, %arg1: i32, %arg2: memref<1x16x16x128xf32, #tpu.memory_space<vmem>>, %arg3: memref<9x128x128xf32, #tpu.memory_space<vmem>>, %arg4: memref<1x128xf32, #tpu.memory_space<vmem>>, %arg5: memref<1x128xf32, #tpu.memory_space<vmem>>, %arg6: memref<1x16x16x128xf32, #tpu.memory_space<vmem>>, %arg7: memref<18x18x128xf32, #tpu.memory_space<vmem>>) attributes {dimension_semantics = [#tpu.dimension_semantics<parallel>, #tpu.dimension_semantics<parallel>], iteration_bounds = array<i64: 2, 1>, scalar_prefetch = 0 : i64, scratch_operands = 1 : i64, tpu.core_type = #tpu.core_type<tc>, window_params = [{transform_indices = @transform_0, window_bounds = array<i64: 1, 16, 16, 128>}, {pipeline_mode = #tpu.pipeline_mode<synchronous>, transform_indices = @transform_1, window_bounds = array<i64: 9, 128, 128>}, {pipeline_mode = #tpu.pipeline_mode<synchronous>, transform_indices = @transform_2, window_bounds = array<i64: 1, 128>}, {pipeline_mode = #tpu.pipeline_mode<synchronous>, transform_indices = @transform_3, window_bounds = array<i64: 1, 128>}, {transform_indices = @transform_4, window_bounds = array<i64: 1, 16, 16, 128>}]} {
    %cst = arith.constant 0.000000e+00 : f32
    %0 = vector.broadcast %cst : f32 to vector<18x18x128xf32>
    %c0 = arith.constant 0 : index
    %c0_0 = arith.constant 0 : index
    %c0_1 = arith.constant 0 : index
    %1 = vector.load %arg7[%c0, %c0_0, %c0_1] : memref<18x18x128xf32, #tpu.memory_space<vmem>>, vector<18x18x128xf32>
    tpu.vector_store %arg7[%c0, %c0_0, %c0_1], %0 {strides = array<i32>} : memref<18x18x128xf32, #tpu.memory_space<vmem>>, vector<18x18x128xf32>,
    %c0_2 = arith.constant 0 : index
    %c0_3 = arith.constant 0 : index
    %c0_4 = arith.constant 0 : index
    %c0_5 = arith.constant 0 : index
    %2 = vector.load %arg2[%c0_2, %c0_3, %c0_4, %c0_5] : memref<1x16x16x128xf32, #tpu.memory_space<vmem>>, vector<1x16x16x128xf32>
    %3 = vector.shape_cast %2 : vector<1x16x16x128xf32> to vector<16x16x128xf32>
    %c1 = arith.constant 1 : index
    %c1_6 = arith.constant 1 : index
    %c0_7 = arith.constant 0 : index
    %4 = vector.load %arg7[%c1, %c1_6, %c0_7] : memref<18x18x128xf32, #tpu.memory_space<vmem>>, vector<16x16x128xf32>
    tpu.vector_store %arg7[%c1, %c1_6, %c0_7], %3 {strides = array<i32>} : memref<18x18x128xf32, #tpu.memory_space<vmem>>, vector<16x16x128xf32>,
    %c16_i32 = arith.constant 16 : i32
    %5 = arith.muli %arg1, %c16_i32 : i32
    %cst_8 = arith.constant 0.000000e+00 : f32
    %6 = vector.broadcast %cst_8 : f32 to vector<256x128xf32>
    %c0_i32 = arith.constant 0 : i32
    %7 = arith.addi %5, %c0_i32 : i32
    %8 = arith.index_cast %7 : i32 to index
    %c0_9 = arith.constant 0 : index
    %c0_10 = arith.constant 0 : index
    %9 = vector.load %arg7[%8, %c0_9, %c0_10] : memref<18x18x128xf32, #tpu.memory_space<vmem>>, vector<16x16x128xf32>
    %10 = vector.shape_cast %9 : vector<16x16x128xf32> to vector<256x128xf32>
    %c0_11 = arith.constant 0 : index
    %c0_12 = arith.constant 0 : index
    %c0_13 = arith.constant 0 : index
    %11 = vector.load %arg3[%c0_11, %c0_12, %c0_13] : memref<9x128x128xf32, #tpu.memory_space<vmem>>, vector<1x128x128xf32>
    %12 = vector.shape_cast %11 : vector<1x128x128xf32> to vector<128x128xf32>
    %cst_14 = arith.constant dense<0.000000e+00> : vector<256x128xf32>
    %13 = tpu.matmul %10, %12, %cst_14 {dimension_numbers = #tpu.dot_dimension_numbers<[1], [0], [0], [1], [0, 0, 1, 1], [], []>} : vector<256x128xf32>, vector<128x128xf32>, vector<256x128xf32> -> vector<256x128xf32>
    %14 = arith.addf %6, %13 : vector<256x128xf32>
    %c0_i32_15 = arith.constant 0 : i32
    %15 = arith.addi %5, %c0_i32_15 : i32
    %16 = arith.index_cast %15 : i32 to index
    %c1_16 = arith.constant 1 : index
    %c0_17 = arith.constant 0 : index
    %17 = vector.load %arg7[%16, %c1_16, %c0_17] : memref<18x18x128xf32, #tpu.memory_space<vmem>>, vector<16x16x128xf32>
    %18 = vector.shape_cast %17 : vector<16x16x128xf32> to vector<256x128xf32>
    %c1_18 = arith.constant 1 : index
    %c0_19 = arith.constant 0 : index
    %c0_20 = arith.constant 0 : index
    %19 = vector.load %arg3[%c1_18, %c0_19, %c0_20] : memref<9x128x128xf32, #tpu.memory_space<vmem>>, vector<1x128x128xf32>
    %20 = vector.shape_cast %19 : vector<1x128x128xf32> to vector<128x128xf32>
    %cst_21 = arith.constant dense<0.000000e+00> : vector<256x128xf32>
    %21 = tpu.matmul %18, %20, %cst_21 {dimension_numbers = #tpu.dot_dimension_numbers<[1], [0], [0], [1], [0, 0, 1, 1], [], []>} : vector<256x128xf32>, vector<128x128xf32>, vector<256x128xf32> -> vector<256x128xf32>
    %22 = arith.addf %14, %21 : vector<256x128xf32>
    %c0_i32_22 = arith.constant 0 : i32
    %23 = arith.addi %5, %c0_i32_22 : i32
    %24 = arith.index_cast %23 : i32 to index
    %c2 = arith.constant 2 : index
    %c0_23 = arith.constant 0 : index
    %25 = vector.load %arg7[%24, %c2, %c0_23] : memref<18x18x128xf32, #tpu.memory_space<vmem>>, vector<16x16x128xf32>
    %26 = vector.shape_cast %25 : vector<16x16x128xf32> to vector<256x128xf32>
    %c2_24 = arith.constant 2 : index
    %c0_25 = arith.constant 0 : index
    %c0_26 = arith.constant 0 : index
    %27 = vector.load %arg3[%c2_24, %c0_25, %c0_26] : memref<9x128x128xf32, #tpu.memory_space<vmem>>, vector<1x128x128xf32>
    %28 = vector.shape_cast %27 : vector<1x128x128xf32> to vector<128x128xf32>
    %cst_27 = arith.constant dense<0.000000e+00> : vector<256x128xf32>
    %29 = tpu.matmul %26, %28, %cst_27 {dimension_numbers = #tpu.dot_dimension_numbers<[1], [0], [0], [1], [0, 0, 1, 1], [], []>} : vector<256x128xf32>, vector<128x128xf32>, vector<256x128xf32> -> vector<256x128xf32>
    %30 = arith.addf %22, %29 : vector<256x128xf32>
    %c1_i32 = arith.constant 1 : i32
    %31 = arith.addi %5, %c1_i32 : i32
    %32 = arith.index_cast %31 : i32 to index
    %c0_28 = arith.constant 0 : index
    %c0_29 = arith.constant 0 : index
    %33 = vector.load %arg7[%32, %c0_28, %c0_29] : memref<18x18x128xf32, #tpu.memory_space<vmem>>, vector<16x16x128xf32>
    %34 = vector.shape_cast %33 : vector<16x16x128xf32> to vector<256x128xf32>
    %c3 = arith.constant 3 : index
    %c0_30 = arith.constant 0 : index
    %c0_31 = arith.constant 0 : index
    %35 = vector.load %arg3[%c3, %c0_30, %c0_31] : memref<9x128x128xf32, #tpu.memory_space<vmem>>, vector<1x128x128xf32>
    %36 = vector.shape_cast %35 : vector<1x128x128xf32> to vector<128x128xf32>
    %cst_32 = arith.constant dense<0.000000e+00> : vector<256x128xf32>
    %37 = tpu.matmul %34, %36, %cst_32 {dimension_numbers = #tpu.dot_dimension_numbers<[1], [0], [0], [1], [0, 0, 1, 1], [], []>} : vector<256x128xf32>, vector<128x128xf32>, vector<256x128xf32> -> vector<256x128xf32>
    %38 = arith.addf %30, %37 : vector<256x128xf32>
    %c1_i32_33 = arith.constant 1 : i32
    %39 = arith.addi %5, %c1_i32_33 : i32
    %40 = arith.index_cast %39 : i32 to index
    %c1_34 = arith.constant 1 : index
    %c0_35 = arith.constant 0 : index
    %41 = vector.load %arg7[%40, %c1_34, %c0_35] : memref<18x18x128xf32, #tpu.memory_space<vmem>>, vector<16x16x128xf32>
    %42 = vector.shape_cast %41 : vector<16x16x128xf32> to vector<256x128xf32>
    %c4 = arith.constant 4 : index
    %c0_36 = arith.constant 0 : index
    %c0_37 = arith.constant 0 : index
    %43 = vector.load %arg3[%c4, %c0_36, %c0_37] : memref<9x128x128xf32, #tpu.memory_space<vmem>>, vector<1x128x128xf32>
    %44 = vector.shape_cast %43 : vector<1x128x128xf32> to vector<128x128xf32>
    %cst_38 = arith.constant dense<0.000000e+00> : vector<256x128xf32>
    %45 = tpu.matmul %42, %44, %cst_38 {dimension_numbers = #tpu.dot_dimension_numbers<[1], [0], [0], [1], [0, 0, 1, 1], [], []>} : vector<256x128xf32>, vector<128x128xf32>, vector<256x128xf32> -> vector<256x128xf32>
    %46 = arith.addf %38, %45 : vector<256x128xf32>
    %c1_i32_39 = arith.constant 1 : i32
    %47 = arith.addi %5, %c1_i32_39 : i32
    %48 = arith.index_cast %47 : i32 to index
    %c2_40 = arith.constant 2 : index
    %c0_41 = arith.constant 0 : index
    %49 = vector.load %arg7[%48, %c2_40, %c0_41] : memref<18x18x128xf32, #tpu.memory_space<vmem>>, vector<16x16x128xf32>
    %50 = vector.shape_cast %49 : vector<16x16x128xf32> to vector<256x128xf32>
    %c5 = arith.constant 5 : index
    %c0_42 = arith.constant 0 : index
    %c0_43 = arith.constant 0 : index
    %51 = vector.load %arg3[%c5, %c0_42, %c0_43] : memref<9x128x128xf32, #tpu.memory_space<vmem>>, vector<1x128x128xf32>
    %52 = vector.shape_cast %51 : vector<1x128x128xf32> to vector<128x128xf32>
    %cst_44 = arith.constant dense<0.000000e+00> : vector<256x128xf32>
    %53 = tpu.matmul %50, %52, %cst_44 {dimension_numbers = #tpu.dot_dimension_numbers<[1], [0], [0], [1], [0, 0, 1, 1], [], []>} : vector<256x128xf32>, vector<128x128xf32>, vector<256x128xf32> -> vector<256x128xf32>
    %54 = arith.addf %46, %53 : vector<256x128xf32>
    %c2_i32 = arith.constant 2 : i32
    %55 = arith.addi %5, %c2_i32 : i32
    %56 = arith.index_cast %55 : i32 to index
    %c0_45 = arith.constant 0 : index
    %c0_46 = arith.constant 0 : index
    %57 = vector.load %arg7[%56, %c0_45, %c0_46] : memref<18x18x128xf32, #tpu.memory_space<vmem>>, vector<16x16x128xf32>
    %58 = vector.shape_cast %57 : vector<16x16x128xf32> to vector<256x128xf32>
    %c6 = arith.constant 6 : index
    %c0_47 = arith.constant 0 : index
    %c0_48 = arith.constant 0 : index
    %59 = vector.load %arg3[%c6, %c0_47, %c0_48] : memref<9x128x128xf32, #tpu.memory_space<vmem>>, vector<1x128x128xf32>
    %60 = vector.shape_cast %59 : vector<1x128x128xf32> to vector<128x128xf32>
    %cst_49 = arith.constant dense<0.000000e+00> : vector<256x128xf32>
    %61 = tpu.matmul %58, %60, %cst_49 {dimension_numbers = #tpu.dot_dimension_numbers<[1], [0], [0], [1], [0, 0, 1, 1], [], []>} : vector<256x128xf32>, vector<128x128xf32>, vector<256x128xf32> -> vector<256x128xf32>
    %62 = arith.addf %54, %61 : vector<256x128xf32>
    %c2_i32_50 = arith.constant 2 : i32
    %63 = arith.addi %5, %c2_i32_50 : i32
    %64 = arith.index_cast %63 : i32 to index
    %c1_51 = arith.constant 1 : index
    %c0_52 = arith.constant 0 : index
    %65 = vector.load %arg7[%64, %c1_51, %c0_52] : memref<18x18x128xf32, #tpu.memory_space<vmem>>, vector<16x16x128xf32>
    %66 = vector.shape_cast %65 : vector<16x16x128xf32> to vector<256x128xf32>
    %c7 = arith.constant 7 : index
    %c0_53 = arith.constant 0 : index
    %c0_54 = arith.constant 0 : index
    %67 = vector.load %arg3[%c7, %c0_53, %c0_54] : memref<9x128x128xf32, #tpu.memory_space<vmem>>, vector<1x128x128xf32>
    %68 = vector.shape_cast %67 : vector<1x128x128xf32> to vector<128x128xf32>
    %cst_55 = arith.constant dense<0.000000e+00> : vector<256x128xf32>
    %69 = tpu.matmul %66, %68, %cst_55 {dimension_numbers = #tpu.dot_dimension_numbers<[1], [0], [0], [1], [0, 0, 1, 1], [], []>} : vector<256x128xf32>, vector<128x128xf32>, vector<256x128xf32> -> vector<256x128xf32>
    %70 = arith.addf %62, %69 : vector<256x128xf32>
    %c2_i32_56 = arith.constant 2 : i32
    %71 = arith.addi %5, %c2_i32_56 : i32
    %72 = arith.index_cast %71 : i32 to index
    %c2_57 = arith.constant 2 : index
    %c0_58 = arith.constant 0 : index
    %73 = vector.load %arg7[%72, %c2_57, %c0_58] : memref<18x18x128xf32, #tpu.memory_space<vmem>>, vector<16x16x128xf32>
    %74 = vector.shape_cast %73 : vector<16x16x128xf32> to vector<256x128xf32>
    %c8 = arith.constant 8 : index
    %c0_59 = arith.constant 0 : index
    %c0_60 = arith.constant 0 : index
    %75 = vector.load %arg3[%c8, %c0_59, %c0_60] : memref<9x128x128xf32, #tpu.memory_space<vmem>>, vector<1x128x128xf32>
    %76 = vector.shape_cast %75 : vector<1x128x128xf32> to vector<128x128xf32>
    %cst_61 = arith.constant dense<0.000000e+00> : vector<256x128xf32>
    %77 = tpu.matmul %74, %76, %cst_61 {dimension_numbers = #tpu.dot_dimension_numbers<[1], [0], [0], [1], [0, 0, 1, 1], [], []>} : vector<256x128xf32>, vector<128x128xf32>, vector<256x128xf32> -> vector<256x128xf32>
    %78 = arith.addf %70, %77 : vector<256x128xf32>
    %c0_62 = arith.constant 0 : index
    %c0_63 = arith.constant 0 : index
    %79 = vector.load %arg4[%c0_62, %c0_63] : memref<1x128xf32, #tpu.memory_space<vmem>>, vector<1x128xf32>
    %80 = vector.broadcast %79 : vector<1x128xf32> to vector<256x128xf32>
    %81 = arith.mulf %78, %80 : vector<256x128xf32>
    %c0_64 = arith.constant 0 : index
    %c0_65 = arith.constant 0 : index
    %82 = vector.load %arg5[%c0_64, %c0_65] : memref<1x128xf32, #tpu.memory_space<vmem>>, vector<1x128xf32>
    %83 = vector.broadcast %82 : vector<1x128xf32> to vector<256x128xf32>
    %84 = arith.addf %81, %83 : vector<256x128xf32>
    %cst_66 = arith.constant 0.000000e+00 : f32
    %85 = vector.broadcast %cst_66 : f32 to vector<256x128xf32>
    %86 = arith.maximumf %84, %85 : vector<256x128xf32>
    %87 = vector.shape_cast %86 : vector<256x128xf32> to vector<1x16x16x128xf32>
    %c0_67 = arith.constant 0 : index
    %c0_68 = arith.constant 0 : index
    %c0_69 = arith.constant 0 : index
    %c0_70 = arith.constant 0 : index
    %88 = vector.load %arg6[%c0_67, %c0_68, %c0_69, %c0_70] : memref<1x16x16x128xf32, #tpu.memory_space<vmem>>, vector<1x16x16x128xf32>
    tpu.vector_store %arg6[%c0_67, %c0_68, %c0_69, %c0_70], %87 {strides = array<i32>} : memref<1x16x16x128xf32, #tpu.memory_space<vmem>>, vector<1x16x16x128xf32>,
    return
  }
  func.func @transform_0(%arg0: i32, %arg1: i32) -> (i32, i32, i32, i32) {
    %c0_i32 = arith.constant 0 : i32
    %c0_i32_0 = arith.constant 0 : i32
    %c0_i32_1 = arith.constant 0 : i32
    %c0_i32_2 = arith.constant 0 : i32
    return %arg0, %c0_i32, %c0_i32_0, %c0_i32_1 : i32, i32, i32, i32
  }
  func.func @transform_1(%arg0: i32, %arg1: i32) -> (i32, i32, i32) {
    %c0_i32 = arith.constant 0 : i32
    %c0_i32_0 = arith.constant 0 : i32
    %c0_i32_1 = arith.constant 0 : i32
    %c0_i32_2 = arith.constant 0 : i32
    return %c0_i32, %c0_i32_0, %c0_i32_1 : i32, i32, i32
  }
  func.func @transform_2(%arg0: i32, %arg1: i32) -> (i32, i32) {
    %c0_i32 = arith.constant 0 : i32
    %c0_i32_0 = arith.constant 0 : i32
    %c0_i32_1 = arith.constant 0 : i32
    return %c0_i32, %c0_i32_0 : i32, i32
  }
  func.func @transform_3(%arg0: i32, %arg1: i32) -> (i32, i32) {
    %c0_i32 = arith.constant 0 : i32
    %c0_i32_0 = arith.constant 0 : i32
    %c0_i32_1 = arith.constant 0 : i32
    return %c0_i32, %c0_i32_0 : i32, i32
  }
  func.func @transform_4(%arg0: i32, %arg1: i32) -> (i32, i32, i32, i32) {
    %c0_i32 = arith.constant 0 : i32
    %c0_i32_0 = arith.constant 0 : i32
    %c0_i32_1 = arith.constant 0 : i32
    return %arg0, %arg1, %c0_i32, %c0_i32_0 : i32, i32, i32, i32
  }
}

module attributes {stable_mosaic.version = 11 : i64} {
  func.func @_conv3x3_bn_act_kernel(%arg0: i32, %arg1: i32, %arg2: memref<1x16x16x128xf32, #tpu.memory_space<vmem>>, %arg3: memref<9x128x128xf32, #tpu.memory_space<vmem>>, %arg4: memref<1x128xf32, #tpu.memory_space<vmem>>, %arg5: memref<1x128xf32, #tpu.memory_space<vmem>>, %arg6: memref<1x16x16x128xf32, #tpu.memory_space<vmem>>, %arg7: memref<2x128xf32, #tpu.memory_space<vmem>>, %arg8: memref<18x18x128xf32, #tpu.memory_space<vmem>>) attributes {dimension_semantics = [#tpu.dimension_semantics<arbitrary>, #tpu.dimension_semantics<arbitrary>], iteration_bounds = array<i64: 2, 1>, scalar_prefetch = 0 : i64, scratch_operands = 1 : i64, tpu.core_type = #tpu.core_type<tc>, window_params = [{transform_indices = @transform_0, window_bounds = array<i64: 1, 16, 16, 128>}, {pipeline_mode = #tpu.pipeline_mode<synchronous>, transform_indices = @transform_1, window_bounds = array<i64: 9, 128, 128>}, {pipeline_mode = #tpu.pipeline_mode<synchronous>, transform_indices = @transform_2, window_bounds = array<i64: 1, 128>}, {pipeline_mode = #tpu.pipeline_mode<synchronous>, transform_indices = @transform_3, window_bounds = array<i64: 1, 128>}, {transform_indices = @transform_4, window_bounds = array<i64: 1, 16, 16, 128>}, {pipeline_mode = #tpu.pipeline_mode<synchronous>, transform_indices = @transform_5, window_bounds = array<i64: 2, 128>}]} {
    %cst = arith.constant 0.000000e+00 : f32
    %0 = vector.broadcast %cst : f32 to vector<18x18x128xf32>
    %c0 = arith.constant 0 : index
    %c0_0 = arith.constant 0 : index
    %c0_1 = arith.constant 0 : index
    %1 = vector.load %arg8[%c0, %c0_0, %c0_1] : memref<18x18x128xf32, #tpu.memory_space<vmem>>, vector<18x18x128xf32>
    tpu.vector_store %arg8[%c0, %c0_0, %c0_1], %0 {strides = array<i32>} : memref<18x18x128xf32, #tpu.memory_space<vmem>>, vector<18x18x128xf32>,
    %c0_2 = arith.constant 0 : index
    %c0_3 = arith.constant 0 : index
    %c0_4 = arith.constant 0 : index
    %c0_5 = arith.constant 0 : index
    %2 = vector.load %arg2[%c0_2, %c0_3, %c0_4, %c0_5] : memref<1x16x16x128xf32, #tpu.memory_space<vmem>>, vector<1x16x16x128xf32>
    %3 = vector.shape_cast %2 : vector<1x16x16x128xf32> to vector<16x16x128xf32>
    %c1 = arith.constant 1 : index
    %c1_6 = arith.constant 1 : index
    %c0_7 = arith.constant 0 : index
    %4 = vector.load %arg8[%c1, %c1_6, %c0_7] : memref<18x18x128xf32, #tpu.memory_space<vmem>>, vector<16x16x128xf32>
    tpu.vector_store %arg8[%c1, %c1_6, %c0_7], %3 {strides = array<i32>} : memref<18x18x128xf32, #tpu.memory_space<vmem>>, vector<16x16x128xf32>,
    %c16_i32 = arith.constant 16 : i32
    %5 = arith.muli %arg1, %c16_i32 : i32
    %cst_8 = arith.constant 0.000000e+00 : f32
    %6 = vector.broadcast %cst_8 : f32 to vector<256x128xf32>
    %c0_i32 = arith.constant 0 : i32
    %7 = arith.addi %5, %c0_i32 : i32
    %8 = arith.index_cast %7 : i32 to index
    %c0_9 = arith.constant 0 : index
    %c0_10 = arith.constant 0 : index
    %9 = vector.load %arg8[%8, %c0_9, %c0_10] : memref<18x18x128xf32, #tpu.memory_space<vmem>>, vector<16x16x128xf32>
    %10 = vector.shape_cast %9 : vector<16x16x128xf32> to vector<256x128xf32>
    %c0_11 = arith.constant 0 : index
    %c0_12 = arith.constant 0 : index
    %c0_13 = arith.constant 0 : index
    %11 = vector.load %arg3[%c0_11, %c0_12, %c0_13] : memref<9x128x128xf32, #tpu.memory_space<vmem>>, vector<1x128x128xf32>
    %12 = vector.shape_cast %11 : vector<1x128x128xf32> to vector<128x128xf32>
    %cst_14 = arith.constant dense<0.000000e+00> : vector<256x128xf32>
    %13 = tpu.matmul %10, %12, %cst_14 {dimension_numbers = #tpu.dot_dimension_numbers<[1], [0], [0], [1], [0, 0, 1, 1], [], []>} : vector<256x128xf32>, vector<128x128xf32>, vector<256x128xf32> -> vector<256x128xf32>
    %14 = arith.addf %6, %13 : vector<256x128xf32>
    %c0_i32_15 = arith.constant 0 : i32
    %15 = arith.addi %5, %c0_i32_15 : i32
    %16 = arith.index_cast %15 : i32 to index
    %c1_16 = arith.constant 1 : index
    %c0_17 = arith.constant 0 : index
    %17 = vector.load %arg8[%16, %c1_16, %c0_17] : memref<18x18x128xf32, #tpu.memory_space<vmem>>, vector<16x16x128xf32>
    %18 = vector.shape_cast %17 : vector<16x16x128xf32> to vector<256x128xf32>
    %c1_18 = arith.constant 1 : index
    %c0_19 = arith.constant 0 : index
    %c0_20 = arith.constant 0 : index
    %19 = vector.load %arg3[%c1_18, %c0_19, %c0_20] : memref<9x128x128xf32, #tpu.memory_space<vmem>>, vector<1x128x128xf32>
    %20 = vector.shape_cast %19 : vector<1x128x128xf32> to vector<128x128xf32>
    %cst_21 = arith.constant dense<0.000000e+00> : vector<256x128xf32>
    %21 = tpu.matmul %18, %20, %cst_21 {dimension_numbers = #tpu.dot_dimension_numbers<[1], [0], [0], [1], [0, 0, 1, 1], [], []>} : vector<256x128xf32>, vector<128x128xf32>, vector<256x128xf32> -> vector<256x128xf32>
    %22 = arith.addf %14, %21 : vector<256x128xf32>
    %c0_i32_22 = arith.constant 0 : i32
    %23 = arith.addi %5, %c0_i32_22 : i32
    %24 = arith.index_cast %23 : i32 to index
    %c2 = arith.constant 2 : index
    %c0_23 = arith.constant 0 : index
    %25 = vector.load %arg8[%24, %c2, %c0_23] : memref<18x18x128xf32, #tpu.memory_space<vmem>>, vector<16x16x128xf32>
    %26 = vector.shape_cast %25 : vector<16x16x128xf32> to vector<256x128xf32>
    %c2_24 = arith.constant 2 : index
    %c0_25 = arith.constant 0 : index
    %c0_26 = arith.constant 0 : index
    %27 = vector.load %arg3[%c2_24, %c0_25, %c0_26] : memref<9x128x128xf32, #tpu.memory_space<vmem>>, vector<1x128x128xf32>
    %28 = vector.shape_cast %27 : vector<1x128x128xf32> to vector<128x128xf32>
    %cst_27 = arith.constant dense<0.000000e+00> : vector<256x128xf32>
    %29 = tpu.matmul %26, %28, %cst_27 {dimension_numbers = #tpu.dot_dimension_numbers<[1], [0], [0], [1], [0, 0, 1, 1], [], []>} : vector<256x128xf32>, vector<128x128xf32>, vector<256x128xf32> -> vector<256x128xf32>
    %30 = arith.addf %22, %29 : vector<256x128xf32>
    %c1_i32 = arith.constant 1 : i32
    %31 = arith.addi %5, %c1_i32 : i32
    %32 = arith.index_cast %31 : i32 to index
    %c0_28 = arith.constant 0 : index
    %c0_29 = arith.constant 0 : index
    %33 = vector.load %arg8[%32, %c0_28, %c0_29] : memref<18x18x128xf32, #tpu.memory_space<vmem>>, vector<16x16x128xf32>
    %34 = vector.shape_cast %33 : vector<16x16x128xf32> to vector<256x128xf32>
    %c3 = arith.constant 3 : index
    %c0_30 = arith.constant 0 : index
    %c0_31 = arith.constant 0 : index
    %35 = vector.load %arg3[%c3, %c0_30, %c0_31] : memref<9x128x128xf32, #tpu.memory_space<vmem>>, vector<1x128x128xf32>
    %36 = vector.shape_cast %35 : vector<1x128x128xf32> to vector<128x128xf32>
    %cst_32 = arith.constant dense<0.000000e+00> : vector<256x128xf32>
    %37 = tpu.matmul %34, %36, %cst_32 {dimension_numbers = #tpu.dot_dimension_numbers<[1], [0], [0], [1], [0, 0, 1, 1], [], []>} : vector<256x128xf32>, vector<128x128xf32>, vector<256x128xf32> -> vector<256x128xf32>
    %38 = arith.addf %30, %37 : vector<256x128xf32>
    %c1_i32_33 = arith.constant 1 : i32
    %39 = arith.addi %5, %c1_i32_33 : i32
    %40 = arith.index_cast %39 : i32 to index
    %c1_34 = arith.constant 1 : index
    %c0_35 = arith.constant 0 : index
    %41 = vector.load %arg8[%40, %c1_34, %c0_35] : memref<18x18x128xf32, #tpu.memory_space<vmem>>, vector<16x16x128xf32>
    %42 = vector.shape_cast %41 : vector<16x16x128xf32> to vector<256x128xf32>
    %c4 = arith.constant 4 : index
    %c0_36 = arith.constant 0 : index
    %c0_37 = arith.constant 0 : index
    %43 = vector.load %arg3[%c4, %c0_36, %c0_37] : memref<9x128x128xf32, #tpu.memory_space<vmem>>, vector<1x128x128xf32>
    %44 = vector.shape_cast %43 : vector<1x128x128xf32> to vector<128x128xf32>
    %cst_38 = arith.constant dense<0.000000e+00> : vector<256x128xf32>
    %45 = tpu.matmul %42, %44, %cst_38 {dimension_numbers = #tpu.dot_dimension_numbers<[1], [0], [0], [1], [0, 0, 1, 1], [], []>} : vector<256x128xf32>, vector<128x128xf32>, vector<256x128xf32> -> vector<256x128xf32>
    %46 = arith.addf %38, %45 : vector<256x128xf32>
    %c1_i32_39 = arith.constant 1 : i32
    %47 = arith.addi %5, %c1_i32_39 : i32
    %48 = arith.index_cast %47 : i32 to index
    %c2_40 = arith.constant 2 : index
    %c0_41 = arith.constant 0 : index
    %49 = vector.load %arg8[%48, %c2_40, %c0_41] : memref<18x18x128xf32, #tpu.memory_space<vmem>>, vector<16x16x128xf32>
    %50 = vector.shape_cast %49 : vector<16x16x128xf32> to vector<256x128xf32>
    %c5 = arith.constant 5 : index
    %c0_42 = arith.constant 0 : index
    %c0_43 = arith.constant 0 : index
    %51 = vector.load %arg3[%c5, %c0_42, %c0_43] : memref<9x128x128xf32, #tpu.memory_space<vmem>>, vector<1x128x128xf32>
    %52 = vector.shape_cast %51 : vector<1x128x128xf32> to vector<128x128xf32>
    %cst_44 = arith.constant dense<0.000000e+00> : vector<256x128xf32>
    %53 = tpu.matmul %50, %52, %cst_44 {dimension_numbers = #tpu.dot_dimension_numbers<[1], [0], [0], [1], [0, 0, 1, 1], [], []>} : vector<256x128xf32>, vector<128x128xf32>, vector<256x128xf32> -> vector<256x128xf32>
    %54 = arith.addf %46, %53 : vector<256x128xf32>
    %c2_i32 = arith.constant 2 : i32
    %55 = arith.addi %5, %c2_i32 : i32
    %56 = arith.index_cast %55 : i32 to index
    %c0_45 = arith.constant 0 : index
    %c0_46 = arith.constant 0 : index
    %57 = vector.load %arg8[%56, %c0_45, %c0_46] : memref<18x18x128xf32, #tpu.memory_space<vmem>>, vector<16x16x128xf32>
    %58 = vector.shape_cast %57 : vector<16x16x128xf32> to vector<256x128xf32>
    %c6 = arith.constant 6 : index
    %c0_47 = arith.constant 0 : index
    %c0_48 = arith.constant 0 : index
    %59 = vector.load %arg3[%c6, %c0_47, %c0_48] : memref<9x128x128xf32, #tpu.memory_space<vmem>>, vector<1x128x128xf32>
    %60 = vector.shape_cast %59 : vector<1x128x128xf32> to vector<128x128xf32>
    %cst_49 = arith.constant dense<0.000000e+00> : vector<256x128xf32>
    %61 = tpu.matmul %58, %60, %cst_49 {dimension_numbers = #tpu.dot_dimension_numbers<[1], [0], [0], [1], [0, 0, 1, 1], [], []>} : vector<256x128xf32>, vector<128x128xf32>, vector<256x128xf32> -> vector<256x128xf32>
    %62 = arith.addf %54, %61 : vector<256x128xf32>
    %c2_i32_50 = arith.constant 2 : i32
    %63 = arith.addi %5, %c2_i32_50 : i32
    %64 = arith.index_cast %63 : i32 to index
    %c1_51 = arith.constant 1 : index
    %c0_52 = arith.constant 0 : index
    %65 = vector.load %arg8[%64, %c1_51, %c0_52] : memref<18x18x128xf32, #tpu.memory_space<vmem>>, vector<16x16x128xf32>
    %66 = vector.shape_cast %65 : vector<16x16x128xf32> to vector<256x128xf32>
    %c7 = arith.constant 7 : index
    %c0_53 = arith.constant 0 : index
    %c0_54 = arith.constant 0 : index
    %67 = vector.load %arg3[%c7, %c0_53, %c0_54] : memref<9x128x128xf32, #tpu.memory_space<vmem>>, vector<1x128x128xf32>
    %68 = vector.shape_cast %67 : vector<1x128x128xf32> to vector<128x128xf32>
    %cst_55 = arith.constant dense<0.000000e+00> : vector<256x128xf32>
    %69 = tpu.matmul %66, %68, %cst_55 {dimension_numbers = #tpu.dot_dimension_numbers<[1], [0], [0], [1], [0, 0, 1, 1], [], []>} : vector<256x128xf32>, vector<128x128xf32>, vector<256x128xf32> -> vector<256x128xf32>
    %70 = arith.addf %62, %69 : vector<256x128xf32>
    %c2_i32_56 = arith.constant 2 : i32
    %71 = arith.addi %5, %c2_i32_56 : i32
    %72 = arith.index_cast %71 : i32 to index
    %c2_57 = arith.constant 2 : index
    %c0_58 = arith.constant 0 : index
    %73 = vector.load %arg8[%72, %c2_57, %c0_58] : memref<18x18x128xf32, #tpu.memory_space<vmem>>, vector<16x16x128xf32>
    %74 = vector.shape_cast %73 : vector<16x16x128xf32> to vector<256x128xf32>
    %c8 = arith.constant 8 : index
    %c0_59 = arith.constant 0 : index
    %c0_60 = arith.constant 0 : index
    %75 = vector.load %arg3[%c8, %c0_59, %c0_60] : memref<9x128x128xf32, #tpu.memory_space<vmem>>, vector<1x128x128xf32>
    %76 = vector.shape_cast %75 : vector<1x128x128xf32> to vector<128x128xf32>
    %cst_61 = arith.constant dense<0.000000e+00> : vector<256x128xf32>
    %77 = tpu.matmul %74, %76, %cst_61 {dimension_numbers = #tpu.dot_dimension_numbers<[1], [0], [0], [1], [0, 0, 1, 1], [], []>} : vector<256x128xf32>, vector<128x128xf32>, vector<256x128xf32> -> vector<256x128xf32>
    %78 = arith.addf %70, %77 : vector<256x128xf32>
    %c0_62 = arith.constant 0 : index
    %c0_63 = arith.constant 0 : index
    %79 = vector.load %arg4[%c0_62, %c0_63] : memref<1x128xf32, #tpu.memory_space<vmem>>, vector<1x128xf32>
    %80 = vector.broadcast %79 : vector<1x128xf32> to vector<256x128xf32>
    %81 = arith.mulf %78, %80 : vector<256x128xf32>
    %c0_64 = arith.constant 0 : index
    %c0_65 = arith.constant 0 : index
    %82 = vector.load %arg5[%c0_64, %c0_65] : memref<1x128xf32, #tpu.memory_space<vmem>>, vector<1x128xf32>
    %83 = vector.broadcast %82 : vector<1x128xf32> to vector<256x128xf32>
    %84 = arith.addf %81, %83 : vector<256x128xf32>
    %85 = vector.shape_cast %84 : vector<256x128xf32> to vector<1x16x16x128xf32>
    %c0_66 = arith.constant 0 : index
    %c0_67 = arith.constant 0 : index
    %c0_68 = arith.constant 0 : index
    %c0_69 = arith.constant 0 : index
    %86 = vector.load %arg6[%c0_66, %c0_67, %c0_68, %c0_69] : memref<1x16x16x128xf32, #tpu.memory_space<vmem>>, vector<1x16x16x128xf32>
    tpu.vector_store %arg6[%c0_66, %c0_67, %c0_68, %c0_69], %85 {strides = array<i32>} : memref<1x16x16x128xf32, #tpu.memory_space<vmem>>, vector<1x16x16x128xf32>,
    %c0_i32_70 = arith.constant 0 : i32
    %87 = arith.cmpi eq, %arg0, %c0_i32_70 : i32
    %c0_i32_71 = arith.constant 0 : i32
    %88 = arith.cmpi eq, %arg1, %c0_i32_71 : i32
    %89 = arith.andi %87, %88 : i1
    %90 = arith.extui %89 : i1 to i32
    %c0_i32_72 = arith.constant 0 : i32
    %91 = arith.cmpi ne, %90, %c0_i32_72 : i32
    scf.if %91 {
      %cst_83 = arith.constant 0.000000e+00 : f32
      %103 = vector.broadcast %cst_83 : f32 to vector<2x128xf32>
      %c0_84 = arith.constant 0 : index
      %c0_85 = arith.constant 0 : index
      %104 = vector.load %arg7[%c0_84, %c0_85] : memref<2x128xf32, #tpu.memory_space<vmem>>, vector<2x128xf32>
      tpu.vector_store %arg7[%c0_84, %c0_85], %103 {strides = array<i32>} : memref<2x128xf32, #tpu.memory_space<vmem>>, vector<2x128xf32>,
    } else {
    }
    %c0_73 = arith.constant 0 : index
    %c0_74 = arith.constant 0 : index
    %92 = vector.load %arg7[%c0_73, %c0_74] : memref<2x128xf32, #tpu.memory_space<vmem>>, vector<1x128xf32>
    %cst_75 = arith.constant dense<0.000000e+00> : vector<128xf32>
    %93 = vector.multi_reduction <add>, %84, %cst_75 [0] : vector<256x128xf32> to vector<128xf32>
    %94 = vector.shape_cast %93 : vector<128xf32> to vector<1x128xf32>
    %95 = arith.addf %92, %94 : vector<1x128xf32>
    %c0_76 = arith.constant 0 : index
    %c0_77 = arith.constant 0 : index
    %96 = vector.load %arg7[%c0_76, %c0_77] : memref<2x128xf32, #tpu.memory_space<vmem>>, vector<1x128xf32>
    tpu.vector_store %arg7[%c0_76, %c0_77], %95 {strides = array<i32>} : memref<2x128xf32, #tpu.memory_space<vmem>>, vector<1x128xf32>,
    %c1_78 = arith.constant 1 : index
    %c0_79 = arith.constant 0 : index
    %97 = vector.load %arg7[%c1_78, %c0_79] : memref<2x128xf32, #tpu.memory_space<vmem>>, vector<1x128xf32>
    %98 = arith.mulf %84, %84 : vector<256x128xf32>
    %cst_80 = arith.constant dense<0.000000e+00> : vector<128xf32>
    %99 = vector.multi_reduction <add>, %98, %cst_80 [0] : vector<256x128xf32> to vector<128xf32>
    %100 = vector.shape_cast %99 : vector<128xf32> to vector<1x128xf32>
    %101 = arith.addf %97, %100 : vector<1x128xf32>
    %c1_81 = arith.constant 1 : index
    %c0_82 = arith.constant 0 : index
    %102 = vector.load %arg7[%c1_81, %c0_82] : memref<2x128xf32, #tpu.memory_space<vmem>>, vector<1x128xf32>
    tpu.vector_store %arg7[%c1_81, %c0_82], %101 {strides = array<i32>} : memref<2x128xf32, #tpu.memory_space<vmem>>, vector<1x128xf32>,
    return
  }
  func.func @transform_0(%arg0: i32, %arg1: i32) -> (i32, i32, i32, i32) {
    %c0_i32 = arith.constant 0 : i32
    %c0_i32_0 = arith.constant 0 : i32
    %c0_i32_1 = arith.constant 0 : i32
    %c0_i32_2 = arith.constant 0 : i32
    return %arg0, %c0_i32, %c0_i32_0, %c0_i32_1 : i32, i32, i32, i32
  }
  func.func @transform_1(%arg0: i32, %arg1: i32) -> (i32, i32, i32) {
    %c0_i32 = arith.constant 0 : i32
    %c0_i32_0 = arith.constant 0 : i32
    %c0_i32_1 = arith.constant 0 : i32
    %c0_i32_2 = arith.constant 0 : i32
    return %c0_i32, %c0_i32_0, %c0_i32_1 : i32, i32, i32
  }
  func.func @transform_2(%arg0: i32, %arg1: i32) -> (i32, i32) {
    %c0_i32 = arith.constant 0 : i32
    %c0_i32_0 = arith.constant 0 : i32
    %c0_i32_1 = arith.constant 0 : i32
    return %c0_i32, %c0_i32_0 : i32, i32
  }
  func.func @transform_3(%arg0: i32, %arg1: i32) -> (i32, i32) {
    %c0_i32 = arith.constant 0 : i32
    %c0_i32_0 = arith.constant 0 : i32
    %c0_i32_1 = arith.constant 0 : i32
    return %c0_i32, %c0_i32_0 : i32, i32
  }
  func.func @transform_4(%arg0: i32, %arg1: i32) -> (i32, i32, i32, i32) {
    %c0_i32 = arith.constant 0 : i32
    %c0_i32_0 = arith.constant 0 : i32
    %c0_i32_1 = arith.constant 0 : i32
    return %arg0, %arg1, %c0_i32, %c0_i32_0 : i32, i32, i32, i32
  }
  func.func @transform_5(%arg0: i32, %arg1: i32) -> (i32, i32) {
    %c0_i32 = arith.constant 0 : i32
    %c0_i32_0 = arith.constant 0 : i32
    %c0_i32_1 = arith.constant 0 : i32
    return %c0_i32, %c0_i32_0 : i32, i32
  }
}

</mosaic_0001>

<llo_original>
// kernel: bottleneck_forward.7
$region0: #{bottleneck_forward.7}
  #allocation0 [shape = 'u32[]', space=smem, size = 0x4, offset = 0x4, fixed_abs, tag = 'smem constant byte address 0x4 - core index']
  #allocation1 [shape = 'u32[144,128]{1,0:T(1,128)}', space=vmem, size = 0x12000, scoped, tag = 'internal scratch']
  %s0 = inlined_call_operand.vmem [shape: f32[2,16,16,128], index: 0, kind: input, shape index: {}]
  %s1 = inlined_call_operand.vmem [shape: f32[2,16,16,128], index: 1, kind: input, shape index: {}]
  %s2 = inlined_call_operand.vmem [shape: f32[1,128], index: 2, kind: input, shape index: {}]
  %s3 = inlined_call_operand.vmem [shape: f32[1,128], index: 3, kind: input, shape index: {}]
  %s4 = inlined_call_operand.vmem [shape: f32[2,16,16,128], index: 4, kind: output, shape index: {}]
  %s5 = sld [smem:[#allocation0]]
  $region49: #{bottleneck_forward.7} parent=0
    _
  %s7 = ssub.s32 1, %s5
  %s8 = scalar_select 0, %s7, %s5
  loop: start=0, step=1, limit=4
  $region2: #{bottleneck_forward.7} parent=0 // loop_pre_header
    _
  $region3: #{bottleneck_forward.7} parent=0 // loop_header
    %s10 = sphi 0, %s14
    %p11 = scmp.ge.s32.totalorder %s10, 4
    %s17 = sphi 0, %s29
    %s18 = sphi 0, %s25
    %s19 = sphi 0, %s17
    %s20 = sphi 0, %s18
    %s21 = sphi 0, %s19
    %s22 = sphi 0, %s20
    %s34 = sphi 0, %s36
    %s37 = sphi 0, %s34
    %s38 = sphi 0, %s37
    %s54 = sphi 0, %s38
    %s62 = sphi 0, %s64
    %s65 = sphi 0, %s62
    %s66 = sphi 0, %s65
    %s82 = sphi 0, %s66
    %s86 = sphi 0, %s86
    %s88 = sphi 0, %s86
    %s89 = sphi 0, %s88
    %s103 = sphi 0, %s89
    %s107 = sphi 0, %s107
    %s109 = sphi 0, %s107
    %s110 = sphi 0, %s109
    %s124 = sphi 0, %s110
    %s132 = sphi 0, %s134
    %s135 = sphi 0, %s132
    %s136 = sphi 0, %s135
    %s152 = sphi 0, %s136
  $region4: #{bottleneck_forward.7} parent=0 // loop_header_branch
    %13 = sbr.rel (%p11) target = $region8
  $region5: #{bottleneck_forward.7} parent=0 // loop_body
    %s15 = ssub.s32 %s10, 1
    %s16 = ssub.s32 %s10, 2
    %s23 = sadd.s32 1, %s18
    %p24 = scmp.ge.s32.totalorder %s23, 1
    %s25 = scalar_select %p24, 0, %s23
    %s26 = sadd.s32 1, %s17
    %s27 = scalar_select %p24, %s26, %s17
    %p28 = scmp.ge.s32.totalorder %s27, 2
    %s29 = scalar_select %p28, 0, %s27
    %s30 = ssub.s32 %s17, %s29
    %s31 = ssub.s32 %s18, %s25
    %s32 = sor.u32 %s30, %s31
    %p33 = scmp.eq.s32.totalorder %s32, 0
    %s35 = sadd.s32 %s34, 1
    %s36 = scalar_select %p33, %s34, %s35
    %p39 = pneg %p33
    %p40 = scmp.eq.s32.totalorder %s10, 1
    %p41 = por %p39, %p40
    %p42 = scmp.ne.s32.totalorder %s34, %s37
    %p43 = scmp.eq.s32.totalorder %s10, 0
    %p44 = por %p42, %p43
    %p45 = scmp.ne.s32.totalorder %s34, %s37
    %p46 = scmp.eq.s32.totalorder %s15, 1
    %p47 = por %p45, %p46
    %p48 = scmp.ne.s32.totalorder %s37, %s38
    %p49 = scmp.eq.s32.totalorder %s15, 0
    %p50 = por %p48, %p49
    %p51 = scmp.ne.s32.totalorder %s37, %s38
    %p52 = scmp.eq.s32.totalorder %s16, 1
    %p53 = por %p51, %p52
    %p55 = scmp.ne.s32.totalorder %s38, %s54
    %p56 = scmp.eq.s32.totalorder %s16, 0
    %p57 = por %p55, %p56
    %s58 = ssub.s32 %s17, %s29
    %s59 = ssub.s32 %s18, %s25
    %s60 = sor.u32 %s58, %s59
    %p61 = scmp.eq.s32.totalorder %s60, 0
    %s63 = sadd.s32 %s62, 1
    %s64 = scalar_select %p61, %s62, %s63
    %p67 = pneg %p61
    %p68 = scmp.eq.s32.totalorder %s10, 1
    %p69 = por %p67, %p68
    %p70 = scmp.ne.s32.totalorder %s62, %s65
    %p71 = scmp.eq.s32.totalorder %s10, 0
    %p72 = por %p70, %p71
    %p73 = scmp.ne.s32.totalorder %s62, %s65
    %p74 = scmp.eq.s32.totalorder %s15, 1
    %p75 = por %p73, %p74
    %p76 = scmp.ne.s32.totalorder %s65, %s66
    %p77 = scmp.eq.s32.totalorder %s15, 0
    %p78 = por %p76, %p77
    %p79 = scmp.ne.s32.totalorder %s65, %s66
    %p80 = scmp.eq.s32.totalorder %s16, 1
    %p81 = por %p79, %p80
    %p83 = scmp.ne.s32.totalorder %s66, %s82
    %p84 = scmp.eq.s32.totalorder %s16, 0
    %p85 = por %p83, %p84
    %s87 = sadd.s32 %s86, 1
    %p90 = scmp.eq.s32.totalorder %s10, 1
    %p91 = scmp.ne.s32.totalorder %s86, %s88
    %p92 = scmp.eq.s32.totalorder %s10, 0
    %p93 = por %p91, %p92
    %p94 = scmp.ne.s32.totalorder %s86, %s88
    %p95 = scmp.eq.s32.totalorder %s15, 1
    %p96 = por %p94, %p95
    %p97 = scmp.ne.s32.totalorder %s88, %s89
    %p98 = scmp.eq.s32.totalorder %s15, 0
    %p99 = por %p97, %p98
    %p100 = scmp.ne.s32.totalorder %s88, %s89
    %p101 = scmp.eq.s32.totalorder %s16, 1
    %p102 = por %p100, %p101
    %p104 = scmp.ne.s32.totalorder %s89, %s103
    %p105 = scmp.eq.s32.totalorder %s16, 0
    %p106 = por %p104, %p105
    %s108 = sadd.s32 %s107, 1
    %p111 = scmp.eq.s32.totalorder %s10, 1
    %p112 = scmp.ne.s32.totalorder %s107, %s109
    %p113 = scmp.eq.s32.totalorder %s10, 0
    %p114 = por %p112, %p113
    %p115 = scmp.ne.s32.totalorder %s107, %s109
    %p116 = scmp.eq.s32.totalorder %s15, 1
    %p117 = por %p115, %p116
    %p118 = scmp.ne.s32.totalorder %s109, %s110
    %p119 = scmp.eq.s32.totalorder %s15, 0
    %p120 = por %p118, %p119
    %p121 = scmp.ne.s32.totalorder %s109, %s110
    %p122 = scmp.eq.s32.totalorder %s16, 1
    %p123 = por %p121, %p122
    %p125 = scmp.ne.s32.totalorder %s110, %s124
    %p126 = scmp.eq.s32.totalorder %s16, 0
    %p127 = por %p125, %p126
    %s128 = ssub.s32 %s17, %s29
    %s129 = ssub.s32 %s18, %s25
    %s130 = sor.u32 %s128, %s129
    %p131 = scmp.eq.s32.totalorder %s130, 0
    %s133 = sadd.s32 %s132, 1
    %s134 = scalar_select %p131, %s132, %s133
    %p137 = pneg %p131
    %p138 = scmp.eq.s32.totalorder %s10, 1
    %p139 = por %p137, %p138
    %p140 = scmp.ne.s32.totalorder %s132, %s135
    %p141 = scmp.eq.s32.totalorder %s10, 0
    %p142 = por %p140, %p141
    %p143 = scmp.ne.s32.totalorder %s132, %s135
    %p144 = scmp.eq.s32.totalorder %s15, 1
    %p145 = por %p143, %p144
    %p146 = scmp.ne.s32.totalorder %s135, %s136
    %p147 = scmp.eq.s32.totalorder %s15, 0
    %p148 = por %p146, %p147
    %p149 = scmp.ne.s32.totalorder %s135, %s136
    %p150 = scmp.eq.s32.totalorder %s16, 1
    %p151 = por %p149, %p150
    %p153 = scmp.ne.s32.totalorder %s136, %s152
    %p154 = scmp.eq.s32.totalorder %s16, 0
    %p155 = por %p153, %p154
    %p156 = scmp.le.s32.totalorder 1, %s10
    %p157 = scmp.lt.s32.totalorder %s10, 3
    %p158 = pnand %p156, %p157
    %p159 = pneg %p158
    // Predicated region
    $region9: #{bottleneck_forward.7} parent=5 // pred_check
      _
    $region10: #{bottleneck_forward.7} parent=5 // pred_check_branch
      %161 = sbr.rel (%p158) target = $region12
    $region11: #{bottleneck_forward.7} parent=5 // pred_region
      %s162 = ssub.s32 %s10, 1
      // Predicated region
      $region13: #{bottleneck_forward.7} parent=11 // pred_check
        %p163 = pneg %p99
      $region14: #{bottleneck_forward.7} parent=11 // pred_check_branch
        %165 = sbr.rel (%p163) target = $region16
      $region15: #{bottleneck_forward.7} parent=11 // pred_region
        _
      $region16: #{bottleneck_forward.7} parent=11 // pred_fallthru
        _
      // Predicated region
      $region17: #{bottleneck_forward.7} parent=11 // pred_check
        %p166 = pneg %p120
      $region18: #{bottleneck_forward.7} parent=11 // pred_check_branch
        %168 = sbr.rel (%p166) target = $region20
      $region19: #{bottleneck_forward.7} parent=11 // pred_region
        _
      $region20: #{bottleneck_forward.7} parent=11 // pred_fallthru
        _
    $region12: #{bottleneck_forward.7} parent=5 // pred_fallthru
      _
    %p169 = scmp.lt.s32.totalorder %s10, 2
    // Predicated region
    $region21: #{bottleneck_forward.7} parent=5 // pred_check
      %p170 = pneg %p169
    $region22: #{bottleneck_forward.7} parent=5 // pred_check_branch
      %172 = sbr.rel (%p170) target = $region24
    $region23: #{bottleneck_forward.7} parent=5 // pred_region
      // Predicated region
      $region25: #{bottleneck_forward.7} parent=23 // pred_check
        %p173 = pneg %p44
      $region26: #{bottleneck_forward.7} parent=23 // pred_check_branch
        %175 = sbr.rel (%p173) target = $region28
      $region27: #{bottleneck_forward.7} parent=23 // pred_region
        %s176 = smul.u32 16, %s18
        %p177 = scmp.lt.s32.totalorder %s17, 1
        %s178 = scalar_select %p177, %s17, 1
        %p179 = scmp.lt.s32.totalorder %s176, 15
        %s180 = scalar_select %p179, %s176, 15
        %s181 = smul.addr %s180, 2
        %s182 = smul.addr %s178, 32
        %s183 = sadd.s32 %s181, %s182
        %s184 = smul.addr %s183, 8
        %s185 = scalar_lea.vmem %s0, %s184
        %s186 = smul.u32 16, %s18
      $region28: #{bottleneck_forward.7} parent=23 // pred_fallthru
        _
      // Predicated region
      $region29: #{bottleneck_forward.7} parent=23 // pred_check
        %p187 = pneg %p72
      $region30: #{bottleneck_forward.7} parent=23 // pred_check_branch
        %189 = sbr.rel (%p187) target = $region32
      $region31: #{bottleneck_forward.7} parent=23 // pred_region
        %s190 = smul.u32 16, %s18
        %p191 = scmp.lt.s32.totalorder %s17, 1
        %s192 = scalar_select %p191, %s17, 1
        %p193 = scmp.lt.s32.totalorder %s190, 15
        %s194 = scalar_select %p193, %s190, 15
        %s195 = smul.addr %s194, 2
        %s196 = smul.addr %s192, 32
        %s197 = sadd.s32 %s195, %s196
        %s198 = smul.addr %s197, 8
        %s199 = scalar_lea.vmem %s1, %s198
        %s200 = smul.u32 16, %s18
      $region32: #{bottleneck_forward.7} parent=23 // pred_fallthru
        _
    $region24: #{bottleneck_forward.7} parent=5 // pred_fallthru
      _
    %p201 = scmp.le.s32.totalorder 1, %s10
    %p202 = scmp.lt.s32.totalorder %s10, 3
    %p203 = pnand %p201, %p202
    %p204 = pneg %p203
    // Predicated region
    $region33: #{bottleneck_forward.7} parent=5 // pred_check
      _
    $region34: #{bottleneck_forward.7} parent=5 // pred_check_branch
      %206 = sbr.rel (%p203) target = $region36
    $region35: #{bottleneck_forward.7} parent=5 // pred_region
      %s207 = ssub.s32 %s10, 1
      %s208 = smul.u32 16, %s20
      %p209 = scmp.lt.s32.totalorder %s19, 1
      %s210 = scalar_select %p209, %s19, 1
      %p211 = scmp.lt.s32.totalorder %s208, 15
      %s212 = scalar_select %p211, %s208, 15
      %s213 = smul.addr %s212, 2
      %s214 = smul.addr %s210, 32
      %s215 = sadd.s32 %s213, %s214
      %s216 = smul.addr %s215, 8
      %s217 = scalar_lea.vmem %s0, %s216
      %p218 = pneg %p50
      %p219 = pneg %p47
      %s220 = smul.u32 16, %s20
      %p221 = scmp.lt.s32.totalorder %s19, 1
      %s222 = scalar_select %p221, %s19, 1
      %p223 = scmp.lt.s32.totalorder %s220, 15
      %s224 = scalar_select %p223, %s220, 15
      %s225 = smul.addr %s224, 2
      %s226 = smul.addr %s222, 32
      %s227 = sadd.s32 %s225, %s226
      %s228 = smul.addr %s227, 8
      %s229 = scalar_lea.vmem %s1, %s228
      %p230 = pneg %p78
      %p231 = pneg %p75
      %p232 = pneg %p99
      %p233 = pneg %p96
      %p234 = pneg %p120
      %p235 = pneg %p117
      %p236 = pneg %p148
      %p237 = pneg %p145
      %s238 = smul.u32 16, %s20
      %p239 = scmp.lt.s32.totalorder %s19, 1
      %s240 = scalar_select %p239, %s19, 1
      %p241 = scmp.lt.s32.totalorder %s238, 15
      %s242 = scalar_select %p241, %s238, 15
      %s243 = smul.addr %s242, 2
      %s244 = smul.addr %s240, 32
      %s245 = sadd.s32 %s243, %s244
      %s246 = smul.addr %s245, 8
      %s247 = scalar_lea.vmem %s4, %s246
      %s248 = smul.u32 16, %s20
      %p249 = scmp.lt.s32.totalorder %s19, 1
      %s250 = scalar_select %p249, %s19, 1
      %p251 = scmp.lt.s32.totalorder %s248, 15
      %s252 = scalar_select %p251, %s248, 15
      %s253 = smul.addr %s252, 2
      %s254 = smul.addr %s250, 32
      %s255 = sadd.s32 %s253, %s254
      %s256 = smul.addr %s255, 8
      %s257 = scalar_lea.vmem %s0, %s256
      %s258 = smul.u32 16, %s20
      %s259 = smul.u32 16, %s20
      %p260 = scmp.lt.s32.totalorder %s19, 1
      %s261 = scalar_select %p260, %s19, 1
      %p262 = scmp.lt.s32.totalorder %s259, 15
      %s263 = scalar_select %p262, %s259, 15
      %s264 = smul.addr %s263, 2
      %s265 = smul.addr %s261, 32
      %s266 = sadd.s32 %s264, %s265
      %s267 = smul.addr %s266, 8
      %s268 = scalar_lea.vmem %s1, %s267
      %s269 = smul.u32 16, %s20
      %s270 = smul.u32 16, %s20
      %p271 = scmp.lt.s32.totalorder %s19, 1
      %s272 = scalar_select %p271, %s19, 1
      %p273 = scmp.lt.s32.totalorder %s270, 15
      %s274 = scalar_select %p273, %s270, 15
      %s275 = smul.addr %s274, 2
      %s276 = smul.addr %s272, 32
      %s277 = sadd.s32 %s275, %s276
      %s278 = smul.addr %s277, 8
      %s279 = scalar_lea.vmem %s4, %s278
      %s280 = smul.u32 16, %s20
      %v281 = vld [vmem:[%s2] sm:$0x1]
      %v282 = vld [vmem:[%s3] sm:$0x1]
      %v283 = vld [vmem:[%s257] sm:$0xff]
      %v284 = vld [vmem:[%s257 + $0x8] sm:$0xff]
      %v285 = vld [vmem:[%s257 + $0x10] sm:$0xff]
      %v286 = vld [vmem:[%s257 + $0x18] sm:$0xff]
      %v287 = vld [vmem:[%s257 + $0x20] sm:$0xff]
      %v288 = vld [vmem:[%s257 + $0x28] sm:$0xff]
      %v289 = vld [vmem:[%s257 + $0x30] sm:$0xff]
      %v290 = vld [vmem:[%s257 + $0x38] sm:$0xff]
      %v291 = vld [vmem:[%s257 + $0x40] sm:$0xff]
      %v292 = vld [vmem:[%s257 + $0x48] sm:$0xff]
      %v293 = vld [vmem:[%s257 + $0x50] sm:$0xff]
      %v294 = vld [vmem:[%s257 + $0x58] sm:$0xff]
      %v295 = vld [vmem:[%s257 + $0x60] sm:$0xff]
      %v296 = vld [vmem:[%s257 + $0x68] sm:$0xff]
      %v297 = vld [vmem:[%s257 + $0x70] sm:$0xff]
      %v298 = vld [vmem:[%s257 + $0x78] sm:$0xff]
      %v299 = vld [vmem:[%s257 + $0x80] sm:$0xff]
      %v300 = vld [vmem:[%s257 + $0x88] sm:$0xff]
      %v301 = vld [vmem:[%s257 + $0x90] sm:$0xff]
      %v302 = vld [vmem:[%s257 + $0x98] sm:$0xff]
      %v303 = vld [vmem:[%s257 + $0xa0] sm:$0xff]
      %v304 = vld [vmem:[%s257 + $0xa8] sm:$0xff]
      %v305 = vld [vmem:[%s257 + $0xb0] sm:$0xff]
      %v306 = vld [vmem:[%s257 + $0xb8] sm:$0xff]
      %v307 = vld [vmem:[%s257 + $0xc0] sm:$0xff]
      %v308 = vld [vmem:[%s257 + $0xc8] sm:$0xff]
      %v309 = vld [vmem:[%s257 + $0xd0] sm:$0xff]
      %v310 = vld [vmem:[%s257 + $0xd8] sm:$0xff]
      %v311 = vld [vmem:[%s257 + $0xe0] sm:$0xff]
      %v312 = vld [vmem:[%s257 + $0xe8] sm:$0xff]
      %v313 = vld [vmem:[%s257 + $0xf0] sm:$0xff]
      %v314 = vld [vmem:[%s257 + $0xf8] sm:$0xff]
      %v316 = vlaneseq
      %v317 = vshrl.u32 %v316, 7
      %v318 = vsub.s32 0, %v317
      %v319 = vrot.slane %v281, %v318
      %v321 = vmul.f32 %v283, %v319
      %v322 = vmul.f32 %v284, %v319
      %v323 = vmul.f32 %v285, %v319
      %v324 = vmul.f32 %v286, %v319
      %v325 = vmul.f32 %v287, %v319
      %v326 = vmul.f32 %v288, %v319
      %v327 = vmul.f32 %v289, %v319
      %v328 = vmul.f32 %v290, %v319
      %v329 = vmul.f32 %v291, %v319
      %v330 = vmul.f32 %v292, %v319
      %v331 = vmul.f32 %v293, %v319
      %v332 = vmul.f32 %v294, %v319
      %v333 = vmul.f32 %v295, %v319
      %v334 = vmul.f32 %v296, %v319
      %v335 = vmul.f32 %v297, %v319
      %v336 = vmul.f32 %v298, %v319
      %v337 = vmul.f32 %v299, %v319
      %v338 = vmul.f32 %v300, %v319
      %v339 = vmul.f32 %v301, %v319
      %v340 = vmul.f32 %v302, %v319
      %v341 = vmul.f32 %v303, %v319
      %v342 = vmul.f32 %v304, %v319
      %v343 = vmul.f32 %v305, %v319
      %v344 = vmul.f32 %v306, %v319
      %v345 = vmul.f32 %v307, %v319
      %v346 = vmul.f32 %v308, %v319
      %v347 = vmul.f32 %v309, %v319
      %v348 = vmul.f32 %v310, %v319
      %v349 = vmul.f32 %v311, %v319
      %v350 = vmul.f32 %v312, %v319
      %v351 = vmul.f32 %v313, %v319
      %v352 = vmul.f32 %v314, %v319
      %v354 = vlaneseq
      %v355 = vshrl.u32 %v354, 7
      %v356 = vsub.s32 0, %v355
      %v357 = vrot.slane %v282, %v356
      %v359 = vadd.f32 %v321, %v357
      %v360 = vadd.f32 %v322, %v357
      %v361 = vadd.f32 %v323, %v357
      %v362 = vadd.f32 %v324, %v357
      %v363 = vadd.f32 %v325, %v357
      %v364 = vadd.f32 %v326, %v357
      %v365 = vadd.f32 %v327, %v357
      %v366 = vadd.f32 %v328, %v357
      %v367 = vadd.f32 %v329, %v357
      %v368 = vadd.f32 %v330, %v357
      %v369 = vadd.f32 %v331, %v357
      %v370 = vadd.f32 %v332, %v357
      %v371 = vadd.f32 %v333, %v357
      %v372 = vadd.f32 %v334, %v357
      %v373 = vadd.f32 %v335, %v357
      %v374 = vadd.f32 %v336, %v357
      %v375 = vadd.f32 %v337, %v357
      %v376 = vadd.f32 %v338, %v357
      %v377 = vadd.f32 %v339, %v357
      %v378 = vadd.f32 %v340, %v357
      %v379 = vadd.f32 %v341, %v357
      %v380 = vadd.f32 %v342, %v357
      %v381 = vadd.f32 %v343, %v357
      %v382 = vadd.f32 %v344, %v357
      %v383 = vadd.f32 %v345, %v357
      %v384 = vadd.f32 %v346, %v357
      %v385 = vadd.f32 %v347, %v357
      %v386 = vadd.f32 %v348, %v357
      %v387 = vadd.f32 %v349, %v357
      %v388 = vadd.f32 %v350, %v357
      %v389 = vadd.f32 %v351, %v357
      %v390 = vadd.f32 %v352, %v357
      %v391 = vld [vmem:[%s268] sm:$0xff]
      %v392 = vld [vmem:[%s268 + $0x8] sm:$0xff]
      %v393 = vld [vmem:[%s268 + $0x10] sm:$0xff]
      %v394 = vld [vmem:[%s268 + $0x18] sm:$0xff]
      %v395 = vld [vmem:[%s268 + $0x20] sm:$0xff]
      %v396 = vld [vmem:[%s268 + $0x28] sm:$0xff]
      %v397 = vld [vmem:[%s268 + $0x30] sm:$0xff]
      %v398 = vld [vmem:[%s268 + $0x38] sm:$0xff]
      %v399 = vld [vmem:[%s268 + $0x40] sm:$0xff]
      %v400 = vld [vmem:[%s268 + $0x48] sm:$0xff]
      %v401 = vld [vmem:[%s268 + $0x50] sm:$0xff]
      %v402 = vld [vmem:[%s268 + $0x58] sm:$0xff]
      %v403 = vld [vmem:[%s268 + $0x60] sm:$0xff]
      %v404 = vld [vmem:[%s268 + $0x68] sm:$0xff]
      %v405 = vld [vmem:[%s268 + $0x70] sm:$0xff]
      %v406 = vld [vmem:[%s268 + $0x78] sm:$0xff]
      %v407 = vld [vmem:[%s268 + $0x80] sm:$0xff]
      %v408 = vld [vmem:[%s268 + $0x88] sm:$0xff]
      %v409 = vld [vmem:[%s268 + $0x90] sm:$0xff]
      %v410 = vld [vmem:[%s268 + $0x98] sm:$0xff]
      %v411 = vld [vmem:[%s268 + $0xa0] sm:$0xff]
      %v412 = vld [vmem:[%s268 + $0xa8] sm:$0xff]
      %v413 = vld [vmem:[%s268 + $0xb0] sm:$0xff]
      %v414 = vld [vmem:[%s268 + $0xb8] sm:$0xff]
      %v415 = vld [vmem:[%s268 + $0xc0] sm:$0xff]
      %v416 = vld [vmem:[%s268 + $0xc8] sm:$0xff]
      %v417 = vld [vmem:[%s268 + $0xd0] sm:$0xff]
      %v418 = vld [vmem:[%s268 + $0xd8] sm:$0xff]
      %v419 = vld [vmem:[%s268 + $0xe0] sm:$0xff]
      %v420 = vld [vmem:[%s268 + $0xe8] sm:$0xff]
      %v421 = vld [vmem:[%s268 + $0xf0] sm:$0xff]
      %v422 = vld [vmem:[%s268 + $0xf8] sm:$0xff]
      %v423 = vadd.f32 %v359, %v391
      %v424 = vadd.f32 %v360, %v392
      %v425 = vadd.f32 %v361, %v393
      %v426 = vadd.f32 %v362, %v394
      %v427 = vadd.f32 %v363, %v395
      %v428 = vadd.f32 %v364, %v396
      %v429 = vadd.f32 %v365, %v397
      %v430 = vadd.f32 %v366, %v398
      %v431 = vadd.f32 %v367, %v399
      %v432 = vadd.f32 %v368, %v400
      %v433 = vadd.f32 %v369, %v401
      %v434 = vadd.f32 %v370, %v402
      %v435 = vadd.f32 %v371, %v403
      %v436 = vadd.f32 %v372, %v404
      %v437 = vadd.f32 %v373, %v405
      %v438 = vadd.f32 %v374, %v406
      %v439 = vadd.f32 %v375, %v407
      %v440 = vadd.f32 %v376, %v408
      %v441 = vadd.f32 %v377, %v409
      %v442 = vadd.f32 %v378, %v410
      %v443 = vadd.f32 %v379, %v411
      %v444 = vadd.f32 %v380, %v412
      %v445 = vadd.f32 %v381, %v413
      %v446 = vadd.f32 %v382, %v414
      %v447 = vadd.f32 %v383, %v415
      %v448 = vadd.f32 %v384, %v416
      %v449 = vadd.f32 %v385, %v417
      %v450 = vadd.f32 %v386, %v418
      %v451 = vadd.f32 %v387, %v419
      %v452 = vadd.f32 %v388, %v420
      %v453 = vadd.f32 %v389, %v421
      %v454 = vadd.f32 %v390, %v422
      %v455 = vmax.f32 %v423, 0.0
      %v456 = vmax.f32 %v424, 0.0
      %v457 = vmax.f32 %v425, 0.0
      %v458 = vmax.f32 %v426, 0.0
      %v459 = vmax.f32 %v427, 0.0
      %v460 = vmax.f32 %v428, 0.0
      %v461 = vmax.f32 %v429, 0.0
      %v462 = vmax.f32 %v430, 0.0
      %v463 = vmax.f32 %v431, 0.0
      %v464 = vmax.f32 %v432, 0.0
      %v465 = vmax.f32 %v433, 0.0
      %v466 = vmax.f32 %v434, 0.0
      %v467 = vmax.f32 %v435, 0.0
      %v468 = vmax.f32 %v436, 0.0
      %v469 = vmax.f32 %v437, 0.0
      %v470 = vmax.f32 %v438, 0.0
      %v471 = vmax.f32 %v439, 0.0
      %v472 = vmax.f32 %v440, 0.0
      %v473 = vmax.f32 %v441, 0.0
      %v474 = vmax.f32 %v442, 0.0
      %v475 = vmax.f32 %v443, 0.0
      %v476 = vmax.f32 %v444, 0.0
      %v477 = vmax.f32 %v445, 0.0
      %v478 = vmax.f32 %v446, 0.0
      %v479 = vmax.f32 %v447, 0.0
      %v480 = vmax.f32 %v448, 0.0
      %v481 = vmax.f32 %v449, 0.0
      %v482 = vmax.f32 %v450, 0.0
      %v483 = vmax.f32 %v451, 0.0
      %v484 = vmax.f32 %v452, 0.0
      %v485 = vmax.f32 %v453, 0.0
      %v486 = vmax.f32 %v454, 0.0
      %487 = vst [vmem:[%s279] sm:$0xff] %v455
      %488 = vst [vmem:[%s279 + $0x8] sm:$0xff] %v456
      %489 = vst [vmem:[%s279 + $0x10] sm:$0xff] %v457
      %490 = vst [vmem:[%s279 + $0x18] sm:$0xff] %v458
      %491 = vst [vmem:[%s279 + $0x20] sm:$0xff] %v459
      %492 = vst [vmem:[%s279 + $0x28] sm:$0xff] %v460
      %493 = vst [vmem:[%s279 + $0x30] sm:$0xff] %v461
      %494 = vst [vmem:[%s279 + $0x38] sm:$0xff] %v462
      %495 = vst [vmem:[%s279 + $0x40] sm:$0xff] %v463
      %496 = vst [vmem:[%s279 + $0x48] sm:$0xff] %v464
      %497 = vst [vmem:[%s279 + $0x50] sm:$0xff] %v465
      %498 = vst [vmem:[%s279 + $0x58] sm:$0xff] %v466
      %499 = vst [vmem:[%s279 + $0x60] sm:$0xff] %v467
      %500 = vst [vmem:[%s279 + $0x68] sm:$0xff] %v468
      %501 = vst [vmem:[%s279 + $0x70] sm:$0xff] %v469
      %502 = vst [vmem:[%s279 + $0x78] sm:$0xff] %v470
      %503 = vst [vmem:[%s279 + $0x80] sm:$0xff] %v471
      %504 = vst [vmem:[%s279 + $0x88] sm:$0xff] %v472
      %505 = vst [vmem:[%s279 + $0x90] sm:$0xff] %v473
      %506 = vst [vmem:[%s279 + $0x98] sm:$0xff] %v474
      %507 = vst [vmem:[%s279 + $0xa0] sm:$0xff] %v475
      %508 = vst [vmem:[%s279 + $0xa8] sm:$0xff] %v476
      %509 = vst [vmem:[%s279 + $0xb0] sm:$0xff] %v477
      %510 = vst [vmem:[%s279 + $0xb8] sm:$0xff] %v478
      %511 = vst [vmem:[%s279 + $0xc0] sm:$0xff] %v479
      %512 = vst [vmem:[%s279 + $0xc8] sm:$0xff] %v480
      %513 = vst [vmem:[%s279 + $0xd0] sm:$0xff] %v481
      %514 = vst [vmem:[%s279 + $0xd8] sm:$0xff] %v482
      %515 = vst [vmem:[%s279 + $0xe0] sm:$0xff] %v483
      %516 = vst [vmem:[%s279 + $0xe8] sm:$0xff] %v484
      %517 = vst [vmem:[%s279 + $0xf0] sm:$0xff] %v485
      %518 = vst [vmem:[%s279 + $0xf8] sm:$0xff] %v486
      %s519 = smul.u32 16, %s20
      %p520 = scmp.lt.s32.totalorder %s19, 1
      %s521 = scalar_select %p520, %s19, 1
      %p522 = scmp.lt.s32.totalorder %s519, 15
      %s523 = scalar_select %p522, %s519, 15
      %s524 = smul.addr %s523, 2
      %s525 = smul.addr %s521, 32
      %s526 = sadd.s32 %s524, %s525
      %s527 = smul.addr %s526, 8
      %s528 = scalar_lea.vmem %s4, %s527
      // Predicated region
      $region37: #{bottleneck_forward.7} parent=35 // pred_check
        %p529 = pneg %p145
      $region38: #{bottleneck_forward.7} parent=35 // pred_check_branch
        %531 = sbr.rel (%p529) target = $region40
      $region39: #{bottleneck_forward.7} parent=35 // pred_region
        %s532 = smul.u32 16, %s20
      $region40: #{bottleneck_forward.7} parent=35 // pred_fallthru
        _
    $region36: #{bottleneck_forward.7} parent=5 // pred_fallthru
      _
    %p533 = scmp.le.s32.totalorder 2, %s10
    // Predicated region
    $region41: #{bottleneck_forward.7} parent=5 // pred_check
      %p534 = pneg %p533
    $region42: #{bottleneck_forward.7} parent=5 // pred_check_branch
      %536 = sbr.rel (%p534) target = $region44
    $region43: #{bottleneck_forward.7} parent=5 // pred_region
      %s537 = ssub.s32 %s10, 2
      // Predicated region
      $region45: #{bottleneck_forward.7} parent=43 // pred_check
        %p538 = pneg %p151
      $region46: #{bottleneck_forward.7} parent=43 // pred_check_branch
        %540 = sbr.rel (%p538) target = $region48
      $region47: #{bottleneck_forward.7} parent=43 // pred_region
        %s541 = smul.u32 16, %s22
        %p542 = scmp.lt.s32.totalorder %s21, 1
        %s543 = scalar_select %p542, %s21, 1
        %p544 = scmp.lt.s32.totalorder %s541, 15
        %s545 = scalar_select %p544, %s541, 15
        %s546 = smul.addr %s545, 2
        %s547 = smul.addr %s543, 32
        %s548 = sadd.s32 %s546, %s547
        %s549 = smul.addr %s548, 8
        %s550 = scalar_lea.vmem %s4, %s549
      $region48: #{bottleneck_forward.7} parent=43 // pred_fallthru
        _
    $region44: #{bottleneck_forward.7} parent=5 // pred_fallthru
      _
  $region6: #{bottleneck_forward.7} parent=0 // loop_footer
    %s14 = sadd.s32 1, %s10
  $region7: #{bottleneck_forward.7} parent=0 // loop_footer_branch
    %9 = sbr.rel target = $region3
  $region8: #{bottleneck_forward.7} parent=0 // loop_exit
    _

// kernel: bottleneck_forward.4
$region0: #{bottleneck_forward.4}
  #allocation0 [shape = 'u32[]', space=smem, size = 0x4, offset = 0x4, fixed_abs, tag = 'smem constant byte address 0x4 - core index']
  #allocation1 [shape = 'u32[144,128]{1,0:T(1,128)}', space=vmem, size = 0x12000, scoped, tag = 'internal scratch']
  #allocation2 [shape = 'f32[18,18,128]{2,1,0:T(8,128)}', space=vmem, size = 0x36000, scoped, tag = 'scratch operand']
  %s0 = inlined_call_operand.vmem [shape: f32[2,16,16,128], index: 0, kind: input, shape index: {}]
  %s1 = inlined_call_operand.vmem [shape: f32[9,128,128], index: 1, kind: input, shape index: {}]
  %s2 = inlined_call_operand.vmem [shape: f32[1,128], index: 2, kind: input, shape index: {}]
  %s3 = inlined_call_operand.vmem [shape: f32[1,128], index: 3, kind: input, shape index: {}]
  %s4 = inlined_call_operand.vmem [shape: f32[2,16,16,128], index: 4, kind: output, shape index: {}]
  %s5 = sld [smem:[#allocation0]]
  $region49: #{bottleneck_forward.4} parent=0
    _
  %s7 = ssub.s32 1, %s5
  %s8 = scalar_select 0, %s7, %s5
  loop: start=0, step=1, limit=4
  $region2: #{bottleneck_forward.4} parent=0 // loop_pre_header
    _
  $region3: #{bottleneck_forward.4} parent=0 // loop_header
    %s10 = sphi 0, %s14
    %p11 = scmp.ge.s32.totalorder %s10, 4
    %s17 = sphi 0, %s29
    %s18 = sphi 0, %s25
    %s19 = sphi 0, %s17
    %s20 = sphi 0, %s18
    %s21 = sphi 0, %s19
    %s22 = sphi 0, %s20
    %s32 = sphi 0, %s34
    %s35 = sphi 0, %s32
    %s36 = sphi 0, %s35
    %s52 = sphi 0, %s36
    %s56 = sphi 0, %s56
    %s58 = sphi 0, %s56
    %s59 = sphi 0, %s58
    %s73 = sphi 0, %s59
    %s77 = sphi 0, %s77
    %s79 = sphi 0, %s77
    %s80 = sphi 0, %s79
    %s94 = sphi 0, %s80
    %s98 = sphi 0, %s98
    %s100 = sphi 0, %s98
    %s101 = sphi 0, %s100
    %s115 = sphi 0, %s101
    %s123 = sphi 0, %s125
    %s126 = sphi 0, %s123
    %s127 = sphi 0, %s126
    %s143 = sphi 0, %s127
  $region4: #{bottleneck_forward.4} parent=0 // loop_header_branch
    %13 = sbr.rel (%p11) target = $region8
  $region5: #{bottleneck_forward.4} parent=0 // loop_body
    %s15 = ssub.s32 %s10, 1
    %s16 = ssub.s32 %s10, 2
    %s23 = sadd.s32 1, %s18
    %p24 = scmp.ge.s32.totalorder %s23, 1
    %s25 = scalar_select %p24, 0, %s23
    %s26 = sadd.s32 1, %s17
    %s27 = scalar_select %p24, %s26, %s17
    %p28 = scmp.ge.s32.totalorder %s27, 2
    %s29 = scalar_select %p28, 0, %s27
    %s30 = ssub.s32 %s17, %s29
    %p31 = scmp.eq.s32.totalorder %s30, 0
    %s33 = sadd.s32 %s32, 1
    %s34 = scalar_select %p31, %s32, %s33
    %p37 = pneg %p31
    %p38 = scmp.eq.s32.totalorder %s10, 1
    %p39 = por %p37, %p38
    %p40 = scmp.ne.s32.totalorder %s32, %s35
    %p41 = scmp.eq.s32.totalorder %s10, 0
    %p42 = por %p40, %p41
    %p43 = scmp.ne.s32.totalorder %s32, %s35
    %p44 = scmp.eq.s32.totalorder %s15, 1
    %p45 = por %p43, %p44
    %p46 = scmp.ne.s32.totalorder %s35, %s36
    %p47 = scmp.eq.s32.totalorder %s15, 0
    %p48 = por %p46, %p47
    %p49 = scmp.ne.s32.totalorder %s35, %s36
    %p50 = scmp.eq.s32.totalorder %s16, 1
    %p51 = por %p49, %p50
    %p53 = scmp.ne.s32.totalorder %s36, %s52
    %p54 = scmp.eq.s32.totalorder %s16, 0
    %p55 = por %p53, %p54
    %s57 = sadd.s32 %s56, 1
    %p60 = scmp.eq.s32.totalorder %s10, 1
    %p61 = scmp.ne.s32.totalorder %s56, %s58
    %p62 = scmp.eq.s32.totalorder %s10, 0
    %p63 = por %p61, %p62
    %p64 = scmp.ne.s32.totalorder %s56, %s58
    %p65 = scmp.eq.s32.totalorder %s15, 1
    %p66 = por %p64, %p65
    %p67 = scmp.ne.s32.totalorder %s58, %s59
    %p68 = scmp.eq.s32.totalorder %s15, 0
    %p69 = por %p67, %p68
    %p70 = scmp.ne.s32.totalorder %s58, %s59
    %p71 = scmp.eq.s32.totalorder %s16, 1
    %p72 = por %p70, %p71
    %p74 = scmp.ne.s32.totalorder %s59, %s73
    %p75 = scmp.eq.s32.totalorder %s16, 0
    %p76 = por %p74, %p75
    %s78 = sadd.s32 %s77, 1
    %p81 = scmp.eq.s32.totalorder %s10, 1
    %p82 = scmp.ne.s32.totalorder %s77, %s79
    %p83 = scmp.eq.s32.totalorder %s10, 0
    %p84 = por %p82, %p83
    %p85 = scmp.ne.s32.totalorder %s77, %s79
    %p86 = scmp.eq.s32.totalorder %s15, 1
    %p87 = por %p85, %p86
    %p88 = scmp.ne.s32.totalorder %s79, %s80
    %p89 = scmp.eq.s32.totalorder %s15, 0
    %p90 = por %p88, %p89
    %p91 = scmp.ne.s32.totalorder %s79, %s80
    %p92 = scmp.eq.s32.totalorder %s16, 1
    %p93 = por %p91, %p92
    %p95 = scmp.ne.s32.totalorder %s80, %s94
    %p96 = scmp.eq.s32.totalorder %s16, 0
    %p97 = por %p95, %p96
    %s99 = sadd.s32 %s98, 1
    %p102 = scmp.eq.s32.totalorder %s10, 1
    %p103 = scmp.ne.s32.totalorder %s98, %s100
    %p104 = scmp.eq.s32.totalorder %s10, 0
    %p105 = por %p103, %p104
    %p106 = scmp.ne.s32.totalorder %s98, %s100
    %p107 = scmp.eq.s32.totalorder %s15, 1
    %p108 = por %p106, %p107
    %p109 = scmp.ne.s32.totalorder %s100, %s101
    %p110 = scmp.eq.s32.totalorder %s15, 0
    %p111 = por %p109, %p110
    %p112 = scmp.ne.s32.totalorder %s100, %s101
    %p113 = scmp.eq.s32.totalorder %s16, 1
    %p114 = por %p112, %p113
    %p116 = scmp.ne.s32.totalorder %s101, %s115
    %p117 = scmp.eq.s32.totalorder %s16, 0
    %p118 = por %p116, %p117
    %s119 = ssub.s32 %s17, %s29
    %s120 = ssub.s32 %s18, %s25
    %s121 = sor.u32 %s119, %s120
    %p122 = scmp.eq.s32.totalorder %s121, 0
    %s124 = sadd.s32 %s123, 1
    %s125 = scalar_select %p122, %s123, %s124
    %p128 = pneg %p122
    %p129 = scmp.eq.s32.totalorder %s10, 1
    %p130 = por %p128, %p129
    %p131 = scmp.ne.s32.totalorder %s123, %s126
    %p132 = scmp.eq.s32.totalorder %s10, 0
    %p133 = por %p131, %p132
    %p134 = scmp.ne.s32.totalorder %s123, %s126
    %p135 = scmp.eq.s32.totalorder %s15, 1
    %p136 = por %p134, %p135
    %p137 = scmp.ne.s32.totalorder %s126, %s127
    %p138 = scmp.eq.s32.totalorder %s15, 0
    %p139 = por %p137, %p138
    %p140 = scmp.ne.s32.totalorder %s126, %s127
    %p141 = scmp.eq.s32.totalorder %s16, 1
    %p142 = por %p140, %p141
    %p144 = scmp.ne.s32.totalorder %s127, %s143
    %p145 = scmp.eq.s32.totalorder %s16, 0
    %p146 = por %p144, %p145
    %p147 = scmp.le.s32.totalorder 1, %s10
    %p148 = scmp.lt.s32.totalorder %s10, 3
    %p149 = pnand %p147, %p148
    %p150 = pneg %p149
    // Predicated region
    $region9: #{bottleneck_forward.4} parent=5 // pred_check
      _
    $region10: #{bottleneck_forward.4} parent=5 // pred_check_branch
      %152 = sbr.rel (%p149) target = $region12
    $region11: #{bottleneck_forward.4} parent=5 // pred_region
      %s153 = ssub.s32 %s10, 1
      // Predicated region
      $region13: #{bottleneck_forward.4} parent=11 // pred_check
        %p154 = pneg %p69
      $region14: #{bottleneck_forward.4} parent=11 // pred_check_branch
        %156 = sbr.rel (%p154) target = $region16
      $region15: #{bottleneck_forward.4} parent=11 // pred_region
        _
      $region16: #{bottleneck_forward.4} parent=11 // pred_fallthru
        _
      // Predicated region
      $region17: #{bottleneck_forward.4} parent=11 // pred_check
        %p157 = pneg %p90
      $region18: #{bottleneck_forward.4} parent=11 // pred_check_branch
        %159 = sbr.rel (%p157) target = $region20
      $region19: #{bottleneck_forward.4} parent=11 // pred_region
        _
      $region20: #{bottleneck_forward.4} parent=11 // pred_fallthru
        _
      // Predicated region
      $region21: #{bottleneck_forward.4} parent=11 // pred_check
        %p160 = pneg %p111
      $region22: #{bottleneck_forward.4} parent=11 // pred_check_branch
        %162 = sbr.rel (%p160) target = $region24
      $region23: #{bottleneck_forward.4} parent=11 // pred_region
        _
      $region24: #{bottleneck_forward.4} parent=11 // pred_fallthru
        _
    $region12: #{bottleneck_forward.4} parent=5 // pred_fallthru
      _
    %p163 = scmp.lt.s32.totalorder %s10, 2
    // Predicated region
    $region25: #{bottleneck_forward.4} parent=5 // pred_check
      %p164 = pneg %p163
    $region26: #{bottleneck_forward.4} parent=5 // pred_check_branch
      %166 = sbr.rel (%p164) target = $region28
    $region27: #{bottleneck_forward.4} parent=5 // pred_region
      // Predicated region
      $region29: #{bottleneck_forward.4} parent=27 // pred_check
        %p167 = pneg %p42
      $region30: #{bottleneck_forward.4} parent=27 // pred_check_branch
        %169 = sbr.rel (%p167) target = $region32
      $region31: #{bottleneck_forward.4} parent=27 // pred_region
        %p170 = scmp.lt.s32.totalorder %s17, 1
        %s171 = scalar_select %p170, %s17, 1
        %s172 = smul.addr %s171, 32
        %s173 = smul.addr %s172, 8
        %s174 = scalar_lea.vmem %s0, %s173
      $region32: #{bottleneck_forward.4} parent=27 // pred_fallthru
        _
    $region28: #{bottleneck_forward.4} parent=5 // pred_fallthru
      _
    %p175 = scmp.le.s32.totalorder 1, %s10
    %p176 = scmp.lt.s32.totalorder %s10, 3
    %p177 = pnand %p175, %p176
    %p178 = pneg %p177
    // Predicated region
    $region33: #{bottleneck_forward.4} parent=5 // pred_check
      _
    $region34: #{bottleneck_forward.4} parent=5 // pred_check_branch
      %180 = sbr.rel (%p177) target = $region36
    $region35: #{bottleneck_forward.4} parent=5 // pred_region
      %s181 = ssub.s32 %s10, 1
      %p182 = scmp.lt.s32.totalorder %s19, 1
      %s183 = scalar_select %p182, %s19, 1
      %s184 = smul.addr %s183, 32
      %s185 = smul.addr %s184, 8
      %s186 = scalar_lea.vmem %s0, %s185
      %p187 = pneg %p48
      %p188 = pneg %p45
      %p189 = pneg %p69
      %p190 = pneg %p66
      %p191 = pneg %p90
      %p192 = pneg %p87
      %p193 = pneg %p111
      %p194 = pneg %p108
      %p195 = pneg %p139
      %p196 = pneg %p136
      %s197 = smul.u32 16, %s20
      %p198 = scmp.lt.s32.totalorder %s19, 1
      %s199 = scalar_select %p198, %s19, 1
      %p200 = scmp.lt.s32.totalorder %s197, 15
      %s201 = scalar_select %p200, %s197, 15
      %s202 = smul.addr %s201, 2
      %s203 = smul.addr %s199, 32
      %s204 = sadd.s32 %s202, %s203
      %s205 = smul.addr %s204, 8
      %s206 = scalar_lea.vmem %s4, %s205
      %p207 = scmp.lt.s32.totalorder %s19, 1
      %s208 = scalar_select %p207, %s19, 1
      %s209 = smul.addr %s208, 32
      %s210 = smul.addr %s209, 8
      %s211 = scalar_lea.vmem %s0, %s210
      %s212 = smul.u32 16, %s20
      %p213 = scmp.lt.s32.totalorder %s19, 1
      %s214 = scalar_select %p213, %s19, 1
      %p215 = scmp.lt.s32.totalorder %s212, 15
      %s216 = scalar_select %p215, %s212, 15
      %s217 = smul.addr %s216, 2
      %s218 = smul.addr %s214, 32
      %s219 = sadd.s32 %s217, %s218
      %s220 = smul.addr %s219, 8
      %s221 = scalar_lea.vmem %s4, %s220
      %s222 = smul.u32 16, %s20
      %223 = vst [vmem:[#allocation2] sm:$0xff] 0.0
      %224 = vst [vmem:[#allocation2 + $0x8] sm:$0xff] 0.0
      %225 = vst [vmem:[#allocation2 + $0x10] sm:$0x3] 0.0
      %226 = vst [vmem:[#allocation2 + $0x18] sm:$0xff] 0.0
      %227 = vst [vmem:[#allocation2 + $0x20] sm:$0xff] 0.0
      %228 = vst [vmem:[#allocation2 + $0x28] sm:$0x3] 0.0
      %229 = vst [vmem:[#allocation2 + $0x30] sm:$0xff] 0.0
      %230 = vst [vmem:[#allocation2 + $0x38] sm:$0xff] 0.0
      %231 = vst [vmem:[#allocation2 + $0x40] sm:$0x3] 0.0
      %232 = vst [vmem:[#allocation2 + $0x48] sm:$0xff] 0.0
      %233 = vst [vmem:[#allocation2 + $0x50] sm:$0xff] 0.0
      %234 = vst [vmem:[#allocation2 + $0x58] sm:$0x3] 0.0
      %235 = vst [vmem:[#allocation2 + $0x60] sm:$0xff] 0.0
      %236 = vst [vmem:[#allocation2 + $0x68] sm:$0xff] 0.0
      %237 = vst [vmem:[#allocation2 + $0x70] sm:$0x3] 0.0
      %238 = vst [vmem:[#allocation2 + $0x78] sm:$0xff] 0.0
      %239 = vst [vmem:[#allocation2 + $0x80] sm:$0xff] 0.0
      %240 = vst [vmem:[#allocation2 + $0x88] sm:$0x3] 0.0
      %241 = vst [vmem:[#allocation2 + $0x90] sm:$0xff] 0.0
      %242 = vst [vmem:[#allocation2 + $0x98] sm:$0xff] 0.0
      %243 = vst [vmem:[#allocation2 + $0xa0] sm:$0x3] 0.0
      %244 = vst [vmem:[#allocation2 + $0xa8] sm:$0xff] 0.0
      %245 = vst [vmem:[#allocation2 + $0xb0] sm:$0xff] 0.0
      %246 = vst [vmem:[#allocation2 + $0xb8] sm:$0x3] 0.0
      %247 = vst [vmem:[#allocation2 + $0xc0] sm:$0xff] 0.0
      %248 = vst [vmem:[#allocation2 + $0xc8] sm:$0xff] 0.0
      %249 = vst [vmem:[#allocation2 + $0xd0] sm:$0x3] 0.0
      %250 = vst [vmem:[#allocation2 + $0xd8] sm:$0xff] 0.0
      %251 = vst [vmem:[#allocation2 + $0xe0] sm:$0xff] 0.0
      %252 = vst [vmem:[#allocation2 + $0xe8] sm:$0x3] 0.0
      %253 = vst [vmem:[#allocation2 + $0xf0] sm:$0xff] 0.0
      %254 = vst [vmem:[#allocation2 + $0xf8] sm:$0xff] 0.0
      %255 = vst [vmem:[#allocation2 + $0x100] sm:$0x3] 0.0
      %256 = vst [vmem:[#allocation2 + $0x108] sm:$0xff] 0.0
      %257 = vst [vmem:[#allocation2 + $0x110] sm:$0xff] 0.0
      %258 = vst [vmem:[#allocation2 + $0x118] sm:$0x3] 0.0
      %259 = vst [vmem:[#allocation2 + $0x120] sm:$0xff] 0.0
      %260 = vst [vmem:[#allocation2 + $0x128] sm:$0xff] 0.0
      %261 = vst [vmem:[#allocation2 + $0x130] sm:$0x3] 0.0
      %262 = vst [vmem:[#allocation2 + $0x138] sm:$0xff] 0.0
      %263 = vst [vmem:[#allocation2 + $0x140] sm:$0xff] 0.0
      %264 = vst [vmem:[#allocation2 + $0x148] sm:$0x3] 0.0
      %265 = vst [vmem:[#allocation2 + $0x150] sm:$0xff] 0.0
      %266 = vst [vmem:[#allocation2 + $0x158] sm:$0xff] 0.0
      %267 = vst [vmem:[#allocation2 + $0x160] sm:$0x3] 0.0
      %268 = vst [vmem:[#allocation2 + $0x168] sm:$0xff] 0.0
      %269 = vst [vmem:[#allocation2 + $0x170] sm:$0xff] 0.0
      %270 = vst [vmem:[#allocation2 + $0x178] sm:$0x3] 0.0
      %271 = vst [vmem:[#allocation2 + $0x180] sm:$0xff] 0.0
      %272 = vst [vmem:[#allocation2 + $0x188] sm:$0xff] 0.0
      %273 = vst [vmem:[#allocation2 + $0x190] sm:$0x3] 0.0
      %274 = vst [vmem:[#allocation2 + $0x198] sm:$0xff] 0.0
      %275 = vst [vmem:[#allocation2 + $0x1a0] sm:$0xff] 0.0
      %276 = vst [vmem:[#allocation2 + $0x1a8] sm:$0x3] 0.0
      %v277 = vld [vmem:[%s211] sm:$0xff]
      %v278 = vld [vmem:[%s211 + $0x8] sm:$0xff]
      %v279 = vld [vmem:[%s211 + $0x10] sm:$0xff]
      %v280 = vld [vmem:[%s211 + $0x18] sm:$0xff]
      %v281 = vld [vmem:[%s211 + $0x20] sm:$0xff]
      %v282 = vld [vmem:[%s211 + $0x28] sm:$0xff]
      %v283 = vld [vmem:[%s211 + $0x30] sm:$0xff]
      %v284 = vld [vmem:[%s211 + $0x38] sm:$0xff]
      %v285 = vld [vmem:[%s211 + $0x40] sm:$0xff]
      %v286 = vld [vmem:[%s211 + $0x48] sm:$0xff]
      %v287 = vld [vmem:[%s211 + $0x50] sm:$0xff]
      %v288 = vld [vmem:[%s211 + $0x58] sm:$0xff]
      %v289 = vld [vmem:[%s211 + $0x60] sm:$0xff]
      %v290 = vld [vmem:[%s211 + $0x68] sm:$0xff]
      %v291 = vld [vmem:[%s211 + $0x70] sm:$0xff]
      %v292 = vld [vmem:[%s211 + $0x78] sm:$0xff]
      %v293 = vld [vmem:[%s211 + $0x80] sm:$0xff]
      %v294 = vld [vmem:[%s211 + $0x88] sm:$0xff]
      %v295 = vld [vmem:[%s211 + $0x90] sm:$0xff]
      %v296 = vld [vmem:[%s211 + $0x98] sm:$0xff]
      %v297 = vld [vmem:[%s211 + $0xa0] sm:$0xff]
      %v298 = vld [vmem:[%s211 + $0xa8] sm:$0xff]
      %v299 = vld [vmem:[%s211 + $0xb0] sm:$0xff]
      %v300 = vld [vmem:[%s211 + $0xb8] sm:$0xff]
      %v301 = vld [vmem:[%s211 + $0xc0] sm:$0xff]
      %v302 = vld [vmem:[%s211 + $0xc8] sm:$0xff]
      %v303 = vld [vmem:[%s211 + $0xd0] sm:$0xff]
      %v304 = vld [vmem:[%s211 + $0xd8] sm:$0xff]
      %v305 = vld [vmem:[%s211 + $0xe0] sm:$0xff]
      %v306 = vld [vmem:[%s211 + $0xe8] sm:$0xff]
      %v307 = vld [vmem:[%s211 + $0xf0] sm:$0xff]
      %v308 = vld [vmem:[%s211 + $0xf8] sm:$0xff]
      %s309 = scalar_lea.vmem [#allocation2], 24
      %310 = vst [vmem:[%s309 + $0x1] sm:$0xff] %v277
      %311 = vst [vmem:[%s309 + $0x9] sm:$0xff] %v278
      %312 = vst [vmem:[%s309 + $0x19] sm:$0xff] %v279
      %313 = vst [vmem:[%s309 + $0x21] sm:$0xff] %v280
      %314 = vst [vmem:[%s309 + $0x31] sm:$0xff] %v281
      %315 = vst [vmem:[%s309 + $0x39] sm:$0xff] %v282
      %316 = vst [vmem:[%s309 + $0x49] sm:$0xff] %v283
      %317 = vst [vmem:[%s309 + $0x51] sm:$0xff] %v284
      %318 = vst [vmem:[%s309 + $0x61] sm:$0xff] %v285
      %319 = vst [vmem:[%s309 + $0x69] sm:$0xff] %v286
      %320 = vst [vmem:[%s309 + $0x79] sm:$0xff] %v287
      %321 = vst [vmem:[%s309 + $0x81] sm:$0xff] %v288
      %322 = vst [vmem:[%s309 + $0x91] sm:$0xff] %v289
      %323 = vst [vmem:[%s309 + $0x99] sm:$0xff] %v290
      %324 = vst [vmem:[%s309 + $0xa9] sm:$0xff] %v291
      %325 = vst [vmem:[%s309 + $0xb1] sm:$0xff] %v292
      %326 = vst [vmem:[%s309 + $0xc1] sm:$0xff] %v293
      %327 = vst [vmem:[%s309 + $0xc9] sm:$0xff] %v294
      %328 = vst [vmem:[%s309 + $0xd9] sm:$0xff] %v295
      %329 = vst [vmem:[%s309 + $0xe1] sm:$0xff] %v296
      %330 = vst [vmem:[%s309 + $0xf1] sm:$0xff] %v297
      %331 = vst [vmem:[%s309 + $0xf9] sm:$0xff] %v298
      %332 = vst [vmem:[%s309 + $0x109] sm:$0xff] %v299
      %333 = vst [vmem:[%s309 + $0x111] sm:$0xff] %v300
      %334 = vst [vmem:[%s309 + $0x121] sm:$0xff] %v301
      %335 = vst [vmem:[%s309 + $0x129] sm:$0xff] %v302
      %336 = vst [vmem:[%s309 + $0x139] sm:$0xff] %v303
      %337 = vst [vmem:[%s309 + $0x141] sm:$0xff] %v304
      %338 = vst [vmem:[%s309 + $0x151] sm:$0xff] %v305
      %339 = vst [vmem:[%s309 + $0x159] sm:$0xff] %v306
      %340 = vst [vmem:[%s309 + $0x169] sm:$0xff] %v307
      %341 = vst [vmem:[%s309 + $0x171] sm:$0xff] %v308
      %s342 = smul.u32 %s20, 16
      %s343 = smul.u32 %s342, 24
      %s344 = scalar_lea.vmem [#allocation2], %s343
      %v345 = vld [vmem:[%s344] sm:$0xff]
      %v346 = vld [vmem:[%s344 + $0x8] sm:$0xff]
      %v347 = vld [vmem:[%s344 + $0x18] sm:$0xff]
      %v348 = vld [vmem:[%s344 + $0x20] sm:$0xff]
      %v349 = vld [vmem:[%s344 + $0x30] sm:$0xff]
      %v350 = vld [vmem:[%s344 + $0x38] sm:$0xff]
      %v351 = vld [vmem:[%s344 + $0x48] sm:$0xff]
      %v352 = vld [vmem:[%s344 + $0x50] sm:$0xff]
      %v353 = vld [vmem:[%s344 + $0x60] sm:$0xff]
      %v354 = vld [vmem:[%s344 + $0x68] sm:$0xff]
      %v355 = vld [vmem:[%s344 + $0x78] sm:$0xff]
      %v356 = vld [vmem:[%s344 + $0x80] sm:$0xff]
      %v357 = vld [vmem:[%s344 + $0x90] sm:$0xff]
      %v358 = vld [vmem:[%s344 + $0x98] sm:$0xff]
      %v359 = vld [vmem:[%s344 + $0xa8] sm:$0xff]
      %v360 = vld [vmem:[%s344 + $0xb0] sm:$0xff]
      %v361 = vld [vmem:[%s344 + $0xc0] sm:$0xff]
      %v362 = vld [vmem:[%s344 + $0xc8] sm:$0xff]
      %v363 = vld [vmem:[%s344 + $0xd8] sm:$0xff]
      %v364 = vld [vmem:[%s344 + $0xe0] sm:$0xff]
      %v365 = vld [vmem:[%s344 + $0xf0] sm:$0xff]
      %v366 = vld [vmem:[%s344 + $0xf8] sm:$0xff]
      %v367 = vld [vmem:[%s344 + $0x108] sm:$0xff]
      %v368 = vld [vmem:[%s344 + $0x110] sm:$0xff]
      %v369 = vld [vmem:[%s344 + $0x120] sm:$0xff]
      %v370 = vld [vmem:[%s344 + $0x128] sm:$0xff]
      %v371 = vld [vmem:[%s344 + $0x138] sm:$0xff]
      %v372 = vld [vmem:[%s344 + $0x140] sm:$0xff]
      %v373 = vld [vmem:[%s344 + $0x150] sm:$0xff]
      %v374 = vld [vmem:[%s344 + $0x158] sm:$0xff]
      %v375 = vld [vmem:[%s344 + $0x168] sm:$0xff]
      %v376 = vld [vmem:[%s344 + $0x170] sm:$0xff]
      %v377 = vld [vmem:[%s1] sm:$0xff]
      %v378 = vld [vmem:[%s1 + $0x8] sm:$0xff]
      %v379 = vld [vmem:[%s1 + $0x10] sm:$0xff]
      %v380 = vld [vmem:[%s1 + $0x18] sm:$0xff]
      %v381 = vld [vmem:[%s1 + $0x20] sm:$0xff]
      %v382 = vld [vmem:[%s1 + $0x28] sm:$0xff]
      %v383 = vld [vmem:[%s1 + $0x30] sm:$0xff]
      %v384 = vld [vmem:[%s1 + $0x38] sm:$0xff]
      %v385 = vld [vmem:[%s1 + $0x40] sm:$0xff]
      %v386 = vld [vmem:[%s1 + $0x48] sm:$0xff]
      %v387 = vld [vmem:[%s1 + $0x50] sm:$0xff]
      %v388 = vld [vmem:[%s1 + $0x58] sm:$0xff]
      %v389 = vld [vmem:[%s1 + $0x60] sm:$0xff]
      %v390 = vld [vmem:[%s1 + $0x68] sm:$0xff]
      %v391 = vld [vmem:[%s1 + $0x70] sm:$0xff]
      %v392 = vld [vmem:[%s1 + $0x78] sm:$0xff]
      %v393 = vld [vmem:[%s344 + $0x1] sm:$0xff]
      %v394 = vld [vmem:[%s344 + $0x9] sm:$0xff]
      %v395 = vld [vmem:[%s344 + $0x19] sm:$0xff]
      %v396 = vld [vmem:[%s344 + $0x21] sm:$0xff]
      %v397 = vld [vmem:[%s344 + $0x31] sm:$0xff]
      %v398 = vld [vmem:[%s344 + $0x39] sm:$0xff]
      %v399 = vld [vmem:[%s344 + $0x49] sm:$0xff]
      %v400 = vld [vmem:[%s344 + $0x51] sm:$0xff]
      %v401 = vld [vmem:[%s344 + $0x61] sm:$0xff]
      %v402 = vld [vmem:[%s344 + $0x69] sm:$0xff]
      %v403 = vld [vmem:[%s344 + $0x79] sm:$0xff]
      %v404 = vld [vmem:[%s344 + $0x81] sm:$0xff]
      %v405 = vld [vmem:[%s344 + $0x91] sm:$0xff]
      %v406 = vld [vmem:[%s344 + $0x99] sm:$0xff]
      %v407 = vld [vmem:[%s344 + $0xa9] sm:$0xff]
      %v408 = vld [vmem:[%s344 + $0xb1] sm:$0xff]
      %v409 = vld [vmem:[%s344 + $0xc1] sm:$0xff]
      %v410 = vld [vmem:[%s344 + $0xc9] sm:$0xff]
      %v411 = vld [vmem:[%s344 + $0xd9] sm:$0xff]
      %v412 = vld [vmem:[%s344 + $0xe1] sm:$0xff]
      %v413 = vld [vmem:[%s344 + $0xf1] sm:$0xff]
      %v414 = vld [vmem:[%s344 + $0xf9] sm:$0xff]
      %v415 = vld [vmem:[%s344 + $0x109] sm:$0xff]
      %v416 = vld [vmem:[%s344 + $0x111] sm:$0xff]
      %v417 = vld [vmem:[%s344 + $0x121] sm:$0xff]
      %v418 = vld [vmem:[%s344 + $0x129] sm:$0xff]
      %v419 = vld [vmem:[%s344 + $0x139] sm:$0xff]
      %v420 = vld [vmem:[%s344 + $0x141] sm:$0xff]
      %v421 = vld [vmem:[%s344 + $0x151] sm:$0xff]
      %v422 = vld [vmem:[%s344 + $0x159] sm:$0xff]
      %v423 = vld [vmem:[%s344 + $0x169] sm:$0xff]
      %v424 = vld [vmem:[%s344 + $0x171] sm:$0xff]
      %s425 = scalar_lea.vmem %s1, 128
      %v426 = vld [vmem:[%s425] sm:$0xff]
      %v427 = vld [vmem:[%s425 + $0x8] sm:$0xff]
      %v428 = vld [vmem:[%s425 + $0x10] sm:$0xff]
      %v429 = vld [vmem:[%s425 + $0x18] sm:$0xff]
      %v430 = vld [vmem:[%s425 + $0x20] sm:$0xff]
      %v431 = vld [vmem:[%s425 + $0x28] sm:$0xff]
      %v432 = vld [vmem:[%s425 + $0x30] sm:$0xff]
      %v433 = vld [vmem:[%s425 + $0x38] sm:$0xff]
      %v434 = vld [vmem:[%s425 + $0x40] sm:$0xff]
      %v435 = vld [vmem:[%s425 + $0x48] sm:$0xff]
      %v436 = vld [vmem:[%s425 + $0x50] sm:$0xff]
      %v437 = vld [vmem:[%s425 + $0x58] sm:$0xff]
      %v438 = vld [vmem:[%s425 + $0x60] sm:$0xff]
      %v439 = vld [vmem:[%s425 + $0x68] sm:$0xff]
      %v440 = vld [vmem:[%s425 + $0x70] sm:$0xff]
      %v441 = vld [vmem:[%s425 + $0x78] sm:$0xff]
      %442 = vmatprep.subr.mxu0 0.0
      %443 = vmatpush1.msra.mxu0 %v441
      %444 = vmatprep.subr.mxu0 0.0
      %445 = vmatpush1.msra.mxu0 %v440
      %446 = vmatprep.subr.mxu0 0.0
      %447 = vmatpush1.msra.mxu0 %v439
      %448 = vmatprep.subr.mxu0 0.0
      %449 = vmatpush1.msra.mxu0 %v438
      %450 = vmatprep.subr.mxu0 0.0
      %451 = vmatpush1.msra.mxu0 %v437
      %452 = vmatprep.subr.mxu0 0.0
      %453 = vmatpush1.msra.mxu0 %v436
      %454 = vmatprep.subr.mxu0 0.0
      %455 = vmatpush1.msra.mxu0 %v435
      %456 = vmatprep.subr.mxu0 0.0
      %457 = vmatpush1.msra.mxu0 %v434
      %458 = vmatprep.subr.mxu0 0.0
      %459 = vmatpush1.msra.mxu0 %v433
      %460 = vmatprep.subr.mxu0 0.0
      %461 = vmatpush1.msra.mxu0 %v432
      %462 = vmatprep.subr.mxu0 0.0
      %463 = vmatpush1.msra.mxu0 %v431
      %464 = vmatprep.subr.mxu0 0.0
      %465 = vmatpush1.msra.mxu0 %v430
      %466 = vmatprep.subr.mxu0 0.0
      %467 = vmatpush1.msra.mxu0 %v429
      %468 = vmatprep.subr.mxu0 0.0
      %469 = vmatpush1.msra.mxu0 %v428
      %470 = vmatprep.subr.mxu0 0.0
      %471 = vmatpush1.msra.mxu0 %v427
      %472 = vmatprep.subr.mxu0 0.0
      %473 = vmatpush1.msra.mxu0 %v426
      %474 = vmatprep.subr.mxu0 0.0
      %475 = vmatpush2.msra.mxu0 0.0
      %476 = vmatprep.subr.mxu0 0.0
      %477 = vmatpush2.msra.mxu0 0.0
      %478 = vmatprep.subr.mxu0 0.0
      %479 = vmatpush2.msra.mxu0 0.0
      %480 = vmatprep.subr.mxu0 0.0
      %481 = vmatpush2.msra.mxu0 0.0
      %482 = vmatprep.subr.mxu0 0.0
      %483 = vmatpush2.msra.mxu0 0.0
      %484 = vmatprep.subr.mxu0 0.0
      %485 = vmatpush2.msra.mxu0 0.0
      %486 = vmatprep.subr.mxu0 0.0
      %487 = vmatpush2.msra.mxu0 0.0
      %488 = vmatprep.subr.mxu0 0.0
      %489 = vmatpush2.msra.mxu0 0.0
      %490 = vmatprep.subr.mxu0 0.0
      %491 = vmatpush2.msra.mxu0 0.0
      %492 = vmatprep.subr.mxu0 0.0
      %493 = vmatpush2.msra.mxu0 0.0
      %494 = vmatprep.subr.mxu0 0.0
      %495 = vmatpush2.msra.mxu0 0.0
      %496 = vmatprep.subr.mxu0 0.0
      %497 = vmatpush2.msra.mxu0 0.0
      %498 = vmatprep.subr.mxu0 0.0
      %499 = vmatpush2.msra.mxu0 0.0
      %500 = vmatprep.subr.mxu0 0.0
      %501 = vmatpush2.msra.mxu0 0.0
      %502 = vmatprep.subr.mxu0 0.0
      %503 = vmatpush2.msra.mxu0 0.0
      %504 = vmatprep.subr.mxu0 0.0
      %505 = vmatpush2.msra.mxu0 0.0
      %506 = vmatprep.mubr.f32.mxu0 0.0
      %507 = vmatmul.mubr.f32.gmra.mxu0 %v393
      %v508 = vpop.f32.mrf.mxu0
      %v509 = vadd.f32 0.0, %v508
      %v510 = vpop.f32.mrf.mxu0
      %511 = vmatprep.mubr.f32.mxu0 0.0
      %512 = vmatmul.mubr.f32.gmra.mxu0 %v394
      %v513 = vpop.f32.mrf.mxu0
      %v514 = vadd.f32 0.0, %v513
      %v515 = vpop.f32.mrf.mxu0
      %516 = vmatprep.mubr.f32.mxu0 0.0
      %517 = vmatmul.mubr.f32.gmra.mxu0 %v395
      %v518 = vpop.f32.mrf.mxu0
      %v519 = vadd.f32 0.0, %v518
      %v520 = vpop.f32.mrf.mxu0
      %521 = vmatprep.mubr.f32.mxu0 0.0
      %522 = vmatmul.mubr.f32.gmra.mxu0 %v396
      %v523 = vpop.f32.mrf.mxu0
      %v524 = vadd.f32 0.0, %v523
      %v525 = vpop.f32.mrf.mxu0
      %526 = vmatprep.mubr.f32.mxu0 0.0
      %527 = vmatmul.mubr.f32.gmra.mxu0 %v397
      %v528 = vpop.f32.mrf.mxu0
      %v529 = vadd.f32 0.0, %v528
      %v530 = vpop.f32.mrf.mxu0
      %531 = vmatprep.mubr.f32.mxu0 0.0
      %532 = vmatmul.mubr.f32.gmra.mxu0 %v398
      %v533 = vpop.f32.mrf.mxu0
      %v534 = vadd.f32 0.0, %v533
      %v535 = vpop.f32.mrf.mxu0
      %536 = vmatprep.mubr.f32.mxu0 0.0
      %537 = vmatmul.mubr.f32.gmra.mxu0 %v399
      %v538 = vpop.f32.mrf.mxu0
      %v539 = vadd.f32 0.0, %v538
      %v540 = vpop.f32.mrf.mxu0
      %541 = vmatprep.mubr.f32.mxu0 0.0
      %542 = vmatmul.mubr.f32.gmra.mxu0 %v400
      %v543 = vpop.f32.mrf.mxu0
      %v544 = vadd.f32 0.0, %v543
      %v545 = vpop.f32.mrf.mxu0
      %546 = vmatprep.mubr.f32.mxu0 0.0
      %547 = vmatmul.mubr.f32.gmra.mxu0 %v401
      %v548 = vpop.f32.mrf.mxu0
      %v549 = vadd.f32 0.0, %v548
      %v550 = vpop.f32.mrf.mxu0
      %551 = vmatprep.mubr.f32.mxu0 0.0
      %552 = vmatmul.mubr.f32.gmra.mxu0 %v402
      %v553 = vpop.f32.mrf.mxu0
      %v554 = vadd.f32 0.0, %v553
      %v555 = vpop.f32.mrf.mxu0
      %556 = vmatprep.mubr.f32.mxu0 0.0
      %557 = vmatmul.mubr.f32.gmra.mxu0 %v403
      %v558 = vpop.f32.mrf.mxu0
      %v559 = vadd.f32 0.0, %v558
      %v560 = vpop.f32.mrf.mxu0
      %561 = vmatprep.mubr.f32.mxu0 0.0
      %562 = vmatmul.mubr.f32.gmra.mxu0 %v404
      %v563 = vpop.f32.mrf.mxu0
      %v564 = vadd.f32 0.0, %v563
      %v565 = vpop.f32.mrf.mxu0
      %566 = vmatprep.mubr.f32.mxu0 0.0
      %567 = vmatmul.mubr.f32.gmra.mxu0 %v405
      %v568 = vpop.f32.mrf.mxu0
      %v569 = vadd.f32 0.0, %v568
      %v570 = vpop.f32.mrf.mxu0
      %571 = vmatprep.mubr.f32.mxu0 0.0
      %572 = vmatmul.mubr.f32.gmra.mxu0 %v406
      %v573 = vpop.f32.mrf.mxu0
      %v574 = vadd.f32 0.0, %v573
      %v575 = vpop.f32.mrf.mxu0
      %576 = vmatprep.mubr.f32.mxu0 0.0
      %577 = vmatmul.mubr.f32.gmra.mxu0 %v407
      %v578 = vpop.f32.mrf.mxu0
      %v579 = vadd.f32 0.0, %v578
      %v580 = vpop.f32.mrf.mxu0
      %581 = vmatprep.mubr.f32.mxu0 0.0
      %582 = vmatmul.mubr.f32.gmra.mxu0 %v408
      %v583 = vpop.f32.mrf.mxu0
      %v584 = vadd.f32 0.0, %v583
      %v585 = vpop.f32.mrf.mxu0
      %586 = vmatprep.mubr.f32.mxu0 0.0
      %587 = vmatmul.mubr.f32.gmra.mxu0 %v409
      %v588 = vpop.f32.mrf.mxu0
      %v589 = vadd.f32 0.0, %v588
      %v590 = vpop.f32.mrf.mxu0
      %591 = vmatprep.mubr.f32.mxu0 0.0
      %592 = vmatmul.mubr.f32.gmra.mxu0 %v410
      %v593 = vpop.f32.mrf.mxu0
      %v594 = vadd.f32 0.0, %v593
      %v595 = vpop.f32.mrf.mxu0
      %596 = vmatprep.mubr.f32.mxu0 0.0
      %597 = vmatmul.mubr.f32.gmra.mxu0 %v411
      %v598 = vpop.f32.mrf.mxu0
      %v599 = vadd.f32 0.0, %v598
      %v600 = vpop.f32.mrf.mxu0
      %601 = vmatprep.mubr.f32.mxu0 0.0
      %602 = vmatmul.mubr.f32.gmra.mxu0 %v412
      %v603 = vpop.f32.mrf.mxu0
      %v604 = vadd.f32 0.0, %v603
      %v605 = vpop.f32.mrf.mxu0
      %606 = vmatprep.mubr.f32.mxu0 0.0
      %607 = vmatmul.mubr.f32.gmra.mxu0 %v413
      %v608 = vpop.f32.mrf.mxu0
      %v609 = vadd.f32 0.0, %v608
      %v610 = vpop.f32.mrf.mxu0
      %611 = vmatprep.mubr.f32.mxu0 0.0
      %612 = vmatmul.mubr.f32.gmra.mxu0 %v414
      %v613 = vpop.f32.mrf.mxu0
      %v614 = vadd.f32 0.0, %v613
      %v615 = vpop.f32.mrf.mxu0
      %616 = vmatprep.mubr.f32.mxu0 0.0
      %617 = vmatmul.mubr.f32.gmra.mxu0 %v415
      %v618 = vpop.f32.mrf.mxu0
      %v619 = vadd.f32 0.0, %v618
      %v620 = vpop.f32.mrf.mxu0
      %621 = vmatprep.mubr.f32.mxu0 0.0
      %622 = vmatmul.mubr.f32.gmra.mxu0 %v416
      %v623 = vpop.f32.mrf.mxu0
      %v624 = vadd.f32 0.0, %v623
      %v625 = vpop.f32.mrf.mxu0
      %626 = vmatprep.mubr.f32.mxu0 0.0
      %627 = vmatmul.mubr.f32.gmra.mxu0 %v417
      %v628 = vpop.f32.mrf.mxu0
      %v629 = vadd.f32 0.0, %v628
      %v630 = vpop.f32.mrf.mxu0
      %631 = vmatprep.mubr.f32.mxu0 0.0
      %632 = vmatmul.mubr.f32.gmra.mxu0 %v418
      %v633 = vpop.f32.mrf.mxu0
      %v634 = vadd.f32 0.0, %v633
      %v635 = vpop.f32.mrf.mxu0
      %636 = vmatprep.mubr.f32.mxu0 0.0
      %637 = vmatmul.mubr.f32.gmra.mxu0 %v419
      %v638 = vpop.f32.mrf.mxu0
      %v639 = vadd.f32 0.0, %v638
      %v640 = vpop.f32.mrf.mxu0
      %641 = vmatprep.mubr.f32.mxu0 0.0
      %642 = vmatmul.mubr.f32.gmra.mxu0 %v420
      %v643 = vpop.f32.mrf.mxu0
      %v644 = vadd.f32 0.0, %v643
      %v645 = vpop.f32.mrf.mxu0
      %646 = vmatprep.mubr.f32.mxu0 0.0
      %647 = vmatmul.mubr.f32.gmra.mxu0 %v421
      %v648 = vpop.f32.mrf.mxu0
      %v649 = vadd.f32 0.0, %v648
      %v650 = vpop.f32.mrf.mxu0
      %651 = vmatprep.mubr.f32.mxu0 0.0
      %652 = vmatmul.mubr.f32.gmra.mxu0 %v422
      %v653 = vpop.f32.mrf.mxu0
      %v654 = vadd.f32 0.0, %v653
      %v655 = vpop.f32.mrf.mxu0
      %656 = vmatprep.mubr.f32.mxu0 0.0
      %657 = vmatmul.mubr.f32.gmra.mxu0 %v423
      %v658 = vpop.f32.mrf.mxu0
      %v659 = vadd.f32 0.0, %v658
      %v660 = vpop.f32.mrf.mxu0
      %661 = vmatprep.mubr.f32.mxu0 0.0
      %662 = vmatmul.mubr.f32.gmra.mxu0 %v424
      %v663 = vpop.f32.mrf.mxu0
      %v664 = vadd.f32 0.0, %v663
      %v665 = vpop.f32.mrf.mxu0
      %666 = vdwg.mxu0
      %667 = vmatprep.subr.mxu0 0.0
      %668 = vmatpush1.msra.mxu0 %v392
      %669 = vmatprep.subr.mxu0 0.0
      %670 = vmatpush1.msra.mxu0 %v391
      %671 = vmatprep.subr.mxu0 0.0
      %672 = vmatpush1.msra.mxu0 %v390
      %673 = vmatprep.subr.mxu0 0.0
      %674 = vmatpush1.msra.mxu0 %v389
      %675 = vmatprep.subr.mxu0 0.0
      %676 = vmatpush1.msra.mxu0 %v388
      %677 = vmatprep.subr.mxu0 0.0
      %678 = vmatpush1.msra.mxu0 %v387
      %679 = vmatprep.subr.mxu0 0.0
      %680 = vmatpush1.msra.mxu0 %v386
      %681 = vmatprep.subr.mxu0 0.0
      %682 = vmatpush1.msra.mxu0 %v385
      %683 = vmatprep.subr.mxu0 0.0
      %684 = vmatpush1.msra.mxu0 %v384
      %685 = vmatprep.subr.mxu0 0.0
      %686 = vmatpush1.msra.mxu0 %v383
      %687 = vmatprep.subr.mxu0 0.0
      %688 = vmatpush1.msra.mxu0 %v382
      %689 = vmatprep.subr.mxu0 0.0
      %690 = vmatpush1.msra.mxu0 %v381
      %691 = vmatprep.subr.mxu0 0.0
      %692 = vmatpush1.msra.mxu0 %v380
      %693 = vmatprep.subr.mxu0 0.0
      %694 = vmatpush1.msra.mxu0 %v379
      %695 = vmatprep.subr.mxu0 0.0
      %696 = vmatpush1.msra.mxu0 %v378
      %697 = vmatprep.subr.mxu0 0.0
      %698 = vmatpush1.msra.mxu0 %v377
      %699 = vmatprep.subr.mxu0 0.0
      %700 = vmatpush2.msra.mxu0 0.0
      %701 = vmatprep.subr.mxu0 0.0
      %702 = vmatpush2.msra.mxu0 0.0
      %703 = vmatprep.subr.mxu0 0.0
      %704 = vmatpush2.msra.mxu0 0.0
      %705 = vmatprep.subr.mxu0 0.0
      %706 = vmatpush2.msra.mxu0 0.0
      %707 = vmatprep.subr.mxu0 0.0
      %708 = vmatpush2.msra.mxu0 0.0
      %709 = vmatprep.subr.mxu0 0.0
      %710 = vmatpush2.msra.mxu0 0.0
      %711 = vmatprep.subr.mxu0 0.0
      %712 = vmatpush2.msra.mxu0 0.0
      %713 = vmatprep.subr.mxu0 0.0
      %714 = vmatpush2.msra.mxu0 0.0
      %715 = vmatprep.subr.mxu0 0.0
      %716 = vmatpush2.msra.mxu0 0.0
      %717 = vmatprep.subr.mxu0 0.0
      %718 = vmatpush2.msra.mxu0 0.0
      %719 = vmatprep.subr.mxu0 0.0
      %720 = vmatpush2.msra.mxu0 0.0
      %721 = vmatprep.subr.mxu0 0.0
      %722 = vmatpush2.msra.mxu0 0.0
      %723 = vmatprep.subr.mxu0 0.0
      %724 = vmatpush2.msra.mxu0 0.0
      %725 = vmatprep.subr.mxu0 0.0
      %726 = vmatpush2.msra.mxu0 0.0
      %727 = vmatprep.subr.mxu0 0.0
      %728 = vmatpush2.msra.mxu0 0.0
      %729 = vmatprep.subr.mxu0 0.0
      %730 = vmatpush2.msra.mxu0 0.0
      %731 = vmatprep.mubr.f32.mxu0 0.0
      %732 = vmatmul.mubr.f32.gmra.mxu0 %v345
      %v733 = vpop.f32.mrf.mxu0
      %v734 = vadd.f32 %v509, %v733
      %v735 = vpop.f32.mrf.mxu0
      %736 = vmatprep.mubr.f32.mxu0 0.0
      %737 = vmatmul.mubr.f32.gmra.mxu0 %v346
      %v738 = vpop.f32.mrf.mxu0
      %v739 = vadd.f32 %v514, %v738
      %v740 = vpop.f32.mrf.mxu0
      %741 = vmatprep.mubr.f32.mxu0 0.0
      %742 = vmatmul.mubr.f32.gmra.mxu0 %v347
      %v743 = vpop.f32.mrf.mxu0
      %v744 = vadd.f32 %v519, %v743
      %v745 = vpop.f32.mrf.mxu0
      %746 = vmatprep.mubr.f32.mxu0 0.0
      %747 = vmatmul.mubr.f32.gmra.mxu0 %v348
      %v748 = vpop.f32.mrf.mxu0
      %v749 = vadd.f32 %v524, %v748
      %v750 = vpop.f32.mrf.mxu0
      %751 = vmatprep.mubr.f32.mxu0 0.0
      %752 = vmatmul.mubr.f32.gmra.mxu0 %v349
      %v753 = vpop.f32.mrf.mxu0
      %v754 = vadd.f32 %v529, %v753
      %v755 = vpop.f32.mrf.mxu0
      %756 = vmatprep.mubr.f32.mxu0 0.0
      %757 = vmatmul.mubr.f32.gmra.mxu0 %v350
      %v758 = vpop.f32.mrf.mxu0
      %v759 = vadd.f32 %v534, %v758
      %v760 = vpop.f32.mrf.mxu0
      %761 = vmatprep.mubr.f32.mxu0 0.0
      %762 = vmatmul.mubr.f32.gmra.mxu0 %v351
      %v763 = vpop.f32.mrf.mxu0
      %v764 = vadd.f32 %v539, %v763
      %v765 = vpop.f32.mrf.mxu0
      %766 = vmatprep.mubr.f32.mxu0 0.0
      %767 = vmatmul.mubr.f32.gmra.mxu0 %v352
      %v768 = vpop.f32.mrf.mxu0
      %v769 = vadd.f32 %v544, %v768
      %v770 = vpop.f32.mrf.mxu0
      %771 = vmatprep.mubr.f32.mxu0 0.0
      %772 = vmatmul.mubr.f32.gmra.mxu0 %v353
      %v773 = vpop.f32.mrf.mxu0
      %v774 = vadd.f32 %v549, %v773
      %v775 = vpop.f32.mrf.mxu0
      %776 = vmatprep.mubr.f32.mxu0 0.0
      %777 = vmatmul.mubr.f32.gmra.mxu0 %v354
      %v778 = vpop.f32.mrf.mxu0
      %v779 = vadd.f32 %v554, %v778
      %v780 = vpop.f32.mrf.mxu0
      %781 = vmatprep.mubr.f32.mxu0 0.0
      %782 = vmatmul.mubr.f32.gmra.mxu0 %v355
      %v783 = vpop.f32.mrf.mxu0
      %v784 = vadd.f32 %v559, %v783
      %v785 = vpop.f32.mrf.mxu0
      %786 = vmatprep.mubr.f32.mxu0 0.0
      %787 = vmatmul.mubr.f32.gmra.mxu0 %v356
      %v788 = vpop.f32.mrf.mxu0
      %v789 = vadd.f32 %v564, %v788
      %v790 = vpop.f32.mrf.mxu0
      %791 = vmatprep.mubr.f32.mxu0 0.0
      %792 = vmatmul.mubr.f32.gmra.mxu0 %v357
      %v793 = vpop.f32.mrf.mxu0
      %v794 = vadd.f32 %v569, %v793
      %v795 = vpop.f32.mrf.mxu0
      %796 = vmatprep.mubr.f32.mxu0 0.0
      %797 = vmatmul.mubr.f32.gmra.mxu0 %v358
      %v798 = vpop.f32.mrf.mxu0
      %v799 = vadd.f32 %v574, %v798
      %v800 = vpop.f32.mrf.mxu0
      %801 = vmatprep.mubr.f32.mxu0 0.0
      %802 = vmatmul.mubr.f32.gmra.mxu0 %v359
      %v803 = vpop.f32.mrf.mxu0
      %v804 = vadd.f32 %v579, %v803
      %v805 = vpop.f32.mrf.mxu0
      %806 = vmatprep.mubr.f32.mxu0 0.0
      %807 = vmatmul.mubr.f32.gmra.mxu0 %v360
      %v808 = vpop.f32.mrf.mxu0
      %v809 = vadd.f32 %v584, %v808
      %v810 = vpop.f32.mrf.mxu0
      %811 = vmatprep.mubr.f32.mxu0 0.0
      %812 = vmatmul.mubr.f32.gmra.mxu0 %v361
      %v813 = vpop.f32.mrf.mxu0
      %v814 = vadd.f32 %v589, %v813
      %v815 = vpop.f32.mrf.mxu0
      %816 = vmatprep.mubr.f32.mxu0 0.0
      %817 = vmatmul.mubr.f32.gmra.mxu0 %v362
      %v818 = vpop.f32.mrf.mxu0
      %v819 = vadd.f32 %v594, %v818
      %v820 = vpop.f32.mrf.mxu0
      %821 = vmatprep.mubr.f32.mxu0 0.0
      %822 = vmatmul.mubr.f32.gmra.mxu0 %v363
      %v823 = vpop.f32.mrf.mxu0
      %v824 = vadd.f32 %v599, %v823
      %v825 = vpop.f32.mrf.mxu0
      %826 = vmatprep.mubr.f32.mxu0 0.0
      %827 = vmatmul.mubr.f32.gmra.mxu0 %v364
      %v828 = vpop.f32.mrf.mxu0
      %v829 = vadd.f32 %v604, %v828
      %v830 = vpop.f32.mrf.mxu0
      %831 = vmatprep.mubr.f32.mxu0 0.0
      %832 = vmatmul.mubr.f32.gmra.mxu0 %v365
      %v833 = vpop.f32.mrf.mxu0
      %v834 = vadd.f32 %v609, %v833
      %v835 = vpop.f32.mrf.mxu0
      %836 = vmatprep.mubr.f32.mxu0 0.0
      %837 = vmatmul.mubr.f32.gmra.mxu0 %v366
      %v838 = vpop.f32.mrf.mxu0
      %v839 = vadd.f32 %v614, %v838
      %v840 = vpop.f32.mrf.mxu0
      %841 = vmatprep.mubr.f32.mxu0 0.0
      %842 = vmatmul.mubr.f32.gmra.mxu0 %v367
      %v843 = vpop.f32.mrf.mxu0
      %v844 = vadd.f32 %v619, %v843
      %v845 = vpop.f32.mrf.mxu0
      %846 = vmatprep.mubr.f32.mxu0 0.0
      %847 = vmatmul.mubr.f32.gmra.mxu0 %v368
      %v848 = vpop.f32.mrf.mxu0
      %v849 = vadd.f32 %v624, %v848
      %v850 = vpop.f32.mrf.mxu0
      %851 = vmatprep.mubr.f32.mxu0 0.0
      %852 = vmatmul.mubr.f32.gmra.mxu0 %v369
      %v853 = vpop.f32.mrf.mxu0
      %v854 = vadd.f32 %v629, %v853
      %v855 = vpop.f32.mrf.mxu0
      %856 = vmatprep.mubr.f32.mxu0 0.0
      %857 = vmatmul.mubr.f32.gmra.mxu0 %v370
      %v858 = vpop.f32.mrf.mxu0
      %v859 = vadd.f32 %v634, %v858
      %v860 = vpop.f32.mrf.mxu0
      %861 = vmatprep.mubr.f32.mxu0 0.0
      %862 = vmatmul.mubr.f32.gmra.mxu0 %v371
      %v863 = vpop.f32.mrf.mxu0
      %v864 = vadd.f32 %v639, %v863
      %v865 = vpop.f32.mrf.mxu0
      %866 = vmatprep.mubr.f32.mxu0 0.0
      %867 = vmatmul.mubr.f32.gmra.mxu0 %v372
      %v868 = vpop.f32.mrf.mxu0
      %v869 = vadd.f32 %v644, %v868
      %v870 = vpop.f32.mrf.mxu0
      %871 = vmatprep.mubr.f32.mxu0 0.0
      %872 = vmatmul.mubr.f32.gmra.mxu0 %v373
      %v873 = vpop.f32.mrf.mxu0
      %v874 = vadd.f32 %v649, %v873
      %v875 = vpop.f32.mrf.mxu0
      %876 = vmatprep.mubr.f32.mxu0 0.0
      %877 = vmatmul.mubr.f32.gmra.mxu0 %v374
      %v878 = vpop.f32.mrf.mxu0
      %v879 = vadd.f32 %v654, %v878
      %v880 = vpop.f32.mrf.mxu0
      %881 = vmatprep.mubr.f32.mxu0 0.0
      %882 = vmatmul.mubr.f32.gmra.mxu0 %v375
      %v883 = vpop.f32.mrf.mxu0
      %v884 = vadd.f32 %v659, %v883
      %v885 = vpop.f32.mrf.mxu0
      %886 = vmatprep.mubr.f32.mxu0 0.0
      %887 = vmatmul.mubr.f32.gmra.mxu0 %v376
      %v888 = vpop.f32.mrf.mxu0
      %v889 = vadd.f32 %v664, %v888
      %v890 = vpop.f32.mrf.mxu0
      %891 = vdwg.mxu0
      %v892 = vld [vmem:[%s344 + $0x2] sm:$0xff]
      %v893 = vld [vmem:[%s344 + $0xa] sm:$0xff]
      %v894 = vld [vmem:[%s344 + $0x1a] sm:$0xff]
      %v895 = vld [vmem:[%s344 + $0x22] sm:$0xff]
      %v896 = vld [vmem:[%s344 + $0x32] sm:$0xff]
      %v897 = vld [vmem:[%s344 + $0x3a] sm:$0xff]
      %v898 = vld [vmem:[%s344 + $0x4a] sm:$0xff]
      %v899 = vld [vmem:[%s344 + $0x52] sm:$0xff]
      %v900 = vld [vmem:[%s344 + $0x62] sm:$0xff]
      %v901 = vld [vmem:[%s344 + $0x6a] sm:$0xff]
      %v902 = vld [vmem:[%s344 + $0x7a] sm:$0xff]
      %v903 = vld [vmem:[%s344 + $0x82] sm:$0xff]
      %v904 = vld [vmem:[%s344 + $0x92] sm:$0xff]
      %v905 = vld [vmem:[%s344 + $0x9a] sm:$0xff]
      %v906 = vld [vmem:[%s344 + $0xaa] sm:$0xff]
      %v907 = vld [vmem:[%s344 + $0xb2] sm:$0xff]
      %v908 = vld [vmem:[%s344 + $0xc2] sm:$0xff]
      %v909 = vld [vmem:[%s344 + $0xca] sm:$0xff]
      %v910 = vld [vmem:[%s344 + $0xda] sm:$0xff]
      %v911 = vld [vmem:[%s344 + $0xe2] sm:$0xff]
      %v912 = vld [vmem:[%s344 + $0xf2] sm:$0xff]
      %v913 = vld [vmem:[%s344 + $0xfa] sm:$0xff]
      %v914 = vld [vmem:[%s344 + $0x10a] sm:$0xff]
      %v915 = vld [vmem:[%s344 + $0x112] sm:$0xff]
      %v916 = vld [vmem:[%s344 + $0x122] sm:$0xff]
      %v917 = vld [vmem:[%s344 + $0x12a] sm:$0xff]
      %v918 = vld [vmem:[%s344 + $0x13a] sm:$0xff]
      %v919 = vld [vmem:[%s344 + $0x142] sm:$0xff]
      %v920 = vld [vmem:[%s344 + $0x152] sm:$0xff]
      %v921 = vld [vmem:[%s344 + $0x15a] sm:$0xff]
      %v922 = vld [vmem:[%s344 + $0x16a] sm:$0xff]
      %v923 = vld [vmem:[%s344 + $0x172] sm:$0xff]
      %s924 = scalar_lea.vmem %s1, 256
      %v925 = vld [vmem:[%s924] sm:$0xff]
      %v926 = vld [vmem:[%s924 + $0x8] sm:$0xff]
      %v927 = vld [vmem:[%s924 + $0x10] sm:$0xff]
      %v928 = vld [vmem:[%s924 + $0x18] sm:$0xff]
      %v929 = vld [vmem:[%s924 + $0x20] sm:$0xff]
      %v930 = vld [vmem:[%s924 + $0x28] sm:$0xff]
      %v931 = vld [vmem:[%s924 + $0x30] sm:$0xff]
      %v932 = vld [vmem:[%s924 + $0x38] sm:$0xff]
      %v933 = vld [vmem:[%s924 + $0x40] sm:$0xff]
      %v934 = vld [vmem:[%s924 + $0x48] sm:$0xff]
      %v935 = vld [vmem:[%s924 + $0x50] sm:$0xff]
      %v936 = vld [vmem:[%s924 + $0x58] sm:$0xff]
      %v937 = vld [vmem:[%s924 + $0x60] sm:$0xff]
      %v938 = vld [vmem:[%s924 + $0x68] sm:$0xff]
      %v939 = vld [vmem:[%s924 + $0x70] sm:$0xff]
      %v940 = vld [vmem:[%s924 + $0x78] sm:$0xff]
      %941 = vmatprep.subr.mxu0 0.0
      %942 = vmatpush1.msra.mxu0 %v940
      %943 = vmatprep.subr.mxu0 0.0
      %944 = vmatpush1.msra.mxu0 %v939
      %945 = vmatprep.subr.mxu0 0.0
      %946 = vmatpush1.msra.mxu0 %v938
      %947 = vmatprep.subr.mxu0 0.0
      %948 = vmatpush1.msra.mxu0 %v937
      %949 = vmatprep.subr.mxu0 0.0
      %950 = vmatpush1.msra.mxu0 %v936
      %951 = vmatprep.subr.mxu0 0.0
      %952 = vmatpush1.msra.mxu0 %v935
      %953 = vmatprep.subr.mxu0 0.0
      %954 = vmatpush1.msra.mxu0 %v934
      %955 = vmatprep.subr.mxu0 0.0
      %956 = vmatpush1.msra.mxu0 %v933
      %957 = vmatprep.subr.mxu0 0.0
      %958 = vmatpush1.msra.mxu0 %v932
      %959 = vmatprep.subr.mxu0 0.0
      %960 = vmatpush1.msra.mxu0 %v931
      %961 = vmatprep.subr.mxu0 0.0
      %962 = vmatpush1.msra.mxu0 %v930
      %963 = vmatprep.subr.mxu0 0.0
      %964 = vmatpush1.msra.mxu0 %v929
      %965 = vmatprep.subr.mxu0 0.0
      %966 = vmatpush1.msra.mxu0 %v928
      %967 = vmatprep.subr.mxu0 0.0
      %968 = vmatpush1.msra.mxu0 %v927
      %969 = vmatprep.subr.mxu0 0.0
      %970 = vmatpush1.msra.mxu0 %v926
      %971 = vmatprep.subr.mxu0 0.0
      %972 = vmatpush1.msra.mxu0 %v925
      %973 = vmatprep.subr.mxu0 0.0
      %974 = vmatpush2.msra.mxu0 0.0
      %975 = vmatprep.subr.mxu0 0.0
      %976 = vmatpush2.msra.mxu0 0.0
      %977 = vmatprep.subr.mxu0 0.0
      %978 = vmatpush2.msra.mxu0 0.0
      %979 = vmatprep.subr.mxu0 0.0
      %980 = vmatpush2.msra.mxu0 0.0
      %981 = vmatprep.subr.mxu0 0.0
      %982 = vmatpush2.msra.mxu0 0.0
      %983 = vmatprep.subr.mxu0 0.0
      %984 = vmatpush2.msra.mxu0 0.0
      %985 = vmatprep.subr.mxu0 0.0
      %986 = vmatpush2.msra.mxu0 0.0
      %987 = vmatprep.subr.mxu0 0.0
      %988 = vmatpush2.msra.mxu0 0.0
      %989 = vmatprep.subr.mxu0 0.0
      %990 = vmatpush2.msra.mxu0 0.0
      %991 = vmatprep.subr.mxu0 0.0
      %992 = vmatpush2.msra.mxu0 0.0
      %993 = vmatprep.subr.mxu0 0.0
      %994 = vmatpush2.msra.mxu0 0.0
      %995 = vmatprep.subr.mxu0 0.0
      %996 = vmatpush2.msra.mxu0 0.0
      %997 = vmatprep.subr.mxu0 0.0
      %998 = vmatpush2.msra.mxu0 0.0
      %999 = vmatprep.subr.mxu0 0.0
      %1000 = vmatpush2.msra.mxu0 0.0
      %1001 = vmatprep.subr.mxu0 0.0
      %1002 = vmatpush2.msra.mxu0 0.0
      %1003 = vmatprep.subr.mxu0 0.0
      %1004 = vmatpush2.msra.mxu0 0.0
      %1005 = vmatprep.mubr.f32.mxu0 0.0
      %1006 = vmatmul.mubr.f32.gmra.mxu0 %v892
      %v1007 = vpop.f32.mrf.mxu0
      %v1008 = vadd.f32 0.0, %v1007
      %v1009 = vpop.f32.mrf.mxu0
      %1010 = vmatprep.mubr.f32.mxu0 0.0
      %1011 = vmatmul.mubr.f32.gmra.mxu0 %v893
      %v1012 = vpop.f32.mrf.mxu0
      %v1013 = vadd.f32 0.0, %v1012
      %v1014 = vpop.f32.mrf.mxu0
      %1015 = vmatprep.mubr.f32.mxu0 0.0
      %1016 = vmatmul.mubr.f32.gmra.mxu0 %v894
      %v1017 = vpop.f32.mrf.mxu0
      %v1018 = vadd.f32 0.0, %v1017
      %v1019 = vpop.f32.mrf.mxu0
      %1020 = vmatprep.mubr.f32.mxu0 0.0
      %1021 = vmatmul.mubr.f32.gmra.mxu0 %v895
      %v1022 = vpop.f32.mrf.mxu0
      %v1023 = vadd.f32 0.0, %v1022
      %v1024 = vpop.f32.mrf.mxu0
      %1025 = vmatprep.mubr.f32.mxu0 0.0
      %1026 = vmatmul.mubr.f32.gmra.mxu0 %v896
      %v1027 = vpop.f32.mrf.mxu0
      %v1028 = vadd.f32 0.0, %v1027
      %v1029 = vpop.f32.mrf.mxu0
      %1030 = vmatprep.mubr.f32.mxu0 0.0
      %1031 = vmatmul.mubr.f32.gmra.mxu0 %v897
      %v1032 = vpop.f32.mrf.mxu0
      %v1033 = vadd.f32 0.0, %v1032
      %v1034 = vpop.f32.mrf.mxu0
      %1035 = vmatprep.mubr.f32.mxu0 0.0
      %1036 = vmatmul.mubr.f32.gmra.mxu0 %v898
      %v1037 = vpop.f32.mrf.mxu0
      %v1038 = vadd.f32 0.0, %v1037
      %v1039 = vpop.f32.mrf.mxu0
      %1040 = vmatprep.mubr.f32.mxu0 0.0
      %1041 = vmatmul.mubr.f32.gmra.mxu0 %v899
      %v1042 = vpop.f32.mrf.mxu0
      %v1043 = vadd.f32 0.0, %v1042
      %v1044 = vpop.f32.mrf.mxu0
      %1045 = vmatprep.mubr.f32.mxu0 0.0
      %1046 = vmatmul.mubr.f32.gmra.mxu0 %v900
      %v1047 = vpop.f32.mrf.mxu0
      %v1048 = vadd.f32 0.0, %v1047
      %v1049 = vpop.f32.mrf.mxu0
      %1050 = vmatprep.mubr.f32.mxu0 0.0
      %1051 = vmatmul.mubr.f32.gmra.mxu0 %v901
      %v1052 = vpop.f32.mrf.mxu0
      %v1053 = vadd.f32 0.0, %v1052
      %v1054 = vpop.f32.mrf.mxu0
      %1055 = vmatprep.mubr.f32.mxu0 0.0
      %1056 = vmatmul.mubr.f32.gmra.mxu0 %v902
      %v1057 = vpop.f32.mrf.mxu0
      %v1058 = vadd.f32 0.0, %v1057
      %v1059 = vpop.f32.mrf.mxu0
      %1060 = vmatprep.mubr.f32.mxu0 0.0
      %1061 = vmatmul.mubr.f32.gmra.mxu0 %v903
      %v1062 = vpop.f32.mrf.mxu0
      %v1063 = vadd.f32 0.0, %v1062
      %v1064 = vpop.f32.mrf.mxu0
      %1065 = vmatprep.mubr.f32.mxu0 0.0
      %1066 = vmatmul.mubr.f32.gmra.mxu0 %v904
      %v1067 = vpop.f32.mrf.mxu0
      %v1068 = vadd.f32 0.0, %v1067
      %v1069 = vpop.f32.mrf.mxu0
      %1070 = vmatprep.mubr.f32.mxu0 0.0
      %1071 = vmatmul.mubr.f32.gmra.mxu0 %v905
      %v1072 = vpop.f32.mrf.mxu0
      %v1073 = vadd.f32 0.0, %v1072
      %v1074 = vpop.f32.mrf.mxu0
      %1075 = vmatprep.mubr.f32.mxu0 0.0
      %1076 = vmatmul.mubr.f32.gmra.mxu0 %v906
      %v1077 = vpop.f32.mrf.mxu0
      %v1078 = vadd.f32 0.0, %v1077
      %v1079 = vpop.f32.mrf.mxu0
      %1080 = vmatprep.mubr.f32.mxu0 0.0
      %1081 = vmatmul.mubr.f32.gmra.mxu0 %v907
      %v1082 = vpop.f32.mrf.mxu0
      %v1083 = vadd.f32 0.0, %v1082
      %v1084 = vpop.f32.mrf.mxu0
      %1085 = vmatprep.mubr.f32.mxu0 0.0
      %1086 = vmatmul.mubr.f32.gmra.mxu0 %v908
      %v1087 = vpop.f32.mrf.mxu0
      %v1088 = vadd.f32 0.0, %v1087
      %v1089 = vpop.f32.mrf.mxu0
      %1090 = vmatprep.mubr.f32.mxu0 0.0
      %1091 = vmatmul.mubr.f32.gmra.mxu0 %v909
      %v1092 = vpop.f32.mrf.mxu0
      %v1093 = vadd.f32 0.0, %v1092
      %v1094 = vpop.f32.mrf.mxu0
      %1095 = vmatprep.mubr.f32.mxu0 0.0
      %1096 = vmatmul.mubr.f32.gmra.mxu0 %v910
      %v1097 = vpop.f32.mrf.mxu0
      %v1098 = vadd.f32 0.0, %v1097
      %v1099 = vpop.f32.mrf.mxu0
      %1100 = vmatprep.mubr.f32.mxu0 0.0
      %1101 = vmatmul.mubr.f32.gmra.mxu0 %v911
      %v1102 = vpop.f32.mrf.mxu0
      %v1103 = vadd.f32 0.0, %v1102
      %v1104 = vpop.f32.mrf.mxu0
      %1105 = vmatprep.mubr.f32.mxu0 0.0
      %1106 = vmatmul.mubr.f32.gmra.mxu0 %v912
      %v1107 = vpop.f32.mrf.mxu0
      %v1108 = vadd.f32 0.0, %v1107
      %v1109 = vpop.f32.mrf.mxu0
      %1110 = vmatprep.mubr.f32.mxu0 0.0
      %1111 = vmatmul.mubr.f32.gmra.mxu0 %v913
      %v1112 = vpop.f32.mrf.mxu0
      %v1113 = vadd.f32 0.0, %v1112
      %v1114 = vpop.f32.mrf.mxu0
      %1115 = vmatprep.mubr.f32.mxu0 0.0
      %1116 = vmatmul.mubr.f32.gmra.mxu0 %v914
      %v1117 = vpop.f32.mrf.mxu0
      %v1118 = vadd.f32 0.0, %v1117
      %v1119 = vpop.f32.mrf.mxu0
      %1120 = vmatprep.mubr.f32.mxu0 0.0
      %1121 = vmatmul.mubr.f32.gmra.mxu0 %v915
      %v1122 = vpop.f32.mrf.mxu0
      %v1123 = vadd.f32 0.0, %v1122
      %v1124 = vpop.f32.mrf.mxu0
      %1125 = vmatprep.mubr.f32.mxu0 0.0
      %1126 = vmatmul.mubr.f32.gmra.mxu0 %v916
      %v1127 = vpop.f32.mrf.mxu0
      %v1128 = vadd.f32 0.0, %v1127
      %v1129 = vpop.f32.mrf.mxu0
      %1130 = vmatprep.mubr.f32.mxu0 0.0
      %1131 = vmatmul.mubr.f32.gmra.mxu0 %v917
      %v1132 = vpop.f32.mrf.mxu0
      %v1133 = vadd.f32 0.0, %v1132
      %v1134 = vpop.f32.mrf.mxu0
      %1135 = vmatprep.mubr.f32.mxu0 0.0
      %1136 = vmatmul.mubr.f32.gmra.mxu0 %v918
      %v1137 = vpop.f32.mrf.mxu0
      %v1138 = vadd.f32 0.0, %v1137
      %v1139 = vpop.f32.mrf.mxu0
      %1140 = vmatprep.mubr.f32.mxu0 0.0
      %1141 = vmatmul.mubr.f32.gmra.mxu0 %v919
      %v1142 = vpop.f32.mrf.mxu0
      %v1143 = vadd.f32 0.0, %v1142
      %v1144 = vpop.f32.mrf.mxu0
      %1145 = vmatprep.mubr.f32.mxu0 0.0
      %1146 = vmatmul.mubr.f32.gmra.mxu0 %v920
      %v1147 = vpop.f32.mrf.mxu0
      %v1148 = vadd.f32 0.0, %v1147
      %v1149 = vpop.f32.mrf.mxu0
      %1150 = vmatprep.mubr.f32.mxu0 0.0
      %1151 = vmatmul.mubr.f32.gmra.mxu0 %v921
      %v1152 = vpop.f32.mrf.mxu0
      %v1153 = vadd.f32 0.0, %v1152
      %v1154 = vpop.f32.mrf.mxu0
      %1155 = vmatprep.mubr.f32.mxu0 0.0
      %1156 = vmatmul.mubr.f32.gmra.mxu0 %v922
      %v1157 = vpop.f32.mrf.mxu0
      %v1158 = vadd.f32 0.0, %v1157
      %v1159 = vpop.f32.mrf.mxu0
      %1160 = vmatprep.mubr.f32.mxu0 0.0
      %1161 = vmatmul.mubr.f32.gmra.mxu0 %v923
      %v1162 = vpop.f32.mrf.mxu0
      %v1163 = vadd.f32 0.0, %v1162
      %v1164 = vpop.f32.mrf.mxu0
      %1165 = vdwg.mxu0
      %v1166 = vadd.f32 %v734, %v1008
      %v1167 = vadd.f32 %v739, %v1013
      %v1168 = vadd.f32 %v744, %v1018
      %v1169 = vadd.f32 %v749, %v1023
      %v1170 = vadd.f32 %v754, %v1028
      %v1171 = vadd.f32 %v759, %v1033
      %v1172 = vadd.f32 %v764, %v1038
      %v1173 = vadd.f32 %v769, %v1043
      %v1174 = vadd.f32 %v774, %v1048
      %v1175 = vadd.f32 %v779, %v1053
      %v1176 = vadd.f32 %v784, %v1058
      %v1177 = vadd.f32 %v789, %v1063
      %v1178 = vadd.f32 %v794, %v1068
      %v1179 = vadd.f32 %v799, %v1073
      %v1180 = vadd.f32 %v804, %v1078
      %v1181 = vadd.f32 %v809, %v1083
      %v1182 = vadd.f32 %v814, %v1088
      %v1183 = vadd.f32 %v819, %v1093
      %v1184 = vadd.f32 %v824, %v1098
      %v1185 = vadd.f32 %v829, %v1103
      %v1186 = vadd.f32 %v834, %v1108
      %v1187 = vadd.f32 %v839, %v1113
      %v1188 = vadd.f32 %v844, %v1118
      %v1189 = vadd.f32 %v849, %v1123
      %v1190 = vadd.f32 %v854, %v1128
      %v1191 = vadd.f32 %v859, %v1133
      %v1192 = vadd.f32 %v864, %v1138
      %v1193 = vadd.f32 %v869, %v1143
      %v1194 = vadd.f32 %v874, %v1148
      %v1195 = vadd.f32 %v879, %v1153
      %v1196 = vadd.f32 %v884, %v1158
      %v1197 = vadd.f32 %v889, %v1163
      %s1198 = sadd.s32 %s342, 1
      %s1199 = smul.u32 %s1198, 24
      %s1200 = scalar_lea.vmem [#allocation2], %s1199
      %v1201 = vld [vmem:[%s1200] sm:$0xff]
      %v1202 = vld [vmem:[%s1200 + $0x8] sm:$0xff]
      %v1203 = vld [vmem:[%s1200 + $0x18] sm:$0xff]
      %v1204 = vld [vmem:[%s1200 + $0x20] sm:$0xff]
      %v1205 = vld [vmem:[%s1200 + $0x30] sm:$0xff]
      %v1206 = vld [vmem:[%s1200 + $0x38] sm:$0xff]
      %v1207 = vld [vmem:[%s1200 + $0x48] sm:$0xff]
      %v1208 = vld [vmem:[%s1200 + $0x50] sm:$0xff]
      %v1209 = vld [vmem:[%s1200 + $0x60] sm:$0xff]
      %v1210 = vld [vmem:[%s1200 + $0x68] sm:$0xff]
      %v1211 = vld [vmem:[%s1200 + $0x78] sm:$0xff]
      %v1212 = vld [vmem:[%s1200 + $0x80] sm:$0xff]
      %v1213 = vld [vmem:[%s1200 + $0x90] sm:$0xff]
      %v1214 = vld [vmem:[%s1200 + $0x98] sm:$0xff]
      %v1215 = vld [vmem:[%s1200 + $0xa8] sm:$0xff]
      %v1216 = vld [vmem:[%s1200 + $0xb0] sm:$0xff]
      %v1217 = vld [vmem:[%s1200 + $0xc0] sm:$0xff]
      %v1218 = vld [vmem:[%s1200 + $0xc8] sm:$0xff]
      %v1219 = vld [vmem:[%s1200 + $0xd8] sm:$0xff]
      %v1220 = vld [vmem:[%s1200 + $0xe0] sm:$0xff]
      %v1221 = vld [vmem:[%s1200 + $0xf0] sm:$0xff]
      %v1222 = vld [vmem:[%s1200 + $0xf8] sm:$0xff]
      %v1223 = vld [vmem:[%s1200 + $0x108] sm:$0xff]
      %v1224 = vld [vmem:[%s1200 + $0x110] sm:$0xff]
      %v1225 = vld [vmem:[%s1200 + $0x120] sm:$0xff]
      %v1226 = vld [vmem:[%s1200 + $0x128] sm:$0xff]
      %v1227 = vld [vmem:[%s1200 + $0x138] sm:$0xff]
      %v1228 = vld [vmem:[%s1200 + $0x140] sm:$0xff]
      %v1229 = vld [vmem:[%s1200 + $0x150] sm:$0xff]
      %v1230 = vld [vmem:[%s1200 + $0x158] sm:$0xff]
      %v1231 = vld [vmem:[%s1200 + $0x168] sm:$0xff]
      %v1232 = vld [vmem:[%s1200 + $0x170] sm:$0xff]
      %s1233 = scalar_lea.vmem %s1, 384
      %v1234 = vld [vmem:[%s1233] sm:$0xff]
      %v1235 = vld [vmem:[%s1233 + $0x8] sm:$0xff]
      %v1236 = vld [vmem:[%s1233 + $0x10] sm:$0xff]
      %v1237 = vld [vmem:[%s1233 + $0x18] sm:$0xff]
      %v1238 = vld [vmem:[%s1233 + $0x20] sm:$0xff]
      %v1239 = vld [vmem:[%s1233 + $0x28] sm:$0xff]
      %v1240 = vld [vmem:[%s1233 + $0x30] sm:$0xff]
      %v1241 = vld [vmem:[%s1233 + $0x38] sm:$0xff]
      %v1242 = vld [vmem:[%s1233 + $0x40] sm:$0xff]
      %v1243 = vld [vmem:[%s1233 + $0x48] sm:$0xff]
      %v1244 = vld [vmem:[%s1233 + $0x50] sm:$0xff]
      %v1245 = vld [vmem:[%s1233 + $0x58] sm:$0xff]
      %v1246 = vld [vmem:[%s1233 + $0x60] sm:$0xff]
      %v1247 = vld [vmem:[%s1233 + $0x68] sm:$0xff]
      %v1248 = vld [vmem:[%s1233 + $0x70] sm:$0xff]
      %v1249 = vld [vmem:[%s1233 + $0x78] sm:$0xff]
      %1250 = vmatprep.subr.mxu0 0.0
      %1251 = vmatpush1.msra.mxu0 %v1249
      %1252 = vmatprep.subr.mxu0 0.0
      %1253 = vmatpush1.msra.mxu0 %v1248
      %1254 = vmatprep.subr.mxu0 0.0
      %1255 = vmatpush1.msra.mxu0 %v1247
      %1256 = vmatprep.subr.mxu0 0.0
      %1257 = vmatpush1.msra.mxu0 %v1246
      %1258 = vmatprep.subr.mxu0 0.0
      %1259 = vmatpush1.msra.mxu0 %v1245
      %1260 = vmatprep.subr.mxu0 0.0
      %1261 = vmatpush1.msra.mxu0 %v1244
      %1262 = vmatprep.subr.mxu0 0.0
      %1263 = vmatpush1.msra.mxu0 %v1243
      %1264 = vmatprep.subr.mxu0 0.0
      %1265 = vmatpush1.msra.mxu0 %v1242
      %1266 = vmatprep.subr.mxu0 0.0
      %1267 = vmatpush1.msra.mxu0 %v1241
      %1268 = vmatprep.subr.mxu0 0.0
      %1269 = vmatpush1.msra.mxu0 %v1240
      %1270 = vmatprep.subr.mxu0 0.0
      %1271 = vmatpush1.msra.mxu0 %v1239
      %1272 = vmatprep.subr.mxu0 0.0
      %1273 = vmatpush1.msra.mxu0 %v1238
      %1274 = vmatprep.subr.mxu0 0.0
      %1275 = vmatpush1.msra.mxu0 %v1237
      %1276 = vmatprep.subr.mxu0 0.0
      %1277 = vmatpush1.msra.mxu0 %v1236
      %1278 = vmatprep.subr.mxu0 0.0
      %1279 = vmatpush1.msra.mxu0 %v1235
      %1280 = vmatprep.subr.mxu0 0.0
      %1281 = vmatpush1.msra.mxu0 %v1234
      %1282 = vmatprep.subr.mxu0 0.0
      %1283 = vmatpush2.msra.mxu0 0.0
      %1284 = vmatprep.subr.mxu0 0.0
      %1285 = vmatpush2.msra.mxu0 0.0
      %1286 = vmatprep.subr.mxu0 0.0
      %1287 = vmatpush2.msra.mxu0 0.0
      %1288 = vmatprep.subr.mxu0 0.0
      %1289 = vmatpush2.msra.mxu0 0.0
      %1290 = vmatprep.subr.mxu0 0.0
      %1291 = vmatpush2.msra.mxu0 0.0
      %1292 = vmatprep.subr.mxu0 0.0
      %1293 = vmatpush2.msra.mxu0 0.0
      %1294 = vmatprep.subr.mxu0 0.0
      %1295 = vmatpush2.msra.mxu0 0.0
      %1296 = vmatprep.subr.mxu0 0.0
      %1297 = vmatpush2.msra.mxu0 0.0
      %1298 = vmatprep.subr.mxu0 0.0
      %1299 = vmatpush2.msra.mxu0 0.0
      %1300 = vmatprep.subr.mxu0 0.0
      %1301 = vmatpush2.msra.mxu0 0.0
      %1302 = vmatprep.subr.mxu0 0.0
      %1303 = vmatpush2.msra.mxu0 0.0
      %1304 = vmatprep.subr.mxu0 0.0
      %1305 = vmatpush2.msra.mxu0 0.0
      %1306 = vmatprep.subr.mxu0 0.0
      %1307 = vmatpush2.msra.mxu0 0.0
      %1308 = vmatprep.subr.mxu0 0.0
      %1309 = vmatpush2.msra.mxu0 0.0
      %1310 = vmatprep.subr.mxu0 0.0
      %1311 = vmatpush2.msra.mxu0 0.0
      %1312 = vmatprep.subr.mxu0 0.0
      %1313 = vmatpush2.msra.mxu0 0.0
      %1314 = vmatprep.mubr.f32.mxu0 0.0
      %1315 = vmatmul.mubr.f32.gmra.mxu0 %v1201
      %v1316 = vpop.f32.mrf.mxu0
      %v1317 = vadd.f32 0.0, %v1316
      %v1318 = vpop.f32.mrf.mxu0
      %1319 = vmatprep.mubr.f32.mxu0 0.0
      %1320 = vmatmul.mubr.f32.gmra.mxu0 %v1202
      %v1321 = vpop.f32.mrf.mxu0
      %v1322 = vadd.f32 0.0, %v1321
      %v1323 = vpop.f32.mrf.mxu0
      %1324 = vmatprep.mubr.f32.mxu0 0.0
      %1325 = vmatmul.mubr.f32.gmra.mxu0 %v1203
      %v1326 = vpop.f32.mrf.mxu0
      %v1327 = vadd.f32 0.0, %v1326
      %v1328 = vpop.f32.mrf.mxu0
      %1329 = vmatprep.mubr.f32.mxu0 0.0
      %1330 = vmatmul.mubr.f32.gmra.mxu0 %v1204
      %v1331 = vpop.f32.mrf.mxu0
      %v1332 = vadd.f32 0.0, %v1331
      %v1333 = vpop.f32.mrf.mxu0
      %1334 = vmatprep.mubr.f32.mxu0 0.0
      %1335 = vmatmul.mubr.f32.gmra.mxu0 %v1205
      %v1336 = vpop.f32.mrf.mxu0
      %v1337 = vadd.f32 0.0, %v1336
      %v1338 = vpop.f32.mrf.mxu0
      %1339 = vmatprep.mubr.f32.mxu0 0.0
      %1340 = vmatmul.mubr.f32.gmra.mxu0 %v1206
      %v1341 = vpop.f32.mrf.mxu0
      %v1342 = vadd.f32 0.0, %v1341
      %v1343 = vpop.f32.mrf.mxu0
      %1344 = vmatprep.mubr.f32.mxu0 0.0
      %1345 = vmatmul.mubr.f32.gmra.mxu0 %v1207
      %v1346 = vpop.f32.mrf.mxu0
      %v1347 = vadd.f32 0.0, %v1346
      %v1348 = vpop.f32.mrf.mxu0
      %1349 = vmatprep.mubr.f32.mxu0 0.0
      %1350 = vmatmul.mubr.f32.gmra.mxu0 %v1208
      %v1351 = vpop.f32.mrf.mxu0
      %v1352 = vadd.f32 0.0, %v1351
      %v1353 = vpop.f32.mrf.mxu0
      %1354 = vmatprep.mubr.f32.mxu0 0.0
      %1355 = vmatmul.mubr.f32.gmra.mxu0 %v1209
      %v1356 = vpop.f32.mrf.mxu0
      %v1357 = vadd.f32 0.0, %v1356
      %v1358 = vpop.f32.mrf.mxu0
      %1359 = vmatprep.mubr.f32.mxu0 0.0
      %1360 = vmatmul.mubr.f32.gmra.mxu0 %v1210
      %v1361 = vpop.f32.mrf.mxu0
      %v1362 = vadd.f32 0.0, %v1361
      %v1363 = vpop.f32.mrf.mxu0
      %1364 = vmatprep.mubr.f32.mxu0 0.0
      %1365 = vmatmul.mubr.f32.gmra.mxu0 %v1211
      %v1366 = vpop.f32.mrf.mxu0
      %v1367 = vadd.f32 0.0, %v1366
      %v1368 = vpop.f32.mrf.mxu0
      %1369 = vmatprep.mubr.f32.mxu0 0.0
      %1370 = vmatmul.mubr.f32.gmra.mxu0 %v1212
      %v1371 = vpop.f32.mrf.mxu0
      %v1372 = vadd.f32 0.0, %v1371
      %v1373 = vpop.f32.mrf.mxu0
      %1374 = vmatprep.mubr.f32.mxu0 0.0
      %1375 = vmatmul.mubr.f32.gmra.mxu0 %v1213
      %v1376 = vpop.f32.mrf.mxu0
      %v1377 = vadd.f32 0.0, %v1376
      %v1378 = vpop.f32.mrf.mxu0
      %1379 = vmatprep.mubr.f32.mxu0 0.0
      %1380 = vmatmul.mubr.f32.gmra.mxu0 %v1214
      %v1381 = vpop.f32.mrf.mxu0
      %v1382 = vadd.f32 0.0, %v1381
      %v1383 = vpop.f32.mrf.mxu0
      %1384 = vmatprep.mubr.f32.mxu0 0.0
      %1385 = vmatmul.mubr.f32.gmra.mxu0 %v1215
      %v1386 = vpop.f32.mrf.mxu0
      %v1387 = vadd.f32 0.0, %v1386
      %v1388 = vpop.f32.mrf.mxu0
      %1389 = vmatprep.mubr.f32.mxu0 0.0
      %1390 = vmatmul.mubr.f32.gmra.mxu0 %v1216
      %v1391 = vpop.f32.mrf.mxu0
      %v1392 = vadd.f32 0.0, %v1391
      %v1393 = vpop.f32.mrf.mxu0
      %1394 = vmatprep.mubr.f32.mxu0 0.0
      %1395 = vmatmul.mubr.f32.gmra.mxu0 %v1217
      %v1396 = vpop.f32.mrf.mxu0
      %v1397 = vadd.f32 0.0, %v1396
      %v1398 = vpop.f32.mrf.mxu0
      %1399 = vmatprep.mubr.f32.mxu0 0.0
      %1400 = vmatmul.mubr.f32.gmra.mxu0 %v1218
      %v1401 = vpop.f32.mrf.mxu0
      %v1402 = vadd.f32 0.0, %v1401
      %v1403 = vpop.f32.mrf.mxu0
      %1404 = vmatprep.mubr.f32.mxu0 0.0
      %1405 = vmatmul.mubr.f32.gmra.mxu0 %v1219
      %v1406 = vpop.f32.mrf.mxu0
      %v1407 = vadd.f32 0.0, %v1406
      %v1408 = vpop.f32.mrf.mxu0
      %1409 = vmatprep.mubr.f32.mxu0 0.0
      %1410 = vmatmul.mubr.f32.gmra.mxu0 %v1220
      %v1411 = vpop.f32.mrf.mxu0
      %v1412 = vadd.f32 0.0, %v1411
      %v1413 = vpop.f32.mrf.mxu0
      %1414 = vmatprep.mubr.f32.mxu0 0.0
      %1415 = vmatmul.mubr.f32.gmra.mxu0 %v1221
      %v1416 = vpop.f32.mrf.mxu0
      %v1417 = vadd.f32 0.0, %v1416
      %v1418 = vpop.f32.mrf.mxu0
      %1419 = vmatprep.mubr.f32.mxu0 0.0
      %1420 = vmatmul.mubr.f32.gmra.mxu0 %v1222
      %v1421 = vpop.f32.mrf.mxu0
      %v1422 = vadd.f32 0.0, %v1421
      %v1423 = vpop.f32.mrf.mxu0
      %1424 = vmatprep.mubr.f32.mxu0 0.0
      %1425 = vmatmul.mubr.f32.gmra.mxu0 %v1223
      %v1426 = vpop.f32.mrf.mxu0
      %v1427 = vadd.f32 0.0, %v1426
      %v1428 = vpop.f32.mrf.mxu0
      %1429 = vmatprep.mubr.f32.mxu0 0.0
      %1430 = vmatmul.mubr.f32.gmra.mxu0 %v1224
      %v1431 = vpop.f32.mrf.mxu0
      %v1432 = vadd.f32 0.0, %v1431
      %v1433 = vpop.f32.mrf.mxu0
      %1434 = vmatprep.mubr.f32.mxu0 0.0
      %1435 = vmatmul.mubr.f32.gmra.mxu0 %v1225
      %v1436 = vpop.f32.mrf.mxu0
      %v1437 = vadd.f32 0.0, %v1436
      %v1438 = vpop.f32.mrf.mxu0
      %1439 = vmatprep.mubr.f32.mxu0 0.0
      %1440 = vmatmul.mubr.f32.gmra.mxu0 %v1226
      %v1441 = vpop.f32.mrf.mxu0
      %v1442 = vadd.f32 0.0, %v1441
      %v1443 = vpop.f32.mrf.mxu0
      %1444 = vmatprep.mubr.f32.mxu0 0.0
      %1445 = vmatmul.mubr.f32.gmra.mxu0 %v1227
      %v1446 = vpop.f32.mrf.mxu0
      %v1447 = vadd.f32 0.0, %v1446
      %v1448 = vpop.f32.mrf.mxu0
      %1449 = vmatprep.mubr.f32.mxu0 0.0
      %1450 = vmatmul.mubr.f32.gmra.mxu0 %v1228
      %v1451 = vpop.f32.mrf.mxu0
      %v1452 = vadd.f32 0.0, %v1451
      %v1453 = vpop.f32.mrf.mxu0
      %1454 = vmatprep.mubr.f32.mxu0 0.0
      %1455 = vmatmul.mubr.f32.gmra.mxu0 %v1229
      %v1456 = vpop.f32.mrf.mxu0
      %v1457 = vadd.f32 0.0, %v1456
      %v1458 = vpop.f32.mrf.mxu0
      %1459 = vmatprep.mubr.f32.mxu0 0.0
      %1460 = vmatmul.mubr.f32.gmra.mxu0 %v1230
      %v1461 = vpop.f32.mrf.mxu0
      %v1462 = vadd.f32 0.0, %v1461
      %v1463 = vpop.f32.mrf.mxu0
      %1464 = vmatprep.mubr.f32.mxu0 0.0
      %1465 = vmatmul.mubr.f32.gmra.mxu0 %v1231
      %v1466 = vpop.f32.mrf.mxu0
      %v1467 = vadd.f32 0.0, %v1466
      %v1468 = vpop.f32.mrf.mxu0
      %1469 = vmatprep.mubr.f32.mxu0 0.0
      %1470 = vmatmul.mubr.f32.gmra.mxu0 %v1232
      %v1471 = vpop.f32.mrf.mxu0
      %v1472 = vadd.f32 0.0, %v1471
      %v1473 = vpop.f32.mrf.mxu0
      %1474 = vdwg.mxu0
      %v1475 = vadd.f32 %v1166, %v1317
      %v1476 = vadd.f32 %v1167, %v1322
      %v1477 = vadd.f32 %v1168, %v1327
      %v1478 = vadd.f32 %v1169, %v1332
      %v1479 = vadd.f32 %v1170, %v1337
      %v1480 = vadd.f32 %v1171, %v1342
      %v1481 = vadd.f32 %v1172, %v1347
      %v1482 = vadd.f32 %v1173, %v1352
      %v1483 = vadd.f32 %v1174, %v1357
      %v1484 = vadd.f32 %v1175, %v1362
      %v1485 = vadd.f32 %v1176, %v1367
      %v1486 = vadd.f32 %v1177, %v1372
      %v1487 = vadd.f32 %v1178, %v1377
      %v1488 = vadd.f32 %v1179, %v1382
      %v1489 = vadd.f32 %v1180, %v1387
      %v1490 = vadd.f32 %v1181, %v1392
      %v1491 = vadd.f32 %v1182, %v1397
      %v1492 = vadd.f32 %v1183, %v1402
      %v1493 = vadd.f32 %v1184, %v1407
      %v1494 = vadd.f32 %v1185, %v1412
      %v1495 = vadd.f32 %v1186, %v1417
      %v1496 = vadd.f32 %v1187, %v1422
      %v1497 = vadd.f32 %v1188, %v1427
      %v1498 = vadd.f32 %v1189, %v1432
      %v1499 = vadd.f32 %v1190, %v1437
      %v1500 = vadd.f32 %v1191, %v1442
      %v1501 = vadd.f32 %v1192, %v1447
      %v1502 = vadd.f32 %v1193, %v1452
      %v1503 = vadd.f32 %v1194, %v1457
      %v1504 = vadd.f32 %v1195, %v1462
      %v1505 = vadd.f32 %v1196, %v1467
      %v1506 = vadd.f32 %v1197, %v1472
      %v1507 = vld [vmem:[%s1200 + $0x1] sm:$0xff]
      %v1508 = vld [vmem:[%s1200 + $0x9] sm:$0xff]
      %v1509 = vld [vmem:[%s1200 + $0x19] sm:$0xff]
      %v1510 = vld [vmem:[%s1200 + $0x21] sm:$0xff]
      %v1511 = vld [vmem:[%s1200 + $0x31] sm:$0xff]
      %v1512 = vld [vmem:[%s1200 + $0x39] sm:$0xff]
      %v1513 = vld [vmem:[%s1200 + $0x49] sm:$0xff]
      %v1514 = vld [vmem:[%s1200 + $0x51] sm:$0xff]
      %v1515 = vld [vmem:[%s1200 + $0x61] sm:$0xff]
      %v1516 = vld [vmem:[%s1200 + $0x69] sm:$0xff]
      %v1517 = vld [vmem:[%s1200 + $0x79] sm:$0xff]
      %v1518 = vld [vmem:[%s1200 + $0x81] sm:$0xff]
      %v1519 = vld [vmem:[%s1200 + $0x91] sm:$0xff]
      %v1520 = vld [vmem:[%s1200 + $0x99] sm:$0xff]
      %v1521 = vld [vmem:[%s1200 + $0xa9] sm:$0xff]
      %v1522 = vld [vmem:[%s1200 + $0xb1] sm:$0xff]
      %v1523 = vld [vmem:[%s1200 + $0xc1] sm:$0xff]
      %v1524 = vld [vmem:[%s1200 + $0xc9] sm:$0xff]
      %v1525 = vld [vmem:[%s1200 + $0xd9] sm:$0xff]
      %v1526 = vld [vmem:[%s1200 + $0xe1] sm:$0xff]
      %v1527 = vld [vmem:[%s1200 + $0xf1] sm:$0xff]
      %v1528 = vld [vmem:[%s1200 + $0xf9] sm:$0xff]
      %v1529 = vld [vmem:[%s1200 + $0x109] sm:$0xff]
      %v1530 = vld [vmem:[%s1200 + $0x111] sm:$0xff]
      %v1531 = vld [vmem:[%s1200 + $0x121] sm:$0xff]
      %v1532 = vld [vmem:[%s1200 + $0x129] sm:$0xff]
      %v1533 = vld [vmem:[%s1200 + $0x139] sm:$0xff]
      %v1534 = vld [vmem:[%s1200 + $0x141] sm:$0xff]
      %v1535 = vld [vmem:[%s1200 + $0x151] sm:$0xff]
      %v1536 = vld [vmem:[%s1200 + $0x159] sm:$0xff]
      %v1537 = vld [vmem:[%s1200 + $0x169] sm:$0xff]
      %v1538 = vld [vmem:[%s1200 + $0x171] sm:$0xff]
      %s1539 = scalar_lea.vmem %s1, 512
      %v1540 = vld [vmem:[%s1539] sm:$0xff]
      %v1541 = vld [vmem:[%s1539 + $0x8] sm:$0xff]
      %v1542 = vld [vmem:[%s1539 + $0x10] sm:$0xff]
      %v1543 = vld [vmem:[%s1539 + $0x18] sm:$0xff]
      %v1544 = vld [vmem:[%s1539 + $0x20] sm:$0xff]
      %v1545 = vld [vmem:[%s1539 + $0x28] sm:$0xff]
      %v1546 = vld [vmem:[%s1539 + $0x30] sm:$0xff]
      %v1547 = vld [vmem:[%s1539 + $0x38] sm:$0xff]
      %v1548 = vld [vmem:[%s1539 + $0x40] sm:$0xff]
      %v1549 = vld [vmem:[%s1539 + $0x48] sm:$0xff]
      %v1550 = vld [vmem:[%s1539 + $0x50] sm:$0xff]
      %v1551 = vld [vmem:[%s1539 + $0x58] sm:$0xff]
      %v1552 = vld [vmem:[%s1539 + $0x60] sm:$0xff]
      %v1553 = vld [vmem:[%s1539 + $0x68] sm:$0xff]
      %v1554 = vld [vmem:[%s1539 + $0x70] sm:$0xff]
      %v1555 = vld [vmem:[%s1539 + $0x78] sm:$0xff]
      %1556 = vmatprep.subr.mxu0 0.0
      %1557 = vmatpush1.msra.mxu0 %v1555
      %1558 = vmatprep.subr.mxu0 0.0
      %1559 = vmatpush1.msra.mxu0 %v1554
      %1560 = vmatprep.subr.mxu0 0.0
      %1561 = vmatpush1.msra.mxu0 %v1553
      %1562 = vmatprep.subr.mxu0 0.0
      %1563 = vmatpush1.msra.mxu0 %v1552
      %1564 = vmatprep.subr.mxu0 0.0
      %1565 = vmatpush1.msra.mxu0 %v1551
      %1566 = vmatprep.subr.mxu0 0.0
      %1567 = vmatpush1.msra.mxu0 %v1550
      %1568 = vmatprep.subr.mxu0 0.0
      %1569 = vmatpush1.msra.mxu0 %v1549
      %1570 = vmatprep.subr.mxu0 0.0
      %1571 = vmatpush1.msra.mxu0 %v1548
      %1572 = vmatprep.subr.mxu0 0.0
      %1573 = vmatpush1.msra.mxu0 %v1547
      %1574 = vmatprep.subr.mxu0 0.0
      %1575 = vmatpush1.msra.mxu0 %v1546
      %1576 = vmatprep.subr.mxu0 0.0
      %1577 = vmatpush1.msra.mxu0 %v1545
      %1578 = vmatprep.subr.mxu0 0.0
      %1579 = vmatpush1.msra.mxu0 %v1544
      %1580 = vmatprep.subr.mxu0 0.0
      %1581 = vmatpush1.msra.mxu0 %v1543
      %1582 = vmatprep.subr.mxu0 0.0
      %1583 = vmatpush1.msra.mxu0 %v1542
      %1584 = vmatprep.subr.mxu0 0.0
      %1585 = vmatpush1.msra.mxu0 %v1541
      %1586 = vmatprep.subr.mxu0 0.0
      %1587 = vmatpush1.msra.mxu0 %v1540
      %1588 = vmatprep.subr.mxu0 0.0
      %1589 = vmatpush2.msra.mxu0 0.0
      %1590 = vmatprep.subr.mxu0 0.0
      %1591 = vmatpush2.msra.mxu0 0.0
      %1592 = vmatprep.subr.mxu0 0.0
      %1593 = vmatpush2.msra.mxu0 0.0
      %1594 = vmatprep.subr.mxu0 0.0
      %1595 = vmatpush2.msra.mxu0 0.0
      %1596 = vmatprep.subr.mxu0 0.0
      %1597 = vmatpush2.msra.mxu0 0.0
      %1598 = vmatprep.subr.mxu0 0.0
      %1599 = vmatpush2.msra.mxu0 0.0
      %1600 = vmatprep.subr.mxu0 0.0
      %1601 = vmatpush2.msra.mxu0 0.0
      %1602 = vmatprep.subr.mxu0 0.0
      %1603 = vmatpush2.msra.mxu0 0.0
      %1604 = vmatprep.subr.mxu0 0.0
      %1605 = vmatpush2.msra.mxu0 0.0
      %1606 = vmatprep.subr.mxu0 0.0
      %1607 = vmatpush2.msra.mxu0 0.0
      %1608 = vmatprep.subr.mxu0 0.0
      %1609 = vmatpush2.msra.mxu0 0.0
      %1610 = vmatprep.subr.mxu0 0.0
      %1611 = vmatpush2.msra.mxu0 0.0
      %1612 = vmatprep.subr.mxu0 0.0
      %1613 = vmatpush2.msra.mxu0 0.0
      %1614 = vmatprep.subr.mxu0 0.0
      %1615 = vmatpush2.msra.mxu0 0.0
      %1616 = vmatprep.subr.mxu0 0.0
      %1617 = vmatpush2.msra.mxu0 0.0
      %1618 = vmatprep.subr.mxu0 0.0
      %1619 = vmatpush2.msra.mxu0 0.0
      %1620 = vmatprep.mubr.f32.mxu0 0.0
      %1621 = vmatmul.mubr.f32.gmra.mxu0 %v1507
      %v1622 = vpop.f32.mrf.mxu0
      %v1623 = vadd.f32 0.0, %v1622
      %v1624 = vpop.f32.mrf.mxu0
      %1625 = vmatprep.mubr.f32.mxu0 0.0
      %1626 = vmatmul.mubr.f32.gmra.mxu0 %v1508
      %v1627 = vpop.f32.mrf.mxu0
      %v1628 = vadd.f32 0.0, %v1627
      %v1629 = vpop.f32.mrf.mxu0
      %1630 = vmatprep.mubr.f32.mxu0 0.0
      %1631 = vmatmul.mubr.f32.gmra.mxu0 %v1509
      %v1632 = vpop.f32.mrf.mxu0
      %v1633 = vadd.f32 0.0, %v1632
      %v1634 = vpop.f32.mrf.mxu0
      %1635 = vmatprep.mubr.f32.mxu0 0.0
      %1636 = vmatmul.mubr.f32.gmra.mxu0 %v1510
      %v1637 = vpop.f32.mrf.mxu0
      %v1638 = vadd.f32 0.0, %v1637
      %v1639 = vpop.f32.mrf.mxu0
      %1640 = vmatprep.mubr.f32.mxu0 0.0
      %1641 = vmatmul.mubr.f32.gmra.mxu0 %v1511
      %v1642 = vpop.f32.mrf.mxu0
      %v1643 = vadd.f32 0.0, %v1642
      %v1644 = vpop.f32.mrf.mxu0
      %1645 = vmatprep.mubr.f32.mxu0 0.0
      %1646 = vmatmul.mubr.f32.gmra.mxu0 %v1512
      %v1647 = vpop.f32.mrf.mxu0
      %v1648 = vadd.f32 0.0, %v1647
      %v1649 = vpop.f32.mrf.mxu0
      %1650 = vmatprep.mubr.f32.mxu0 0.0
      %1651 = vmatmul.mubr.f32.gmra.mxu0 %v1513
      %v1652 = vpop.f32.mrf.mxu0
      %v1653 = vadd.f32 0.0, %v1652
      %v1654 = vpop.f32.mrf.mxu0
      %1655 = vmatprep.mubr.f32.mxu0 0.0
      %1656 = vmatmul.mubr.f32.gmra.mxu0 %v1514
      %v1657 = vpop.f32.mrf.mxu0
      %v1658 = vadd.f32 0.0, %v1657
      %v1659 = vpop.f32.mrf.mxu0
      %1660 = vmatprep.mubr.f32.mxu0 0.0
      %1661 = vmatmul.mubr.f32.gmra.mxu0 %v1515
      %v1662 = vpop.f32.mrf.mxu0
      %v1663 = vadd.f32 0.0, %v1662
      %v1664 = vpop.f32.mrf.mxu0
      %1665 = vmatprep.mubr.f32.mxu0 0.0
      %1666 = vmatmul.mubr.f32.gmra.mxu0 %v1516
      %v1667 = vpop.f32.mrf.mxu0
      %v1668 = vadd.f32 0.0, %v1667
      %v1669 = vpop.f32.mrf.mxu0
      %1670 = vmatprep.mubr.f32.mxu0 0.0
      %1671 = vmatmul.mubr.f32.gmra.mxu0 %v1517
      %v1672 = vpop.f32.mrf.mxu0
      %v1673 = vadd.f32 0.0, %v1672
      %v1674 = vpop.f32.mrf.mxu0
      %1675 = vmatprep.mubr.f32.mxu0 0.0
      %1676 = vmatmul.mubr.f32.gmra.mxu0 %v1518
      %v1677 = vpop.f32.mrf.mxu0
      %v1678 = vadd.f32 0.0, %v1677
      %v1679 = vpop.f32.mrf.mxu0
      %1680 = vmatprep.mubr.f32.mxu0 0.0
      %1681 = vmatmul.mubr.f32.gmra.mxu0 %v1519
      %v1682 = vpop.f32.mrf.mxu0
      %v1683 = vadd.f32 0.0, %v1682
      %v1684 = vpop.f32.mrf.mxu0
      %1685 = vmatprep.mubr.f32.mxu0 0.0
      %1686 = vmatmul.mubr.f32.gmra.mxu0 %v1520
      %v1687 = vpop.f32.mrf.mxu0
      %v1688 = vadd.f32 0.0, %v1687
      %v1689 = vpop.f32.mrf.mxu0
      %1690 = vmatprep.mubr.f32.mxu0 0.0
      %1691 = vmatmul.mubr.f32.gmra.mxu0 %v1521
      %v1692 = vpop.f32.mrf.mxu0
      %v1693 = vadd.f32 0.0, %v1692
      %v1694 = vpop.f32.mrf.mxu0
      %1695 = vmatprep.mubr.f32.mxu0 0.0
      %1696 = vmatmul.mubr.f32.gmra.mxu0 %v1522
      %v1697 = vpop.f32.mrf.mxu0
      %v1698 = vadd.f32 0.0, %v1697
      %v1699 = vpop.f32.mrf.mxu0
      %1700 = vmatprep.mubr.f32.mxu0 0.0
      %1701 = vmatmul.mubr.f32.gmra.mxu0 %v1523
      %v1702 = vpop.f32.mrf.mxu0
      %v1703 = vadd.f32 0.0, %v1702
      %v1704 = vpop.f32.mrf.mxu0
      %1705 = vmatprep.mubr.f32.mxu0 0.0
      %1706 = vmatmul.mubr.f32.gmra.mxu0 %v1524
      %v1707 = vpop.f32.mrf.mxu0
      %v1708 = vadd.f32 0.0, %v1707
      %v1709 = vpop.f32.mrf.mxu0
      %1710 = vmatprep.mubr.f32.mxu0 0.0
      %1711 = vmatmul.mubr.f32.gmra.mxu0 %v1525
      %v1712 = vpop.f32.mrf.mxu0
      %v1713 = vadd.f32 0.0, %v1712
      %v1714 = vpop.f32.mrf.mxu0
      %1715 = vmatprep.mubr.f32.mxu0 0.0
      %1716 = vmatmul.mubr.f32.gmra.mxu0 %v1526
      %v1717 = vpop.f32.mrf.mxu0
      %v1718 = vadd.f32 0.0, %v1717
      %v1719 = vpop.f32.mrf.mxu0
      %1720 = vmatprep.mubr.f32.mxu0 0.0
      %1721 = vmatmul.mubr.f32.gmra.mxu0 %v1527
      %v1722 = vpop.f32.mrf.mxu0
      %v1723 = vadd.f32 0.0, %v1722
      %v1724 = vpop.f32.mrf.mxu0
      %1725 = vmatprep.mubr.f32.mxu0 0.0
      %1726 = vmatmul.mubr.f32.gmra.mxu0 %v1528
      %v1727 = vpop.f32.mrf.mxu0
      %v1728 = vadd.f32 0.0, %v1727
      %v1729 = vpop.f32.mrf.mxu0
      %1730 = vmatprep.mubr.f32.mxu0 0.0
      %1731 = vmatmul.mubr.f32.gmra.mxu0 %v1529
      %v1732 = vpop.f32.mrf.mxu0
      %v1733 = vadd.f32 0.0, %v1732
      %v1734 = vpop.f32.mrf.mxu0
      %1735 = vmatprep.mubr.f32.mxu0 0.0
      %1736 = vmatmul.mubr.f32.gmra.mxu0 %v1530
      %v1737 = vpop.f32.mrf.mxu0
      %v1738 = vadd.f32 0.0, %v1737
      %v1739 = vpop.f32.mrf.mxu0
      %1740 = vmatprep.mubr.f32.mxu0 0.0
      %1741 = vmatmul.mubr.f32.gmra.mxu0 %v1531
      %v1742 = vpop.f32.mrf.mxu0
      %v1743 = vadd.f32 0.0, %v1742
      %v1744 = vpop.f32.mrf.mxu0
      %1745 = vmatprep.mubr.f32.mxu0 0.0
      %1746 = vmatmul.mubr.f32.gmra.mxu0 %v1532
      %v1747 = vpop.f32.mrf.mxu0
      %v1748 = vadd.f32 0.0, %v1747
      %v1749 = vpop.f32.mrf.mxu0
      %1750 = vmatprep.mubr.f32.mxu0 0.0
      %1751 = vmatmul.mubr.f32.gmra.mxu0 %v1533
      %v1752 = vpop.f32.mrf.mxu0
      %v1753 = vadd.f32 0.0, %v1752
      %v1754 = vpop.f32.mrf.mxu0
      %1755 = vmatprep.mubr.f32.mxu0 0.0
      %1756 = vmatmul.mubr.f32.gmra.mxu0 %v1534
      %v1757 = vpop.f32.mrf.mxu0
      %v1758 = vadd.f32 0.0, %v1757
      %v1759 = vpop.f32.mrf.mxu0
      %1760 = vmatprep.mubr.f32.mxu0 0.0
      %1761 = vmatmul.mubr.f32.gmra.mxu0 %v1535
      %v1762 = vpop.f32.mrf.mxu0
      %v1763 = vadd.f32 0.0, %v1762
      %v1764 = vpop.f32.mrf.mxu0
      %1765 = vmatprep.mubr.f32.mxu0 0.0
      %1766 = vmatmul.mubr.f32.gmra.mxu0 %v1536
      %v1767 = vpop.f32.mrf.mxu0
      %v1768 = vadd.f32 0.0, %v1767
      %v1769 = vpop.f32.mrf.mxu0
      %1770 = vmatprep.mubr.f32.mxu0 0.0
      %1771 = vmatmul.mubr.f32.gmra.mxu0 %v1537
      %v1772 = vpop.f32.mrf.mxu0
      %v1773 = vadd.f32 0.0, %v1772
      %v1774 = vpop.f32.mrf.mxu0
      %1775 = vmatprep.mubr.f32.mxu0 0.0
      %1776 = vmatmul.mubr.f32.gmra.mxu0 %v1538
      %v1777 = vpop.f32.mrf.mxu0
      %v1778 = vadd.f32 0.0, %v1777
      %v1779 = vpop.f32.mrf.mxu0
      %1780 = vdwg.mxu0
      %v1781 = vadd.f32 %v1475, %v1623
      %v1782 = vadd.f32 %v1476, %v1628
      %v1783 = vadd.f32 %v1477, %v1633
      %v1784 = vadd.f32 %v1478, %v1638
      %v1785 = vadd.f32 %v1479, %v1643
      %v1786 = vadd.f32 %v1480, %v1648
      %v1787 = vadd.f32 %v1481, %v1653
      %v1788 = vadd.f32 %v1482, %v1658
      %v1789 = vadd.f32 %v1483, %v1663
      %v1790 = vadd.f32 %v1484, %v1668
      %v1791 = vadd.f32 %v1485, %v1673
      %v1792 = vadd.f32 %v1486, %v1678
      %v1793 = vadd.f32 %v1487, %v1683
      %v1794 = vadd.f32 %v1488, %v1688
      %v1795 = vadd.f32 %v1489, %v1693
      %v1796 = vadd.f32 %v1490, %v1698
      %v1797 = vadd.f32 %v1491, %v1703
      %v1798 = vadd.f32 %v1492, %v1708
      %v1799 = vadd.f32 %v1493, %v1713
      %v1800 = vadd.f32 %v1494, %v1718
      %v1801 = vadd.f32 %v1495, %v1723
      %v1802 = vadd.f32 %v1496, %v1728
      %v1803 = vadd.f32 %v1497, %v1733
      %v1804 = vadd.f32 %v1498, %v1738
      %v1805 = vadd.f32 %v1499, %v1743
      %v1806 = vadd.f32 %v1500, %v1748
      %v1807 = vadd.f32 %v1501, %v1753
      %v1808 = vadd.f32 %v1502, %v1758
      %v1809 = vadd.f32 %v1503, %v1763
      %v1810 = vadd.f32 %v1504, %v1768
      %v1811 = vadd.f32 %v1505, %v1773
      %v1812 = vadd.f32 %v1506, %v1778
      %v1813 = vld [vmem:[%s1200 + $0x2] sm:$0xff]
      %v1814 = vld [vmem:[%s1200 + $0xa] sm:$0xff]
      %v1815 = vld [vmem:[%s1200 + $0x1a] sm:$0xff]
      %v1816 = vld [vmem:[%s1200 + $0x22] sm:$0xff]
      %v1817 = vld [vmem:[%s1200 + $0x32] sm:$0xff]
      %v1818 = vld [vmem:[%s1200 + $0x3a] sm:$0xff]
      %v1819 = vld [vmem:[%s1200 + $0x4a] sm:$0xff]
      %v1820 = vld [vmem:[%s1200 + $0x52] sm:$0xff]
      %v1821 = vld [vmem:[%s1200 + $0x62] sm:$0xff]
      %v1822 = vld [vmem:[%s1200 + $0x6a] sm:$0xff]
      %v1823 = vld [vmem:[%s1200 + $0x7a] sm:$0xff]
      %v1824 = vld [vmem:[%s1200 + $0x82] sm:$0xff]
      %v1825 = vld [vmem:[%s1200 + $0x92] sm:$0xff]
      %v1826 = vld [vmem:[%s1200 + $0x9a] sm:$0xff]
      %v1827 = vld [vmem:[%s1200 + $0xaa] sm:$0xff]
      %v1828 = vld [vmem:[%s1200 + $0xb2] sm:$0xff]
      %v1829 = vld [vmem:[%s1200 + $0xc2] sm:$0xff]
      %v1830 = vld [vmem:[%s1200 + $0xca] sm:$0xff]
      %v1831 = vld [vmem:[%s1200 + $0xda] sm:$0xff]
      %v1832 = vld [vmem:[%s1200 + $0xe2] sm:$0xff]
      %v1833 = vld [vmem:[%s1200 + $0xf2] sm:$0xff]
      %v1834 = vld [vmem:[%s1200 + $0xfa] sm:$0xff]
      %v1835 = vld [vmem:[%s1200 + $0x10a] sm:$0xff]
      %v1836 = vld [vmem:[%s1200 + $0x112] sm:$0xff]
      %v1837 = vld [vmem:[%s1200 + $0x122] sm:$0xff]
      %v1838 = vld [vmem:[%s1200 + $0x12a] sm:$0xff]
      %v1839 = vld [vmem:[%s1200 + $0x13a] sm:$0xff]
      %v1840 = vld [vmem:[%s1200 + $0x142] sm:$0xff]
      %v1841 = vld [vmem:[%s1200 + $0x152] sm:$0xff]
      %v1842 = vld [vmem:[%s1200 + $0x15a] sm:$0xff]
      %v1843 = vld [vmem:[%s1200 + $0x16a] sm:$0xff]
      %v1844 = vld [vmem:[%s1200 + $0x172] sm:$0xff]
      %s1845 = scalar_lea.vmem %s1, 640
      %v1846 = vld [vmem:[%s1845] sm:$0xff]
      %v1847 = vld [vmem:[%s1845 + $0x8] sm:$0xff]
      %v1848 = vld [vmem:[%s1845 + $0x10] sm:$0xff]
      %v1849 = vld [vmem:[%s1845 + $0x18] sm:$0xff]
      %v1850 = vld [vmem:[%s1845 + $0x20] sm:$0xff]
      %v1851 = vld [vmem:[%s1845 + $0x28] sm:$0xff]
      %v1852 = vld [vmem:[%s1845 + $0x30] sm:$0xff]
      %v1853 = vld [vmem:[%s1845 + $0x38] sm:$0xff]
      %v1854 = vld [vmem:[%s1845 + $0x40] sm:$0xff]
      %v1855 = vld [vmem:[%s1845 + $0x48] sm:$0xff]
      %v1856 = vld [vmem:[%s1845 + $0x50] sm:$0xff]
      %v1857 = vld [vmem:[%s1845 + $0x58] sm:$0xff]
      %v1858 = vld [vmem:[%s1845 + $0x60] sm:$0xff]
      %v1859 = vld [vmem:[%s1845 + $0x68] sm:$0xff]
      %v1860 = vld [vmem:[%s1845 + $0x70] sm:$0xff]
      %v1861 = vld [vmem:[%s1845 + $0x78] sm:$0xff]
      %1862 = vmatprep.subr.mxu0 0.0
      %1863 = vmatpush1.msra.mxu0 %v1861
      %1864 = vmatprep.subr.mxu0 0.0
      %1865 = vmatpush1.msra.mxu0 %v1860
      %1866 = vmatprep.subr.mxu0 0.0
      %1867 = vmatpush1.msra.mxu0 %v1859
      %1868 = vmatprep.subr.mxu0 0.0
      %1869 = vmatpush1.msra.mxu0 %v1858
      %1870 = vmatprep.subr.mxu0 0.0
      %1871 = vmatpush1.msra.mxu0 %v1857
      %1872 = vmatprep.subr.mxu0 0.0
      %1873 = vmatpush1.msra.mxu0 %v1856
      %1874 = vmatprep.subr.mxu0 0.0
      %1875 = vmatpush1.msra.mxu0 %v1855
      %1876 = vmatprep.subr.mxu0 0.0
      %1877 = vmatpush1.msra.mxu0 %v1854
      %1878 = vmatprep.subr.mxu0 0.0
      %1879 = vmatpush1.msra.mxu0 %v1853
      %1880 = vmatprep.subr.mxu0 0.0
      %1881 = vmatpush1.msra.mxu0 %v1852
      %1882 = vmatprep.subr.mxu0 0.0
      %1883 = vmatpush1.msra.mxu0 %v1851
      %1884 = vmatprep.subr.mxu0 0.0
      %1885 = vmatpush1.msra.mxu0 %v1850
      %1886 = vmatprep.subr.mxu0 0.0
      %1887 = vmatpush1.msra.mxu0 %v1849
      %1888 = vmatprep.subr.mxu0 0.0
      %1889 = vmatpush1.msra.mxu0 %v1848
      %1890 = vmatprep.subr.mxu0 0.0
      %1891 = vmatpush1.msra.mxu0 %v1847
      %1892 = vmatprep.subr.mxu0 0.0
      %1893 = vmatpush1.msra.mxu0 %v1846
      %1894 = vmatprep.subr.mxu0 0.0
      %1895 = vmatpush2.msra.mxu0 0.0
      %1896 = vmatprep.subr.mxu0 0.0
      %1897 = vmatpush2.msra.mxu0 0.0
      %1898 = vmatprep.subr.mxu0 0.0
      %1899 = vmatpush2.msra.mxu0 0.0
      %1900 = vmatprep.subr.mxu0 0.0
      %1901 = vmatpush2.msra.mxu0 0.0
      %1902 = vmatprep.subr.mxu0 0.0
      %1903 = vmatpush2.msra.mxu0 0.0
      %1904 = vmatprep.subr.mxu0 0.0
      %1905 = vmatpush2.msra.mxu0 0.0
      %1906 = vmatprep.subr.mxu0 0.0
      %1907 = vmatpush2.msra.mxu0 0.0
      %1908 = vmatprep.subr.mxu0 0.0
      %1909 = vmatpush2.msra.mxu0 0.0
      %1910 = vmatprep.subr.mxu0 0.0
      %1911 = vmatpush2.msra.mxu0 0.0
      %1912 = vmatprep.subr.mxu0 0.0
      %1913 = vmatpush2.msra.mxu0 0.0
      %1914 = vmatprep.subr.mxu0 0.0
      %1915 = vmatpush2.msra.mxu0 0.0
      %1916 = vmatprep.subr.mxu0 0.0
      %1917 = vmatpush2.msra.mxu0 0.0
      %1918 = vmatprep.subr.mxu0 0.0
      %1919 = vmatpush2.msra.mxu0 0.0
      %1920 = vmatprep.subr.mxu0 0.0
      %1921 = vmatpush2.msra.mxu0 0.0
      %1922 = vmatprep.subr.mxu0 0.0
      %1923 = vmatpush2.msra.mxu0 0.0
      %1924 = vmatprep.subr.mxu0 0.0
      %1925 = vmatpush2.msra.mxu0 0.0
      %1926 = vmatprep.mubr.f32.mxu0 0.0
      %1927 = vmatmul.mubr.f32.gmra.mxu0 %v1813
      %v1928 = vpop.f32.mrf.mxu0
      %v1929 = vadd.f32 0.0, %v1928
      %v1930 = vpop.f32.mrf.mxu0
      %1931 = vmatprep.mubr.f32.mxu0 0.0
      %1932 = vmatmul.mubr.f32.gmra.mxu0 %v1814
      %v1933 = vpop.f32.mrf.mxu0
      %v1934 = vadd.f32 0.0, %v1933
      %v1935 = vpop.f32.mrf.mxu0
      %1936 = vmatprep.mubr.f32.mxu0 0.0
      %1937 = vmatmul.mubr.f32.gmra.mxu0 %v1815
      %v1938 = vpop.f32.mrf.mxu0
      %v1939 = vadd.f32 0.0, %v1938
      %v1940 = vpop.f32.mrf.mxu0
      %1941 = vmatprep.mubr.f32.mxu0 0.0
      %1942 = vmatmul.mubr.f32.gmra.mxu0 %v1816
      %v1943 = vpop.f32.mrf.mxu0
      %v1944 = vadd.f32 0.0, %v1943
      %v1945 = vpop.f32.mrf.mxu0
      %1946 = vmatprep.mubr.f32.mxu0 0.0
      %1947 = vmatmul.mubr.f32.gmra.mxu0 %v1817
      %v1948 = vpop.f32.mrf.mxu0
      %v1949 = vadd.f32 0.0, %v1948
      %v1950 = vpop.f32.mrf.mxu0
      %1951 = vmatprep.mubr.f32.mxu0 0.0
      %1952 = vmatmul.mubr.f32.gmra.mxu0 %v1818
      %v1953 = vpop.f32.mrf.mxu0
      %v1954 = vadd.f32 0.0, %v1953
      %v1955 = vpop.f32.mrf.mxu0
      %1956 = vmatprep.mubr.f32.mxu0 0.0
      %1957 = vmatmul.mubr.f32.gmra.mxu0 %v1819
      %v1958 = vpop.f32.mrf.mxu0
      %v1959 = vadd.f32 0.0, %v1958
      %v1960 = vpop.f32.mrf.mxu0
      %1961 = vmatprep.mubr.f32.mxu0 0.0
      %1962 = vmatmul.mubr.f32.gmra.mxu0 %v1820
      %v1963 = vpop.f32.mrf.mxu0
      %v1964 = vadd.f32 0.0, %v1963
      %v1965 = vpop.f32.mrf.mxu0
      %1966 = vmatprep.mubr.f32.mxu0 0.0
      %1967 = vmatmul.mubr.f32.gmra.mxu0 %v1821
      %v1968 = vpop.f32.mrf.mxu0
      %v1969 = vadd.f32 0.0, %v1968
      %v1970 = vpop.f32.mrf.mxu0
      %1971 = vmatprep.mubr.f32.mxu0 0.0
      %1972 = vmatmul.mubr.f32.gmra.mxu0 %v1822
      %v1973 = vpop.f32.mrf.mxu0
      %v1974 = vadd.f32 0.0, %v1973
      %v1975 = vpop.f32.mrf.mxu0
      %1976 = vmatprep.mubr.f32.mxu0 0.0
      %1977 = vmatmul.mubr.f32.gmra.mxu0 %v1823
      %v1978 = vpop.f32.mrf.mxu0
      %v1979 = vadd.f32 0.0, %v1978
      %v1980 = vpop.f32.mrf.mxu0
      %1981 = vmatprep.mubr.f32.mxu0 0.0
      %1982 = vmatmul.mubr.f32.gmra.mxu0 %v1824
      %v1983 = vpop.f32.mrf.mxu0
      %v1984 = vadd.f32 0.0, %v1983
      %v1985 = vpop.f32.mrf.mxu0
      %1986 = vmatprep.mubr.f32.mxu0 0.0
      %1987 = vmatmul.mubr.f32.gmra.mxu0 %v1825
      %v1988 = vpop.f32.mrf.mxu0
      %v1989 = vadd.f32 0.0, %v1988
      %v1990 = vpop.f32.mrf.mxu0
      %1991 = vmatprep.mubr.f32.mxu0 0.0
      %1992 = vmatmul.mubr.f32.gmra.mxu0 %v1826
      %v1993 = vpop.f32.mrf.mxu0
      %v1994 = vadd.f32 0.0, %v1993
      %v1995 = vpop.f32.mrf.mxu0
      %1996 = vmatprep.mubr.f32.mxu0 0.0
      %1997 = vmatmul.mubr.f32.gmra.mxu0 %v1827
      %v1998 = vpop.f32.mrf.mxu0
      %v1999 = vadd.f32 0.0, %v1998
      %v2000 = vpop.f32.mrf.mxu0
      %2001 = vmatprep.mubr.f32.mxu0 0.0
      %2002 = vmatmul.mubr.f32.gmra.mxu0 %v1828
      %v2003 = vpop.f32.mrf.mxu0
      %v2004 = vadd.f32 0.0, %v2003
      %v2005 = vpop.f32.mrf.mxu0
      %2006 = vmatprep.mubr.f32.mxu0 0.0
      %2007 = vmatmul.mubr.f32.gmra.mxu0 %v1829
      %v2008 = vpop.f32.mrf.mxu0
      %v2009 = vadd.f32 0.0, %v2008
      %v2010 = vpop.f32.mrf.mxu0
      %2011 = vmatprep.mubr.f32.mxu0 0.0
      %2012 = vmatmul.mubr.f32.gmra.mxu0 %v1830
      %v2013 = vpop.f32.mrf.mxu0
      %v2014 = vadd.f32 0.0, %v2013
      %v2015 = vpop.f32.mrf.mxu0
      %2016 = vmatprep.mubr.f32.mxu0 0.0
      %2017 = vmatmul.mubr.f32.gmra.mxu0 %v1831
      %v2018 = vpop.f32.mrf.mxu0
      %v2019 = vadd.f32 0.0, %v2018
      %v2020 = vpop.f32.mrf.mxu0
      %2021 = vmatprep.mubr.f32.mxu0 0.0
      %2022 = vmatmul.mubr.f32.gmra.mxu0 %v1832
      %v2023 = vpop.f32.mrf.mxu0
      %v2024 = vadd.f32 0.0, %v2023
      %v2025 = vpop.f32.mrf.mxu0
      %2026 = vmatprep.mubr.f32.mxu0 0.0
      %2027 = vmatmul.mubr.f32.gmra.mxu0 %v1833
      %v2028 = vpop.f32.mrf.mxu0
      %v2029 = vadd.f32 0.0, %v2028
      %v2030 = vpop.f32.mrf.mxu0
      %2031 = vmatprep.mubr.f32.mxu0 0.0
      %2032 = vmatmul.mubr.f32.gmra.mxu0 %v1834
      %v2033 = vpop.f32.mrf.mxu0
      %v2034 = vadd.f32 0.0, %v2033
      %v2035 = vpop.f32.mrf.mxu0
      %2036 = vmatprep.mubr.f32.mxu0 0.0
      %2037 = vmatmul.mubr.f32.gmra.mxu0 %v1835
      %v2038 = vpop.f32.mrf.mxu0
      %v2039 = vadd.f32 0.0, %v2038
      %v2040 = vpop.f32.mrf.mxu0
      %2041 = vmatprep.mubr.f32.mxu0 0.0
      %2042 = vmatmul.mubr.f32.gmra.mxu0 %v1836
      %v2043 = vpop.f32.mrf.mxu0
      %v2044 = vadd.f32 0.0, %v2043
      %v2045 = vpop.f32.mrf.mxu0
      %2046 = vmatprep.mubr.f32.mxu0 0.0
      %2047 = vmatmul.mubr.f32.gmra.mxu0 %v1837
      %v2048 = vpop.f32.mrf.mxu0
      %v2049 = vadd.f32 0.0, %v2048
      %v2050 = vpop.f32.mrf.mxu0
      %2051 = vmatprep.mubr.f32.mxu0 0.0
      %2052 = vmatmul.mubr.f32.gmra.mxu0 %v1838
      %v2053 = vpop.f32.mrf.mxu0
      %v2054 = vadd.f32 0.0, %v2053
      %v2055 = vpop.f32.mrf.mxu0
      %2056 = vmatprep.mubr.f32.mxu0 0.0
      %2057 = vmatmul.mubr.f32.gmra.mxu0 %v1839
      %v2058 = vpop.f32.mrf.mxu0
      %v2059 = vadd.f32 0.0, %v2058
      %v2060 = vpop.f32.mrf.mxu0
      %2061 = vmatprep.mubr.f32.mxu0 0.0
      %2062 = vmatmul.mubr.f32.gmra.mxu0 %v1840
      %v2063 = vpop.f32.mrf.mxu0
      %v2064 = vadd.f32 0.0, %v2063
      %v2065 = vpop.f32.mrf.mxu0
      %2066 = vmatprep.mubr.f32.mxu0 0.0
      %2067 = vmatmul.mubr.f32.gmra.mxu0 %v1841
      %v2068 = vpop.f32.mrf.mxu0
      %v2069 = vadd.f32 0.0, %v2068
      %v2070 = vpop.f32.mrf.mxu0
      %2071 = vmatprep.mubr.f32.mxu0 0.0
      %2072 = vmatmul.mubr.f32.gmra.mxu0 %v1842
      %v2073 = vpop.f32.mrf.mxu0
      %v2074 = vadd.f32 0.0, %v2073
      %v2075 = vpop.f32.mrf.mxu0
      %2076 = vmatprep.mubr.f32.mxu0 0.0
      %2077 = vmatmul.mubr.f32.gmra.mxu0 %v1843
      %v2078 = vpop.f32.mrf.mxu0
      %v2079 = vadd.f32 0.0, %v2078
      %v2080 = vpop.f32.mrf.mxu0
      %2081 = vmatprep.mubr.f32.mxu0 0.0
      %2082 = vmatmul.mubr.f32.gmra.mxu0 %v1844
      %v2083 = vpop.f32.mrf.mxu0
      %v2084 = vadd.f32 0.0, %v2083
      %v2085 = vpop.f32.mrf.mxu0
      %2086 = vdwg.mxu0
      %v2087 = vadd.f32 %v1781, %v1929
      %v2088 = vadd.f32 %v1782, %v1934
      %v2089 = vadd.f32 %v1783, %v1939
      %v2090 = vadd.f32 %v1784, %v1944
      %v2091 = vadd.f32 %v1785, %v1949
      %v2092 = vadd.f32 %v1786, %v1954
      %v2093 = vadd.f32 %v1787, %v1959
      %v2094 = vadd.f32 %v1788, %v1964
      %v2095 = vadd.f32 %v1789, %v1969
      %v2096 = vadd.f32 %v1790, %v1974
      %v2097 = vadd.f32 %v1791, %v1979
      %v2098 = vadd.f32 %v1792, %v1984
      %v2099 = vadd.f32 %v1793, %v1989
      %v2100 = vadd.f32 %v1794, %v1994
      %v2101 = vadd.f32 %v1795, %v1999
      %v2102 = vadd.f32 %v1796, %v2004
      %v2103 = vadd.f32 %v1797, %v2009
      %v2104 = vadd.f32 %v1798, %v2014
      %v2105 = vadd.f32 %v1799, %v2019
      %v2106 = vadd.f32 %v1800, %v2024
      %v2107 = vadd.f32 %v1801, %v2029
      %v2108 = vadd.f32 %v1802, %v2034
      %v2109 = vadd.f32 %v1803, %v2039
      %v2110 = vadd.f32 %v1804, %v2044
      %v2111 = vadd.f32 %v1805, %v2049
      %v2112 = vadd.f32 %v1806, %v2054
      %v2113 = vadd.f32 %v1807, %v2059
      %v2114 = vadd.f32 %v1808, %v2064
      %v2115 = vadd.f32 %v1809, %v2069
      %v2116 = vadd.f32 %v1810, %v2074
      %v2117 = vadd.f32 %v1811, %v2079
      %v2118 = vadd.f32 %v1812, %v2084
      %s2119 = sadd.s32 %s342, 2
      %s2120 = smul.u32 %s2119, 24
      %s2121 = scalar_lea.vmem [#allocation2], %s2120
      %v2122 = vld [vmem:[%s2121] sm:$0xff]
      %v2123 = vld [vmem:[%s2121 + $0x8] sm:$0xff]
      %v2124 = vld [vmem:[%s2121 + $0x18] sm:$0xff]
      %v2125 = vld [vmem:[%s2121 + $0x20] sm:$0xff]
      %v2126 = vld [vmem:[%s2121 + $0x30] sm:$0xff]
      %v2127 = vld [vmem:[%s2121 + $0x38] sm:$0xff]
      %v2128 = vld [vmem:[%s2121 + $0x48] sm:$0xff]
      %v2129 = vld [vmem:[%s2121 + $0x50] sm:$0xff]
      %v2130 = vld [vmem:[%s2121 + $0x60] sm:$0xff]
      %v2131 = vld [vmem:[%s2121 + $0x68] sm:$0xff]
      %v2132 = vld [vmem:[%s2121 + $0x78] sm:$0xff]
      %v2133 = vld [vmem:[%s2121 + $0x80] sm:$0xff]
      %v2134 = vld [vmem:[%s2121 + $0x90] sm:$0xff]
      %v2135 = vld [vmem:[%s2121 + $0x98] sm:$0xff]
      %v2136 = vld [vmem:[%s2121 + $0xa8] sm:$0xff]
      %v2137 = vld [vmem:[%s2121 + $0xb0] sm:$0xff]
      %v2138 = vld [vmem:[%s2121 + $0xc0] sm:$0xff]
      %v2139 = vld [vmem:[%s2121 + $0xc8] sm:$0xff]
      %v2140 = vld [vmem:[%s2121 + $0xd8] sm:$0xff]
      %v2141 = vld [vmem:[%s2121 + $0xe0] sm:$0xff]
      %v2142 = vld [vmem:[%s2121 + $0xf0] sm:$0xff]
      %v2143 = vld [vmem:[%s2121 + $0xf8] sm:$0xff]
      %v2144 = vld [vmem:[%s2121 + $0x108] sm:$0xff]
      %v2145 = vld [vmem:[%s2121 + $0x110] sm:$0xff]
      %v2146 = vld [vmem:[%s2121 + $0x120] sm:$0xff]
      %v2147 = vld [vmem:[%s2121 + $0x128] sm:$0xff]
      %v2148 = vld [vmem:[%s2121 + $0x138] sm:$0xff]
      %v2149 = vld [vmem:[%s2121 + $0x140] sm:$0xff]
      %v2150 = vld [vmem:[%s2121 + $0x150] sm:$0xff]
      %v2151 = vld [vmem:[%s2121 + $0x158] sm:$0xff]
      %v2152 = vld [vmem:[%s2121 + $0x168] sm:$0xff]
      %v2153 = vld [vmem:[%s2121 + $0x170] sm:$0xff]
      %s2154 = scalar_lea.vmem %s1, 768
      %v2155 = vld [vmem:[%s2154] sm:$0xff]
      %v2156 = vld [vmem:[%s2154 + $0x8] sm:$0xff]
      %v2157 = vld [vmem:[%s2154 + $0x10] sm:$0xff]
      %v2158 = vld [vmem:[%s2154 + $0x18] sm:$0xff]
      %v2159 = vld [vmem:[%s2154 + $0x20] sm:$0xff]
      %v2160 = vld [vmem:[%s2154 + $0x28] sm:$0xff]
      %v2161 = vld [vmem:[%s2154 + $0x30] sm:$0xff]
      %v2162 = vld [vmem:[%s2154 + $0x38] sm:$0xff]
      %v2163 = vld [vmem:[%s2154 + $0x40] sm:$0xff]
      %v2164 = vld [vmem:[%s2154 + $0x48] sm:$0xff]
      %v2165 = vld [vmem:[%s2154 + $0x50] sm:$0xff]
      %v2166 = vld [vmem:[%s2154 + $0x58] sm:$0xff]
      %v2167 = vld [vmem:[%s2154 + $0x60] sm:$0xff]
      %v2168 = vld [vmem:[%s2154 + $0x68] sm:$0xff]
      %v2169 = vld [vmem:[%s2154 + $0x70] sm:$0xff]
      %v2170 = vld [vmem:[%s2154 + $0x78] sm:$0xff]
      %2171 = vmatprep.subr.mxu0 0.0
      %2172 = vmatpush1.msra.mxu0 %v2170
      %2173 = vmatprep.subr.mxu0 0.0
      %2174 = vmatpush1.msra.mxu0 %v2169
      %2175 = vmatprep.subr.mxu0 0.0
      %2176 = vmatpush1.msra.mxu0 %v2168
      %2177 = vmatprep.subr.mxu0 0.0
      %2178 = vmatpush1.msra.mxu0 %v2167
      %2179 = vmatprep.subr.mxu0 0.0
      %2180 = vmatpush1.msra.mxu0 %v2166
      %2181 = vmatprep.subr.mxu0 0.0
      %2182 = vmatpush1.msra.mxu0 %v2165
      %2183 = vmatprep.subr.mxu0 0.0
      %2184 = vmatpush1.msra.mxu0 %v2164
      %2185 = vmatprep.subr.mxu0 0.0
      %2186 = vmatpush1.msra.mxu0 %v2163
      %2187 = vmatprep.subr.mxu0 0.0
      %2188 = vmatpush1.msra.mxu0 %v2162
      %2189 = vmatprep.subr.mxu0 0.0
      %2190 = vmatpush1.msra.mxu0 %v2161
      %2191 = vmatprep.subr.mxu0 0.0
      %2192 = vmatpush1.msra.mxu0 %v2160
      %2193 = vmatprep.subr.mxu0 0.0
      %2194 = vmatpush1.msra.mxu0 %v2159
      %2195 = vmatprep.subr.mxu0 0.0
      %2196 = vmatpush1.msra.mxu0 %v2158
      %2197 = vmatprep.subr.mxu0 0.0
      %2198 = vmatpush1.msra.mxu0 %v2157
      %2199 = vmatprep.subr.mxu0 0.0
      %2200 = vmatpush1.msra.mxu0 %v2156
      %2201 = vmatprep.subr.mxu0 0.0
      %2202 = vmatpush1.msra.mxu0 %v2155
      %2203 = vmatprep.subr.mxu0 0.0
      %2204 = vmatpush2.msra.mxu0 0.0
      %2205 = vmatprep.subr.mxu0 0.0
      %2206 = vmatpush2.msra.mxu0 0.0
      %2207 = vmatprep.subr.mxu0 0.0
      %2208 = vmatpush2.msra.mxu0 0.0
      %2209 = vmatprep.subr.mxu0 0.0
      %2210 = vmatpush2.msra.mxu0 0.0
      %2211 = vmatprep.subr.mxu0 0.0
      %2212 = vmatpush2.msra.mxu0 0.0
      %2213 = vmatprep.subr.mxu0 0.0
      %2214 = vmatpush2.msra.mxu0 0.0
      %2215 = vmatprep.subr.mxu0 0.0
      %2216 = vmatpush2.msra.mxu0 0.0
      %2217 = vmatprep.subr.mxu0 0.0
      %2218 = vmatpush2.msra.mxu0 0.0
      %2219 = vmatprep.subr.mxu0 0.0
      %2220 = vmatpush2.msra.mxu0 0.0
      %2221 = vmatprep.subr.mxu0 0.0
      %2222 = vmatpush2.msra.mxu0 0.0
      %2223 = vmatprep.subr.mxu0 0.0
      %2224 = vmatpush2.msra.mxu0 0.0
      %2225 = vmatprep.subr.mxu0 0.0
      %2226 = vmatpush2.msra.mxu0 0.0
      %2227 = vmatprep.subr.mxu0 0.0
      %2228 = vmatpush2.msra.mxu0 0.0
      %2229 = vmatprep.subr.mxu0 0.0
      %2230 = vmatpush2.msra.mxu0 0.0
      %2231 = vmatprep.subr.mxu0 0.0
      %2232 = vmatpush2.msra.mxu0 0.0
      %2233 = vmatprep.subr.mxu0 0.0
      %2234 = vmatpush2.msra.mxu0 0.0
      %2235 = vmatprep.mubr.f32.mxu0 0.0
      %2236 = vmatmul.mubr.f32.gmra.mxu0 %v2122
      %v2237 = vpop.f32.mrf.mxu0
      %v2238 = vadd.f32 0.0, %v2237
      %v2239 = vpop.f32.mrf.mxu0
      %2240 = vmatprep.mubr.f32.mxu0 0.0
      %2241 = vmatmul.mubr.f32.gmra.mxu0 %v2123
      %v2242 = vpop.f32.mrf.mxu0
      %v2243 = vadd.f32 0.0, %v2242
      %v2244 = vpop.f32.mrf.mxu0
      %2245 = vmatprep.mubr.f32.mxu0 0.0
      %2246 = vmatmul.mubr.f32.gmra.mxu0 %v2124
      %v2247 = vpop.f32.mrf.mxu0
      %v2248 = vadd.f32 0.0, %v2247
      %v2249 = vpop.f32.mrf.mxu0
      %2250 = vmatprep.mubr.f32.mxu0 0.0
      %2251 = vmatmul.mubr.f32.gmra.mxu0 %v2125
      %v2252 = vpop.f32.mrf.mxu0
      %v2253 = vadd.f32 0.0, %v2252
      %v2254 = vpop.f32.mrf.mxu0
      %2255 = vmatprep.mubr.f32.mxu0 0.0
      %2256 = vmatmul.mubr.f32.gmra.mxu0 %v2126
      %v2257 = vpop.f32.mrf.mxu0
      %v2258 = vadd.f32 0.0, %v2257
      %v2259 = vpop.f32.mrf.mxu0
      %2260 = vmatprep.mubr.f32.mxu0 0.0
      %2261 = vmatmul.mubr.f32.gmra.mxu0 %v2127
      %v2262 = vpop.f32.mrf.mxu0
      %v2263 = vadd.f32 0.0, %v2262
      %v2264 = vpop.f32.mrf.mxu0
      %2265 = vmatprep.mubr.f32.mxu0 0.0
      %2266 = vmatmul.mubr.f32.gmra.mxu0 %v2128
      %v2267 = vpop.f32.mrf.mxu0
      %v2268 = vadd.f32 0.0, %v2267
      %v2269 = vpop.f32.mrf.mxu0
      %2270 = vmatprep.mubr.f32.mxu0 0.0
      %2271 = vmatmul.mubr.f32.gmra.mxu0 %v2129
      %v2272 = vpop.f32.mrf.mxu0
      %v2273 = vadd.f32 0.0, %v2272
      %v2274 = vpop.f32.mrf.mxu0
      %2275 = vmatprep.mubr.f32.mxu0 0.0
      %2276 = vmatmul.mubr.f32.gmra.mxu0 %v2130
      %v2277 = vpop.f32.mrf.mxu0
      %v2278 = vadd.f32 0.0, %v2277
      %v2279 = vpop.f32.mrf.mxu0
      %2280 = vmatprep.mubr.f32.mxu0 0.0
      %2281 = vmatmul.mubr.f32.gmra.mxu0 %v2131
      %v2282 = vpop.f32.mrf.mxu0
      %v2283 = vadd.f32 0.0, %v2282
      %v2284 = vpop.f32.mrf.mxu0
      %2285 = vmatprep.mubr.f32.mxu0 0.0
      %2286 = vmatmul.mubr.f32.gmra.mxu0 %v2132
      %v2287 = vpop.f32.mrf.mxu0
      %v2288 = vadd.f32 0.0, %v2287
      %v2289 = vpop.f32.mrf.mxu0
      %2290 = vmatprep.mubr.f32.mxu0 0.0
      %2291 = vmatmul.mubr.f32.gmra.mxu0 %v2133
      %v2292 = vpop.f32.mrf.mxu0
      %v2293 = vadd.f32 0.0, %v2292
      %v2294 = vpop.f32.mrf.mxu0
      %2295 = vmatprep.mubr.f32.mxu0 0.0
      %2296 = vmatmul.mubr.f32.gmra.mxu0 %v2134
      %v2297 = vpop.f32.mrf.mxu0
      %v2298 = vadd.f32 0.0, %v2297
      %v2299 = vpop.f32.mrf.mxu0
      %2300 = vmatprep.mubr.f32.mxu0 0.0
      %2301 = vmatmul.mubr.f32.gmra.mxu0 %v2135
      %v2302 = vpop.f32.mrf.mxu0
      %v2303 = vadd.f32 0.0, %v2302
      %v2304 = vpop.f32.mrf.mxu0
      %2305 = vmatprep.mubr.f32.mxu0 0.0
      %2306 = vmatmul.mubr.f32.gmra.mxu0 %v2136
      %v2307 = vpop.f32.mrf.mxu0
      %v2308 = vadd.f32 0.0, %v2307
      %v2309 = vpop.f32.mrf.mxu0
      %2310 = vmatprep.mubr.f32.mxu0 0.0
      %2311 = vmatmul.mubr.f32.gmra.mxu0 %v2137
      %v2312 = vpop.f32.mrf.mxu0
      %v2313 = vadd.f32 0.0, %v2312
      %v2314 = vpop.f32.mrf.mxu0
      %2315 = vmatprep.mubr.f32.mxu0 0.0
      %2316 = vmatmul.mubr.f32.gmra.mxu0 %v2138
      %v2317 = vpop.f32.mrf.mxu0
      %v2318 = vadd.f32 0.0, %v2317
      %v2319 = vpop.f32.mrf.mxu0
      %2320 = vmatprep.mubr.f32.mxu0 0.0
      %2321 = vmatmul.mubr.f32.gmra.mxu0 %v2139
      %v2322 = vpop.f32.mrf.mxu0
      %v2323 = vadd.f32 0.0, %v2322
      %v2324 = vpop.f32.mrf.mxu0
      %2325 = vmatprep.mubr.f32.mxu0 0.0
      %2326 = vmatmul.mubr.f32.gmra.mxu0 %v2140
      %v2327 = vpop.f32.mrf.mxu0
      %v2328 = vadd.f32 0.0, %v2327
      %v2329 = vpop.f32.mrf.mxu0
      %2330 = vmatprep.mubr.f32.mxu0 0.0
      %2331 = vmatmul.mubr.f32.gmra.mxu0 %v2141
      %v2332 = vpop.f32.mrf.mxu0
      %v2333 = vadd.f32 0.0, %v2332
      %v2334 = vpop.f32.mrf.mxu0
      %2335 = vmatprep.mubr.f32.mxu0 0.0
      %2336 = vmatmul.mubr.f32.gmra.mxu0 %v2142
      %v2337 = vpop.f32.mrf.mxu0
      %v2338 = vadd.f32 0.0, %v2337
      %v2339 = vpop.f32.mrf.mxu0
      %2340 = vmatprep.mubr.f32.mxu0 0.0
      %2341 = vmatmul.mubr.f32.gmra.mxu0 %v2143
      %v2342 = vpop.f32.mrf.mxu0
      %v2343 = vadd.f32 0.0, %v2342
      %v2344 = vpop.f32.mrf.mxu0
      %2345 = vmatprep.mubr.f32.mxu0 0.0
      %2346 = vmatmul.mubr.f32.gmra.mxu0 %v2144
      %v2347 = vpop.f32.mrf.mxu0
      %v2348 = vadd.f32 0.0, %v2347
      %v2349 = vpop.f32.mrf.mxu0
      %2350 = vmatprep.mubr.f32.mxu0 0.0
      %2351 = vmatmul.mubr.f32.gmra.mxu0 %v2145
      %v2352 = vpop.f32.mrf.mxu0
      %v2353 = vadd.f32 0.0, %v2352
      %v2354 = vpop.f32.mrf.mxu0
      %2355 = vmatprep.mubr.f32.mxu0 0.0
      %2356 = vmatmul.mubr.f32.gmra.mxu0 %v2146
      %v2357 = vpop.f32.mrf.mxu0
      %v2358 = vadd.f32 0.0, %v2357
      %v2359 = vpop.f32.mrf.mxu0
      %2360 = vmatprep.mubr.f32.mxu0 0.0
      %2361 = vmatmul.mubr.f32.gmra.mxu0 %v2147
      %v2362 = vpop.f32.mrf.mxu0
      %v2363 = vadd.f32 0.0, %v2362
      %v2364 = vpop.f32.mrf.mxu0
      %2365 = vmatprep.mubr.f32.mxu0 0.0
      %2366 = vmatmul.mubr.f32.gmra.mxu0 %v2148
      %v2367 = vpop.f32.mrf.mxu0
      %v2368 = vadd.f32 0.0, %v2367
      %v2369 = vpop.f32.mrf.mxu0
      %2370 = vmatprep.mubr.f32.mxu0 0.0
      %2371 = vmatmul.mubr.f32.gmra.mxu0 %v2149
      %v2372 = vpop.f32.mrf.mxu0
      %v2373 = vadd.f32 0.0, %v2372
      %v2374 = vpop.f32.mrf.mxu0
      %2375 = vmatprep.mubr.f32.mxu0 0.0
      %2376 = vmatmul.mubr.f32.gmra.mxu0 %v2150
      %v2377 = vpop.f32.mrf.mxu0
      %v2378 = vadd.f32 0.0, %v2377
      %v2379 = vpop.f32.mrf.mxu0
      %2380 = vmatprep.mubr.f32.mxu0 0.0
      %2381 = vmatmul.mubr.f32.gmra.mxu0 %v2151
      %v2382 = vpop.f32.mrf.mxu0
      %v2383 = vadd.f32 0.0, %v2382
      %v2384 = vpop.f32.mrf.mxu0
      %2385 = vmatprep.mubr.f32.mxu0 0.0
      %2386 = vmatmul.mubr.f32.gmra.mxu0 %v2152
      %v2387 = vpop.f32.mrf.mxu0
      %v2388 = vadd.f32 0.0, %v2387
      %v2389 = vpop.f32.mrf.mxu0
      %2390 = vmatprep.mubr.f32.mxu0 0.0
      %2391 = vmatmul.mubr.f32.gmra.mxu0 %v2153
      %v2392 = vpop.f32.mrf.mxu0
      %v2393 = vadd.f32 0.0, %v2392
      %v2394 = vpop.f32.mrf.mxu0
      %2395 = vdwg.mxu0
      %v2396 = vadd.f32 %v2087, %v2238
      %v2397 = vadd.f32 %v2088, %v2243
      %v2398 = vadd.f32 %v2089, %v2248
      %v2399 = vadd.f32 %v2090, %v2253
      %v2400 = vadd.f32 %v2091, %v2258
      %v2401 = vadd.f32 %v2092, %v2263
      %v2402 = vadd.f32 %v2093, %v2268
      %v2403 = vadd.f32 %v2094, %v2273
      %v2404 = vadd.f32 %v2095, %v2278
      %v2405 = vadd.f32 %v2096, %v2283
      %v2406 = vadd.f32 %v2097, %v2288
      %v2407 = vadd.f32 %v2098, %v2293
      %v2408 = vadd.f32 %v2099, %v2298
      %v2409 = vadd.f32 %v2100, %v2303
      %v2410 = vadd.f32 %v2101, %v2308
      %v2411 = vadd.f32 %v2102, %v2313
      %v2412 = vadd.f32 %v2103, %v2318
      %v2413 = vadd.f32 %v2104, %v2323
      %v2414 = vadd.f32 %v2105, %v2328
      %v2415 = vadd.f32 %v2106, %v2333
      %v2416 = vadd.f32 %v2107, %v2338
      %v2417 = vadd.f32 %v2108, %v2343
      %v2418 = vadd.f32 %v2109, %v2348
      %v2419 = vadd.f32 %v2110, %v2353
      %v2420 = vadd.f32 %v2111, %v2358
      %v2421 = vadd.f32 %v2112, %v2363
      %v2422 = vadd.f32 %v2113, %v2368
      %v2423 = vadd.f32 %v2114, %v2373
      %v2424 = vadd.f32 %v2115, %v2378
      %v2425 = vadd.f32 %v2116, %v2383
      %v2426 = vadd.f32 %v2117, %v2388
      %v2427 = vadd.f32 %v2118, %v2393
      %v2428 = vld [vmem:[%s2121 + $0x1] sm:$0xff]
      %v2429 = vld [vmem:[%s2121 + $0x9] sm:$0xff]
      %v2430 = vld [vmem:[%s2121 + $0x19] sm:$0xff]
      %v2431 = vld [vmem:[%s2121 + $0x21] sm:$0xff]
      %v2432 = vld [vmem:[%s2121 + $0x31] sm:$0xff]
      %v2433 = vld [vmem:[%s2121 + $0x39] sm:$0xff]
      %v2434 = vld [vmem:[%s2121 + $0x49] sm:$0xff]
      %v2435 = vld [vmem:[%s2121 + $0x51] sm:$0xff]
      %v2436 = vld [vmem:[%s2121 + $0x61] sm:$0xff]
      %v2437 = vld [vmem:[%s2121 + $0x69] sm:$0xff]
      %v2438 = vld [vmem:[%s2121 + $0x79] sm:$0xff]
      %v2439 = vld [vmem:[%s2121 + $0x81] sm:$0xff]
      %v2440 = vld [vmem:[%s2121 + $0x91] sm:$0xff]
      %v2441 = vld [vmem:[%s2121 + $0x99] sm:$0xff]
      %v2442 = vld [vmem:[%s2121 + $0xa9] sm:$0xff]
      %v2443 = vld [vmem:[%s2121 + $0xb1] sm:$0xff]
      %v2444 = vld [vmem:[%s2121 + $0xc1] sm:$0xff]
      %v2445 = vld [vmem:[%s2121 + $0xc9] sm:$0xff]
      %v2446 = vld [vmem:[%s2121 + $0xd9] sm:$0xff]
      %v2447 = vld [vmem:[%s2121 + $0xe1] sm:$0xff]
      %v2448 = vld [vmem:[%s2121 + $0xf1] sm:$0xff]
      %v2449 = vld [vmem:[%s2121 + $0xf9] sm:$0xff]
      %v2450 = vld [vmem:[%s2121 + $0x109] sm:$0xff]
      %v2451 = vld [vmem:[%s2121 + $0x111] sm:$0xff]
      %v2452 = vld [vmem:[%s2121 + $0x121] sm:$0xff]
      %v2453 = vld [vmem:[%s2121 + $0x129] sm:$0xff]
      %v2454 = vld [vmem:[%s2121 + $0x139] sm:$0xff]
      %v2455 = vld [vmem:[%s2121 + $0x141] sm:$0xff]
      %v2456 = vld [vmem:[%s2121 + $0x151] sm:$0xff]
      %v2457 = vld [vmem:[%s2121 + $0x159] sm:$0xff]
      %v2458 = vld [vmem:[%s2121 + $0x169] sm:$0xff]
      %v2459 = vld [vmem:[%s2121 + $0x171] sm:$0xff]
      %s2460 = scalar_lea.vmem %s1, 896
      %v2461 = vld [vmem:[%s2460] sm:$0xff]
      %v2462 = vld [vmem:[%s2460 + $0x8] sm:$0xff]
      %v2463 = vld [vmem:[%s2460 + $0x10] sm:$0xff]
      %v2464 = vld [vmem:[%s2460 + $0x18] sm:$0xff]
      %v2465 = vld [vmem:[%s2460 + $0x20] sm:$0xff]
      %v2466 = vld [vmem:[%s2460 + $0x28] sm:$0xff]
      %v2467 = vld [vmem:[%s2460 + $0x30] sm:$0xff]
      %v2468 = vld [vmem:[%s2460 + $0x38] sm:$0xff]
      %v2469 = vld [vmem:[%s2460 + $0x40] sm:$0xff]
      %v2470 = vld [vmem:[%s2460 + $0x48] sm:$0xff]
      %v2471 = vld [vmem:[%s2460 + $0x50] sm:$0xff]
      %v2472 = vld [vmem:[%s2460 + $0x58] sm:$0xff]
      %v2473 = vld [vmem:[%s2460 + $0x60] sm:$0xff]
      %v2474 = vld [vmem:[%s2460 + $0x68] sm:$0xff]
      %v2475 = vld [vmem:[%s2460 + $0x70] sm:$0xff]
      %v2476 = vld [vmem:[%s2460 + $0x78] sm:$0xff]
      %2477 = vmatprep.subr.mxu0 0.0
      %2478 = vmatpush1.msra.mxu0 %v2476
      %2479 = vmatprep.subr.mxu0 0.0
      %2480 = vmatpush1.msra.mxu0 %v2475
      %2481 = vmatprep.subr.mxu0 0.0
      %2482 = vmatpush1.msra.mxu0 %v2474
      %2483 = vmatprep.subr.mxu0 0.0
      %2484 = vmatpush1.msra.mxu0 %v2473
      %2485 = vmatprep.subr.mxu0 0.0
      %2486 = vmatpush1.msra.mxu0 %v2472
      %2487 = vmatprep.subr.mxu0 0.0
      %2488 = vmatpush1.msra.mxu0 %v2471
      %2489 = vmatprep.subr.mxu0 0.0
      %2490 = vmatpush1.msra.mxu0 %v2470
      %2491 = vmatprep.subr.mxu0 0.0
      %2492 = vmatpush1.msra.mxu0 %v2469
      %2493 = vmatprep.subr.mxu0 0.0
      %2494 = vmatpush1.msra.mxu0 %v2468
      %2495 = vmatprep.subr.mxu0 0.0
      %2496 = vmatpush1.msra.mxu0 %v2467
      %2497 = vmatprep.subr.mxu0 0.0
      %2498 = vmatpush1.msra.mxu0 %v2466
      %2499 = vmatprep.subr.mxu0 0.0
      %2500 = vmatpush1.msra.mxu0 %v2465
      %2501 = vmatprep.subr.mxu0 0.0
      %2502 = vmatpush1.msra.mxu0 %v2464
      %2503 = vmatprep.subr.mxu0 0.0
      %2504 = vmatpush1.msra.mxu0 %v2463
      %2505 = vmatprep.subr.mxu0 0.0
      %2506 = vmatpush1.msra.mxu0 %v2462
      %2507 = vmatprep.subr.mxu0 0.0
      %2508 = vmatpush1.msra.mxu0 %v2461
      %2509 = vmatprep.subr.mxu0 0.0
      %2510 = vmatpush2.msra.mxu0 0.0
      %2511 = vmatprep.subr.mxu0 0.0
      %2512 = vmatpush2.msra.mxu0 0.0
      %2513 = vmatprep.subr.mxu0 0.0
      %2514 = vmatpush2.msra.mxu0 0.0
      %2515 = vmatprep.subr.mxu0 0.0
      %2516 = vmatpush2.msra.mxu0 0.0
      %2517 = vmatprep.subr.mxu0 0.0
      %2518 = vmatpush2.msra.mxu0 0.0
      %2519 = vmatprep.subr.mxu0 0.0
      %2520 = vmatpush2.msra.mxu0 0.0
      %2521 = vmatprep.subr.mxu0 0.0
      %2522 = vmatpush2.msra.mxu0 0.0
      %2523 = vmatprep.subr.mxu0 0.0
      %2524 = vmatpush2.msra.mxu0 0.0
      %2525 = vmatprep.subr.mxu0 0.0
      %2526 = vmatpush2.msra.mxu0 0.0
      %2527 = vmatprep.subr.mxu0 0.0
      %2528 = vmatpush2.msra.mxu0 0.0
      %2529 = vmatprep.subr.mxu0 0.0
      %2530 = vmatpush2.msra.mxu0 0.0
      %2531 = vmatprep.subr.mxu0 0.0
      %2532 = vmatpush2.msra.mxu0 0.0
      %2533 = vmatprep.subr.mxu0 0.0
      %2534 = vmatpush2.msra.mxu0 0.0
      %2535 = vmatprep.subr.mxu0 0.0
      %2536 = vmatpush2.msra.mxu0 0.0
      %2537 = vmatprep.subr.mxu0 0.0
      %2538 = vmatpush2.msra.mxu0 0.0
      %2539 = vmatprep.subr.mxu0 0.0
      %2540 = vmatpush2.msra.mxu0 0.0
      %2541 = vmatprep.mubr.f32.mxu0 0.0
      %2542 = vmatmul.mubr.f32.gmra.mxu0 %v2428
      %v2543 = vpop.f32.mrf.mxu0
      %v2544 = vadd.f32 0.0, %v2543
      %v2545 = vpop.f32.mrf.mxu0
      %2546 = vmatprep.mubr.f32.mxu0 0.0
      %2547 = vmatmul.mubr.f32.gmra.mxu0 %v2429
      %v2548 = vpop.f32.mrf.mxu0
      %v2549 = vadd.f32 0.0, %v2548
      %v2550 = vpop.f32.mrf.mxu0
      %2551 = vmatprep.mubr.f32.mxu0 0.0
      %2552 = vmatmul.mubr.f32.gmra.mxu0 %v2430
      %v2553 = vpop.f32.mrf.mxu0
      %v2554 = vadd.f32 0.0, %v2553
      %v2555 = vpop.f32.mrf.mxu0
      %2556 = vmatprep.mubr.f32.mxu0 0.0
      %2557 = vmatmul.mubr.f32.gmra.mxu0 %v2431
      %v2558 = vpop.f32.mrf.mxu0
      %v2559 = vadd.f32 0.0, %v2558
      %v2560 = vpop.f32.mrf.mxu0
      %2561 = vmatprep.mubr.f32.mxu0 0.0
      %2562 = vmatmul.mubr.f32.gmra.mxu0 %v2432
      %v2563 = vpop.f32.mrf.mxu0
      %v2564 = vadd.f32 0.0, %v2563
      %v2565 = vpop.f32.mrf.mxu0
      %2566 = vmatprep.mubr.f32.mxu0 0.0
      %2567 = vmatmul.mubr.f32.gmra.mxu0 %v2433
      %v2568 = vpop.f32.mrf.mxu0
      %v2569 = vadd.f32 0.0, %v2568
      %v2570 = vpop.f32.mrf.mxu0
      %2571 = vmatprep.mubr.f32.mxu0 0.0
      %2572 = vmatmul.mubr.f32.gmra.mxu0 %v2434
      %v2573 = vpop.f32.mrf.mxu0
      %v2574 = vadd.f32 0.0, %v2573
      %v2575 = vpop.f32.mrf.mxu0
      %2576 = vmatprep.mubr.f32.mxu0 0.0
      %2577 = vmatmul.mubr.f32.gmra.mxu0 %v2435
      %v2578 = vpop.f32.mrf.mxu0
      %v2579 = vadd.f32 0.0, %v2578
      %v2580 = vpop.f32.mrf.mxu0
      %2581 = vmatprep.mubr.f32.mxu0 0.0
      %2582 = vmatmul.mubr.f32.gmra.mxu0 %v2436
      %v2583 = vpop.f32.mrf.mxu0
      %v2584 = vadd.f32 0.0, %v2583
      %v2585 = vpop.f32.mrf.mxu0
      %2586 = vmatprep.mubr.f32.mxu0 0.0
      %2587 = vmatmul.mubr.f32.gmra.mxu0 %v2437
      %v2588 = vpop.f32.mrf.mxu0
      %v2589 = vadd.f32 0.0, %v2588
      %v2590 = vpop.f32.mrf.mxu0
      %2591 = vmatprep.mubr.f32.mxu0 0.0
      %2592 = vmatmul.mubr.f32.gmra.mxu0 %v2438
      %v2593 = vpop.f32.mrf.mxu0
      %v2594 = vadd.f32 0.0, %v2593
      %v2595 = vpop.f32.mrf.mxu0
      %2596 = vmatprep.mubr.f32.mxu0 0.0
      %2597 = vmatmul.mubr.f32.gmra.mxu0 %v2439
      %v2598 = vpop.f32.mrf.mxu0
      %v2599 = vadd.f32 0.0, %v2598
      %v2600 = vpop.f32.mrf.mxu0
      %2601 = vmatprep.mubr.f32.mxu0 0.0
      %2602 = vmatmul.mubr.f32.gmra.mxu0 %v2440
      %v2603 = vpop.f32.mrf.mxu0
      %v2604 = vadd.f32 0.0, %v2603
      %v2605 = vpop.f32.mrf.mxu0
      %2606 = vmatprep.mubr.f32.mxu0 0.0
      %2607 = vmatmul.mubr.f32.gmra.mxu0 %v2441
      %v2608 = vpop.f32.mrf.mxu0
      %v2609 = vadd.f32 0.0, %v2608
      %v2610 = vpop.f32.mrf.mxu0
      %2611 = vmatprep.mubr.f32.mxu0 0.0
      %2612 = vmatmul.mubr.f32.gmra.mxu0 %v2442
      %v2613 = vpop.f32.mrf.mxu0
      %v2614 = vadd.f32 0.0, %v2613
      %v2615 = vpop.f32.mrf.mxu0
      %2616 = vmatprep.mubr.f32.mxu0 0.0
      %2617 = vmatmul.mubr.f32.gmra.mxu0 %v2443
      %v2618 = vpop.f32.mrf.mxu0
      %v2619 = vadd.f32 0.0, %v2618
      %v2620 = vpop.f32.mrf.mxu0
      %2621 = vmatprep.mubr.f32.mxu0 0.0
      %2622 = vmatmul.mubr.f32.gmra.mxu0 %v2444
      %v2623 = vpop.f32.mrf.mxu0
      %v2624 = vadd.f32 0.0, %v2623
      %v2625 = vpop.f32.mrf.mxu0
      %2626 = vmatprep.mubr.f32.mxu0 0.0
      %2627 = vmatmul.mubr.f32.gmra.mxu0 %v2445
      %v2628 = vpop.f32.mrf.mxu0
      %v2629 = vadd.f32 0.0, %v2628
      %v2630 = vpop.f32.mrf.mxu0
      %2631 = vmatprep.mubr.f32.mxu0 0.0
      %2632 = vmatmul.mubr.f32.gmra.mxu0 %v2446
      %v2633 = vpop.f32.mrf.mxu0
      %v2634 = vadd.f32 0.0, %v2633
      %v2635 = vpop.f32.mrf.mxu0
      %2636 = vmatprep.mubr.f32.mxu0 0.0
      %2637 = vmatmul.mubr.f32.gmra.mxu0 %v2447
      %v2638 = vpop.f32.mrf.mxu0
      %v2639 = vadd.f32 0.0, %v2638
      %v2640 = vpop.f32.mrf.mxu0
      %2641 = vmatprep.mubr.f32.mxu0 0.0
      %2642 = vmatmul.mubr.f32.gmra.mxu0 %v2448
      %v2643 = vpop.f32.mrf.mxu0
      %v2644 = vadd.f32 0.0, %v2643
      %v2645 = vpop.f32.mrf.mxu0
      %2646 = vmatprep.mubr.f32.mxu0 0.0
      %2647 = vmatmul.mubr.f32.gmra.mxu0 %v2449
      %v2648 = vpop.f32.mrf.mxu0
      %v2649 = vadd.f32 0.0, %v2648
      %v2650 = vpop.f32.mrf.mxu0
      %2651 = vmatprep.mubr.f32.mxu0 0.0
      %2652 = vmatmul.mubr.f32.gmra.mxu0 %v2450
      %v2653 = vpop.f32.mrf.mxu0
      %v2654 = vadd.f32 0.0, %v2653
      %v2655 = vpop.f32.mrf.mxu0
      %2656 = vmatprep.mubr.f32.mxu0 0.0
      %2657 = vmatmul.mubr.f32.gmra.mxu0 %v2451
      %v2658 = vpop.f32.mrf.mxu0
      %v2659 = vadd.f32 0.0, %v2658
      %v2660 = vpop.f32.mrf.mxu0
      %2661 = vmatprep.mubr.f32.mxu0 0.0
      %2662 = vmatmul.mubr.f32.gmra.mxu0 %v2452
      %v2663 = vpop.f32.mrf.mxu0
      %v2664 = vadd.f32 0.0, %v2663
      %v2665 = vpop.f32.mrf.mxu0
      %2666 = vmatprep.mubr.f32.mxu0 0.0
      %2667 = vmatmul.mubr.f32.gmra.mxu0 %v2453
      %v2668 = vpop.f32.mrf.mxu0
      %v2669 = vadd.f32 0.0, %v2668
      %v2670 = vpop.f32.mrf.mxu0
      %2671 = vmatprep.mubr.f32.mxu0 0.0
      %2672 = vmatmul.mubr.f32.gmra.mxu0 %v2454
      %v2673 = vpop.f32.mrf.mxu0
      %v2674 = vadd.f32 0.0, %v2673
      %v2675 = vpop.f32.mrf.mxu0
      %2676 = vmatprep.mubr.f32.mxu0 0.0
      %2677 = vmatmul.mubr.f32.gmra.mxu0 %v2455
      %v2678 = vpop.f32.mrf.mxu0
      %v2679 = vadd.f32 0.0, %v2678
      %v2680 = vpop.f32.mrf.mxu0
      %2681 = vmatprep.mubr.f32.mxu0 0.0
      %2682 = vmatmul.mubr.f32.gmra.mxu0 %v2456
      %v2683 = vpop.f32.mrf.mxu0
      %v2684 = vadd.f32 0.0, %v2683
      %v2685 = vpop.f32.mrf.mxu0
      %2686 = vmatprep.mubr.f32.mxu0 0.0
      %2687 = vmatmul.mubr.f32.gmra.mxu0 %v2457
      %v2688 = vpop.f32.mrf.mxu0
      %v2689 = vadd.f32 0.0, %v2688
      %v2690 = vpop.f32.mrf.mxu0
      %2691 = vmatprep.mubr.f32.mxu0 0.0
      %2692 = vmatmul.mubr.f32.gmra.mxu0 %v2458
      %v2693 = vpop.f32.mrf.mxu0
      %v2694 = vadd.f32 0.0, %v2693
      %v2695 = vpop.f32.mrf.mxu0
      %2696 = vmatprep.mubr.f32.mxu0 0.0
      %2697 = vmatmul.mubr.f32.gmra.mxu0 %v2459
      %v2698 = vpop.f32.mrf.mxu0
      %v2699 = vadd.f32 0.0, %v2698
      %v2700 = vpop.f32.mrf.mxu0
      %2701 = vdwg.mxu0
      %v2702 = vadd.f32 %v2396, %v2544
      %v2703 = vadd.f32 %v2397, %v2549
      %v2704 = vadd.f32 %v2398, %v2554
      %v2705 = vadd.f32 %v2399, %v2559
      %v2706 = vadd.f32 %v2400, %v2564
      %v2707 = vadd.f32 %v2401, %v2569
      %v2708 = vadd.f32 %v2402, %v2574
      %v2709 = vadd.f32 %v2403, %v2579
      %v2710 = vadd.f32 %v2404, %v2584
      %v2711 = vadd.f32 %v2405, %v2589
      %v2712 = vadd.f32 %v2406, %v2594
      %v2713 = vadd.f32 %v2407, %v2599
      %v2714 = vadd.f32 %v2408, %v2604
      %v2715 = vadd.f32 %v2409, %v2609
      %v2716 = vadd.f32 %v2410, %v2614
      %v2717 = vadd.f32 %v2411, %v2619
      %v2718 = vadd.f32 %v2412, %v2624
      %v2719 = vadd.f32 %v2413, %v2629
      %v2720 = vadd.f32 %v2414, %v2634
      %v2721 = vadd.f32 %v2415, %v2639
      %v2722 = vadd.f32 %v2416, %v2644
      %v2723 = vadd.f32 %v2417, %v2649
      %v2724 = vadd.f32 %v2418, %v2654
      %v2725 = vadd.f32 %v2419, %v2659
      %v2726 = vadd.f32 %v2420, %v2664
      %v2727 = vadd.f32 %v2421, %v2669
      %v2728 = vadd.f32 %v2422, %v2674
      %v2729 = vadd.f32 %v2423, %v2679
      %v2730 = vadd.f32 %v2424, %v2684
      %v2731 = vadd.f32 %v2425, %v2689
      %v2732 = vadd.f32 %v2426, %v2694
      %v2733 = vadd.f32 %v2427, %v2699
      %v2734 = vld [vmem:[%s2121 + $0x2] sm:$0xff]
      %v2735 = vld [vmem:[%s2121 + $0xa] sm:$0xff]
      %v2736 = vld [vmem:[%s2121 + $0x1a] sm:$0xff]
      %v2737 = vld [vmem:[%s2121 + $0x22] sm:$0xff]
      %v2738 = vld [vmem:[%s2121 + $0x32] sm:$0xff]
      %v2739 = vld [vmem:[%s2121 + $0x3a] sm:$0xff]
      %v2740 = vld [vmem:[%s2121 + $0x4a] sm:$0xff]
      %v2741 = vld [vmem:[%s2121 + $0x52] sm:$0xff]
      %v2742 = vld [vmem:[%s2121 + $0x62] sm:$0xff]
      %v2743 = vld [vmem:[%s2121 + $0x6a] sm:$0xff]
      %v2744 = vld [vmem:[%s2121 + $0x7a] sm:$0xff]
      %v2745 = vld [vmem:[%s2121 + $0x82] sm:$0xff]
      %v2746 = vld [vmem:[%s2121 + $0x92] sm:$0xff]
      %v2747 = vld [vmem:[%s2121 + $0x9a] sm:$0xff]
      %v2748 = vld [vmem:[%s2121 + $0xaa] sm:$0xff]
      %v2749 = vld [vmem:[%s2121 + $0xb2] sm:$0xff]
      %v2750 = vld [vmem:[%s2121 + $0xc2] sm:$0xff]
      %v2751 = vld [vmem:[%s2121 + $0xca] sm:$0xff]
      %v2752 = vld [vmem:[%s2121 + $0xda] sm:$0xff]
      %v2753 = vld [vmem:[%s2121 + $0xe2] sm:$0xff]
      %v2754 = vld [vmem:[%s2121 + $0xf2] sm:$0xff]
      %v2755 = vld [vmem:[%s2121 + $0xfa] sm:$0xff]
      %v2756 = vld [vmem:[%s2121 + $0x10a] sm:$0xff]
      %v2757 = vld [vmem:[%s2121 + $0x112] sm:$0xff]
      %v2758 = vld [vmem:[%s2121 + $0x122] sm:$0xff]
      %v2759 = vld [vmem:[%s2121 + $0x12a] sm:$0xff]
      %v2760 = vld [vmem:[%s2121 + $0x13a] sm:$0xff]
      %v2761 = vld [vmem:[%s2121 + $0x142] sm:$0xff]
      %v2762 = vld [vmem:[%s2121 + $0x152] sm:$0xff]
      %v2763 = vld [vmem:[%s2121 + $0x15a] sm:$0xff]
      %v2764 = vld [vmem:[%s2121 + $0x16a] sm:$0xff]
      %v2765 = vld [vmem:[%s2121 + $0x172] sm:$0xff]
      %s2766 = scalar_lea.vmem %s1, 1024
      %v2767 = vld [vmem:[%s2766] sm:$0xff]
      %v2768 = vld [vmem:[%s2766 + $0x8] sm:$0xff]
      %v2769 = vld [vmem:[%s2766 + $0x10] sm:$0xff]
      %v2770 = vld [vmem:[%s2766 + $0x18] sm:$0xff]
      %v2771 = vld [vmem:[%s2766 + $0x20] sm:$0xff]
      %v2772 = vld [vmem:[%s2766 + $0x28] sm:$0xff]
      %v2773 = vld [vmem:[%s2766 + $0x30] sm:$0xff]
      %v2774 = vld [vmem:[%s2766 + $0x38] sm:$0xff]
      %v2775 = vld [vmem:[%s2766 + $0x40] sm:$0xff]
      %v2776 = vld [vmem:[%s2766 + $0x48] sm:$0xff]
      %v2777 = vld [vmem:[%s2766 + $0x50] sm:$0xff]
      %v2778 = vld [vmem:[%s2766 + $0x58] sm:$0xff]
      %v2779 = vld [vmem:[%s2766 + $0x60] sm:$0xff]
      %v2780 = vld [vmem:[%s2766 + $0x68] sm:$0xff]
      %v2781 = vld [vmem:[%s2766 + $0x70] sm:$0xff]
      %v2782 = vld [vmem:[%s2766 + $0x78] sm:$0xff]
      %2783 = vmatprep.subr.mxu0 0.0
      %2784 = vmatpush1.msra.mxu0 %v2782
      %2785 = vmatprep.subr.mxu0 0.0
      %2786 = vmatpush1.msra.mxu0 %v2781
      %2787 = vmatprep.subr.mxu0 0.0
      %2788 = vmatpush1.msra.mxu0 %v2780
      %2789 = vmatprep.subr.mxu0 0.0
      %2790 = vmatpush1.msra.mxu0 %v2779
      %2791 = vmatprep.subr.mxu0 0.0
      %2792 = vmatpush1.msra.mxu0 %v2778
      %2793 = vmatprep.subr.mxu0 0.0
      %2794 = vmatpush1.msra.mxu0 %v2777
      %2795 = vmatprep.subr.mxu0 0.0
      %2796 = vmatpush1.msra.mxu0 %v2776
      %2797 = vmatprep.subr.mxu0 0.0
      %2798 = vmatpush1.msra.mxu0 %v2775
      %2799 = vmatprep.subr.mxu0 0.0
      %2800 = vmatpush1.msra.mxu0 %v2774
      %2801 = vmatprep.subr.mxu0 0.0
      %2802 = vmatpush1.msra.mxu0 %v2773
      %2803 = vmatprep.subr.mxu0 0.0
      %2804 = vmatpush1.msra.mxu0 %v2772
      %2805 = vmatprep.subr.mxu0 0.0
      %2806 = vmatpush1.msra.mxu0 %v2771
      %2807 = vmatprep.subr.mxu0 0.0
      %2808 = vmatpush1.msra.mxu0 %v2770
      %2809 = vmatprep.subr.mxu0 0.0
      %2810 = vmatpush1.msra.mxu0 %v2769
      %2811 = vmatprep.subr.mxu0 0.0
      %2812 = vmatpush1.msra.mxu0 %v2768
      %2813 = vmatprep.subr.mxu0 0.0
      %2814 = vmatpush1.msra.mxu0 %v2767
      %2815 = vmatprep.subr.mxu0 0.0
      %2816 = vmatpush2.msra.mxu0 0.0
      %2817 = vmatprep.subr.mxu0 0.0
      %2818 = vmatpush2.msra.mxu0 0.0
      %2819 = vmatprep.subr.mxu0 0.0
      %2820 = vmatpush2.msra.mxu0 0.0
      %2821 = vmatprep.subr.mxu0 0.0
      %2822 = vmatpush2.msra.mxu0 0.0
      %2823 = vmatprep.subr.mxu0 0.0
      %2824 = vmatpush2.msra.mxu0 0.0
      %2825 = vmatprep.subr.mxu0 0.0
      %2826 = vmatpush2.msra.mxu0 0.0
      %2827 = vmatprep.subr.mxu0 0.0
      %2828 = vmatpush2.msra.mxu0 0.0
      %2829 = vmatprep.subr.mxu0 0.0
      %2830 = vmatpush2.msra.mxu0 0.0
      %2831 = vmatprep.subr.mxu0 0.0
      %2832 = vmatpush2.msra.mxu0 0.0
      %2833 = vmatprep.subr.mxu0 0.0
      %2834 = vmatpush2.msra.mxu0 0.0
      %2835 = vmatprep.subr.mxu0 0.0
      %2836 = vmatpush2.msra.mxu0 0.0
      %2837 = vmatprep.subr.mxu0 0.0
      %2838 = vmatpush2.msra.mxu0 0.0
      %2839 = vmatprep.subr.mxu0 0.0
      %2840 = vmatpush2.msra.mxu0 0.0
      %2841 = vmatprep.subr.mxu0 0.0
      %2842 = vmatpush2.msra.mxu0 0.0
      %2843 = vmatprep.subr.mxu0 0.0
      %2844 = vmatpush2.msra.mxu0 0.0
      %2845 = vmatprep.subr.mxu0 0.0
      %2846 = vmatpush2.msra.mxu0 0.0
      %2847 = vmatprep.mubr.f32.mxu0 0.0
      %2848 = vmatmul.mubr.f32.gmra.mxu0 %v2734
      %v2849 = vpop.f32.mrf.mxu0
      %v2850 = vadd.f32 0.0, %v2849
      %v2851 = vpop.f32.mrf.mxu0
      %2852 = vmatprep.mubr.f32.mxu0 0.0
      %2853 = vmatmul.mubr.f32.gmra.mxu0 %v2735
      %v2854 = vpop.f32.mrf.mxu0
      %v2855 = vadd.f32 0.0, %v2854
      %v2856 = vpop.f32.mrf.mxu0
      %2857 = vmatprep.mubr.f32.mxu0 0.0
      %2858 = vmatmul.mubr.f32.gmra.mxu0 %v2736
      %v2859 = vpop.f32.mrf.mxu0
      %v2860 = vadd.f32 0.0, %v2859
      %v2861 = vpop.f32.mrf.mxu0
      %2862 = vmatprep.mubr.f32.mxu0 0.0
      %2863 = vmatmul.mubr.f32.gmra.mxu0 %v2737
      %v2864 = vpop.f32.mrf.mxu0
      %v2865 = vadd.f32 0.0, %v2864
      %v2866 = vpop.f32.mrf.mxu0
      %2867 = vmatprep.mubr.f32.mxu0 0.0
      %2868 = vmatmul.mubr.f32.gmra.mxu0 %v2738
      %v2869 = vpop.f32.mrf.mxu0
      %v2870 = vadd.f32 0.0, %v2869
      %v2871 = vpop.f32.mrf.mxu0
      %2872 = vmatprep.mubr.f32.mxu0 0.0
      %2873 = vmatmul.mubr.f32.gmra.mxu0 %v2739
      %v2874 = vpop.f32.mrf.mxu0
      %v2875 = vadd.f32 0.0, %v2874
      %v2876 = vpop.f32.mrf.mxu0
      %2877 = vmatprep.mubr.f32.mxu0 0.0
      %2878 = vmatmul.mubr.f32.gmra.mxu0 %v2740
      %v2879 = vpop.f32.mrf.mxu0
      %v2880 = vadd.f32 0.0, %v2879
      %v2881 = vpop.f32.mrf.mxu0
      %2882 = vmatprep.mubr.f32.mxu0 0.0
      %2883 = vmatmul.mubr.f32.gmra.mxu0 %v2741
      %v2884 = vpop.f32.mrf.mxu0
      %v2885 = vadd.f32 0.0, %v2884
      %v2886 = vpop.f32.mrf.mxu0
      %2887 = vmatprep.mubr.f32.mxu0 0.0
      %2888 = vmatmul.mubr.f32.gmra.mxu0 %v2742
      %v2889 = vpop.f32.mrf.mxu0
      %v2890 = vadd.f32 0.0, %v2889
      %v2891 = vpop.f32.mrf.mxu0
      %2892 = vmatprep.mubr.f32.mxu0 0.0
      %2893 = vmatmul.mubr.f32.gmra.mxu0 %v2743
      %v2894 = vpop.f32.mrf.mxu0
      %v2895 = vadd.f32 0.0, %v2894
      %v2896 = vpop.f32.mrf.mxu0
      %2897 = vmatprep.mubr.f32.mxu0 0.0
      %2898 = vmatmul.mubr.f32.gmra.mxu0 %v2744
      %v2899 = vpop.f32.mrf.mxu0
      %v2900 = vadd.f32 0.0, %v2899
      %v2901 = vpop.f32.mrf.mxu0
      %2902 = vmatprep.mubr.f32.mxu0 0.0
      %2903 = vmatmul.mubr.f32.gmra.mxu0 %v2745
      %v2904 = vpop.f32.mrf.mxu0
      %v2905 = vadd.f32 0.0, %v2904
      %v2906 = vpop.f32.mrf.mxu0
      %2907 = vmatprep.mubr.f32.mxu0 0.0
      %2908 = vmatmul.mubr.f32.gmra.mxu0 %v2746
      %v2909 = vpop.f32.mrf.mxu0
      %v2910 = vadd.f32 0.0, %v2909
      %v2911 = vpop.f32.mrf.mxu0
      %2912 = vmatprep.mubr.f32.mxu0 0.0
      %2913 = vmatmul.mubr.f32.gmra.mxu0 %v2747
      %v2914 = vpop.f32.mrf.mxu0
      %v2915 = vadd.f32 0.0, %v2914
      %v2916 = vpop.f32.mrf.mxu0
      %2917 = vmatprep.mubr.f32.mxu0 0.0
      %2918 = vmatmul.mubr.f32.gmra.mxu0 %v2748
      %v2919 = vpop.f32.mrf.mxu0
      %v2920 = vadd.f32 0.0, %v2919
      %v2921 = vpop.f32.mrf.mxu0
      %2922 = vmatprep.mubr.f32.mxu0 0.0
      %2923 = vmatmul.mubr.f32.gmra.mxu0 %v2749
      %v2924 = vpop.f32.mrf.mxu0
      %v2925 = vadd.f32 0.0, %v2924
      %v2926 = vpop.f32.mrf.mxu0
      %2927 = vmatprep.mubr.f32.mxu0 0.0
      %2928 = vmatmul.mubr.f32.gmra.mxu0 %v2750
      %v2929 = vpop.f32.mrf.mxu0
      %v2930 = vadd.f32 0.0, %v2929
      %v2931 = vpop.f32.mrf.mxu0
      %2932 = vmatprep.mubr.f32.mxu0 0.0
      %2933 = vmatmul.mubr.f32.gmra.mxu0 %v2751
      %v2934 = vpop.f32.mrf.mxu0
      %v2935 = vadd.f32 0.0, %v2934
      %v2936 = vpop.f32.mrf.mxu0
      %2937 = vmatprep.mubr.f32.mxu0 0.0
      %2938 = vmatmul.mubr.f32.gmra.mxu0 %v2752
      %v2939 = vpop.f32.mrf.mxu0
      %v2940 = vadd.f32 0.0, %v2939
      %v2941 = vpop.f32.mrf.mxu0
      %2942 = vmatprep.mubr.f32.mxu0 0.0
      %2943 = vmatmul.mubr.f32.gmra.mxu0 %v2753
      %v2944 = vpop.f32.mrf.mxu0
      %v2945 = vadd.f32 0.0, %v2944
      %v2946 = vpop.f32.mrf.mxu0
      %2947 = vmatprep.mubr.f32.mxu0 0.0
      %2948 = vmatmul.mubr.f32.gmra.mxu0 %v2754
      %v2949 = vpop.f32.mrf.mxu0
      %v2950 = vadd.f32 0.0, %v2949
      %v2951 = vpop.f32.mrf.mxu0
      %2952 = vmatprep.mubr.f32.mxu0 0.0
      %2953 = vmatmul.mubr.f32.gmra.mxu0 %v2755
      %v2954 = vpop.f32.mrf.mxu0
      %v2955 = vadd.f32 0.0, %v2954
      %v2956 = vpop.f32.mrf.mxu0
      %2957 = vmatprep.mubr.f32.mxu0 0.0
      %2958 = vmatmul.mubr.f32.gmra.mxu0 %v2756
      %v2959 = vpop.f32.mrf.mxu0
      %v2960 = vadd.f32 0.0, %v2959
      %v2961 = vpop.f32.mrf.mxu0
      %2962 = vmatprep.mubr.f32.mxu0 0.0
      %2963 = vmatmul.mubr.f32.gmra.mxu0 %v2757
      %v2964 = vpop.f32.mrf.mxu0
      %v2965 = vadd.f32 0.0, %v2964
      %v2966 = vpop.f32.mrf.mxu0
      %2967 = vmatprep.mubr.f32.mxu0 0.0
      %2968 = vmatmul.mubr.f32.gmra.mxu0 %v2758
      %v2969 = vpop.f32.mrf.mxu0
      %v2970 = vadd.f32 0.0, %v2969
      %v2971 = vpop.f32.mrf.mxu0
      %2972 = vmatprep.mubr.f32.mxu0 0.0
      %2973 = vmatmul.mubr.f32.gmra.mxu0 %v2759
      %v2974 = vpop.f32.mrf.mxu0
      %v2975 = vadd.f32 0.0, %v2974
      %v2976 = vpop.f32.mrf.mxu0
      %2977 = vmatprep.mubr.f32.mxu0 0.0
      %2978 = vmatmul.mubr.f32.gmra.mxu0 %v2760
      %v2979 = vpop.f32.mrf.mxu0
      %v2980 = vadd.f32 0.0, %v2979
      %v2981 = vpop.f32.mrf.mxu0
      %2982 = vmatprep.mubr.f32.mxu0 0.0
      %2983 = vmatmul.mubr.f32.gmra.mxu0 %v2761
      %v2984 = vpop.f32.mrf.mxu0
      %v2985 = vadd.f32 0.0, %v2984
      %v2986 = vpop.f32.mrf.mxu0
      %2987 = vmatprep.mubr.f32.mxu0 0.0
      %2988 = vmatmul.mubr.f32.gmra.mxu0 %v2762
      %v2989 = vpop.f32.mrf.mxu0
      %v2990 = vadd.f32 0.0, %v2989
      %v2991 = vpop.f32.mrf.mxu0
      %2992 = vmatprep.mubr.f32.mxu0 0.0
      %2993 = vmatmul.mubr.f32.gmra.mxu0 %v2763
      %v2994 = vpop.f32.mrf.mxu0
      %v2995 = vadd.f32 0.0, %v2994
      %v2996 = vpop.f32.mrf.mxu0
      %2997 = vmatprep.mubr.f32.mxu0 0.0
      %2998 = vmatmul.mubr.f32.gmra.mxu0 %v2764
      %v2999 = vpop.f32.mrf.mxu0
      %v3000 = vadd.f32 0.0, %v2999
      %v3001 = vpop.f32.mrf.mxu0
      %3002 = vmatprep.mubr.f32.mxu0 0.0
      %3003 = vmatmul.mubr.f32.gmra.mxu0 %v2765
      %v3004 = vpop.f32.mrf.mxu0
      %v3005 = vadd.f32 0.0, %v3004
      %v3006 = vpop.f32.mrf.mxu0
      %3007 = vdwg.mxu0
      %v3008 = vadd.f32 %v2702, %v2850
      %v3009 = vadd.f32 %v2703, %v2855
      %v3010 = vadd.f32 %v2704, %v2860
      %v3011 = vadd.f32 %v2705, %v2865
      %v3012 = vadd.f32 %v2706, %v2870
      %v3013 = vadd.f32 %v2707, %v2875
      %v3014 = vadd.f32 %v2708, %v2880
      %v3015 = vadd.f32 %v2709, %v2885
      %v3016 = vadd.f32 %v2710, %v2890
      %v3017 = vadd.f32 %v2711, %v2895
      %v3018 = vadd.f32 %v2712, %v2900
      %v3019 = vadd.f32 %v2713, %v2905
      %v3020 = vadd.f32 %v2714, %v2910
      %v3021 = vadd.f32 %v2715, %v2915
      %v3022 = vadd.f32 %v2716, %v2920
      %v3023 = vadd.f32 %v2717, %v2925
      %v3024 = vadd.f32 %v2718, %v2930
      %v3025 = vadd.f32 %v2719, %v2935
      %v3026 = vadd.f32 %v2720, %v2940
      %v3027 = vadd.f32 %v2721, %v2945
      %v3028 = vadd.f32 %v2722, %v2950
      %v3029 = vadd.f32 %v2723, %v2955
      %v3030 = vadd.f32 %v2724, %v2960
      %v3031 = vadd.f32 %v2725, %v2965
      %v3032 = vadd.f32 %v2726, %v2970
      %v3033 = vadd.f32 %v2727, %v2975
      %v3034 = vadd.f32 %v2728, %v2980
      %v3035 = vadd.f32 %v2729, %v2985
      %v3036 = vadd.f32 %v2730, %v2990
      %v3037 = vadd.f32 %v2731, %v2995
      %v3038 = vadd.f32 %v2732, %v3000
      %v3039 = vadd.f32 %v2733, %v3005
      %v3040 = vld [vmem:[%s2] sm:$0x1]
      %v3042 = vlaneseq
      %v3043 = vshrl.u32 %v3042, 7
      %v3044 = vsub.s32 0, %v3043
      %v3045 = vrot.slane %v3040, %v3044
      %v3047 = vmul.f32 %v3008, %v3045
      %v3048 = vmul.f32 %v3009, %v3045
      %v3049 = vmul.f32 %v3010, %v3045
      %v3050 = vmul.f32 %v3011, %v3045
      %v3051 = vmul.f32 %v3012, %v3045
      %v3052 = vmul.f32 %v3013, %v3045
      %v3053 = vmul.f32 %v3014, %v3045
      %v3054 = vmul.f32 %v3015, %v3045
      %v3055 = vmul.f32 %v3016, %v3045
      %v3056 = vmul.f32 %v3017, %v3045
      %v3057 = vmul.f32 %v3018, %v3045
      %v3058 = vmul.f32 %v3019, %v3045
      %v3059 = vmul.f32 %v3020, %v3045
      %v3060 = vmul.f32 %v3021, %v3045
      %v3061 = vmul.f32 %v3022, %v3045
      %v3062 = vmul.f32 %v3023, %v3045
      %v3063 = vmul.f32 %v3024, %v3045
      %v3064 = vmul.f32 %v3025, %v3045
      %v3065 = vmul.f32 %v3026, %v3045
      %v3066 = vmul.f32 %v3027, %v3045
      %v3067 = vmul.f32 %v3028, %v3045
      %v3068 = vmul.f32 %v3029, %v3045
      %v3069 = vmul.f32 %v3030, %v3045
      %v3070 = vmul.f32 %v3031, %v3045
      %v3071 = vmul.f32 %v3032, %v3045
      %v3072 = vmul.f32 %v3033, %v3045
      %v3073 = vmul.f32 %v3034, %v3045
      %v3074 = vmul.f32 %v3035, %v3045
      %v3075 = vmul.f32 %v3036, %v3045
      %v3076 = vmul.f32 %v3037, %v3045
      %v3077 = vmul.f32 %v3038, %v3045
      %v3078 = vmul.f32 %v3039, %v3045
      %v3079 = vld [vmem:[%s3] sm:$0x1]
      %v3081 = vlaneseq
      %v3082 = vshrl.u32 %v3081, 7
      %v3083 = vsub.s32 0, %v3082
      %v3084 = vrot.slane %v3079, %v3083
      %v3086 = vadd.f32 %v3047, %v3084
      %v3087 = vadd.f32 %v3048, %v3084
      %v3088 = vadd.f32 %v3049, %v3084
      %v3089 = vadd.f32 %v3050, %v3084
      %v3090 = vadd.f32 %v3051, %v3084
      %v3091 = vadd.f32 %v3052, %v3084
      %v3092 = vadd.f32 %v3053, %v3084
      %v3093 = vadd.f32 %v3054, %v3084
      %v3094 = vadd.f32 %v3055, %v3084
      %v3095 = vadd.f32 %v3056, %v3084
      %v3096 = vadd.f32 %v3057, %v3084
      %v3097 = vadd.f32 %v3058, %v3084
      %v3098 = vadd.f32 %v3059, %v3084
      %v3099 = vadd.f32 %v3060, %v3084
      %v3100 = vadd.f32 %v3061, %v3084
      %v3101 = vadd.f32 %v3062, %v3084
      %v3102 = vadd.f32 %v3063, %v3084
      %v3103 = vadd.f32 %v3064, %v3084
      %v3104 = vadd.f32 %v3065, %v3084
      %v3105 = vadd.f32 %v3066, %v3084
      %v3106 = vadd.f32 %v3067, %v3084
      %v3107 = vadd.f32 %v3068, %v3084
      %v3108 = vadd.f32 %v3069, %v3084
      %v3109 = vadd.f32 %v3070, %v3084
      %v3110 = vadd.f32 %v3071, %v3084
      %v3111 = vadd.f32 %v3072, %v3084
      %v3112 = vadd.f32 %v3073, %v3084
      %v3113 = vadd.f32 %v3074, %v3084
      %v3114 = vadd.f32 %v3075, %v3084
      %v3115 = vadd.f32 %v3076, %v3084
      %v3116 = vadd.f32 %v3077, %v3084
      %v3117 = vadd.f32 %v3078, %v3084
      %v3118 = vmax.f32 %v3086, 0.0
      %v3119 = vmax.f32 %v3087, 0.0
      %v3120 = vmax.f32 %v3088, 0.0
      %v3121 = vmax.f32 %v3089, 0.0
      %v3122 = vmax.f32 %v3090, 0.0
      %v3123 = vmax.f32 %v3091, 0.0
      %v3124 = vmax.f32 %v3092, 0.0
      %v3125 = vmax.f32 %v3093, 0.0
      %v3126 = vmax.f32 %v3094, 0.0
      %v3127 = vmax.f32 %v3095, 0.0
      %v3128 = vmax.f32 %v3096, 0.0
      %v3129 = vmax.f32 %v3097, 0.0
      %v3130 = vmax.f32 %v3098, 0.0
      %v3131 = vmax.f32 %v3099, 0.0
      %v3132 = vmax.f32 %v3100, 0.0
      %v3133 = vmax.f32 %v3101, 0.0
      %v3134 = vmax.f32 %v3102, 0.0
      %v3135 = vmax.f32 %v3103, 0.0
      %v3136 = vmax.f32 %v3104, 0.0
      %v3137 = vmax.f32 %v3105, 0.0
      %v3138 = vmax.f32 %v3106, 0.0
      %v3139 = vmax.f32 %v3107, 0.0
      %v3140 = vmax.f32 %v3108, 0.0
      %v3141 = vmax.f32 %v3109, 0.0
      %v3142 = vmax.f32 %v3110, 0.0
      %v3143 = vmax.f32 %v3111, 0.0
      %v3144 = vmax.f32 %v3112, 0.0
      %v3145 = vmax.f32 %v3113, 0.0
      %v3146 = vmax.f32 %v3114, 0.0
      %v3147 = vmax.f32 %v3115, 0.0
      %v3148 = vmax.f32 %v3116, 0.0
      %v3149 = vmax.f32 %v3117, 0.0
      %3150 = vst [vmem:[%s221] sm:$0xff] %v3118
      %3151 = vst [vmem:[%s221 + $0x8] sm:$0xff] %v3119
      %3152 = vst [vmem:[%s221 + $0x10] sm:$0xff] %v3120
      %3153 = vst [vmem:[%s221 + $0x18] sm:$0xff] %v3121
      %3154 = vst [vmem:[%s221 + $0x20] sm:$0xff] %v3122
      %3155 = vst [vmem:[%s221 + $0x28] sm:$0xff] %v3123
      %3156 = vst [vmem:[%s221 + $0x30] sm:$0xff] %v3124
      %3157 = vst [vmem:[%s221 + $0x38] sm:$0xff] %v3125
      %3158 = vst [vmem:[%s221 + $0x40] sm:$0xff] %v3126
      %3159 = vst [vmem:[%s221 + $0x48] sm:$0xff] %v3127
      %3160 = vst [vmem:[%s221 + $0x50] sm:$0xff] %v3128
      %3161 = vst [vmem:[%s221 + $0x58] sm:$0xff] %v3129
      %3162 = vst [vmem:[%s221 + $0x60] sm:$0xff] %v3130
      %3163 = vst [vmem:[%s221 + $0x68] sm:$0xff] %v3131
      %3164 = vst [vmem:[%s221 + $0x70] sm:$0xff] %v3132
      %3165 = vst [vmem:[%s221 + $0x78] sm:$0xff] %v3133
      %3166 = vst [vmem:[%s221 + $0x80] sm:$0xff] %v3134
      %3167 = vst [vmem:[%s221 + $0x88] sm:$0xff] %v3135
      %3168 = vst [vmem:[%s221 + $0x90] sm:$0xff] %v3136
      %3169 = vst [vmem:[%s221 + $0x98] sm:$0xff] %v3137
      %3170 = vst [vmem:[%s221 + $0xa0] sm:$0xff] %v3138
      %3171 = vst [vmem:[%s221 + $0xa8] sm:$0xff] %v3139
      %3172 = vst [vmem:[%s221 + $0xb0] sm:$0xff] %v3140
      %3173 = vst [vmem:[%s221 + $0xb8] sm:$0xff] %v3141
      %3174 = vst [vmem:[%s221 + $0xc0] sm:$0xff] %v3142
      %3175 = vst [vmem:[%s221 + $0xc8] sm:$0xff] %v3143
      %3176 = vst [vmem:[%s221 + $0xd0] sm:$0xff] %v3144
      %3177 = vst [vmem:[%s221 + $0xd8] sm:$0xff] %v3145
      %3178 = vst [vmem:[%s221 + $0xe0] sm:$0xff] %v3146
      %3179 = vst [vmem:[%s221 + $0xe8] sm:$0xff] %v3147
      %3180 = vst [vmem:[%s221 + $0xf0] sm:$0xff] %v3148
      %3181 = vst [vmem:[%s221 + $0xf8] sm:$0xff] %v3149
      %s3182 = smul.u32 16, %s20
      %p3183 = scmp.lt.s32.totalorder %s19, 1
      %s3184 = scalar_select %p3183, %s19, 1
      %p3185 = scmp.lt.s32.totalorder %s3182, 15
      %s3186 = scalar_select %p3185, %s3182, 15
      %s3187 = smul.addr %s3186, 2
      %s3188 = smul.addr %s3184, 32
      %s3189 = sadd.s32 %s3187, %s3188
      %s3190 = smul.addr %s3189, 8
      %s3191 = scalar_lea.vmem %s4, %s3190
      // Predicated region
      $region37: #{bottleneck_forward.4} parent=35 // pred_check
        %p3192 = pneg %p136
      $region38: #{bottleneck_forward.4} parent=35 // pred_check_branch
        %3194 = sbr.rel (%p3192) target = $region40
      $region39: #{bottleneck_forward.4} parent=35 // pred_region
        %s3195 = smul.u32 16, %s20
      $region40: #{bottleneck_forward.4} parent=35 // pred_fallthru
        _
    $region36: #{bottleneck_forward.4} parent=5 // pred_fallthru
      _
    %p3196 = scmp.le.s32.totalorder 2, %s10
    // Predicated region
    $region41: #{bottleneck_forward.4} parent=5 // pred_check
      %p3197 = pneg %p3196
    $region42: #{bottleneck_forward.4} parent=5 // pred_check_branch
      %3199 = sbr.rel (%p3197) target = $region44
    $region43: #{bottleneck_forward.4} parent=5 // pred_region
      %s3200 = ssub.s32 %s10, 2
      // Predicated region
      $region45: #{bottleneck_forward.4} parent=43 // pred_check
        %p3201 = pneg %p142
      $region46: #{bottleneck_forward.4} parent=43 // pred_check_branch
        %3203 = sbr.rel (%p3201) target = $region48
      $region47: #{bottleneck_forward.4} parent=43 // pred_region
        %s3204 = smul.u32 16, %s22
        %p3205 = scmp.lt.s32.totalorder %s21, 1
        %s3206 = scalar_select %p3205, %s21, 1
        %p3207 = scmp.lt.s32.totalorder %s3204, 15
        %s3208 = scalar_select %p3207, %s3204, 15
        %s3209 = smul.addr %s3208, 2
        %s3210 = smul.addr %s3206, 32
        %s3211 = sadd.s32 %s3209, %s3210
        %s3212 = smul.addr %s3211, 8
        %s3213 = scalar_lea.vmem %s4, %s3212
      $region48: #{bottleneck_forward.4} parent=43 // pred_fallthru
        _
    $region44: #{bottleneck_forward.4} parent=5 // pred_fallthru
      _
  $region6: #{bottleneck_forward.4} parent=0 // loop_footer
    %s14 = sadd.s32 1, %s10
  $region7: #{bottleneck_forward.4} parent=0 // loop_footer_branch
    %9 = sbr.rel target = $region3
  $region8: #{bottleneck_forward.4} parent=0 // loop_exit
    _

// kernel: bottleneck_forward.6
$region0: #{bottleneck_forward.6}
  #allocation0 [shape = 'u32[]', space=smem, size = 0x4, offset = 0x4, fixed_abs, tag = 'smem constant byte address 0x4 - core index']
  #allocation1 [shape = 'u32[144,128]{1,0:T(1,128)}', space=vmem, size = 0x12000, scoped, tag = 'internal scratch']
  #allocation2 [shape = 'f32[18,18,128]{2,1,0:T(8,128)}', space=vmem, size = 0x36000, scoped, tag = 'scratch operand']
  %s0 = inlined_call_operand.vmem [shape: f32[2,16,16,128], index: 0, kind: input, shape index: {}]
  %s1 = inlined_call_operand.vmem [shape: f32[9,128,128], index: 1, kind: input, shape index: {}]
  %s2 = inlined_call_operand.vmem [shape: f32[1,128], index: 2, kind: input, shape index: {}]
  %s3 = inlined_call_operand.vmem [shape: f32[1,128], index: 3, kind: input, shape index: {}]
  %s4 = inlined_call_operand.vmem [shape: f32[2,16,16,128], index: 4, kind: output, shape index: {0}]
  %s5 = inlined_call_operand.vmem [shape: f32[2,128], index: 5, kind: output, shape index: {1}]
  %6 = xla_tuple %s4, %s5
  %s7 = sld [smem:[#allocation0]]
  $region61: #{bottleneck_forward.6} parent=0
    _
  %s9 = ssub.s32 1, %s7
  %s10 = scalar_select 0, %s9, %s7
  loop: start=0, step=1, limit=4
  $region2: #{bottleneck_forward.6} parent=0 // loop_pre_header
    _
  $region3: #{bottleneck_forward.6} parent=0 // loop_header
    %s12 = sphi 0, %s16
    %p13 = scmp.ge.s32.totalorder %s12, 4
    %s19 = sphi 0, %s31
    %s20 = sphi 0, %s27
    %s21 = sphi 0, %s19
    %s22 = sphi 0, %s20
    %s23 = sphi 0, %s21
    %s24 = sphi 0, %s22
    %s34 = sphi 0, %s36
    %s37 = sphi 0, %s34
    %s38 = sphi 0, %s37
    %s54 = sphi 0, %s38
    %s58 = sphi 0, %s58
    %s60 = sphi 0, %s58
    %s61 = sphi 0, %s60
    %s75 = sphi 0, %s61
    %s79 = sphi 0, %s79
    %s81 = sphi 0, %s79
    %s82 = sphi 0, %s81
    %s96 = sphi 0, %s82
    %s100 = sphi 0, %s100
    %s102 = sphi 0, %s100
    %s103 = sphi 0, %s102
    %s117 = sphi 0, %s103
    %s125 = sphi 0, %s127
    %s128 = sphi 0, %s125
    %s129 = sphi 0, %s128
    %s145 = sphi 0, %s129
    %s149 = sphi 0, %s149
    %s151 = sphi 0, %s149
    %s152 = sphi 0, %s151
    %s166 = sphi 0, %s152
  $region4: #{bottleneck_forward.6} parent=0 // loop_header_branch
    %15 = sbr.rel (%p13) target = $region8
  $region5: #{bottleneck_forward.6} parent=0 // loop_body
    %s17 = ssub.s32 %s12, 1
    %s18 = ssub.s32 %s12, 2
    %s25 = sadd.s32 1, %s20
    %p26 = scmp.ge.s32.totalorder %s25, 1
    %s27 = scalar_select %p26, 0, %s25
    %s28 = sadd.s32 1, %s19
    %s29 = scalar_select %p26, %s28, %s19
    %p30 = scmp.ge.s32.totalorder %s29, 2
    %s31 = scalar_select %p30, 0, %s29
    %s32 = ssub.s32 %s19, %s31
    %p33 = scmp.eq.s32.totalorder %s32, 0
    %s35 = sadd.s32 %s34, 1
    %s36 = scalar_select %p33, %s34, %s35
    %p39 = pneg %p33
    %p40 = scmp.eq.s32.totalorder %s12, 1
    %p41 = por %p39, %p40
    %p42 = scmp.ne.s32.totalorder %s34, %s37
    %p43 = scmp.eq.s32.totalorder %s12, 0
    %p44 = por %p42, %p43
    %p45 = scmp.ne.s32.totalorder %s34, %s37
    %p46 = scmp.eq.s32.totalorder %s17, 1
    %p47 = por %p45, %p46
    %p48 = scmp.ne.s32.totalorder %s37, %s38
    %p49 = scmp.eq.s32.totalorder %s17, 0
    %p50 = por %p48, %p49
    %p51 = scmp.ne.s32.totalorder %s37, %s38
    %p52 = scmp.eq.s32.totalorder %s18, 1
    %p53 = por %p51, %p52
    %p55 = scmp.ne.s32.totalorder %s38, %s54
    %p56 = scmp.eq.s32.totalorder %s18, 0
    %p57 = por %p55, %p56
    %s59 = sadd.s32 %s58, 1
    %p62 = scmp.eq.s32.totalorder %s12, 1
    %p63 = scmp.ne.s32.totalorder %s58, %s60
    %p64 = scmp.eq.s32.totalorder %s12, 0
    %p65 = por %p63, %p64
    %p66 = scmp.ne.s32.totalorder %s58, %s60
    %p67 = scmp.eq.s32.totalorder %s17, 1
    %p68 = por %p66, %p67
    %p69 = scmp.ne.s32.totalorder %s60, %s61
    %p70 = scmp.eq.s32.totalorder %s17, 0
    %p71 = por %p69, %p70
    %p72 = scmp.ne.s32.totalorder %s60, %s61
    %p73 = scmp.eq.s32.totalorder %s18, 1
    %p74 = por %p72, %p73
    %p76 = scmp.ne.s32.totalorder %s61, %s75
    %p77 = scmp.eq.s32.totalorder %s18, 0
    %p78 = por %p76, %p77
    %s80 = sadd.s32 %s79, 1
    %p83 = scmp.eq.s32.totalorder %s12, 1
    %p84 = scmp.ne.s32.totalorder %s79, %s81
    %p85 = scmp.eq.s32.totalorder %s12, 0
    %p86 = por %p84, %p85
    %p87 = scmp.ne.s32.totalorder %s79, %s81
    %p88 = scmp.eq.s32.totalorder %s17, 1
    %p89 = por %p87, %p88
    %p90 = scmp.ne.s32.totalorder %s81, %s82
    %p91 = scmp.eq.s32.totalorder %s17, 0
    %p92 = por %p90, %p91
    %p93 = scmp.ne.s32.totalorder %s81, %s82
    %p94 = scmp.eq.s32.totalorder %s18, 1
    %p95 = por %p93, %p94
    %p97 = scmp.ne.s32.totalorder %s82, %s96
    %p98 = scmp.eq.s32.totalorder %s18, 0
    %p99 = por %p97, %p98
    %s101 = sadd.s32 %s100, 1
    %p104 = scmp.eq.s32.totalorder %s12, 1
    %p105 = scmp.ne.s32.totalorder %s100, %s102
    %p106 = scmp.eq.s32.totalorder %s12, 0
    %p107 = por %p105, %p106
    %p108 = scmp.ne.s32.totalorder %s100, %s102
    %p109 = scmp.eq.s32.totalorder %s17, 1
    %p110 = por %p108, %p109
    %p111 = scmp.ne.s32.totalorder %s102, %s103
    %p112 = scmp.eq.s32.totalorder %s17, 0
    %p113 = por %p111, %p112
    %p114 = scmp.ne.s32.totalorder %s102, %s103
    %p115 = scmp.eq.s32.totalorder %s18, 1
    %p116 = por %p114, %p115
    %p118 = scmp.ne.s32.totalorder %s103, %s117
    %p119 = scmp.eq.s32.totalorder %s18, 0
    %p120 = por %p118, %p119
    %s121 = ssub.s32 %s19, %s31
    %s122 = ssub.s32 %s20, %s27
    %s123 = sor.u32 %s121, %s122
    %p124 = scmp.eq.s32.totalorder %s123, 0
    %s126 = sadd.s32 %s125, 1
    %s127 = scalar_select %p124, %s125, %s126
    %p130 = pneg %p124
    %p131 = scmp.eq.s32.totalorder %s12, 1
    %p132 = por %p130, %p131
    %p133 = scmp.ne.s32.totalorder %s125, %s128
    %p134 = scmp.eq.s32.totalorder %s12, 0
    %p135 = por %p133, %p134
    %p136 = scmp.ne.s32.totalorder %s125, %s128
    %p137 = scmp.eq.s32.totalorder %s17, 1
    %p138 = por %p136, %p137
    %p139 = scmp.ne.s32.totalorder %s128, %s129
    %p140 = scmp.eq.s32.totalorder %s17, 0
    %p141 = por %p139, %p140
    %p142 = scmp.ne.s32.totalorder %s128, %s129
    %p143 = scmp.eq.s32.totalorder %s18, 1
    %p144 = por %p142, %p143
    %p146 = scmp.ne.s32.totalorder %s129, %s145
    %p147 = scmp.eq.s32.totalorder %s18, 0
    %p148 = por %p146, %p147
    %s150 = sadd.s32 %s149, 1
    %p153 = scmp.eq.s32.totalorder %s12, 1
    %p154 = scmp.ne.s32.totalorder %s149, %s151
    %p155 = scmp.eq.s32.totalorder %s12, 0
    %p156 = por %p154, %p155
    %p157 = scmp.ne.s32.totalorder %s149, %s151
    %p158 = scmp.eq.s32.totalorder %s17, 1
    %p159 = por %p157, %p158
    %p160 = scmp.ne.s32.totalorder %s151, %s152
    %p161 = scmp.eq.s32.totalorder %s17, 0
    %p162 = por %p160, %p161
    %p163 = scmp.ne.s32.totalorder %s151, %s152
    %p164 = scmp.eq.s32.totalorder %s18, 1
    %p165 = por %p163, %p164
    %p167 = scmp.ne.s32.totalorder %s152, %s166
    %p168 = scmp.eq.s32.totalorder %s18, 0
    %p169 = por %p167, %p168
    %p170 = scmp.le.s32.totalorder 1, %s12
    %p171 = scmp.lt.s32.totalorder %s12, 3
    %p172 = pnand %p170, %p171
    %p173 = pneg %p172
    // Predicated region
    $region9: #{bottleneck_forward.6} parent=5 // pred_check
      _
    $region10: #{bottleneck_forward.6} parent=5 // pred_check_branch
      %175 = sbr.rel (%p172) target = $region12
    $region11: #{bottleneck_forward.6} parent=5 // pred_region
      %s176 = ssub.s32 %s12, 1
      // Predicated region
      $region13: #{bottleneck_forward.6} parent=11 // pred_check
        %p177 = pneg %p71
      $region14: #{bottleneck_forward.6} parent=11 // pred_check_branch
        %179 = sbr.rel (%p177) target = $region16
      $region15: #{bottleneck_forward.6} parent=11 // pred_region
        _
      $region16: #{bottleneck_forward.6} parent=11 // pred_fallthru
        _
      // Predicated region
      $region17: #{bottleneck_forward.6} parent=11 // pred_check
        %p180 = pneg %p92
      $region18: #{bottleneck_forward.6} parent=11 // pred_check_branch
        %182 = sbr.rel (%p180) target = $region20
      $region19: #{bottleneck_forward.6} parent=11 // pred_region
        _
      $region20: #{bottleneck_forward.6} parent=11 // pred_fallthru
        _
      // Predicated region
      $region21: #{bottleneck_forward.6} parent=11 // pred_check
        %p183 = pneg %p113
      $region22: #{bottleneck_forward.6} parent=11 // pred_check_branch
        %185 = sbr.rel (%p183) target = $region24
      $region23: #{bottleneck_forward.6} parent=11 // pred_region
        _
      $region24: #{bottleneck_forward.6} parent=11 // pred_fallthru
        _
    $region12: #{bottleneck_forward.6} parent=5 // pred_fallthru
      _
    %p186 = scmp.lt.s32.totalorder %s12, 2
    // Predicated region
    $region25: #{bottleneck_forward.6} parent=5 // pred_check
      %p187 = pneg %p186
    $region26: #{bottleneck_forward.6} parent=5 // pred_check_branch
      %189 = sbr.rel (%p187) target = $region28
    $region27: #{bottleneck_forward.6} parent=5 // pred_region
      // Predicated region
      $region29: #{bottleneck_forward.6} parent=27 // pred_check
        %p190 = pneg %p44
      $region30: #{bottleneck_forward.6} parent=27 // pred_check_branch
        %192 = sbr.rel (%p190) target = $region32
      $region31: #{bottleneck_forward.6} parent=27 // pred_region
        %p193 = scmp.lt.s32.totalorder %s19, 1
        %s194 = scalar_select %p193, %s19, 1
        %s195 = smul.addr %s194, 32
        %s196 = smul.addr %s195, 8
        %s197 = scalar_lea.vmem %s0, %s196
      $region32: #{bottleneck_forward.6} parent=27 // pred_fallthru
        _
    $region28: #{bottleneck_forward.6} parent=5 // pred_fallthru
      _
    %p198 = scmp.le.s32.totalorder 1, %s12
    %p199 = scmp.lt.s32.totalorder %s12, 3
    %p200 = pnand %p198, %p199
    %p201 = pneg %p200
    // Predicated region
    $region33: #{bottleneck_forward.6} parent=5 // pred_check
      _
    $region34: #{bottleneck_forward.6} parent=5 // pred_check_branch
      %203 = sbr.rel (%p200) target = $region36
    $region35: #{bottleneck_forward.6} parent=5 // pred_region
      %s204 = ssub.s32 %s12, 1
      %p205 = scmp.lt.s32.totalorder %s21, 1
      %s206 = scalar_select %p205, %s21, 1
      %s207 = smul.addr %s206, 32
      %s208 = smul.addr %s207, 8
      %s209 = scalar_lea.vmem %s0, %s208
      %p210 = pneg %p50
      %p211 = pneg %p47
      %p212 = pneg %p71
      %p213 = pneg %p68
      %p214 = pneg %p92
      %p215 = pneg %p89
      %p216 = pneg %p113
      %p217 = pneg %p110
      %p218 = pneg %p141
      %p219 = pneg %p138
      %s220 = smul.u32 16, %s22
      %p221 = scmp.lt.s32.totalorder %s21, 1
      %s222 = scalar_select %p221, %s21, 1
      %p223 = scmp.lt.s32.totalorder %s220, 15
      %s224 = scalar_select %p223, %s220, 15
      %s225 = smul.addr %s224, 2
      %s226 = smul.addr %s222, 32
      %s227 = sadd.s32 %s225, %s226
      %s228 = smul.addr %s227, 8
      %s229 = scalar_lea.vmem %s4, %s228
      %p230 = pneg %p162
      %p231 = pneg %p159
      %p232 = scmp.lt.s32.totalorder %s21, 1
      %s233 = scalar_select %p232, %s21, 1
      %s234 = smul.addr %s233, 32
      %s235 = smul.addr %s234, 8
      %s236 = scalar_lea.vmem %s0, %s235
      %s237 = smul.u32 16, %s22
      %p238 = scmp.lt.s32.totalorder %s21, 1
      %s239 = scalar_select %p238, %s21, 1
      %p240 = scmp.lt.s32.totalorder %s237, 15
      %s241 = scalar_select %p240, %s237, 15
      %s242 = smul.addr %s241, 2
      %s243 = smul.addr %s239, 32
      %s244 = sadd.s32 %s242, %s243
      %s245 = smul.addr %s244, 8
      %s246 = scalar_lea.vmem %s4, %s245
      %s247 = smul.u32 16, %s22
      %248 = vst [vmem:[#allocation2] sm:$0xff] 0.0
      %249 = vst [vmem:[#allocation2 + $0x8] sm:$0xff] 0.0
      %250 = vst [vmem:[#allocation2 + $0x10] sm:$0x3] 0.0
      %251 = vst [vmem:[#allocation2 + $0x18] sm:$0xff] 0.0
      %252 = vst [vmem:[#allocation2 + $0x20] sm:$0xff] 0.0
      %253 = vst [vmem:[#allocation2 + $0x28] sm:$0x3] 0.0
      %254 = vst [vmem:[#allocation2 + $0x30] sm:$0xff] 0.0
      %255 = vst [vmem:[#allocation2 + $0x38] sm:$0xff] 0.0
      %256 = vst [vmem:[#allocation2 + $0x40] sm:$0x3] 0.0
      %257 = vst [vmem:[#allocation2 + $0x48] sm:$0xff] 0.0
      %258 = vst [vmem:[#allocation2 + $0x50] sm:$0xff] 0.0
      %259 = vst [vmem:[#allocation2 + $0x58] sm:$0x3] 0.0
      %260 = vst [vmem:[#allocation2 + $0x60] sm:$0xff] 0.0
      %261 = vst [vmem:[#allocation2 + $0x68] sm:$0xff] 0.0
      %262 = vst [vmem:[#allocation2 + $0x70] sm:$0x3] 0.0
      %263 = vst [vmem:[#allocation2 + $0x78] sm:$0xff] 0.0
      %264 = vst [vmem:[#allocation2 + $0x80] sm:$0xff] 0.0
      %265 = vst [vmem:[#allocation2 + $0x88] sm:$0x3] 0.0
      %266 = vst [vmem:[#allocation2 + $0x90] sm:$0xff] 0.0
      %267 = vst [vmem:[#allocation2 + $0x98] sm:$0xff] 0.0
      %268 = vst [vmem:[#allocation2 + $0xa0] sm:$0x3] 0.0
      %269 = vst [vmem:[#allocation2 + $0xa8] sm:$0xff] 0.0
      %270 = vst [vmem:[#allocation2 + $0xb0] sm:$0xff] 0.0
      %271 = vst [vmem:[#allocation2 + $0xb8] sm:$0x3] 0.0
      %272 = vst [vmem:[#allocation2 + $0xc0] sm:$0xff] 0.0
      %273 = vst [vmem:[#allocation2 + $0xc8] sm:$0xff] 0.0
      %274 = vst [vmem:[#allocation2 + $0xd0] sm:$0x3] 0.0
      %275 = vst [vmem:[#allocation2 + $0xd8] sm:$0xff] 0.0
      %276 = vst [vmem:[#allocation2 + $0xe0] sm:$0xff] 0.0
      %277 = vst [vmem:[#allocation2 + $0xe8] sm:$0x3] 0.0
      %278 = vst [vmem:[#allocation2 + $0xf0] sm:$0xff] 0.0
      %279 = vst [vmem:[#allocation2 + $0xf8] sm:$0xff] 0.0
      %280 = vst [vmem:[#allocation2 + $0x100] sm:$0x3] 0.0
      %281 = vst [vmem:[#allocation2 + $0x108] sm:$0xff] 0.0
      %282 = vst [vmem:[#allocation2 + $0x110] sm:$0xff] 0.0
      %283 = vst [vmem:[#allocation2 + $0x118] sm:$0x3] 0.0
      %284 = vst [vmem:[#allocation2 + $0x120] sm:$0xff] 0.0
      %285 = vst [vmem:[#allocation2 + $0x128] sm:$0xff] 0.0
      %286 = vst [vmem:[#allocation2 + $0x130] sm:$0x3] 0.0
      %287 = vst [vmem:[#allocation2 + $0x138] sm:$0xff] 0.0
      %288 = vst [vmem:[#allocation2 + $0x140] sm:$0xff] 0.0
      %289 = vst [vmem:[#allocation2 + $0x148] sm:$0x3] 0.0
      %290 = vst [vmem:[#allocation2 + $0x150] sm:$0xff] 0.0
      %291 = vst [vmem:[#allocation2 + $0x158] sm:$0xff] 0.0
      %292 = vst [vmem:[#allocation2 + $0x160] sm:$0x3] 0.0
      %293 = vst [vmem:[#allocation2 + $0x168] sm:$0xff] 0.0
      %294 = vst [vmem:[#allocation2 + $0x170] sm:$0xff] 0.0
      %295 = vst [vmem:[#allocation2 + $0x178] sm:$0x3] 0.0
      %296 = vst [vmem:[#allocation2 + $0x180] sm:$0xff] 0.0
      %297 = vst [vmem:[#allocation2 + $0x188] sm:$0xff] 0.0
      %298 = vst [vmem:[#allocation2 + $0x190] sm:$0x3] 0.0
      %299 = vst [vmem:[#allocation2 + $0x198] sm:$0xff] 0.0
      %300 = vst [vmem:[#allocation2 + $0x1a0] sm:$0xff] 0.0
      %301 = vst [vmem:[#allocation2 + $0x1a8] sm:$0x3] 0.0
      %v302 = vld [vmem:[%s236] sm:$0xff]
      %v303 = vld [vmem:[%s236 + $0x8] sm:$0xff]
      %v304 = vld [vmem:[%s236 + $0x10] sm:$0xff]
      %v305 = vld [vmem:[%s236 + $0x18] sm:$0xff]
      %v306 = vld [vmem:[%s236 + $0x20] sm:$0xff]
      %v307 = vld [vmem:[%s236 + $0x28] sm:$0xff]
      %v308 = vld [vmem:[%s236 + $0x30] sm:$0xff]
      %v309 = vld [vmem:[%s236 + $0x38] sm:$0xff]
      %v310 = vld [vmem:[%s236 + $0x40] sm:$0xff]
      %v311 = vld [vmem:[%s236 + $0x48] sm:$0xff]
      %v312 = vld [vmem:[%s236 + $0x50] sm:$0xff]
      %v313 = vld [vmem:[%s236 + $0x58] sm:$0xff]
      %v314 = vld [vmem:[%s236 + $0x60] sm:$0xff]
      %v315 = vld [vmem:[%s236 + $0x68] sm:$0xff]
      %v316 = vld [vmem:[%s236 + $0x70] sm:$0xff]
      %v317 = vld [vmem:[%s236 + $0x78] sm:$0xff]
      %v318 = vld [vmem:[%s236 + $0x80] sm:$0xff]
      %v319 = vld [vmem:[%s236 + $0x88] sm:$0xff]
      %v320 = vld [vmem:[%s236 + $0x90] sm:$0xff]
      %v321 = vld [vmem:[%s236 + $0x98] sm:$0xff]
      %v322 = vld [vmem:[%s236 + $0xa0] sm:$0xff]
      %v323 = vld [vmem:[%s236 + $0xa8] sm:$0xff]
      %v324 = vld [vmem:[%s236 + $0xb0] sm:$0xff]
      %v325 = vld [vmem:[%s236 + $0xb8] sm:$0xff]
      %v326 = vld [vmem:[%s236 + $0xc0] sm:$0xff]
      %v327 = vld [vmem:[%s236 + $0xc8] sm:$0xff]
      %v328 = vld [vmem:[%s236 + $0xd0] sm:$0xff]
      %v329 = vld [vmem:[%s236 + $0xd8] sm:$0xff]
      %v330 = vld [vmem:[%s236 + $0xe0] sm:$0xff]
      %v331 = vld [vmem:[%s236 + $0xe8] sm:$0xff]
      %v332 = vld [vmem:[%s236 + $0xf0] sm:$0xff]
      %v333 = vld [vmem:[%s236 + $0xf8] sm:$0xff]
      %s334 = scalar_lea.vmem [#allocation2], 24
      %335 = vst [vmem:[%s334 + $0x1] sm:$0xff] %v302
      %336 = vst [vmem:[%s334 + $0x9] sm:$0xff] %v303
      %337 = vst [vmem:[%s334 + $0x19] sm:$0xff] %v304
      %338 = vst [vmem:[%s334 + $0x21] sm:$0xff] %v305
      %339 = vst [vmem:[%s334 + $0x31] sm:$0xff] %v306
      %340 = vst [vmem:[%s334 + $0x39] sm:$0xff] %v307
      %341 = vst [vmem:[%s334 + $0x49] sm:$0xff] %v308
      %342 = vst [vmem:[%s334 + $0x51] sm:$0xff] %v309
      %343 = vst [vmem:[%s334 + $0x61] sm:$0xff] %v310
      %344 = vst [vmem:[%s334 + $0x69] sm:$0xff] %v311
      %345 = vst [vmem:[%s334 + $0x79] sm:$0xff] %v312
      %346 = vst [vmem:[%s334 + $0x81] sm:$0xff] %v313
      %347 = vst [vmem:[%s334 + $0x91] sm:$0xff] %v314
      %348 = vst [vmem:[%s334 + $0x99] sm:$0xff] %v315
      %349 = vst [vmem:[%s334 + $0xa9] sm:$0xff] %v316
      %350 = vst [vmem:[%s334 + $0xb1] sm:$0xff] %v317
      %351 = vst [vmem:[%s334 + $0xc1] sm:$0xff] %v318
      %352 = vst [vmem:[%s334 + $0xc9] sm:$0xff] %v319
      %353 = vst [vmem:[%s334 + $0xd9] sm:$0xff] %v320
      %354 = vst [vmem:[%s334 + $0xe1] sm:$0xff] %v321
      %355 = vst [vmem:[%s334 + $0xf1] sm:$0xff] %v322
      %356 = vst [vmem:[%s334 + $0xf9] sm:$0xff] %v323
      %357 = vst [vmem:[%s334 + $0x109] sm:$0xff] %v324
      %358 = vst [vmem:[%s334 + $0x111] sm:$0xff] %v325
      %359 = vst [vmem:[%s334 + $0x121] sm:$0xff] %v326
      %360 = vst [vmem:[%s334 + $0x129] sm:$0xff] %v327
      %361 = vst [vmem:[%s334 + $0x139] sm:$0xff] %v328
      %362 = vst [vmem:[%s334 + $0x141] sm:$0xff] %v329
      %363 = vst [vmem:[%s334 + $0x151] sm:$0xff] %v330
      %364 = vst [vmem:[%s334 + $0x159] sm:$0xff] %v331
      %365 = vst [vmem:[%s334 + $0x169] sm:$0xff] %v332
      %366 = vst [vmem:[%s334 + $0x171] sm:$0xff] %v333
      %s367 = smul.u32 %s22, 16
      %s368 = smul.u32 %s367, 24
      %s369 = scalar_lea.vmem [#allocation2], %s368
      %v370 = vld [vmem:[%s369] sm:$0xff]
      %v371 = vld [vmem:[%s369 + $0x8] sm:$0xff]
      %v372 = vld [vmem:[%s369 + $0x18] sm:$0xff]
      %v373 = vld [vmem:[%s369 + $0x20] sm:$0xff]
      %v374 = vld [vmem:[%s369 + $0x30] sm:$0xff]
      %v375 = vld [vmem:[%s369 + $0x38] sm:$0xff]
      %v376 = vld [vmem:[%s369 + $0x48] sm:$0xff]
      %v377 = vld [vmem:[%s369 + $0x50] sm:$0xff]
      %v378 = vld [vmem:[%s369 + $0x60] sm:$0xff]
      %v379 = vld [vmem:[%s369 + $0x68] sm:$0xff]
      %v380 = vld [vmem:[%s369 + $0x78] sm:$0xff]
      %v381 = vld [vmem:[%s369 + $0x80] sm:$0xff]
      %v382 = vld [vmem:[%s369 + $0x90] sm:$0xff]
      %v383 = vld [vmem:[%s369 + $0x98] sm:$0xff]
      %v384 = vld [vmem:[%s369 + $0xa8] sm:$0xff]
      %v385 = vld [vmem:[%s369 + $0xb0] sm:$0xff]
      %v386 = vld [vmem:[%s369 + $0xc0] sm:$0xff]
      %v387 = vld [vmem:[%s369 + $0xc8] sm:$0xff]
      %v388 = vld [vmem:[%s369 + $0xd8] sm:$0xff]
      %v389 = vld [vmem:[%s369 + $0xe0] sm:$0xff]
      %v390 = vld [vmem:[%s369 + $0xf0] sm:$0xff]
      %v391 = vld [vmem:[%s369 + $0xf8] sm:$0xff]
      %v392 = vld [vmem:[%s369 + $0x108] sm:$0xff]
      %v393 = vld [vmem:[%s369 + $0x110] sm:$0xff]
      %v394 = vld [vmem:[%s369 + $0x120] sm:$0xff]
      %v395 = vld [vmem:[%s369 + $0x128] sm:$0xff]
      %v396 = vld [vmem:[%s369 + $0x138] sm:$0xff]
      %v397 = vld [vmem:[%s369 + $0x140] sm:$0xff]
      %v398 = vld [vmem:[%s369 + $0x150] sm:$0xff]
      %v399 = vld [vmem:[%s369 + $0x158] sm:$0xff]
      %v400 = vld [vmem:[%s369 + $0x168] sm:$0xff]
      %v401 = vld [vmem:[%s369 + $0x170] sm:$0xff]
      %v402 = vld [vmem:[%s1] sm:$0xff]
      %v403 = vld [vmem:[%s1 + $0x8] sm:$0xff]
      %v404 = vld [vmem:[%s1 + $0x10] sm:$0xff]
      %v405 = vld [vmem:[%s1 + $0x18] sm:$0xff]
      %v406 = vld [vmem:[%s1 + $0x20] sm:$0xff]
      %v407 = vld [vmem:[%s1 + $0x28] sm:$0xff]
      %v408 = vld [vmem:[%s1 + $0x30] sm:$0xff]
      %v409 = vld [vmem:[%s1 + $0x38] sm:$0xff]
      %v410 = vld [vmem:[%s1 + $0x40] sm:$0xff]
      %v411 = vld [vmem:[%s1 + $0x48] sm:$0xff]
      %v412 = vld [vmem:[%s1 + $0x50] sm:$0xff]
      %v413 = vld [vmem:[%s1 + $0x58] sm:$0xff]
      %v414 = vld [vmem:[%s1 + $0x60] sm:$0xff]
      %v415 = vld [vmem:[%s1 + $0x68] sm:$0xff]
      %v416 = vld [vmem:[%s1 + $0x70] sm:$0xff]
      %v417 = vld [vmem:[%s1 + $0x78] sm:$0xff]
      %v418 = vld [vmem:[%s369 + $0x1] sm:$0xff]
      %v419 = vld [vmem:[%s369 + $0x9] sm:$0xff]
      %v420 = vld [vmem:[%s369 + $0x19] sm:$0xff]
      %v421 = vld [vmem:[%s369 + $0x21] sm:$0xff]
      %v422 = vld [vmem:[%s369 + $0x31] sm:$0xff]
      %v423 = vld [vmem:[%s369 + $0x39] sm:$0xff]
      %v424 = vld [vmem:[%s369 + $0x49] sm:$0xff]
      %v425 = vld [vmem:[%s369 + $0x51] sm:$0xff]
      %v426 = vld [vmem:[%s369 + $0x61] sm:$0xff]
      %v427 = vld [vmem:[%s369 + $0x69] sm:$0xff]
      %v428 = vld [vmem:[%s369 + $0x79] sm:$0xff]
      %v429 = vld [vmem:[%s369 + $0x81] sm:$0xff]
      %v430 = vld [vmem:[%s369 + $0x91] sm:$0xff]
      %v431 = vld [vmem:[%s369 + $0x99] sm:$0xff]
      %v432 = vld [vmem:[%s369 + $0xa9] sm:$0xff]
      %v433 = vld [vmem:[%s369 + $0xb1] sm:$0xff]
      %v434 = vld [vmem:[%s369 + $0xc1] sm:$0xff]
      %v435 = vld [vmem:[%s369 + $0xc9] sm:$0xff]
      %v436 = vld [vmem:[%s369 + $0xd9] sm:$0xff]
      %v437 = vld [vmem:[%s369 + $0xe1] sm:$0xff]
      %v438 = vld [vmem:[%s369 + $0xf1] sm:$0xff]
      %v439 = vld [vmem:[%s369 + $0xf9] sm:$0xff]
      %v440 = vld [vmem:[%s369 + $0x109] sm:$0xff]
      %v441 = vld [vmem:[%s369 + $0x111] sm:$0xff]
      %v442 = vld [vmem:[%s369 + $0x121] sm:$0xff]
      %v443 = vld [vmem:[%s369 + $0x129] sm:$0xff]
      %v444 = vld [vmem:[%s369 + $0x139] sm:$0xff]
      %v445 = vld [vmem:[%s369 + $0x141] sm:$0xff]
      %v446 = vld [vmem:[%s369 + $0x151] sm:$0xff]
      %v447 = vld [vmem:[%s369 + $0x159] sm:$0xff]
      %v448 = vld [vmem:[%s369 + $0x169] sm:$0xff]
      %v449 = vld [vmem:[%s369 + $0x171] sm:$0xff]
      %s450 = scalar_lea.vmem %s1, 128
      %v451 = vld [vmem:[%s450] sm:$0xff]
      %v452 = vld [vmem:[%s450 + $0x8] sm:$0xff]
      %v453 = vld [vmem:[%s450 + $0x10] sm:$0xff]
      %v454 = vld [vmem:[%s450 + $0x18] sm:$0xff]
      %v455 = vld [vmem:[%s450 + $0x20] sm:$0xff]
      %v456 = vld [vmem:[%s450 + $0x28] sm:$0xff]
      %v457 = vld [vmem:[%s450 + $0x30] sm:$0xff]
      %v458 = vld [vmem:[%s450 + $0x38] sm:$0xff]
      %v459 = vld [vmem:[%s450 + $0x40] sm:$0xff]
      %v460 = vld [vmem:[%s450 + $0x48] sm:$0xff]
      %v461 = vld [vmem:[%s450 + $0x50] sm:$0xff]
      %v462 = vld [vmem:[%s450 + $0x58] sm:$0xff]
      %v463 = vld [vmem:[%s450 + $0x60] sm:$0xff]
      %v464 = vld [vmem:[%s450 + $0x68] sm:$0xff]
      %v465 = vld [vmem:[%s450 + $0x70] sm:$0xff]
      %v466 = vld [vmem:[%s450 + $0x78] sm:$0xff]
      %467 = vmatprep.subr.mxu0 0.0
      %468 = vmatpush1.msra.mxu0 %v466
      %469 = vmatprep.subr.mxu0 0.0
      %470 = vmatpush1.msra.mxu0 %v465
      %471 = vmatprep.subr.mxu0 0.0
      %472 = vmatpush1.msra.mxu0 %v464
      %473 = vmatprep.subr.mxu0 0.0
      %474 = vmatpush1.msra.mxu0 %v463
      %475 = vmatprep.subr.mxu0 0.0
      %476 = vmatpush1.msra.mxu0 %v462
      %477 = vmatprep.subr.mxu0 0.0
      %478 = vmatpush1.msra.mxu0 %v461
      %479 = vmatprep.subr.mxu0 0.0
      %480 = vmatpush1.msra.mxu0 %v460
      %481 = vmatprep.subr.mxu0 0.0
      %482 = vmatpush1.msra.mxu0 %v459
      %483 = vmatprep.subr.mxu0 0.0
      %484 = vmatpush1.msra.mxu0 %v458
      %485 = vmatprep.subr.mxu0 0.0
      %486 = vmatpush1.msra.mxu0 %v457
      %487 = vmatprep.subr.mxu0 0.0
      %488 = vmatpush1.msra.mxu0 %v456
      %489 = vmatprep.subr.mxu0 0.0
      %490 = vmatpush1.msra.mxu0 %v455
      %491 = vmatprep.subr.mxu0 0.0
      %492 = vmatpush1.msra.mxu0 %v454
      %493 = vmatprep.subr.mxu0 0.0
      %494 = vmatpush1.msra.mxu0 %v453
      %495 = vmatprep.subr.mxu0 0.0
      %496 = vmatpush1.msra.mxu0 %v452
      %497 = vmatprep.subr.mxu0 0.0
      %498 = vmatpush1.msra.mxu0 %v451
      %499 = vmatprep.subr.mxu0 0.0
      %500 = vmatpush2.msra.mxu0 0.0
      %501 = vmatprep.subr.mxu0 0.0
      %502 = vmatpush2.msra.mxu0 0.0
      %503 = vmatprep.subr.mxu0 0.0
      %504 = vmatpush2.msra.mxu0 0.0
      %505 = vmatprep.subr.mxu0 0.0
      %506 = vmatpush2.msra.mxu0 0.0
      %507 = vmatprep.subr.mxu0 0.0
      %508 = vmatpush2.msra.mxu0 0.0
      %509 = vmatprep.subr.mxu0 0.0
      %510 = vmatpush2.msra.mxu0 0.0
      %511 = vmatprep.subr.mxu0 0.0
      %512 = vmatpush2.msra.mxu0 0.0
      %513 = vmatprep.subr.mxu0 0.0
      %514 = vmatpush2.msra.mxu0 0.0
      %515 = vmatprep.subr.mxu0 0.0
      %516 = vmatpush2.msra.mxu0 0.0
      %517 = vmatprep.subr.mxu0 0.0
      %518 = vmatpush2.msra.mxu0 0.0
      %519 = vmatprep.subr.mxu0 0.0
      %520 = vmatpush2.msra.mxu0 0.0
      %521 = vmatprep.subr.mxu0 0.0
      %522 = vmatpush2.msra.mxu0 0.0
      %523 = vmatprep.subr.mxu0 0.0
      %524 = vmatpush2.msra.mxu0 0.0
      %525 = vmatprep.subr.mxu0 0.0
      %526 = vmatpush2.msra.mxu0 0.0
      %527 = vmatprep.subr.mxu0 0.0
      %528 = vmatpush2.msra.mxu0 0.0
      %529 = vmatprep.subr.mxu0 0.0
      %530 = vmatpush2.msra.mxu0 0.0
      %531 = vmatprep.mubr.f32.mxu0 0.0
      %532 = vmatmul.mubr.f32.gmra.mxu0 %v418
      %v533 = vpop.f32.mrf.mxu0
      %v534 = vadd.f32 0.0, %v533
      %v535 = vpop.f32.mrf.mxu0
      %536 = vmatprep.mubr.f32.mxu0 0.0
      %537 = vmatmul.mubr.f32.gmra.mxu0 %v419
      %v538 = vpop.f32.mrf.mxu0
      %v539 = vadd.f32 0.0, %v538
      %v540 = vpop.f32.mrf.mxu0
      %541 = vmatprep.mubr.f32.mxu0 0.0
      %542 = vmatmul.mubr.f32.gmra.mxu0 %v420
      %v543 = vpop.f32.mrf.mxu0
      %v544 = vadd.f32 0.0, %v543
      %v545 = vpop.f32.mrf.mxu0
      %546 = vmatprep.mubr.f32.mxu0 0.0
      %547 = vmatmul.mubr.f32.gmra.mxu0 %v421
      %v548 = vpop.f32.mrf.mxu0
      %v549 = vadd.f32 0.0, %v548
      %v550 = vpop.f32.mrf.mxu0
      %551 = vmatprep.mubr.f32.mxu0 0.0
      %552 = vmatmul.mubr.f32.gmra.mxu0 %v422
      %v553 = vpop.f32.mrf.mxu0
      %v554 = vadd.f32 0.0, %v553
      %v555 = vpop.f32.mrf.mxu0
      %556 = vmatprep.mubr.f32.mxu0 0.0
      %557 = vmatmul.mubr.f32.gmra.mxu0 %v423
      %v558 = vpop.f32.mrf.mxu0
      %v559 = vadd.f32 0.0, %v558
      %v560 = vpop.f32.mrf.mxu0
      %561 = vmatprep.mubr.f32.mxu0 0.0
      %562 = vmatmul.mubr.f32.gmra.mxu0 %v424
      %v563 = vpop.f32.mrf.mxu0
      %v564 = vadd.f32 0.0, %v563
      %v565 = vpop.f32.mrf.mxu0
      %566 = vmatprep.mubr.f32.mxu0 0.0
      %567 = vmatmul.mubr.f32.gmra.mxu0 %v425
      %v568 = vpop.f32.mrf.mxu0
      %v569 = vadd.f32 0.0, %v568
      %v570 = vpop.f32.mrf.mxu0
      %571 = vmatprep.mubr.f32.mxu0 0.0
      %572 = vmatmul.mubr.f32.gmra.mxu0 %v426
      %v573 = vpop.f32.mrf.mxu0
      %v574 = vadd.f32 0.0, %v573
      %v575 = vpop.f32.mrf.mxu0
      %576 = vmatprep.mubr.f32.mxu0 0.0
      %577 = vmatmul.mubr.f32.gmra.mxu0 %v427
      %v578 = vpop.f32.mrf.mxu0
      %v579 = vadd.f32 0.0, %v578
      %v580 = vpop.f32.mrf.mxu0
      %581 = vmatprep.mubr.f32.mxu0 0.0
      %582 = vmatmul.mubr.f32.gmra.mxu0 %v428
      %v583 = vpop.f32.mrf.mxu0
      %v584 = vadd.f32 0.0, %v583
      %v585 = vpop.f32.mrf.mxu0
      %586 = vmatprep.mubr.f32.mxu0 0.0
      %587 = vmatmul.mubr.f32.gmra.mxu0 %v429
      %v588 = vpop.f32.mrf.mxu0
      %v589 = vadd.f32 0.0, %v588
      %v590 = vpop.f32.mrf.mxu0
      %591 = vmatprep.mubr.f32.mxu0 0.0
      %592 = vmatmul.mubr.f32.gmra.mxu0 %v430
      %v593 = vpop.f32.mrf.mxu0
      %v594 = vadd.f32 0.0, %v593
      %v595 = vpop.f32.mrf.mxu0
      %596 = vmatprep.mubr.f32.mxu0 0.0
      %597 = vmatmul.mubr.f32.gmra.mxu0 %v431
      %v598 = vpop.f32.mrf.mxu0
      %v599 = vadd.f32 0.0, %v598
      %v600 = vpop.f32.mrf.mxu0
      %601 = vmatprep.mubr.f32.mxu0 0.0
      %602 = vmatmul.mubr.f32.gmra.mxu0 %v432
      %v603 = vpop.f32.mrf.mxu0
      %v604 = vadd.f32 0.0, %v603
      %v605 = vpop.f32.mrf.mxu0
      %606 = vmatprep.mubr.f32.mxu0 0.0
      %607 = vmatmul.mubr.f32.gmra.mxu0 %v433
      %v608 = vpop.f32.mrf.mxu0
      %v609 = vadd.f32 0.0, %v608
      %v610 = vpop.f32.mrf.mxu0
      %611 = vmatprep.mubr.f32.mxu0 0.0
      %612 = vmatmul.mubr.f32.gmra.mxu0 %v434
      %v613 = vpop.f32.mrf.mxu0
      %v614 = vadd.f32 0.0, %v613
      %v615 = vpop.f32.mrf.mxu0
      %616 = vmatprep.mubr.f32.mxu0 0.0
      %617 = vmatmul.mubr.f32.gmra.mxu0 %v435
      %v618 = vpop.f32.mrf.mxu0
      %v619 = vadd.f32 0.0, %v618
      %v620 = vpop.f32.mrf.mxu0
      %621 = vmatprep.mubr.f32.mxu0 0.0
      %622 = vmatmul.mubr.f32.gmra.mxu0 %v436
      %v623 = vpop.f32.mrf.mxu0
      %v624 = vadd.f32 0.0, %v623
      %v625 = vpop.f32.mrf.mxu0
      %626 = vmatprep.mubr.f32.mxu0 0.0
      %627 = vmatmul.mubr.f32.gmra.mxu0 %v437
      %v628 = vpop.f32.mrf.mxu0
      %v629 = vadd.f32 0.0, %v628
      %v630 = vpop.f32.mrf.mxu0
      %631 = vmatprep.mubr.f32.mxu0 0.0
      %632 = vmatmul.mubr.f32.gmra.mxu0 %v438
      %v633 = vpop.f32.mrf.mxu0
      %v634 = vadd.f32 0.0, %v633
      %v635 = vpop.f32.mrf.mxu0
      %636 = vmatprep.mubr.f32.mxu0 0.0
      %637 = vmatmul.mubr.f32.gmra.mxu0 %v439
      %v638 = vpop.f32.mrf.mxu0
      %v639 = vadd.f32 0.0, %v638
      %v640 = vpop.f32.mrf.mxu0
      %641 = vmatprep.mubr.f32.mxu0 0.0
      %642 = vmatmul.mubr.f32.gmra.mxu0 %v440
      %v643 = vpop.f32.mrf.mxu0
      %v644 = vadd.f32 0.0, %v643
      %v645 = vpop.f32.mrf.mxu0
      %646 = vmatprep.mubr.f32.mxu0 0.0
      %647 = vmatmul.mubr.f32.gmra.mxu0 %v441
      %v648 = vpop.f32.mrf.mxu0
      %v649 = vadd.f32 0.0, %v648
      %v650 = vpop.f32.mrf.mxu0
      %651 = vmatprep.mubr.f32.mxu0 0.0
      %652 = vmatmul.mubr.f32.gmra.mxu0 %v442
      %v653 = vpop.f32.mrf.mxu0
      %v654 = vadd.f32 0.0, %v653
      %v655 = vpop.f32.mrf.mxu0
      %656 = vmatprep.mubr.f32.mxu0 0.0
      %657 = vmatmul.mubr.f32.gmra.mxu0 %v443
      %v658 = vpop.f32.mrf.mxu0
      %v659 = vadd.f32 0.0, %v658
      %v660 = vpop.f32.mrf.mxu0
      %661 = vmatprep.mubr.f32.mxu0 0.0
      %662 = vmatmul.mubr.f32.gmra.mxu0 %v444
      %v663 = vpop.f32.mrf.mxu0
      %v664 = vadd.f32 0.0, %v663
      %v665 = vpop.f32.mrf.mxu0
      %666 = vmatprep.mubr.f32.mxu0 0.0
      %667 = vmatmul.mubr.f32.gmra.mxu0 %v445
      %v668 = vpop.f32.mrf.mxu0
      %v669 = vadd.f32 0.0, %v668
      %v670 = vpop.f32.mrf.mxu0
      %671 = vmatprep.mubr.f32.mxu0 0.0
      %672 = vmatmul.mubr.f32.gmra.mxu0 %v446
      %v673 = vpop.f32.mrf.mxu0
      %v674 = vadd.f32 0.0, %v673
      %v675 = vpop.f32.mrf.mxu0
      %676 = vmatprep.mubr.f32.mxu0 0.0
      %677 = vmatmul.mubr.f32.gmra.mxu0 %v447
      %v678 = vpop.f32.mrf.mxu0
      %v679 = vadd.f32 0.0, %v678
      %v680 = vpop.f32.mrf.mxu0
      %681 = vmatprep.mubr.f32.mxu0 0.0
      %682 = vmatmul.mubr.f32.gmra.mxu0 %v448
      %v683 = vpop.f32.mrf.mxu0
      %v684 = vadd.f32 0.0, %v683
      %v685 = vpop.f32.mrf.mxu0
      %686 = vmatprep.mubr.f32.mxu0 0.0
      %687 = vmatmul.mubr.f32.gmra.mxu0 %v449
      %v688 = vpop.f32.mrf.mxu0
      %v689 = vadd.f32 0.0, %v688
      %v690 = vpop.f32.mrf.mxu0
      %691 = vdwg.mxu0
      %692 = vmatprep.subr.mxu0 0.0
      %693 = vmatpush1.msra.mxu0 %v417
      %694 = vmatprep.subr.mxu0 0.0
      %695 = vmatpush1.msra.mxu0 %v416
      %696 = vmatprep.subr.mxu0 0.0
      %697 = vmatpush1.msra.mxu0 %v415
      %698 = vmatprep.subr.mxu0 0.0
      %699 = vmatpush1.msra.mxu0 %v414
      %700 = vmatprep.subr.mxu0 0.0
      %701 = vmatpush1.msra.mxu0 %v413
      %702 = vmatprep.subr.mxu0 0.0
      %703 = vmatpush1.msra.mxu0 %v412
      %704 = vmatprep.subr.mxu0 0.0
      %705 = vmatpush1.msra.mxu0 %v411
      %706 = vmatprep.subr.mxu0 0.0
      %707 = vmatpush1.msra.mxu0 %v410
      %708 = vmatprep.subr.mxu0 0.0
      %709 = vmatpush1.msra.mxu0 %v409
      %710 = vmatprep.subr.mxu0 0.0
      %711 = vmatpush1.msra.mxu0 %v408
      %712 = vmatprep.subr.mxu0 0.0
      %713 = vmatpush1.msra.mxu0 %v407
      %714 = vmatprep.subr.mxu0 0.0
      %715 = vmatpush1.msra.mxu0 %v406
      %716 = vmatprep.subr.mxu0 0.0
      %717 = vmatpush1.msra.mxu0 %v405
      %718 = vmatprep.subr.mxu0 0.0
      %719 = vmatpush1.msra.mxu0 %v404
      %720 = vmatprep.subr.mxu0 0.0
      %721 = vmatpush1.msra.mxu0 %v403
      %722 = vmatprep.subr.mxu0 0.0
      %723 = vmatpush1.msra.mxu0 %v402
      %724 = vmatprep.subr.mxu0 0.0
      %725 = vmatpush2.msra.mxu0 0.0
      %726 = vmatprep.subr.mxu0 0.0
      %727 = vmatpush2.msra.mxu0 0.0
      %728 = vmatprep.subr.mxu0 0.0
      %729 = vmatpush2.msra.mxu0 0.0
      %730 = vmatprep.subr.mxu0 0.0
      %731 = vmatpush2.msra.mxu0 0.0
      %732 = vmatprep.subr.mxu0 0.0
      %733 = vmatpush2.msra.mxu0 0.0
      %734 = vmatprep.subr.mxu0 0.0
      %735 = vmatpush2.msra.mxu0 0.0
      %736 = vmatprep.subr.mxu0 0.0
      %737 = vmatpush2.msra.mxu0 0.0
      %738 = vmatprep.subr.mxu0 0.0
      %739 = vmatpush2.msra.mxu0 0.0
      %740 = vmatprep.subr.mxu0 0.0
      %741 = vmatpush2.msra.mxu0 0.0
      %742 = vmatprep.subr.mxu0 0.0
      %743 = vmatpush2.msra.mxu0 0.0
      %744 = vmatprep.subr.mxu0 0.0
      %745 = vmatpush2.msra.mxu0 0.0
      %746 = vmatprep.subr.mxu0 0.0
      %747 = vmatpush2.msra.mxu0 0.0
      %748 = vmatprep.subr.mxu0 0.0
      %749 = vmatpush2.msra.mxu0 0.0
      %750 = vmatprep.subr.mxu0 0.0
      %751 = vmatpush2.msra.mxu0 0.0
      %752 = vmatprep.subr.mxu0 0.0
      %753 = vmatpush2.msra.mxu0 0.0
      %754 = vmatprep.subr.mxu0 0.0
      %755 = vmatpush2.msra.mxu0 0.0
      %756 = vmatprep.mubr.f32.mxu0 0.0
      %757 = vmatmul.mubr.f32.gmra.mxu0 %v370
      %v758 = vpop.f32.mrf.mxu0
      %v759 = vadd.f32 %v534, %v758
      %v760 = vpop.f32.mrf.mxu0
      %761 = vmatprep.mubr.f32.mxu0 0.0
      %762 = vmatmul.mubr.f32.gmra.mxu0 %v371
      %v763 = vpop.f32.mrf.mxu0
      %v764 = vadd.f32 %v539, %v763
      %v765 = vpop.f32.mrf.mxu0
      %766 = vmatprep.mubr.f32.mxu0 0.0
      %767 = vmatmul.mubr.f32.gmra.mxu0 %v372
      %v768 = vpop.f32.mrf.mxu0
      %v769 = vadd.f32 %v544, %v768
      %v770 = vpop.f32.mrf.mxu0
      %771 = vmatprep.mubr.f32.mxu0 0.0
      %772 = vmatmul.mubr.f32.gmra.mxu0 %v373
      %v773 = vpop.f32.mrf.mxu0
      %v774 = vadd.f32 %v549, %v773
      %v775 = vpop.f32.mrf.mxu0
      %776 = vmatprep.mubr.f32.mxu0 0.0
      %777 = vmatmul.mubr.f32.gmra.mxu0 %v374
      %v778 = vpop.f32.mrf.mxu0
      %v779 = vadd.f32 %v554, %v778
      %v780 = vpop.f32.mrf.mxu0
      %781 = vmatprep.mubr.f32.mxu0 0.0
      %782 = vmatmul.mubr.f32.gmra.mxu0 %v375
      %v783 = vpop.f32.mrf.mxu0
      %v784 = vadd.f32 %v559, %v783
      %v785 = vpop.f32.mrf.mxu0
      %786 = vmatprep.mubr.f32.mxu0 0.0
      %787 = vmatmul.mubr.f32.gmra.mxu0 %v376
      %v788 = vpop.f32.mrf.mxu0
      %v789 = vadd.f32 %v564, %v788
      %v790 = vpop.f32.mrf.mxu0
      %791 = vmatprep.mubr.f32.mxu0 0.0
      %792 = vmatmul.mubr.f32.gmra.mxu0 %v377
      %v793 = vpop.f32.mrf.mxu0
      %v794 = vadd.f32 %v569, %v793
      %v795 = vpop.f32.mrf.mxu0
      %796 = vmatprep.mubr.f32.mxu0 0.0
      %797 = vmatmul.mubr.f32.gmra.mxu0 %v378
      %v798 = vpop.f32.mrf.mxu0
      %v799 = vadd.f32 %v574, %v798
      %v800 = vpop.f32.mrf.mxu0
      %801 = vmatprep.mubr.f32.mxu0 0.0
      %802 = vmatmul.mubr.f32.gmra.mxu0 %v379
      %v803 = vpop.f32.mrf.mxu0
      %v804 = vadd.f32 %v579, %v803
      %v805 = vpop.f32.mrf.mxu0
      %806 = vmatprep.mubr.f32.mxu0 0.0
      %807 = vmatmul.mubr.f32.gmra.mxu0 %v380
      %v808 = vpop.f32.mrf.mxu0
      %v809 = vadd.f32 %v584, %v808
      %v810 = vpop.f32.mrf.mxu0
      %811 = vmatprep.mubr.f32.mxu0 0.0
      %812 = vmatmul.mubr.f32.gmra.mxu0 %v381
      %v813 = vpop.f32.mrf.mxu0
      %v814 = vadd.f32 %v589, %v813
      %v815 = vpop.f32.mrf.mxu0
      %816 = vmatprep.mubr.f32.mxu0 0.0
      %817 = vmatmul.mubr.f32.gmra.mxu0 %v382
      %v818 = vpop.f32.mrf.mxu0
      %v819 = vadd.f32 %v594, %v818
      %v820 = vpop.f32.mrf.mxu0
      %821 = vmatprep.mubr.f32.mxu0 0.0
      %822 = vmatmul.mubr.f32.gmra.mxu0 %v383
      %v823 = vpop.f32.mrf.mxu0
      %v824 = vadd.f32 %v599, %v823
      %v825 = vpop.f32.mrf.mxu0
      %826 = vmatprep.mubr.f32.mxu0 0.0
      %827 = vmatmul.mubr.f32.gmra.mxu0 %v384
      %v828 = vpop.f32.mrf.mxu0
      %v829 = vadd.f32 %v604, %v828
      %v830 = vpop.f32.mrf.mxu0
      %831 = vmatprep.mubr.f32.mxu0 0.0
      %832 = vmatmul.mubr.f32.gmra.mxu0 %v385
      %v833 = vpop.f32.mrf.mxu0
      %v834 = vadd.f32 %v609, %v833
      %v835 = vpop.f32.mrf.mxu0
      %836 = vmatprep.mubr.f32.mxu0 0.0
      %837 = vmatmul.mubr.f32.gmra.mxu0 %v386
      %v838 = vpop.f32.mrf.mxu0
      %v839 = vadd.f32 %v614, %v838
      %v840 = vpop.f32.mrf.mxu0
      %841 = vmatprep.mubr.f32.mxu0 0.0
      %842 = vmatmul.mubr.f32.gmra.mxu0 %v387
      %v843 = vpop.f32.mrf.mxu0
      %v844 = vadd.f32 %v619, %v843
      %v845 = vpop.f32.mrf.mxu0
      %846 = vmatprep.mubr.f32.mxu0 0.0
      %847 = vmatmul.mubr.f32.gmra.mxu0 %v388
      %v848 = vpop.f32.mrf.mxu0
      %v849 = vadd.f32 %v624, %v848
      %v850 = vpop.f32.mrf.mxu0
      %851 = vmatprep.mubr.f32.mxu0 0.0
      %852 = vmatmul.mubr.f32.gmra.mxu0 %v389
      %v853 = vpop.f32.mrf.mxu0
      %v854 = vadd.f32 %v629, %v853
      %v855 = vpop.f32.mrf.mxu0
      %856 = vmatprep.mubr.f32.mxu0 0.0
      %857 = vmatmul.mubr.f32.gmra.mxu0 %v390
      %v858 = vpop.f32.mrf.mxu0
      %v859 = vadd.f32 %v634, %v858
      %v860 = vpop.f32.mrf.mxu0
      %861 = vmatprep.mubr.f32.mxu0 0.0
      %862 = vmatmul.mubr.f32.gmra.mxu0 %v391
      %v863 = vpop.f32.mrf.mxu0
      %v864 = vadd.f32 %v639, %v863
      %v865 = vpop.f32.mrf.mxu0
      %866 = vmatprep.mubr.f32.mxu0 0.0
      %867 = vmatmul.mubr.f32.gmra.mxu0 %v392
      %v868 = vpop.f32.mrf.mxu0
      %v869 = vadd.f32 %v644, %v868
      %v870 = vpop.f32.mrf.mxu0
      %871 = vmatprep.mubr.f32.mxu0 0.0
      %872 = vmatmul.mubr.f32.gmra.mxu0 %v393
      %v873 = vpop.f32.mrf.mxu0
      %v874 = vadd.f32 %v649, %v873
      %v875 = vpop.f32.mrf.mxu0
      %876 = vmatprep.mubr.f32.mxu0 0.0
      %877 = vmatmul.mubr.f32.gmra.mxu0 %v394
      %v878 = vpop.f32.mrf.mxu0
      %v879 = vadd.f32 %v654, %v878
      %v880 = vpop.f32.mrf.mxu0
      %881 = vmatprep.mubr.f32.mxu0 0.0
      %882 = vmatmul.mubr.f32.gmra.mxu0 %v395
      %v883 = vpop.f32.mrf.mxu0
      %v884 = vadd.f32 %v659, %v883
      %v885 = vpop.f32.mrf.mxu0
      %886 = vmatprep.mubr.f32.mxu0 0.0
      %887 = vmatmul.mubr.f32.gmra.mxu0 %v396
      %v888 = vpop.f32.mrf.mxu0
      %v889 = vadd.f32 %v664, %v888
      %v890 = vpop.f32.mrf.mxu0
      %891 = vmatprep.mubr.f32.mxu0 0.0
      %892 = vmatmul.mubr.f32.gmra.mxu0 %v397
      %v893 = vpop.f32.mrf.mxu0
      %v894 = vadd.f32 %v669, %v893
      %v895 = vpop.f32.mrf.mxu0
      %896 = vmatprep.mubr.f32.mxu0 0.0
      %897 = vmatmul.mubr.f32.gmra.mxu0 %v398
      %v898 = vpop.f32.mrf.mxu0
      %v899 = vadd.f32 %v674, %v898
      %v900 = vpop.f32.mrf.mxu0
      %901 = vmatprep.mubr.f32.mxu0 0.0
      %902 = vmatmul.mubr.f32.gmra.mxu0 %v399
      %v903 = vpop.f32.mrf.mxu0
      %v904 = vadd.f32 %v679, %v903
      %v905 = vpop.f32.mrf.mxu0
      %906 = vmatprep.mubr.f32.mxu0 0.0
      %907 = vmatmul.mubr.f32.gmra.mxu0 %v400
      %v908 = vpop.f32.mrf.mxu0
      %v909 = vadd.f32 %v684, %v908
      %v910 = vpop.f32.mrf.mxu0
      %911 = vmatprep.mubr.f32.mxu0 0.0
      %912 = vmatmul.mubr.f32.gmra.mxu0 %v401
      %v913 = vpop.f32.mrf.mxu0
      %v914 = vadd.f32 %v689, %v913
      %v915 = vpop.f32.mrf.mxu0
      %916 = vdwg.mxu0
      %v917 = vld [vmem:[%s369 + $0x2] sm:$0xff]
      %v918 = vld [vmem:[%s369 + $0xa] sm:$0xff]
      %v919 = vld [vmem:[%s369 + $0x1a] sm:$0xff]
      %v920 = vld [vmem:[%s369 + $0x22] sm:$0xff]
      %v921 = vld [vmem:[%s369 + $0x32] sm:$0xff]
      %v922 = vld [vmem:[%s369 + $0x3a] sm:$0xff]
      %v923 = vld [vmem:[%s369 + $0x4a] sm:$0xff]
      %v924 = vld [vmem:[%s369 + $0x52] sm:$0xff]
      %v925 = vld [vmem:[%s369 + $0x62] sm:$0xff]
      %v926 = vld [vmem:[%s369 + $0x6a] sm:$0xff]
      %v927 = vld [vmem:[%s369 + $0x7a] sm:$0xff]
      %v928 = vld [vmem:[%s369 + $0x82] sm:$0xff]
      %v929 = vld [vmem:[%s369 + $0x92] sm:$0xff]
      %v930 = vld [vmem:[%s369 + $0x9a] sm:$0xff]
      %v931 = vld [vmem:[%s369 + $0xaa] sm:$0xff]
      %v932 = vld [vmem:[%s369 + $0xb2] sm:$0xff]
      %v933 = vld [vmem:[%s369 + $0xc2] sm:$0xff]
      %v934 = vld [vmem:[%s369 + $0xca] sm:$0xff]
      %v935 = vld [vmem:[%s369 + $0xda] sm:$0xff]
      %v936 = vld [vmem:[%s369 + $0xe2] sm:$0xff]
      %v937 = vld [vmem:[%s369 + $0xf2] sm:$0xff]
      %v938 = vld [vmem:[%s369 + $0xfa] sm:$0xff]
      %v939 = vld [vmem:[%s369 + $0x10a] sm:$0xff]
      %v940 = vld [vmem:[%s369 + $0x112] sm:$0xff]
      %v941 = vld [vmem:[%s369 + $0x122] sm:$0xff]
      %v942 = vld [vmem:[%s369 + $0x12a] sm:$0xff]
      %v943 = vld [vmem:[%s369 + $0x13a] sm:$0xff]
      %v944 = vld [vmem:[%s369 + $0x142] sm:$0xff]
      %v945 = vld [vmem:[%s369 + $0x152] sm:$0xff]
      %v946 = vld [vmem:[%s369 + $0x15a] sm:$0xff]
      %v947 = vld [vmem:[%s369 + $0x16a] sm:$0xff]
      %v948 = vld [vmem:[%s369 + $0x172] sm:$0xff]
      %s949 = scalar_lea.vmem %s1, 256
      %v950 = vld [vmem:[%s949] sm:$0xff]
      %v951 = vld [vmem:[%s949 + $0x8] sm:$0xff]
      %v952 = vld [vmem:[%s949 + $0x10] sm:$0xff]
      %v953 = vld [vmem:[%s949 + $0x18] sm:$0xff]
      %v954 = vld [vmem:[%s949 + $0x20] sm:$0xff]
      %v955 = vld [vmem:[%s949 + $0x28] sm:$0xff]
      %v956 = vld [vmem:[%s949 + $0x30] sm:$0xff]
      %v957 = vld [vmem:[%s949 + $0x38] sm:$0xff]
      %v958 = vld [vmem:[%s949 + $0x40] sm:$0xff]
      %v959 = vld [vmem:[%s949 + $0x48] sm:$0xff]
      %v960 = vld [vmem:[%s949 + $0x50] sm:$0xff]
      %v961 = vld [vmem:[%s949 + $0x58] sm:$0xff]
      %v962 = vld [vmem:[%s949 + $0x60] sm:$0xff]
      %v963 = vld [vmem:[%s949 + $0x68] sm:$0xff]
      %v964 = vld [vmem:[%s949 + $0x70] sm:$0xff]
      %v965 = vld [vmem:[%s949 + $0x78] sm:$0xff]
      %966 = vmatprep.subr.mxu0 0.0
      %967 = vmatpush1.msra.mxu0 %v965
      %968 = vmatprep.subr.mxu0 0.0
      %969 = vmatpush1.msra.mxu0 %v964
      %970 = vmatprep.subr.mxu0 0.0
      %971 = vmatpush1.msra.mxu0 %v963
      %972 = vmatprep.subr.mxu0 0.0
      %973 = vmatpush1.msra.mxu0 %v962
      %974 = vmatprep.subr.mxu0 0.0
      %975 = vmatpush1.msra.mxu0 %v961
      %976 = vmatprep.subr.mxu0 0.0
      %977 = vmatpush1.msra.mxu0 %v960
      %978 = vmatprep.subr.mxu0 0.0
      %979 = vmatpush1.msra.mxu0 %v959
      %980 = vmatprep.subr.mxu0 0.0
      %981 = vmatpush1.msra.mxu0 %v958
      %982 = vmatprep.subr.mxu0 0.0
      %983 = vmatpush1.msra.mxu0 %v957
      %984 = vmatprep.subr.mxu0 0.0
      %985 = vmatpush1.msra.mxu0 %v956
      %986 = vmatprep.subr.mxu0 0.0
      %987 = vmatpush1.msra.mxu0 %v955
      %988 = vmatprep.subr.mxu0 0.0
      %989 = vmatpush1.msra.mxu0 %v954
      %990 = vmatprep.subr.mxu0 0.0
      %991 = vmatpush1.msra.mxu0 %v953
      %992 = vmatprep.subr.mxu0 0.0
      %993 = vmatpush1.msra.mxu0 %v952
      %994 = vmatprep.subr.mxu0 0.0
      %995 = vmatpush1.msra.mxu0 %v951
      %996 = vmatprep.subr.mxu0 0.0
      %997 = vmatpush1.msra.mxu0 %v950
      %998 = vmatprep.subr.mxu0 0.0
      %999 = vmatpush2.msra.mxu0 0.0
      %1000 = vmatprep.subr.mxu0 0.0
      %1001 = vmatpush2.msra.mxu0 0.0
      %1002 = vmatprep.subr.mxu0 0.0
      %1003 = vmatpush2.msra.mxu0 0.0
      %1004 = vmatprep.subr.mxu0 0.0
      %1005 = vmatpush2.msra.mxu0 0.0
      %1006 = vmatprep.subr.mxu0 0.0
      %1007 = vmatpush2.msra.mxu0 0.0
      %1008 = vmatprep.subr.mxu0 0.0
      %1009 = vmatpush2.msra.mxu0 0.0
      %1010 = vmatprep.subr.mxu0 0.0
      %1011 = vmatpush2.msra.mxu0 0.0
      %1012 = vmatprep.subr.mxu0 0.0
      %1013 = vmatpush2.msra.mxu0 0.0
      %1014 = vmatprep.subr.mxu0 0.0
      %1015 = vmatpush2.msra.mxu0 0.0
      %1016 = vmatprep.subr.mxu0 0.0
      %1017 = vmatpush2.msra.mxu0 0.0
      %1018 = vmatprep.subr.mxu0 0.0
      %1019 = vmatpush2.msra.mxu0 0.0
      %1020 = vmatprep.subr.mxu0 0.0
      %1021 = vmatpush2.msra.mxu0 0.0
      %1022 = vmatprep.subr.mxu0 0.0
      %1023 = vmatpush2.msra.mxu0 0.0
      %1024 = vmatprep.subr.mxu0 0.0
      %1025 = vmatpush2.msra.mxu0 0.0
      %1026 = vmatprep.subr.mxu0 0.0
      %1027 = vmatpush2.msra.mxu0 0.0
      %1028 = vmatprep.subr.mxu0 0.0
      %1029 = vmatpush2.msra.mxu0 0.0
      %1030 = vmatprep.mubr.f32.mxu0 0.0
      %1031 = vmatmul.mubr.f32.gmra.mxu0 %v917
      %v1032 = vpop.f32.mrf.mxu0
      %v1033 = vadd.f32 0.0, %v1032
      %v1034 = vpop.f32.mrf.mxu0
      %1035 = vmatprep.mubr.f32.mxu0 0.0
      %1036 = vmatmul.mubr.f32.gmra.mxu0 %v918
      %v1037 = vpop.f32.mrf.mxu0
      %v1038 = vadd.f32 0.0, %v1037
      %v1039 = vpop.f32.mrf.mxu0
      %1040 = vmatprep.mubr.f32.mxu0 0.0
      %1041 = vmatmul.mubr.f32.gmra.mxu0 %v919
      %v1042 = vpop.f32.mrf.mxu0
      %v1043 = vadd.f32 0.0, %v1042
      %v1044 = vpop.f32.mrf.mxu0
      %1045 = vmatprep.mubr.f32.mxu0 0.0
      %1046 = vmatmul.mubr.f32.gmra.mxu0 %v920
      %v1047 = vpop.f32.mrf.mxu0
      %v1048 = vadd.f32 0.0, %v1047
      %v1049 = vpop.f32.mrf.mxu0
      %1050 = vmatprep.mubr.f32.mxu0 0.0
      %1051 = vmatmul.mubr.f32.gmra.mxu0 %v921
      %v1052 = vpop.f32.mrf.mxu0
      %v1053 = vadd.f32 0.0, %v1052
      %v1054 = vpop.f32.mrf.mxu0
      %1055 = vmatprep.mubr.f32.mxu0 0.0
      %1056 = vmatmul.mubr.f32.gmra.mxu0 %v922
      %v1057 = vpop.f32.mrf.mxu0
      %v1058 = vadd.f32 0.0, %v1057
      %v1059 = vpop.f32.mrf.mxu0
      %1060 = vmatprep.mubr.f32.mxu0 0.0
      %1061 = vmatmul.mubr.f32.gmra.mxu0 %v923
      %v1062 = vpop.f32.mrf.mxu0
      %v1063 = vadd.f32 0.0, %v1062
      %v1064 = vpop.f32.mrf.mxu0
      %1065 = vmatprep.mubr.f32.mxu0 0.0
      %1066 = vmatmul.mubr.f32.gmra.mxu0 %v924
      %v1067 = vpop.f32.mrf.mxu0
      %v1068 = vadd.f32 0.0, %v1067
      %v1069 = vpop.f32.mrf.mxu0
      %1070 = vmatprep.mubr.f32.mxu0 0.0
      %1071 = vmatmul.mubr.f32.gmra.mxu0 %v925
      %v1072 = vpop.f32.mrf.mxu0
      %v1073 = vadd.f32 0.0, %v1072
      %v1074 = vpop.f32.mrf.mxu0
      %1075 = vmatprep.mubr.f32.mxu0 0.0
      %1076 = vmatmul.mubr.f32.gmra.mxu0 %v926
      %v1077 = vpop.f32.mrf.mxu0
      %v1078 = vadd.f32 0.0, %v1077
      %v1079 = vpop.f32.mrf.mxu0
      %1080 = vmatprep.mubr.f32.mxu0 0.0
      %1081 = vmatmul.mubr.f32.gmra.mxu0 %v927
      %v1082 = vpop.f32.mrf.mxu0
      %v1083 = vadd.f32 0.0, %v1082
      %v1084 = vpop.f32.mrf.mxu0
      %1085 = vmatprep.mubr.f32.mxu0 0.0
      %1086 = vmatmul.mubr.f32.gmra.mxu0 %v928
      %v1087 = vpop.f32.mrf.mxu0
      %v1088 = vadd.f32 0.0, %v1087
      %v1089 = vpop.f32.mrf.mxu0
      %1090 = vmatprep.mubr.f32.mxu0 0.0
      %1091 = vmatmul.mubr.f32.gmra.mxu0 %v929
      %v1092 = vpop.f32.mrf.mxu0
      %v1093 = vadd.f32 0.0, %v1092
      %v1094 = vpop.f32.mrf.mxu0
      %1095 = vmatprep.mubr.f32.mxu0 0.0
      %1096 = vmatmul.mubr.f32.gmra.mxu0 %v930
      %v1097 = vpop.f32.mrf.mxu0
      %v1098 = vadd.f32 0.0, %v1097
      %v1099 = vpop.f32.mrf.mxu0
      %1100 = vmatprep.mubr.f32.mxu0 0.0
      %1101 = vmatmul.mubr.f32.gmra.mxu0 %v931
      %v1102 = vpop.f32.mrf.mxu0
      %v1103 = vadd.f32 0.0, %v1102
      %v1104 = vpop.f32.mrf.mxu0
      %1105 = vmatprep.mubr.f32.mxu0 0.0
      %1106 = vmatmul.mubr.f32.gmra.mxu0 %v932
      %v1107 = vpop.f32.mrf.mxu0
      %v1108 = vadd.f32 0.0, %v1107
      %v1109 = vpop.f32.mrf.mxu0
      %1110 = vmatprep.mubr.f32.mxu0 0.0
      %1111 = vmatmul.mubr.f32.gmra.mxu0 %v933
      %v1112 = vpop.f32.mrf.mxu0
      %v1113 = vadd.f32 0.0, %v1112
      %v1114 = vpop.f32.mrf.mxu0
      %1115 = vmatprep.mubr.f32.mxu0 0.0
      %1116 = vmatmul.mubr.f32.gmra.mxu0 %v934
      %v1117 = vpop.f32.mrf.mxu0
      %v1118 = vadd.f32 0.0, %v1117
      %v1119 = vpop.f32.mrf.mxu0
      %1120 = vmatprep.mubr.f32.mxu0 0.0
      %1121 = vmatmul.mubr.f32.gmra.mxu0 %v935
      %v1122 = vpop.f32.mrf.mxu0
      %v1123 = vadd.f32 0.0, %v1122
      %v1124 = vpop.f32.mrf.mxu0
      %1125 = vmatprep.mubr.f32.mxu0 0.0
      %1126 = vmatmul.mubr.f32.gmra.mxu0 %v936
      %v1127 = vpop.f32.mrf.mxu0
      %v1128 = vadd.f32 0.0, %v1127
      %v1129 = vpop.f32.mrf.mxu0
      %1130 = vmatprep.mubr.f32.mxu0 0.0
      %1131 = vmatmul.mubr.f32.gmra.mxu0 %v937
      %v1132 = vpop.f32.mrf.mxu0
      %v1133 = vadd.f32 0.0, %v1132
      %v1134 = vpop.f32.mrf.mxu0
      %1135 = vmatprep.mubr.f32.mxu0 0.0
      %1136 = vmatmul.mubr.f32.gmra.mxu0 %v938
      %v1137 = vpop.f32.mrf.mxu0
      %v1138 = vadd.f32 0.0, %v1137
      %v1139 = vpop.f32.mrf.mxu0
      %1140 = vmatprep.mubr.f32.mxu0 0.0
      %1141 = vmatmul.mubr.f32.gmra.mxu0 %v939
      %v1142 = vpop.f32.mrf.mxu0
      %v1143 = vadd.f32 0.0, %v1142
      %v1144 = vpop.f32.mrf.mxu0
      %1145 = vmatprep.mubr.f32.mxu0 0.0
      %1146 = vmatmul.mubr.f32.gmra.mxu0 %v940
      %v1147 = vpop.f32.mrf.mxu0
      %v1148 = vadd.f32 0.0, %v1147
      %v1149 = vpop.f32.mrf.mxu0
      %1150 = vmatprep.mubr.f32.mxu0 0.0
      %1151 = vmatmul.mubr.f32.gmra.mxu0 %v941
      %v1152 = vpop.f32.mrf.mxu0
      %v1153 = vadd.f32 0.0, %v1152
      %v1154 = vpop.f32.mrf.mxu0
      %1155 = vmatprep.mubr.f32.mxu0 0.0
      %1156 = vmatmul.mubr.f32.gmra.mxu0 %v942
      %v1157 = vpop.f32.mrf.mxu0
      %v1158 = vadd.f32 0.0, %v1157
      %v1159 = vpop.f32.mrf.mxu0
      %1160 = vmatprep.mubr.f32.mxu0 0.0
      %1161 = vmatmul.mubr.f32.gmra.mxu0 %v943
      %v1162 = vpop.f32.mrf.mxu0
      %v1163 = vadd.f32 0.0, %v1162
      %v1164 = vpop.f32.mrf.mxu0
      %1165 = vmatprep.mubr.f32.mxu0 0.0
      %1166 = vmatmul.mubr.f32.gmra.mxu0 %v944
      %v1167 = vpop.f32.mrf.mxu0
      %v1168 = vadd.f32 0.0, %v1167
      %v1169 = vpop.f32.mrf.mxu0
      %1170 = vmatprep.mubr.f32.mxu0 0.0
      %1171 = vmatmul.mubr.f32.gmra.mxu0 %v945
      %v1172 = vpop.f32.mrf.mxu0
      %v1173 = vadd.f32 0.0, %v1172
      %v1174 = vpop.f32.mrf.mxu0
      %1175 = vmatprep.mubr.f32.mxu0 0.0
      %1176 = vmatmul.mubr.f32.gmra.mxu0 %v946
      %v1177 = vpop.f32.mrf.mxu0
      %v1178 = vadd.f32 0.0, %v1177
      %v1179 = vpop.f32.mrf.mxu0
      %1180 = vmatprep.mubr.f32.mxu0 0.0
      %1181 = vmatmul.mubr.f32.gmra.mxu0 %v947
      %v1182 = vpop.f32.mrf.mxu0
      %v1183 = vadd.f32 0.0, %v1182
      %v1184 = vpop.f32.mrf.mxu0
      %1185 = vmatprep.mubr.f32.mxu0 0.0
      %1186 = vmatmul.mubr.f32.gmra.mxu0 %v948
      %v1187 = vpop.f32.mrf.mxu0
      %v1188 = vadd.f32 0.0, %v1187
      %v1189 = vpop.f32.mrf.mxu0
      %1190 = vdwg.mxu0
      %v1191 = vadd.f32 %v759, %v1033
      %v1192 = vadd.f32 %v764, %v1038
      %v1193 = vadd.f32 %v769, %v1043
      %v1194 = vadd.f32 %v774, %v1048
      %v1195 = vadd.f32 %v779, %v1053
      %v1196 = vadd.f32 %v784, %v1058
      %v1197 = vadd.f32 %v789, %v1063
      %v1198 = vadd.f32 %v794, %v1068
      %v1199 = vadd.f32 %v799, %v1073
      %v1200 = vadd.f32 %v804, %v1078
      %v1201 = vadd.f32 %v809, %v1083
      %v1202 = vadd.f32 %v814, %v1088
      %v1203 = vadd.f32 %v819, %v1093
      %v1204 = vadd.f32 %v824, %v1098
      %v1205 = vadd.f32 %v829, %v1103
      %v1206 = vadd.f32 %v834, %v1108
      %v1207 = vadd.f32 %v839, %v1113
      %v1208 = vadd.f32 %v844, %v1118
      %v1209 = vadd.f32 %v849, %v1123
      %v1210 = vadd.f32 %v854, %v1128
      %v1211 = vadd.f32 %v859, %v1133
      %v1212 = vadd.f32 %v864, %v1138
      %v1213 = vadd.f32 %v869, %v1143
      %v1214 = vadd.f32 %v874, %v1148
      %v1215 = vadd.f32 %v879, %v1153
      %v1216 = vadd.f32 %v884, %v1158
      %v1217 = vadd.f32 %v889, %v1163
      %v1218 = vadd.f32 %v894, %v1168
      %v1219 = vadd.f32 %v899, %v1173
      %v1220 = vadd.f32 %v904, %v1178
      %v1221 = vadd.f32 %v909, %v1183
      %v1222 = vadd.f32 %v914, %v1188
      %s1223 = sadd.s32 %s367, 1
      %s1224 = smul.u32 %s1223, 24
      %s1225 = scalar_lea.vmem [#allocation2], %s1224
      %v1226 = vld [vmem:[%s1225] sm:$0xff]
      %v1227 = vld [vmem:[%s1225 + $0x8] sm:$0xff]
      %v1228 = vld [vmem:[%s1225 + $0x18] sm:$0xff]
      %v1229 = vld [vmem:[%s1225 + $0x20] sm:$0xff]
      %v1230 = vld [vmem:[%s1225 + $0x30] sm:$0xff]
      %v1231 = vld [vmem:[%s1225 + $0x38] sm:$0xff]
      %v1232 = vld [vmem:[%s1225 + $0x48] sm:$0xff]
      %v1233 = vld [vmem:[%s1225 + $0x50] sm:$0xff]
      %v1234 = vld [vmem:[%s1225 + $0x60] sm:$0xff]
      %v1235 = vld [vmem:[%s1225 + $0x68] sm:$0xff]
      %v1236 = vld [vmem:[%s1225 + $0x78] sm:$0xff]
      %v1237 = vld [vmem:[%s1225 + $0x80] sm:$0xff]
      %v1238 = vld [vmem:[%s1225 + $0x90] sm:$0xff]
      %v1239 = vld [vmem:[%s1225 + $0x98] sm:$0xff]
      %v1240 = vld [vmem:[%s1225 + $0xa8] sm:$0xff]
      %v1241 = vld [vmem:[%s1225 + $0xb0] sm:$0xff]
      %v1242 = vld [vmem:[%s1225 + $0xc0] sm:$0xff]
      %v1243 = vld [vmem:[%s1225 + $0xc8] sm:$0xff]
      %v1244 = vld [vmem:[%s1225 + $0xd8] sm:$0xff]
      %v1245 = vld [vmem:[%s1225 + $0xe0] sm:$0xff]
      %v1246 = vld [vmem:[%s1225 + $0xf0] sm:$0xff]
      %v1247 = vld [vmem:[%s1225 + $0xf8] sm:$0xff]
      %v1248 = vld [vmem:[%s1225 + $0x108] sm:$0xff]
      %v1249 = vld [vmem:[%s1225 + $0x110] sm:$0xff]
      %v1250 = vld [vmem:[%s1225 + $0x120] sm:$0xff]
      %v1251 = vld [vmem:[%s1225 + $0x128] sm:$0xff]
      %v1252 = vld [vmem:[%s1225 + $0x138] sm:$0xff]
      %v1253 = vld [vmem:[%s1225 + $0x140] sm:$0xff]
      %v1254 = vld [vmem:[%s1225 + $0x150] sm:$0xff]
      %v1255 = vld [vmem:[%s1225 + $0x158] sm:$0xff]
      %v1256 = vld [vmem:[%s1225 + $0x168] sm:$0xff]
      %v1257 = vld [vmem:[%s1225 + $0x170] sm:$0xff]
      %s1258 = scalar_lea.vmem %s1, 384
      %v1259 = vld [vmem:[%s1258] sm:$0xff]
      %v1260 = vld [vmem:[%s1258 + $0x8] sm:$0xff]
      %v1261 = vld [vmem:[%s1258 + $0x10] sm:$0xff]
      %v1262 = vld [vmem:[%s1258 + $0x18] sm:$0xff]
      %v1263 = vld [vmem:[%s1258 + $0x20] sm:$0xff]
      %v1264 = vld [vmem:[%s1258 + $0x28] sm:$0xff]
      %v1265 = vld [vmem:[%s1258 + $0x30] sm:$0xff]
      %v1266 = vld [vmem:[%s1258 + $0x38] sm:$0xff]
      %v1267 = vld [vmem:[%s1258 + $0x40] sm:$0xff]
      %v1268 = vld [vmem:[%s1258 + $0x48] sm:$0xff]
      %v1269 = vld [vmem:[%s1258 + $0x50] sm:$0xff]
      %v1270 = vld [vmem:[%s1258 + $0x58] sm:$0xff]
      %v1271 = vld [vmem:[%s1258 + $0x60] sm:$0xff]
      %v1272 = vld [vmem:[%s1258 + $0x68] sm:$0xff]
      %v1273 = vld [vmem:[%s1258 + $0x70] sm:$0xff]
      %v1274 = vld [vmem:[%s1258 + $0x78] sm:$0xff]
      %1275 = vmatprep.subr.mxu0 0.0
      %1276 = vmatpush1.msra.mxu0 %v1274
      %1277 = vmatprep.subr.mxu0 0.0
      %1278 = vmatpush1.msra.mxu0 %v1273
      %1279 = vmatprep.subr.mxu0 0.0
      %1280 = vmatpush1.msra.mxu0 %v1272
      %1281 = vmatprep.subr.mxu0 0.0
      %1282 = vmatpush1.msra.mxu0 %v1271
      %1283 = vmatprep.subr.mxu0 0.0
      %1284 = vmatpush1.msra.mxu0 %v1270
      %1285 = vmatprep.subr.mxu0 0.0
      %1286 = vmatpush1.msra.mxu0 %v1269
      %1287 = vmatprep.subr.mxu0 0.0
      %1288 = vmatpush1.msra.mxu0 %v1268
      %1289 = vmatprep.subr.mxu0 0.0
      %1290 = vmatpush1.msra.mxu0 %v1267
      %1291 = vmatprep.subr.mxu0 0.0
      %1292 = vmatpush1.msra.mxu0 %v1266
      %1293 = vmatprep.subr.mxu0 0.0
      %1294 = vmatpush1.msra.mxu0 %v1265
      %1295 = vmatprep.subr.mxu0 0.0
      %1296 = vmatpush1.msra.mxu0 %v1264
      %1297 = vmatprep.subr.mxu0 0.0
      %1298 = vmatpush1.msra.mxu0 %v1263
      %1299 = vmatprep.subr.mxu0 0.0
      %1300 = vmatpush1.msra.mxu0 %v1262
      %1301 = vmatprep.subr.mxu0 0.0
      %1302 = vmatpush1.msra.mxu0 %v1261
      %1303 = vmatprep.subr.mxu0 0.0
      %1304 = vmatpush1.msra.mxu0 %v1260
      %1305 = vmatprep.subr.mxu0 0.0
      %1306 = vmatpush1.msra.mxu0 %v1259
      %1307 = vmatprep.subr.mxu0 0.0
      %1308 = vmatpush2.msra.mxu0 0.0
      %1309 = vmatprep.subr.mxu0 0.0
      %1310 = vmatpush2.msra.mxu0 0.0
      %1311 = vmatprep.subr.mxu0 0.0
      %1312 = vmatpush2.msra.mxu0 0.0
      %1313 = vmatprep.subr.mxu0 0.0
      %1314 = vmatpush2.msra.mxu0 0.0
      %1315 = vmatprep.subr.mxu0 0.0
      %1316 = vmatpush2.msra.mxu0 0.0
      %1317 = vmatprep.subr.mxu0 0.0
      %1318 = vmatpush2.msra.mxu0 0.0
      %1319 = vmatprep.subr.mxu0 0.0
      %1320 = vmatpush2.msra.mxu0 0.0
      %1321 = vmatprep.subr.mxu0 0.0
      %1322 = vmatpush2.msra.mxu0 0.0
      %1323 = vmatprep.subr.mxu0 0.0
      %1324 = vmatpush2.msra.mxu0 0.0
      %1325 = vmatprep.subr.mxu0 0.0
      %1326 = vmatpush2.msra.mxu0 0.0
      %1327 = vmatprep.subr.mxu0 0.0
      %1328 = vmatpush2.msra.mxu0 0.0
      %1329 = vmatprep.subr.mxu0 0.0
      %1330 = vmatpush2.msra.mxu0 0.0
      %1331 = vmatprep.subr.mxu0 0.0
      %1332 = vmatpush2.msra.mxu0 0.0
      %1333 = vmatprep.subr.mxu0 0.0
      %1334 = vmatpush2.msra.mxu0 0.0
      %1335 = vmatprep.subr.mxu0 0.0
      %1336 = vmatpush2.msra.mxu0 0.0
      %1337 = vmatprep.subr.mxu0 0.0
      %1338 = vmatpush2.msra.mxu0 0.0
      %1339 = vmatprep.mubr.f32.mxu0 0.0
      %1340 = vmatmul.mubr.f32.gmra.mxu0 %v1226
      %v1341 = vpop.f32.mrf.mxu0
      %v1342 = vadd.f32 0.0, %v1341
      %v1343 = vpop.f32.mrf.mxu0
      %1344 = vmatprep.mubr.f32.mxu0 0.0
      %1345 = vmatmul.mubr.f32.gmra.mxu0 %v1227
      %v1346 = vpop.f32.mrf.mxu0
      %v1347 = vadd.f32 0.0, %v1346
      %v1348 = vpop.f32.mrf.mxu0
      %1349 = vmatprep.mubr.f32.mxu0 0.0
      %1350 = vmatmul.mubr.f32.gmra.mxu0 %v1228
      %v1351 = vpop.f32.mrf.mxu0
      %v1352 = vadd.f32 0.0, %v1351
      %v1353 = vpop.f32.mrf.mxu0
      %1354 = vmatprep.mubr.f32.mxu0 0.0
      %1355 = vmatmul.mubr.f32.gmra.mxu0 %v1229
      %v1356 = vpop.f32.mrf.mxu0
      %v1357 = vadd.f32 0.0, %v1356
      %v1358 = vpop.f32.mrf.mxu0
      %1359 = vmatprep.mubr.f32.mxu0 0.0
      %1360 = vmatmul.mubr.f32.gmra.mxu0 %v1230
      %v1361 = vpop.f32.mrf.mxu0
      %v1362 = vadd.f32 0.0, %v1361
      %v1363 = vpop.f32.mrf.mxu0
      %1364 = vmatprep.mubr.f32.mxu0 0.0
      %1365 = vmatmul.mubr.f32.gmra.mxu0 %v1231
      %v1366 = vpop.f32.mrf.mxu0
      %v1367 = vadd.f32 0.0, %v1366
      %v1368 = vpop.f32.mrf.mxu0
      %1369 = vmatprep.mubr.f32.mxu0 0.0
      %1370 = vmatmul.mubr.f32.gmra.mxu0 %v1232
      %v1371 = vpop.f32.mrf.mxu0
      %v1372 = vadd.f32 0.0, %v1371
      %v1373 = vpop.f32.mrf.mxu0
      %1374 = vmatprep.mubr.f32.mxu0 0.0
      %1375 = vmatmul.mubr.f32.gmra.mxu0 %v1233
      %v1376 = vpop.f32.mrf.mxu0
      %v1377 = vadd.f32 0.0, %v1376
      %v1378 = vpop.f32.mrf.mxu0
      %1379 = vmatprep.mubr.f32.mxu0 0.0
      %1380 = vmatmul.mubr.f32.gmra.mxu0 %v1234
      %v1381 = vpop.f32.mrf.mxu0
      %v1382 = vadd.f32 0.0, %v1381
      %v1383 = vpop.f32.mrf.mxu0
      %1384 = vmatprep.mubr.f32.mxu0 0.0
      %1385 = vmatmul.mubr.f32.gmra.mxu0 %v1235
      %v1386 = vpop.f32.mrf.mxu0
      %v1387 = vadd.f32 0.0, %v1386
      %v1388 = vpop.f32.mrf.mxu0
      %1389 = vmatprep.mubr.f32.mxu0 0.0
      %1390 = vmatmul.mubr.f32.gmra.mxu0 %v1236
      %v1391 = vpop.f32.mrf.mxu0
      %v1392 = vadd.f32 0.0, %v1391
      %v1393 = vpop.f32.mrf.mxu0
      %1394 = vmatprep.mubr.f32.mxu0 0.0
      %1395 = vmatmul.mubr.f32.gmra.mxu0 %v1237
      %v1396 = vpop.f32.mrf.mxu0
      %v1397 = vadd.f32 0.0, %v1396
      %v1398 = vpop.f32.mrf.mxu0
      %1399 = vmatprep.mubr.f32.mxu0 0.0
      %1400 = vmatmul.mubr.f32.gmra.mxu0 %v1238
      %v1401 = vpop.f32.mrf.mxu0
      %v1402 = vadd.f32 0.0, %v1401
      %v1403 = vpop.f32.mrf.mxu0
      %1404 = vmatprep.mubr.f32.mxu0 0.0
      %1405 = vmatmul.mubr.f32.gmra.mxu0 %v1239
      %v1406 = vpop.f32.mrf.mxu0
      %v1407 = vadd.f32 0.0, %v1406
      %v1408 = vpop.f32.mrf.mxu0
      %1409 = vmatprep.mubr.f32.mxu0 0.0
      %1410 = vmatmul.mubr.f32.gmra.mxu0 %v1240
      %v1411 = vpop.f32.mrf.mxu0
      %v1412 = vadd.f32 0.0, %v1411
      %v1413 = vpop.f32.mrf.mxu0
      %1414 = vmatprep.mubr.f32.mxu0 0.0
      %1415 = vmatmul.mubr.f32.gmra.mxu0 %v1241
      %v1416 = vpop.f32.mrf.mxu0
      %v1417 = vadd.f32 0.0, %v1416
      %v1418 = vpop.f32.mrf.mxu0
      %1419 = vmatprep.mubr.f32.mxu0 0.0
      %1420 = vmatmul.mubr.f32.gmra.mxu0 %v1242
      %v1421 = vpop.f32.mrf.mxu0
      %v1422 = vadd.f32 0.0, %v1421
      %v1423 = vpop.f32.mrf.mxu0
      %1424 = vmatprep.mubr.f32.mxu0 0.0
      %1425 = vmatmul.mubr.f32.gmra.mxu0 %v1243
      %v1426 = vpop.f32.mrf.mxu0
      %v1427 = vadd.f32 0.0, %v1426
      %v1428 = vpop.f32.mrf.mxu0
      %1429 = vmatprep.mubr.f32.mxu0 0.0
      %1430 = vmatmul.mubr.f32.gmra.mxu0 %v1244
      %v1431 = vpop.f32.mrf.mxu0
      %v1432 = vadd.f32 0.0, %v1431
      %v1433 = vpop.f32.mrf.mxu0
      %1434 = vmatprep.mubr.f32.mxu0 0.0
      %1435 = vmatmul.mubr.f32.gmra.mxu0 %v1245
      %v1436 = vpop.f32.mrf.mxu0
      %v1437 = vadd.f32 0.0, %v1436
      %v1438 = vpop.f32.mrf.mxu0
      %1439 = vmatprep.mubr.f32.mxu0 0.0
      %1440 = vmatmul.mubr.f32.gmra.mxu0 %v1246
      %v1441 = vpop.f32.mrf.mxu0
      %v1442 = vadd.f32 0.0, %v1441
      %v1443 = vpop.f32.mrf.mxu0
      %1444 = vmatprep.mubr.f32.mxu0 0.0
      %1445 = vmatmul.mubr.f32.gmra.mxu0 %v1247
      %v1446 = vpop.f32.mrf.mxu0
      %v1447 = vadd.f32 0.0, %v1446
      %v1448 = vpop.f32.mrf.mxu0
      %1449 = vmatprep.mubr.f32.mxu0 0.0
      %1450 = vmatmul.mubr.f32.gmra.mxu0 %v1248
      %v1451 = vpop.f32.mrf.mxu0
      %v1452 = vadd.f32 0.0, %v1451
      %v1453 = vpop.f32.mrf.mxu0
      %1454 = vmatprep.mubr.f32.mxu0 0.0
      %1455 = vmatmul.mubr.f32.gmra.mxu0 %v1249
      %v1456 = vpop.f32.mrf.mxu0
      %v1457 = vadd.f32 0.0, %v1456
      %v1458 = vpop.f32.mrf.mxu0
      %1459 = vmatprep.mubr.f32.mxu0 0.0
      %1460 = vmatmul.mubr.f32.gmra.mxu0 %v1250
      %v1461 = vpop.f32.mrf.mxu0
      %v1462 = vadd.f32 0.0, %v1461
      %v1463 = vpop.f32.mrf.mxu0
      %1464 = vmatprep.mubr.f32.mxu0 0.0
      %1465 = vmatmul.mubr.f32.gmra.mxu0 %v1251
      %v1466 = vpop.f32.mrf.mxu0
      %v1467 = vadd.f32 0.0, %v1466
      %v1468 = vpop.f32.mrf.mxu0
      %1469 = vmatprep.mubr.f32.mxu0 0.0
      %1470 = vmatmul.mubr.f32.gmra.mxu0 %v1252
      %v1471 = vpop.f32.mrf.mxu0
      %v1472 = vadd.f32 0.0, %v1471
      %v1473 = vpop.f32.mrf.mxu0
      %1474 = vmatprep.mubr.f32.mxu0 0.0
      %1475 = vmatmul.mubr.f32.gmra.mxu0 %v1253
      %v1476 = vpop.f32.mrf.mxu0
      %v1477 = vadd.f32 0.0, %v1476
      %v1478 = vpop.f32.mrf.mxu0
      %1479 = vmatprep.mubr.f32.mxu0 0.0
      %1480 = vmatmul.mubr.f32.gmra.mxu0 %v1254
      %v1481 = vpop.f32.mrf.mxu0
      %v1482 = vadd.f32 0.0, %v1481
      %v1483 = vpop.f32.mrf.mxu0
      %1484 = vmatprep.mubr.f32.mxu0 0.0
      %1485 = vmatmul.mubr.f32.gmra.mxu0 %v1255
      %v1486 = vpop.f32.mrf.mxu0
      %v1487 = vadd.f32 0.0, %v1486
      %v1488 = vpop.f32.mrf.mxu0
      %1489 = vmatprep.mubr.f32.mxu0 0.0
      %1490 = vmatmul.mubr.f32.gmra.mxu0 %v1256
      %v1491 = vpop.f32.mrf.mxu0
      %v1492 = vadd.f32 0.0, %v1491
      %v1493 = vpop.f32.mrf.mxu0
      %1494 = vmatprep.mubr.f32.mxu0 0.0
      %1495 = vmatmul.mubr.f32.gmra.mxu0 %v1257
      %v1496 = vpop.f32.mrf.mxu0
      %v1497 = vadd.f32 0.0, %v1496
      %v1498 = vpop.f32.mrf.mxu0
      %1499 = vdwg.mxu0
      %v1500 = vadd.f32 %v1191, %v1342
      %v1501 = vadd.f32 %v1192, %v1347
      %v1502 = vadd.f32 %v1193, %v1352
      %v1503 = vadd.f32 %v1194, %v1357
      %v1504 = vadd.f32 %v1195, %v1362
      %v1505 = vadd.f32 %v1196, %v1367
      %v1506 = vadd.f32 %v1197, %v1372
      %v1507 = vadd.f32 %v1198, %v1377
      %v1508 = vadd.f32 %v1199, %v1382
      %v1509 = vadd.f32 %v1200, %v1387
      %v1510 = vadd.f32 %v1201, %v1392
      %v1511 = vadd.f32 %v1202, %v1397
      %v1512 = vadd.f32 %v1203, %v1402
      %v1513 = vadd.f32 %v1204, %v1407
      %v1514 = vadd.f32 %v1205, %v1412
      %v1515 = vadd.f32 %v1206, %v1417
      %v1516 = vadd.f32 %v1207, %v1422
      %v1517 = vadd.f32 %v1208, %v1427
      %v1518 = vadd.f32 %v1209, %v1432
      %v1519 = vadd.f32 %v1210, %v1437
      %v1520 = vadd.f32 %v1211, %v1442
      %v1521 = vadd.f32 %v1212, %v1447
      %v1522 = vadd.f32 %v1213, %v1452
      %v1523 = vadd.f32 %v1214, %v1457
      %v1524 = vadd.f32 %v1215, %v1462
      %v1525 = vadd.f32 %v1216, %v1467
      %v1526 = vadd.f32 %v1217, %v1472
      %v1527 = vadd.f32 %v1218, %v1477
      %v1528 = vadd.f32 %v1219, %v1482
      %v1529 = vadd.f32 %v1220, %v1487
      %v1530 = vadd.f32 %v1221, %v1492
      %v1531 = vadd.f32 %v1222, %v1497
      %v1532 = vld [vmem:[%s1225 + $0x1] sm:$0xff]
      %v1533 = vld [vmem:[%s1225 + $0x9] sm:$0xff]
      %v1534 = vld [vmem:[%s1225 + $0x19] sm:$0xff]
      %v1535 = vld [vmem:[%s1225 + $0x21] sm:$0xff]
      %v1536 = vld [vmem:[%s1225 + $0x31] sm:$0xff]
      %v1537 = vld [vmem:[%s1225 + $0x39] sm:$0xff]
      %v1538 = vld [vmem:[%s1225 + $0x49] sm:$0xff]
      %v1539 = vld [vmem:[%s1225 + $0x51] sm:$0xff]
      %v1540 = vld [vmem:[%s1225 + $0x61] sm:$0xff]
      %v1541 = vld [vmem:[%s1225 + $0x69] sm:$0xff]
      %v1542 = vld [vmem:[%s1225 + $0x79] sm:$0xff]
      %v1543 = vld [vmem:[%s1225 + $0x81] sm:$0xff]
      %v1544 = vld [vmem:[%s1225 + $0x91] sm:$0xff]
      %v1545 = vld [vmem:[%s1225 + $0x99] sm:$0xff]
      %v1546 = vld [vmem:[%s1225 + $0xa9] sm:$0xff]
      %v1547 = vld [vmem:[%s1225 + $0xb1] sm:$0xff]
      %v1548 = vld [vmem:[%s1225 + $0xc1] sm:$0xff]
      %v1549 = vld [vmem:[%s1225 + $0xc9] sm:$0xff]
      %v1550 = vld [vmem:[%s1225 + $0xd9] sm:$0xff]
      %v1551 = vld [vmem:[%s1225 + $0xe1] sm:$0xff]
      %v1552 = vld [vmem:[%s1225 + $0xf1] sm:$0xff]
      %v1553 = vld [vmem:[%s1225 + $0xf9] sm:$0xff]
      %v1554 = vld [vmem:[%s1225 + $0x109] sm:$0xff]
      %v1555 = vld [vmem:[%s1225 + $0x111] sm:$0xff]
      %v1556 = vld [vmem:[%s1225 + $0x121] sm:$0xff]
      %v1557 = vld [vmem:[%s1225 + $0x129] sm:$0xff]
      %v1558 = vld [vmem:[%s1225 + $0x139] sm:$0xff]
      %v1559 = vld [vmem:[%s1225 + $0x141] sm:$0xff]
      %v1560 = vld [vmem:[%s1225 + $0x151] sm:$0xff]
      %v1561 = vld [vmem:[%s1225 + $0x159] sm:$0xff]
      %v1562 = vld [vmem:[%s1225 + $0x169] sm:$0xff]
      %v1563 = vld [vmem:[%s1225 + $0x171] sm:$0xff]
      %s1564 = scalar_lea.vmem %s1, 512
      %v1565 = vld [vmem:[%s1564] sm:$0xff]
      %v1566 = vld [vmem:[%s1564 + $0x8] sm:$0xff]
      %v1567 = vld [vmem:[%s1564 + $0x10] sm:$0xff]
      %v1568 = vld [vmem:[%s1564 + $0x18] sm:$0xff]
      %v1569 = vld [vmem:[%s1564 + $0x20] sm:$0xff]
      %v1570 = vld [vmem:[%s1564 + $0x28] sm:$0xff]
      %v1571 = vld [vmem:[%s1564 + $0x30] sm:$0xff]
      %v1572 = vld [vmem:[%s1564 + $0x38] sm:$0xff]
      %v1573 = vld [vmem:[%s1564 + $0x40] sm:$0xff]
      %v1574 = vld [vmem:[%s1564 + $0x48] sm:$0xff]
      %v1575 = vld [vmem:[%s1564 + $0x50] sm:$0xff]
      %v1576 = vld [vmem:[%s1564 + $0x58] sm:$0xff]
      %v1577 = vld [vmem:[%s1564 + $0x60] sm:$0xff]
      %v1578 = vld [vmem:[%s1564 + $0x68] sm:$0xff]
      %v1579 = vld [vmem:[%s1564 + $0x70] sm:$0xff]
      %v1580 = vld [vmem:[%s1564 + $0x78] sm:$0xff]
      %1581 = vmatprep.subr.mxu0 0.0
      %1582 = vmatpush1.msra.mxu0 %v1580
      %1583 = vmatprep.subr.mxu0 0.0
      %1584 = vmatpush1.msra.mxu0 %v1579
      %1585 = vmatprep.subr.mxu0 0.0
      %1586 = vmatpush1.msra.mxu0 %v1578
      %1587 = vmatprep.subr.mxu0 0.0
      %1588 = vmatpush1.msra.mxu0 %v1577
      %1589 = vmatprep.subr.mxu0 0.0
      %1590 = vmatpush1.msra.mxu0 %v1576
      %1591 = vmatprep.subr.mxu0 0.0
      %1592 = vmatpush1.msra.mxu0 %v1575
      %1593 = vmatprep.subr.mxu0 0.0
      %1594 = vmatpush1.msra.mxu0 %v1574
      %1595 = vmatprep.subr.mxu0 0.0
      %1596 = vmatpush1.msra.mxu0 %v1573
      %1597 = vmatprep.subr.mxu0 0.0
      %1598 = vmatpush1.msra.mxu0 %v1572
      %1599 = vmatprep.subr.mxu0 0.0
      %1600 = vmatpush1.msra.mxu0 %v1571
      %1601 = vmatprep.subr.mxu0 0.0
      %1602 = vmatpush1.msra.mxu0 %v1570
      %1603 = vmatprep.subr.mxu0 0.0
      %1604 = vmatpush1.msra.mxu0 %v1569
      %1605 = vmatprep.subr.mxu0 0.0
      %1606 = vmatpush1.msra.mxu0 %v1568
      %1607 = vmatprep.subr.mxu0 0.0
      %1608 = vmatpush1.msra.mxu0 %v1567
      %1609 = vmatprep.subr.mxu0 0.0
      %1610 = vmatpush1.msra.mxu0 %v1566
      %1611 = vmatprep.subr.mxu0 0.0
      %1612 = vmatpush1.msra.mxu0 %v1565
      %1613 = vmatprep.subr.mxu0 0.0
      %1614 = vmatpush2.msra.mxu0 0.0
      %1615 = vmatprep.subr.mxu0 0.0
      %1616 = vmatpush2.msra.mxu0 0.0
      %1617 = vmatprep.subr.mxu0 0.0
      %1618 = vmatpush2.msra.mxu0 0.0
      %1619 = vmatprep.subr.mxu0 0.0
      %1620 = vmatpush2.msra.mxu0 0.0
      %1621 = vmatprep.subr.mxu0 0.0
      %1622 = vmatpush2.msra.mxu0 0.0
      %1623 = vmatprep.subr.mxu0 0.0
      %1624 = vmatpush2.msra.mxu0 0.0
      %1625 = vmatprep.subr.mxu0 0.0
      %1626 = vmatpush2.msra.mxu0 0.0
      %1627 = vmatprep.subr.mxu0 0.0
      %1628 = vmatpush2.msra.mxu0 0.0
      %1629 = vmatprep.subr.mxu0 0.0
      %1630 = vmatpush2.msra.mxu0 0.0
      %1631 = vmatprep.subr.mxu0 0.0
      %1632 = vmatpush2.msra.mxu0 0.0
      %1633 = vmatprep.subr.mxu0 0.0
      %1634 = vmatpush2.msra.mxu0 0.0
      %1635 = vmatprep.subr.mxu0 0.0
      %1636 = vmatpush2.msra.mxu0 0.0
      %1637 = vmatprep.subr.mxu0 0.0
      %1638 = vmatpush2.msra.mxu0 0.0
      %1639 = vmatprep.subr.mxu0 0.0
      %1640 = vmatpush2.msra.mxu0 0.0
      %1641 = vmatprep.subr.mxu0 0.0
      %1642 = vmatpush2.msra.mxu0 0.0
      %1643 = vmatprep.subr.mxu0 0.0
      %1644 = vmatpush2.msra.mxu0 0.0
      %1645 = vmatprep.mubr.f32.mxu0 0.0
      %1646 = vmatmul.mubr.f32.gmra.mxu0 %v1532
      %v1647 = vpop.f32.mrf.mxu0
      %v1648 = vadd.f32 0.0, %v1647
      %v1649 = vpop.f32.mrf.mxu0
      %1650 = vmatprep.mubr.f32.mxu0 0.0
      %1651 = vmatmul.mubr.f32.gmra.mxu0 %v1533
      %v1652 = vpop.f32.mrf.mxu0
      %v1653 = vadd.f32 0.0, %v1652
      %v1654 = vpop.f32.mrf.mxu0
      %1655 = vmatprep.mubr.f32.mxu0 0.0
      %1656 = vmatmul.mubr.f32.gmra.mxu0 %v1534
      %v1657 = vpop.f32.mrf.mxu0
      %v1658 = vadd.f32 0.0, %v1657
      %v1659 = vpop.f32.mrf.mxu0
      %1660 = vmatprep.mubr.f32.mxu0 0.0
      %1661 = vmatmul.mubr.f32.gmra.mxu0 %v1535
      %v1662 = vpop.f32.mrf.mxu0
      %v1663 = vadd.f32 0.0, %v1662
      %v1664 = vpop.f32.mrf.mxu0
      %1665 = vmatprep.mubr.f32.mxu0 0.0
      %1666 = vmatmul.mubr.f32.gmra.mxu0 %v1536
      %v1667 = vpop.f32.mrf.mxu0
      %v1668 = vadd.f32 0.0, %v1667
      %v1669 = vpop.f32.mrf.mxu0
      %1670 = vmatprep.mubr.f32.mxu0 0.0
      %1671 = vmatmul.mubr.f32.gmra.mxu0 %v1537
      %v1672 = vpop.f32.mrf.mxu0
      %v1673 = vadd.f32 0.0, %v1672
      %v1674 = vpop.f32.mrf.mxu0
      %1675 = vmatprep.mubr.f32.mxu0 0.0
      %1676 = vmatmul.mubr.f32.gmra.mxu0 %v1538
      %v1677 = vpop.f32.mrf.mxu0
      %v1678 = vadd.f32 0.0, %v1677
      %v1679 = vpop.f32.mrf.mxu0
      %1680 = vmatprep.mubr.f32.mxu0 0.0
      %1681 = vmatmul.mubr.f32.gmra.mxu0 %v1539
      %v1682 = vpop.f32.mrf.mxu0
      %v1683 = vadd.f32 0.0, %v1682
      %v1684 = vpop.f32.mrf.mxu0
      %1685 = vmatprep.mubr.f32.mxu0 0.0
      %1686 = vmatmul.mubr.f32.gmra.mxu0 %v1540
      %v1687 = vpop.f32.mrf.mxu0
      %v1688 = vadd.f32 0.0, %v1687
      %v1689 = vpop.f32.mrf.mxu0
      %1690 = vmatprep.mubr.f32.mxu0 0.0
      %1691 = vmatmul.mubr.f32.gmra.mxu0 %v1541
      %v1692 = vpop.f32.mrf.mxu0
      %v1693 = vadd.f32 0.0, %v1692
      %v1694 = vpop.f32.mrf.mxu0
      %1695 = vmatprep.mubr.f32.mxu0 0.0
      %1696 = vmatmul.mubr.f32.gmra.mxu0 %v1542
      %v1697 = vpop.f32.mrf.mxu0
      %v1698 = vadd.f32 0.0, %v1697
      %v1699 = vpop.f32.mrf.mxu0
      %1700 = vmatprep.mubr.f32.mxu0 0.0
      %1701 = vmatmul.mubr.f32.gmra.mxu0 %v1543
      %v1702 = vpop.f32.mrf.mxu0
      %v1703 = vadd.f32 0.0, %v1702
      %v1704 = vpop.f32.mrf.mxu0
      %1705 = vmatprep.mubr.f32.mxu0 0.0
      %1706 = vmatmul.mubr.f32.gmra.mxu0 %v1544
      %v1707 = vpop.f32.mrf.mxu0
      %v1708 = vadd.f32 0.0, %v1707
      %v1709 = vpop.f32.mrf.mxu0
      %1710 = vmatprep.mubr.f32.mxu0 0.0
      %1711 = vmatmul.mubr.f32.gmra.mxu0 %v1545
      %v1712 = vpop.f32.mrf.mxu0
      %v1713 = vadd.f32 0.0, %v1712
      %v1714 = vpop.f32.mrf.mxu0
      %1715 = vmatprep.mubr.f32.mxu0 0.0
      %1716 = vmatmul.mubr.f32.gmra.mxu0 %v1546
      %v1717 = vpop.f32.mrf.mxu0
      %v1718 = vadd.f32 0.0, %v1717
      %v1719 = vpop.f32.mrf.mxu0
      %1720 = vmatprep.mubr.f32.mxu0 0.0
      %1721 = vmatmul.mubr.f32.gmra.mxu0 %v1547
      %v1722 = vpop.f32.mrf.mxu0
      %v1723 = vadd.f32 0.0, %v1722
      %v1724 = vpop.f32.mrf.mxu0
      %1725 = vmatprep.mubr.f32.mxu0 0.0
      %1726 = vmatmul.mubr.f32.gmra.mxu0 %v1548
      %v1727 = vpop.f32.mrf.mxu0
      %v1728 = vadd.f32 0.0, %v1727
      %v1729 = vpop.f32.mrf.mxu0
      %1730 = vmatprep.mubr.f32.mxu0 0.0
      %1731 = vmatmul.mubr.f32.gmra.mxu0 %v1549
      %v1732 = vpop.f32.mrf.mxu0
      %v1733 = vadd.f32 0.0, %v1732
      %v1734 = vpop.f32.mrf.mxu0
      %1735 = vmatprep.mubr.f32.mxu0 0.0
      %1736 = vmatmul.mubr.f32.gmra.mxu0 %v1550
      %v1737 = vpop.f32.mrf.mxu0
      %v1738 = vadd.f32 0.0, %v1737
      %v1739 = vpop.f32.mrf.mxu0
      %1740 = vmatprep.mubr.f32.mxu0 0.0
      %1741 = vmatmul.mubr.f32.gmra.mxu0 %v1551
      %v1742 = vpop.f32.mrf.mxu0
      %v1743 = vadd.f32 0.0, %v1742
      %v1744 = vpop.f32.mrf.mxu0
      %1745 = vmatprep.mubr.f32.mxu0 0.0
      %1746 = vmatmul.mubr.f32.gmra.mxu0 %v1552
      %v1747 = vpop.f32.mrf.mxu0
      %v1748 = vadd.f32 0.0, %v1747
      %v1749 = vpop.f32.mrf.mxu0
      %1750 = vmatprep.mubr.f32.mxu0 0.0
      %1751 = vmatmul.mubr.f32.gmra.mxu0 %v1553
      %v1752 = vpop.f32.mrf.mxu0
      %v1753 = vadd.f32 0.0, %v1752
      %v1754 = vpop.f32.mrf.mxu0
      %1755 = vmatprep.mubr.f32.mxu0 0.0
      %1756 = vmatmul.mubr.f32.gmra.mxu0 %v1554
      %v1757 = vpop.f32.mrf.mxu0
      %v1758 = vadd.f32 0.0, %v1757
      %v1759 = vpop.f32.mrf.mxu0
      %1760 = vmatprep.mubr.f32.mxu0 0.0
      %1761 = vmatmul.mubr.f32.gmra.mxu0 %v1555
      %v1762 = vpop.f32.mrf.mxu0
      %v1763 = vadd.f32 0.0, %v1762
      %v1764 = vpop.f32.mrf.mxu0
      %1765 = vmatprep.mubr.f32.mxu0 0.0
      %1766 = vmatmul.mubr.f32.gmra.mxu0 %v1556
      %v1767 = vpop.f32.mrf.mxu0
      %v1768 = vadd.f32 0.0, %v1767
      %v1769 = vpop.f32.mrf.mxu0
      %1770 = vmatprep.mubr.f32.mxu0 0.0
      %1771 = vmatmul.mubr.f32.gmra.mxu0 %v1557
      %v1772 = vpop.f32.mrf.mxu0
      %v1773 = vadd.f32 0.0, %v1772
      %v1774 = vpop.f32.mrf.mxu0
      %1775 = vmatprep.mubr.f32.mxu0 0.0
      %1776 = vmatmul.mubr.f32.gmra.mxu0 %v1558
      %v1777 = vpop.f32.mrf.mxu0
      %v1778 = vadd.f32 0.0, %v1777
      %v1779 = vpop.f32.mrf.mxu0
      %1780 = vmatprep.mubr.f32.mxu0 0.0
      %1781 = vmatmul.mubr.f32.gmra.mxu0 %v1559
      %v1782 = vpop.f32.mrf.mxu0
      %v1783 = vadd.f32 0.0, %v1782
      %v1784 = vpop.f32.mrf.mxu0
      %1785 = vmatprep.mubr.f32.mxu0 0.0
      %1786 = vmatmul.mubr.f32.gmra.mxu0 %v1560
      %v1787 = vpop.f32.mrf.mxu0
      %v1788 = vadd.f32 0.0, %v1787
      %v1789 = vpop.f32.mrf.mxu0
      %1790 = vmatprep.mubr.f32.mxu0 0.0
      %1791 = vmatmul.mubr.f32.gmra.mxu0 %v1561
      %v1792 = vpop.f32.mrf.mxu0
      %v1793 = vadd.f32 0.0, %v1792
      %v1794 = vpop.f32.mrf.mxu0
      %1795 = vmatprep.mubr.f32.mxu0 0.0
      %1796 = vmatmul.mubr.f32.gmra.mxu0 %v1562
      %v1797 = vpop.f32.mrf.mxu0
      %v1798 = vadd.f32 0.0, %v1797
      %v1799 = vpop.f32.mrf.mxu0
      %1800 = vmatprep.mubr.f32.mxu0 0.0
      %1801 = vmatmul.mubr.f32.gmra.mxu0 %v1563
      %v1802 = vpop.f32.mrf.mxu0
      %v1803 = vadd.f32 0.0, %v1802
      %v1804 = vpop.f32.mrf.mxu0
      %1805 = vdwg.mxu0
      %v1806 = vadd.f32 %v1500, %v1648
      %v1807 = vadd.f32 %v1501, %v1653
      %v1808 = vadd.f32 %v1502, %v1658
      %v1809 = vadd.f32 %v1503, %v1663
      %v1810 = vadd.f32 %v1504, %v1668
      %v1811 = vadd.f32 %v1505, %v1673
      %v1812 = vadd.f32 %v1506, %v1678
      %v1813 = vadd.f32 %v1507, %v1683
      %v1814 = vadd.f32 %v1508, %v1688
      %v1815 = vadd.f32 %v1509, %v1693
      %v1816 = vadd.f32 %v1510, %v1698
      %v1817 = vadd.f32 %v1511, %v1703
      %v1818 = vadd.f32 %v1512, %v1708
      %v1819 = vadd.f32 %v1513, %v1713
      %v1820 = vadd.f32 %v1514, %v1718
      %v1821 = vadd.f32 %v1515, %v1723
      %v1822 = vadd.f32 %v1516, %v1728
      %v1823 = vadd.f32 %v1517, %v1733
      %v1824 = vadd.f32 %v1518, %v1738
      %v1825 = vadd.f32 %v1519, %v1743
      %v1826 = vadd.f32 %v1520, %v1748
      %v1827 = vadd.f32 %v1521, %v1753
      %v1828 = vadd.f32 %v1522, %v1758
      %v1829 = vadd.f32 %v1523, %v1763
      %v1830 = vadd.f32 %v1524, %v1768
      %v1831 = vadd.f32 %v1525, %v1773
      %v1832 = vadd.f32 %v1526, %v1778
      %v1833 = vadd.f32 %v1527, %v1783
      %v1834 = vadd.f32 %v1528, %v1788
      %v1835 = vadd.f32 %v1529, %v1793
      %v1836 = vadd.f32 %v1530, %v1798
      %v1837 = vadd.f32 %v1531, %v1803
      %v1838 = vld [vmem:[%s1225 + $0x2] sm:$0xff]
      %v1839 = vld [vmem:[%s1225 + $0xa] sm:$0xff]
      %v1840 = vld [vmem:[%s1225 + $0x1a] sm:$0xff]
      %v1841 = vld [vmem:[%s1225 + $0x22] sm:$0xff]
      %v1842 = vld [vmem:[%s1225 + $0x32] sm:$0xff]
      %v1843 = vld [vmem:[%s1225 + $0x3a] sm:$0xff]
      %v1844 = vld [vmem:[%s1225 + $0x4a] sm:$0xff]
      %v1845 = vld [vmem:[%s1225 + $0x52] sm:$0xff]
      %v1846 = vld [vmem:[%s1225 + $0x62] sm:$0xff]
      %v1847 = vld [vmem:[%s1225 + $0x6a] sm:$0xff]
      %v1848 = vld [vmem:[%s1225 + $0x7a] sm:$0xff]
      %v1849 = vld [vmem:[%s1225 + $0x82] sm:$0xff]
      %v1850 = vld [vmem:[%s1225 + $0x92] sm:$0xff]
      %v1851 = vld [vmem:[%s1225 + $0x9a] sm:$0xff]
      %v1852 = vld [vmem:[%s1225 + $0xaa] sm:$0xff]
      %v1853 = vld [vmem:[%s1225 + $0xb2] sm:$0xff]
      %v1854 = vld [vmem:[%s1225 + $0xc2] sm:$0xff]
      %v1855 = vld [vmem:[%s1225 + $0xca] sm:$0xff]
      %v1856 = vld [vmem:[%s1225 + $0xda] sm:$0xff]
      %v1857 = vld [vmem:[%s1225 + $0xe2] sm:$0xff]
      %v1858 = vld [vmem:[%s1225 + $0xf2] sm:$0xff]
      %v1859 = vld [vmem:[%s1225 + $0xfa] sm:$0xff]
      %v1860 = vld [vmem:[%s1225 + $0x10a] sm:$0xff]
      %v1861 = vld [vmem:[%s1225 + $0x112] sm:$0xff]
      %v1862 = vld [vmem:[%s1225 + $0x122] sm:$0xff]
      %v1863 = vld [vmem:[%s1225 + $0x12a] sm:$0xff]
      %v1864 = vld [vmem:[%s1225 + $0x13a] sm:$0xff]
      %v1865 = vld [vmem:[%s1225 + $0x142] sm:$0xff]
      %v1866 = vld [vmem:[%s1225 + $0x152] sm:$0xff]
      %v1867 = vld [vmem:[%s1225 + $0x15a] sm:$0xff]
      %v1868 = vld [vmem:[%s1225 + $0x16a] sm:$0xff]
      %v1869 = vld [vmem:[%s1225 + $0x172] sm:$0xff]
      %s1870 = scalar_lea.vmem %s1, 640
      %v1871 = vld [vmem:[%s1870] sm:$0xff]
      %v1872 = vld [vmem:[%s1870 + $0x8] sm:$0xff]
      %v1873 = vld [vmem:[%s1870 + $0x10] sm:$0xff]
      %v1874 = vld [vmem:[%s1870 + $0x18] sm:$0xff]
      %v1875 = vld [vmem:[%s1870 + $0x20] sm:$0xff]
      %v1876 = vld [vmem:[%s1870 + $0x28] sm:$0xff]
      %v1877 = vld [vmem:[%s1870 + $0x30] sm:$0xff]
      %v1878 = vld [vmem:[%s1870 + $0x38] sm:$0xff]
      %v1879 = vld [vmem:[%s1870 + $0x40] sm:$0xff]
      %v1880 = vld [vmem:[%s1870 + $0x48] sm:$0xff]
      %v1881 = vld [vmem:[%s1870 + $0x50] sm:$0xff]
      %v1882 = vld [vmem:[%s1870 + $0x58] sm:$0xff]
      %v1883 = vld [vmem:[%s1870 + $0x60] sm:$0xff]
      %v1884 = vld [vmem:[%s1870 + $0x68] sm:$0xff]
      %v1885 = vld [vmem:[%s1870 + $0x70] sm:$0xff]
      %v1886 = vld [vmem:[%s1870 + $0x78] sm:$0xff]
      %1887 = vmatprep.subr.mxu0 0.0
      %1888 = vmatpush1.msra.mxu0 %v1886
      %1889 = vmatprep.subr.mxu0 0.0
      %1890 = vmatpush1.msra.mxu0 %v1885
      %1891 = vmatprep.subr.mxu0 0.0
      %1892 = vmatpush1.msra.mxu0 %v1884
      %1893 = vmatprep.subr.mxu0 0.0
      %1894 = vmatpush1.msra.mxu0 %v1883
      %1895 = vmatprep.subr.mxu0 0.0
      %1896 = vmatpush1.msra.mxu0 %v1882
      %1897 = vmatprep.subr.mxu0 0.0
      %1898 = vmatpush1.msra.mxu0 %v1881
      %1899 = vmatprep.subr.mxu0 0.0
      %1900 = vmatpush1.msra.mxu0 %v1880
      %1901 = vmatprep.subr.mxu0 0.0
      %1902 = vmatpush1.msra.mxu0 %v1879
      %1903 = vmatprep.subr.mxu0 0.0
      %1904 = vmatpush1.msra.mxu0 %v1878
      %1905 = vmatprep.subr.mxu0 0.0
      %1906 = vmatpush1.msra.mxu0 %v1877
      %1907 = vmatprep.subr.mxu0 0.0
      %1908 = vmatpush1.msra.mxu0 %v1876
      %1909 = vmatprep.subr.mxu0 0.0
      %1910 = vmatpush1.msra.mxu0 %v1875
      %1911 = vmatprep.subr.mxu0 0.0
      %1912 = vmatpush1.msra.mxu0 %v1874
      %1913 = vmatprep.subr.mxu0 0.0
      %1914 = vmatpush1.msra.mxu0 %v1873
      %1915 = vmatprep.subr.mxu0 0.0
      %1916 = vmatpush1.msra.mxu0 %v1872
      %1917 = vmatprep.subr.mxu0 0.0
      %1918 = vmatpush1.msra.mxu0 %v1871
      %1919 = vmatprep.subr.mxu0 0.0
      %1920 = vmatpush2.msra.mxu0 0.0
      %1921 = vmatprep.subr.mxu0 0.0
      %1922 = vmatpush2.msra.mxu0 0.0
      %1923 = vmatprep.subr.mxu0 0.0
      %1924 = vmatpush2.msra.mxu0 0.0
      %1925 = vmatprep.subr.mxu0 0.0
      %1926 = vmatpush2.msra.mxu0 0.0
      %1927 = vmatprep.subr.mxu0 0.0
      %1928 = vmatpush2.msra.mxu0 0.0
      %1929 = vmatprep.subr.mxu0 0.0
      %1930 = vmatpush2.msra.mxu0 0.0
      %1931 = vmatprep.subr.mxu0 0.0
      %1932 = vmatpush2.msra.mxu0 0.0
      %1933 = vmatprep.subr.mxu0 0.0
      %1934 = vmatpush2.msra.mxu0 0.0
      %1935 = vmatprep.subr.mxu0 0.0
      %1936 = vmatpush2.msra.mxu0 0.0
      %1937 = vmatprep.subr.mxu0 0.0
      %1938 = vmatpush2.msra.mxu0 0.0
      %1939 = vmatprep.subr.mxu0 0.0
      %1940 = vmatpush2.msra.mxu0 0.0
      %1941 = vmatprep.subr.mxu0 0.0
      %1942 = vmatpush2.msra.mxu0 0.0
      %1943 = vmatprep.subr.mxu0 0.0
      %1944 = vmatpush2.msra.mxu0 0.0
      %1945 = vmatprep.subr.mxu0 0.0
      %1946 = vmatpush2.msra.mxu0 0.0
      %1947 = vmatprep.subr.mxu0 0.0
      %1948 = vmatpush2.msra.mxu0 0.0
      %1949 = vmatprep.subr.mxu0 0.0
      %1950 = vmatpush2.msra.mxu0 0.0
      %1951 = vmatprep.mubr.f32.mxu0 0.0
      %1952 = vmatmul.mubr.f32.gmra.mxu0 %v1838
      %v1953 = vpop.f32.mrf.mxu0
      %v1954 = vadd.f32 0.0, %v1953
      %v1955 = vpop.f32.mrf.mxu0
      %1956 = vmatprep.mubr.f32.mxu0 0.0
      %1957 = vmatmul.mubr.f32.gmra.mxu0 %v1839
      %v1958 = vpop.f32.mrf.mxu0
      %v1959 = vadd.f32 0.0, %v1958
      %v1960 = vpop.f32.mrf.mxu0
      %1961 = vmatprep.mubr.f32.mxu0 0.0
      %1962 = vmatmul.mubr.f32.gmra.mxu0 %v1840
      %v1963 = vpop.f32.mrf.mxu0
      %v1964 = vadd.f32 0.0, %v1963
      %v1965 = vpop.f32.mrf.mxu0
      %1966 = vmatprep.mubr.f32.mxu0 0.0
      %1967 = vmatmul.mubr.f32.gmra.mxu0 %v1841
      %v1968 = vpop.f32.mrf.mxu0
      %v1969 = vadd.f32 0.0, %v1968
      %v1970 = vpop.f32.mrf.mxu0
      %1971 = vmatprep.mubr.f32.mxu0 0.0
      %1972 = vmatmul.mubr.f32.gmra.mxu0 %v1842
      %v1973 = vpop.f32.mrf.mxu0
      %v1974 = vadd.f32 0.0, %v1973
      %v1975 = vpop.f32.mrf.mxu0
      %1976 = vmatprep.mubr.f32.mxu0 0.0
      %1977 = vmatmul.mubr.f32.gmra.mxu0 %v1843
      %v1978 = vpop.f32.mrf.mxu0
      %v1979 = vadd.f32 0.0, %v1978
      %v1980 = vpop.f32.mrf.mxu0
      %1981 = vmatprep.mubr.f32.mxu0 0.0
      %1982 = vmatmul.mubr.f32.gmra.mxu0 %v1844
      %v1983 = vpop.f32.mrf.mxu0
      %v1984 = vadd.f32 0.0, %v1983
      %v1985 = vpop.f32.mrf.mxu0
      %1986 = vmatprep.mubr.f32.mxu0 0.0
      %1987 = vmatmul.mubr.f32.gmra.mxu0 %v1845
      %v1988 = vpop.f32.mrf.mxu0
      %v1989 = vadd.f32 0.0, %v1988
      %v1990 = vpop.f32.mrf.mxu0
      %1991 = vmatprep.mubr.f32.mxu0 0.0
      %1992 = vmatmul.mubr.f32.gmra.mxu0 %v1846
      %v1993 = vpop.f32.mrf.mxu0
      %v1994 = vadd.f32 0.0, %v1993
      %v1995 = vpop.f32.mrf.mxu0
      %1996 = vmatprep.mubr.f32.mxu0 0.0
      %1997 = vmatmul.mubr.f32.gmra.mxu0 %v1847
      %v1998 = vpop.f32.mrf.mxu0
      %v1999 = vadd.f32 0.0, %v1998
      %v2000 = vpop.f32.mrf.mxu0
      %2001 = vmatprep.mubr.f32.mxu0 0.0
      %2002 = vmatmul.mubr.f32.gmra.mxu0 %v1848
      %v2003 = vpop.f32.mrf.mxu0
      %v2004 = vadd.f32 0.0, %v2003
      %v2005 = vpop.f32.mrf.mxu0
      %2006 = vmatprep.mubr.f32.mxu0 0.0
      %2007 = vmatmul.mubr.f32.gmra.mxu0 %v1849
      %v2008 = vpop.f32.mrf.mxu0
      %v2009 = vadd.f32 0.0, %v2008
      %v2010 = vpop.f32.mrf.mxu0
      %2011 = vmatprep.mubr.f32.mxu0 0.0
      %2012 = vmatmul.mubr.f32.gmra.mxu0 %v1850
      %v2013 = vpop.f32.mrf.mxu0
      %v2014 = vadd.f32 0.0, %v2013
      %v2015 = vpop.f32.mrf.mxu0
      %2016 = vmatprep.mubr.f32.mxu0 0.0
      %2017 = vmatmul.mubr.f32.gmra.mxu0 %v1851
      %v2018 = vpop.f32.mrf.mxu0
      %v2019 = vadd.f32 0.0, %v2018
      %v2020 = vpop.f32.mrf.mxu0
      %2021 = vmatprep.mubr.f32.mxu0 0.0
      %2022 = vmatmul.mubr.f32.gmra.mxu0 %v1852
      %v2023 = vpop.f32.mrf.mxu0
      %v2024 = vadd.f32 0.0, %v2023
      %v2025 = vpop.f32.mrf.mxu0
      %2026 = vmatprep.mubr.f32.mxu0 0.0
      %2027 = vmatmul.mubr.f32.gmra.mxu0 %v1853
      %v2028 = vpop.f32.mrf.mxu0
      %v2029 = vadd.f32 0.0, %v2028
      %v2030 = vpop.f32.mrf.mxu0
      %2031 = vmatprep.mubr.f32.mxu0 0.0
      %2032 = vmatmul.mubr.f32.gmra.mxu0 %v1854
      %v2033 = vpop.f32.mrf.mxu0
      %v2034 = vadd.f32 0.0, %v2033
      %v2035 = vpop.f32.mrf.mxu0
      %2036 = vmatprep.mubr.f32.mxu0 0.0
      %2037 = vmatmul.mubr.f32.gmra.mxu0 %v1855
      %v2038 = vpop.f32.mrf.mxu0
      %v2039 = vadd.f32 0.0, %v2038
      %v2040 = vpop.f32.mrf.mxu0
      %2041 = vmatprep.mubr.f32.mxu0 0.0
      %2042 = vmatmul.mubr.f32.gmra.mxu0 %v1856
      %v2043 = vpop.f32.mrf.mxu0
      %v2044 = vadd.f32 0.0, %v2043
      %v2045 = vpop.f32.mrf.mxu0
      %2046 = vmatprep.mubr.f32.mxu0 0.0
      %2047 = vmatmul.mubr.f32.gmra.mxu0 %v1857
      %v2048 = vpop.f32.mrf.mxu0
      %v2049 = vadd.f32 0.0, %v2048
      %v2050 = vpop.f32.mrf.mxu0
      %2051 = vmatprep.mubr.f32.mxu0 0.0
      %2052 = vmatmul.mubr.f32.gmra.mxu0 %v1858
      %v2053 = vpop.f32.mrf.mxu0
      %v2054 = vadd.f32 0.0, %v2053
      %v2055 = vpop.f32.mrf.mxu0
      %2056 = vmatprep.mubr.f32.mxu0 0.0
      %2057 = vmatmul.mubr.f32.gmra.mxu0 %v1859
      %v2058 = vpop.f32.mrf.mxu0
      %v2059 = vadd.f32 0.0, %v2058
      %v2060 = vpop.f32.mrf.mxu0
      %2061 = vmatprep.mubr.f32.mxu0 0.0
      %2062 = vmatmul.mubr.f32.gmra.mxu0 %v1860
      %v2063 = vpop.f32.mrf.mxu0
      %v2064 = vadd.f32 0.0, %v2063
      %v2065 = vpop.f32.mrf.mxu0
      %2066 = vmatprep.mubr.f32.mxu0 0.0
      %2067 = vmatmul.mubr.f32.gmra.mxu0 %v1861
      %v2068 = vpop.f32.mrf.mxu0
      %v2069 = vadd.f32 0.0, %v2068
      %v2070 = vpop.f32.mrf.mxu0
      %2071 = vmatprep.mubr.f32.mxu0 0.0
      %2072 = vmatmul.mubr.f32.gmra.mxu0 %v1862
      %v2073 = vpop.f32.mrf.mxu0
      %v2074 = vadd.f32 0.0, %v2073
      %v2075 = vpop.f32.mrf.mxu0
      %2076 = vmatprep.mubr.f32.mxu0 0.0
      %2077 = vmatmul.mubr.f32.gmra.mxu0 %v1863
      %v2078 = vpop.f32.mrf.mxu0
      %v2079 = vadd.f32 0.0, %v2078
      %v2080 = vpop.f32.mrf.mxu0
      %2081 = vmatprep.mubr.f32.mxu0 0.0
      %2082 = vmatmul.mubr.f32.gmra.mxu0 %v1864
      %v2083 = vpop.f32.mrf.mxu0
      %v2084 = vadd.f32 0.0, %v2083
      %v2085 = vpop.f32.mrf.mxu0
      %2086 = vmatprep.mubr.f32.mxu0 0.0
      %2087 = vmatmul.mubr.f32.gmra.mxu0 %v1865
      %v2088 = vpop.f32.mrf.mxu0
      %v2089 = vadd.f32 0.0, %v2088
      %v2090 = vpop.f32.mrf.mxu0
      %2091 = vmatprep.mubr.f32.mxu0 0.0
      %2092 = vmatmul.mubr.f32.gmra.mxu0 %v1866
      %v2093 = vpop.f32.mrf.mxu0
      %v2094 = vadd.f32 0.0, %v2093
      %v2095 = vpop.f32.mrf.mxu0
      %2096 = vmatprep.mubr.f32.mxu0 0.0
      %2097 = vmatmul.mubr.f32.gmra.mxu0 %v1867
      %v2098 = vpop.f32.mrf.mxu0
      %v2099 = vadd.f32 0.0, %v2098
      %v2100 = vpop.f32.mrf.mxu0
      %2101 = vmatprep.mubr.f32.mxu0 0.0
      %2102 = vmatmul.mubr.f32.gmra.mxu0 %v1868
      %v2103 = vpop.f32.mrf.mxu0
      %v2104 = vadd.f32 0.0, %v2103
      %v2105 = vpop.f32.mrf.mxu0
      %2106 = vmatprep.mubr.f32.mxu0 0.0
      %2107 = vmatmul.mubr.f32.gmra.mxu0 %v1869
      %v2108 = vpop.f32.mrf.mxu0
      %v2109 = vadd.f32 0.0, %v2108
      %v2110 = vpop.f32.mrf.mxu0
      %2111 = vdwg.mxu0
      %v2112 = vadd.f32 %v1806, %v1954
      %v2113 = vadd.f32 %v1807, %v1959
      %v2114 = vadd.f32 %v1808, %v1964
      %v2115 = vadd.f32 %v1809, %v1969
      %v2116 = vadd.f32 %v1810, %v1974
      %v2117 = vadd.f32 %v1811, %v1979
      %v2118 = vadd.f32 %v1812, %v1984
      %v2119 = vadd.f32 %v1813, %v1989
      %v2120 = vadd.f32 %v1814, %v1994
      %v2121 = vadd.f32 %v1815, %v1999
      %v2122 = vadd.f32 %v1816, %v2004
      %v2123 = vadd.f32 %v1817, %v2009
      %v2124 = vadd.f32 %v1818, %v2014
      %v2125 = vadd.f32 %v1819, %v2019
      %v2126 = vadd.f32 %v1820, %v2024
      %v2127 = vadd.f32 %v1821, %v2029
      %v2128 = vadd.f32 %v1822, %v2034
      %v2129 = vadd.f32 %v1823, %v2039
      %v2130 = vadd.f32 %v1824, %v2044
      %v2131 = vadd.f32 %v1825, %v2049
      %v2132 = vadd.f32 %v1826, %v2054
      %v2133 = vadd.f32 %v1827, %v2059
      %v2134 = vadd.f32 %v1828, %v2064
      %v2135 = vadd.f32 %v1829, %v2069
      %v2136 = vadd.f32 %v1830, %v2074
      %v2137 = vadd.f32 %v1831, %v2079
      %v2138 = vadd.f32 %v1832, %v2084
      %v2139 = vadd.f32 %v1833, %v2089
      %v2140 = vadd.f32 %v1834, %v2094
      %v2141 = vadd.f32 %v1835, %v2099
      %v2142 = vadd.f32 %v1836, %v2104
      %v2143 = vadd.f32 %v1837, %v2109
      %s2144 = sadd.s32 %s367, 2
      %s2145 = smul.u32 %s2144, 24
      %s2146 = scalar_lea.vmem [#allocation2], %s2145
      %v2147 = vld [vmem:[%s2146] sm:$0xff]
      %v2148 = vld [vmem:[%s2146 + $0x8] sm:$0xff]
      %v2149 = vld [vmem:[%s2146 + $0x18] sm:$0xff]
      %v2150 = vld [vmem:[%s2146 + $0x20] sm:$0xff]
      %v2151 = vld [vmem:[%s2146 + $0x30] sm:$0xff]
      %v2152 = vld [vmem:[%s2146 + $0x38] sm:$0xff]
      %v2153 = vld [vmem:[%s2146 + $0x48] sm:$0xff]
      %v2154 = vld [vmem:[%s2146 + $0x50] sm:$0xff]
      %v2155 = vld [vmem:[%s2146 + $0x60] sm:$0xff]
      %v2156 = vld [vmem:[%s2146 + $0x68] sm:$0xff]
      %v2157 = vld [vmem:[%s2146 + $0x78] sm:$0xff]
      %v2158 = vld [vmem:[%s2146 + $0x80] sm:$0xff]
      %v2159 = vld [vmem:[%s2146 + $0x90] sm:$0xff]
      %v2160 = vld [vmem:[%s2146 + $0x98] sm:$0xff]
      %v2161 = vld [vmem:[%s2146 + $0xa8] sm:$0xff]
      %v2162 = vld [vmem:[%s2146 + $0xb0] sm:$0xff]
      %v2163 = vld [vmem:[%s2146 + $0xc0] sm:$0xff]
      %v2164 = vld [vmem:[%s2146 + $0xc8] sm:$0xff]
      %v2165 = vld [vmem:[%s2146 + $0xd8] sm:$0xff]
      %v2166 = vld [vmem:[%s2146 + $0xe0] sm:$0xff]
      %v2167 = vld [vmem:[%s2146 + $0xf0] sm:$0xff]
      %v2168 = vld [vmem:[%s2146 + $0xf8] sm:$0xff]
      %v2169 = vld [vmem:[%s2146 + $0x108] sm:$0xff]
      %v2170 = vld [vmem:[%s2146 + $0x110] sm:$0xff]
      %v2171 = vld [vmem:[%s2146 + $0x120] sm:$0xff]
      %v2172 = vld [vmem:[%s2146 + $0x128] sm:$0xff]
      %v2173 = vld [vmem:[%s2146 + $0x138] sm:$0xff]
      %v2174 = vld [vmem:[%s2146 + $0x140] sm:$0xff]
      %v2175 = vld [vmem:[%s2146 + $0x150] sm:$0xff]
      %v2176 = vld [vmem:[%s2146 + $0x158] sm:$0xff]
      %v2177 = vld [vmem:[%s2146 + $0x168] sm:$0xff]
      %v2178 = vld [vmem:[%s2146 + $0x170] sm:$0xff]
      %s2179 = scalar_lea.vmem %s1, 768
      %v2180 = vld [vmem:[%s2179] sm:$0xff]
      %v2181 = vld [vmem:[%s2179 + $0x8] sm:$0xff]
      %v2182 = vld [vmem:[%s2179 + $0x10] sm:$0xff]
      %v2183 = vld [vmem:[%s2179 + $0x18] sm:$0xff]
      %v2184 = vld [vmem:[%s2179 + $0x20] sm:$0xff]
      %v2185 = vld [vmem:[%s2179 + $0x28] sm:$0xff]
      %v2186 = vld [vmem:[%s2179 + $0x30] sm:$0xff]
      %v2187 = vld [vmem:[%s2179 + $0x38] sm:$0xff]
      %v2188 = vld [vmem:[%s2179 + $0x40] sm:$0xff]
      %v2189 = vld [vmem:[%s2179 + $0x48] sm:$0xff]
      %v2190 = vld [vmem:[%s2179 + $0x50] sm:$0xff]
      %v2191 = vld [vmem:[%s2179 + $0x58] sm:$0xff]
      %v2192 = vld [vmem:[%s2179 + $0x60] sm:$0xff]
      %v2193 = vld [vmem:[%s2179 + $0x68] sm:$0xff]
      %v2194 = vld [vmem:[%s2179 + $0x70] sm:$0xff]
      %v2195 = vld [vmem:[%s2179 + $0x78] sm:$0xff]
      %2196 = vmatprep.subr.mxu0 0.0
      %2197 = vmatpush1.msra.mxu0 %v2195
      %2198 = vmatprep.subr.mxu0 0.0
      %2199 = vmatpush1.msra.mxu0 %v2194
      %2200 = vmatprep.subr.mxu0 0.0
      %2201 = vmatpush1.msra.mxu0 %v2193
      %2202 = vmatprep.subr.mxu0 0.0
      %2203 = vmatpush1.msra.mxu0 %v2192
      %2204 = vmatprep.subr.mxu0 0.0
      %2205 = vmatpush1.msra.mxu0 %v2191
      %2206 = vmatprep.subr.mxu0 0.0
      %2207 = vmatpush1.msra.mxu0 %v2190
      %2208 = vmatprep.subr.mxu0 0.0
      %2209 = vmatpush1.msra.mxu0 %v2189
      %2210 = vmatprep.subr.mxu0 0.0
      %2211 = vmatpush1.msra.mxu0 %v2188
      %2212 = vmatprep.subr.mxu0 0.0
      %2213 = vmatpush1.msra.mxu0 %v2187
      %2214 = vmatprep.subr.mxu0 0.0
      %2215 = vmatpush1.msra.mxu0 %v2186
      %2216 = vmatprep.subr.mxu0 0.0
      %2217 = vmatpush1.msra.mxu0 %v2185
      %2218 = vmatprep.subr.mxu0 0.0
      %2219 = vmatpush1.msra.mxu0 %v2184
      %2220 = vmatprep.subr.mxu0 0.0
      %2221 = vmatpush1.msra.mxu0 %v2183
      %2222 = vmatprep.subr.mxu0 0.0
      %2223 = vmatpush1.msra.mxu0 %v2182
      %2224 = vmatprep.subr.mxu0 0.0
      %2225 = vmatpush1.msra.mxu0 %v2181
      %2226 = vmatprep.subr.mxu0 0.0
      %2227 = vmatpush1.msra.mxu0 %v2180
      %2228 = vmatprep.subr.mxu0 0.0
      %2229 = vmatpush2.msra.mxu0 0.0
      %2230 = vmatprep.subr.mxu0 0.0
      %2231 = vmatpush2.msra.mxu0 0.0
      %2232 = vmatprep.subr.mxu0 0.0
      %2233 = vmatpush2.msra.mxu0 0.0
      %2234 = vmatprep.subr.mxu0 0.0
      %2235 = vmatpush2.msra.mxu0 0.0
      %2236 = vmatprep.subr.mxu0 0.0
      %2237 = vmatpush2.msra.mxu0 0.0
      %2238 = vmatprep.subr.mxu0 0.0
      %2239 = vmatpush2.msra.mxu0 0.0
      %2240 = vmatprep.subr.mxu0 0.0
      %2241 = vmatpush2.msra.mxu0 0.0
      %2242 = vmatprep.subr.mxu0 0.0
      %2243 = vmatpush2.msra.mxu0 0.0
      %2244 = vmatprep.subr.mxu0 0.0
      %2245 = vmatpush2.msra.mxu0 0.0
      %2246 = vmatprep.subr.mxu0 0.0
      %2247 = vmatpush2.msra.mxu0 0.0
      %2248 = vmatprep.subr.mxu0 0.0
      %2249 = vmatpush2.msra.mxu0 0.0
      %2250 = vmatprep.subr.mxu0 0.0
      %2251 = vmatpush2.msra.mxu0 0.0
      %2252 = vmatprep.subr.mxu0 0.0
      %2253 = vmatpush2.msra.mxu0 0.0
      %2254 = vmatprep.subr.mxu0 0.0
      %2255 = vmatpush2.msra.mxu0 0.0
      %2256 = vmatprep.subr.mxu0 0.0
      %2257 = vmatpush2.msra.mxu0 0.0
      %2258 = vmatprep.subr.mxu0 0.0
      %2259 = vmatpush2.msra.mxu0 0.0
      %2260 = vmatprep.mubr.f32.mxu0 0.0
      %2261 = vmatmul.mubr.f32.gmra.mxu0 %v2147
      %v2262 = vpop.f32.mrf.mxu0
      %v2263 = vadd.f32 0.0, %v2262
      %v2264 = vpop.f32.mrf.mxu0
      %2265 = vmatprep.mubr.f32.mxu0 0.0
      %2266 = vmatmul.mubr.f32.gmra.mxu0 %v2148
      %v2267 = vpop.f32.mrf.mxu0
      %v2268 = vadd.f32 0.0, %v2267
      %v2269 = vpop.f32.mrf.mxu0
      %2270 = vmatprep.mubr.f32.mxu0 0.0
      %2271 = vmatmul.mubr.f32.gmra.mxu0 %v2149
      %v2272 = vpop.f32.mrf.mxu0
      %v2273 = vadd.f32 0.0, %v2272
      %v2274 = vpop.f32.mrf.mxu0
      %2275 = vmatprep.mubr.f32.mxu0 0.0
      %2276 = vmatmul.mubr.f32.gmra.mxu0 %v2150
      %v2277 = vpop.f32.mrf.mxu0
      %v2278 = vadd.f32 0.0, %v2277
      %v2279 = vpop.f32.mrf.mxu0
      %2280 = vmatprep.mubr.f32.mxu0 0.0
      %2281 = vmatmul.mubr.f32.gmra.mxu0 %v2151
      %v2282 = vpop.f32.mrf.mxu0
      %v2283 = vadd.f32 0.0, %v2282
      %v2284 = vpop.f32.mrf.mxu0
      %2285 = vmatprep.mubr.f32.mxu0 0.0
      %2286 = vmatmul.mubr.f32.gmra.mxu0 %v2152
      %v2287 = vpop.f32.mrf.mxu0
      %v2288 = vadd.f32 0.0, %v2287
      %v2289 = vpop.f32.mrf.mxu0
      %2290 = vmatprep.mubr.f32.mxu0 0.0
      %2291 = vmatmul.mubr.f32.gmra.mxu0 %v2153
      %v2292 = vpop.f32.mrf.mxu0
      %v2293 = vadd.f32 0.0, %v2292
      %v2294 = vpop.f32.mrf.mxu0
      %2295 = vmatprep.mubr.f32.mxu0 0.0
      %2296 = vmatmul.mubr.f32.gmra.mxu0 %v2154
      %v2297 = vpop.f32.mrf.mxu0
      %v2298 = vadd.f32 0.0, %v2297
      %v2299 = vpop.f32.mrf.mxu0
      %2300 = vmatprep.mubr.f32.mxu0 0.0
      %2301 = vmatmul.mubr.f32.gmra.mxu0 %v2155
      %v2302 = vpop.f32.mrf.mxu0
      %v2303 = vadd.f32 0.0, %v2302
      %v2304 = vpop.f32.mrf.mxu0
      %2305 = vmatprep.mubr.f32.mxu0 0.0
      %2306 = vmatmul.mubr.f32.gmra.mxu0 %v2156
      %v2307 = vpop.f32.mrf.mxu0
      %v2308 = vadd.f32 0.0, %v2307
      %v2309 = vpop.f32.mrf.mxu0
      %2310 = vmatprep.mubr.f32.mxu0 0.0
      %2311 = vmatmul.mubr.f32.gmra.mxu0 %v2157
      %v2312 = vpop.f32.mrf.mxu0
      %v2313 = vadd.f32 0.0, %v2312
      %v2314 = vpop.f32.mrf.mxu0
      %2315 = vmatprep.mubr.f32.mxu0 0.0
      %2316 = vmatmul.mubr.f32.gmra.mxu0 %v2158
      %v2317 = vpop.f32.mrf.mxu0
      %v2318 = vadd.f32 0.0, %v2317
      %v2319 = vpop.f32.mrf.mxu0
      %2320 = vmatprep.mubr.f32.mxu0 0.0
      %2321 = vmatmul.mubr.f32.gmra.mxu0 %v2159
      %v2322 = vpop.f32.mrf.mxu0
      %v2323 = vadd.f32 0.0, %v2322
      %v2324 = vpop.f32.mrf.mxu0
      %2325 = vmatprep.mubr.f32.mxu0 0.0
      %2326 = vmatmul.mubr.f32.gmra.mxu0 %v2160
      %v2327 = vpop.f32.mrf.mxu0
      %v2328 = vadd.f32 0.0, %v2327
      %v2329 = vpop.f32.mrf.mxu0
      %2330 = vmatprep.mubr.f32.mxu0 0.0
      %2331 = vmatmul.mubr.f32.gmra.mxu0 %v2161
      %v2332 = vpop.f32.mrf.mxu0
      %v2333 = vadd.f32 0.0, %v2332
      %v2334 = vpop.f32.mrf.mxu0
      %2335 = vmatprep.mubr.f32.mxu0 0.0
      %2336 = vmatmul.mubr.f32.gmra.mxu0 %v2162
      %v2337 = vpop.f32.mrf.mxu0
      %v2338 = vadd.f32 0.0, %v2337
      %v2339 = vpop.f32.mrf.mxu0
      %2340 = vmatprep.mubr.f32.mxu0 0.0
      %2341 = vmatmul.mubr.f32.gmra.mxu0 %v2163
      %v2342 = vpop.f32.mrf.mxu0
      %v2343 = vadd.f32 0.0, %v2342
      %v2344 = vpop.f32.mrf.mxu0
      %2345 = vmatprep.mubr.f32.mxu0 0.0
      %2346 = vmatmul.mubr.f32.gmra.mxu0 %v2164
      %v2347 = vpop.f32.mrf.mxu0
      %v2348 = vadd.f32 0.0, %v2347
      %v2349 = vpop.f32.mrf.mxu0
      %2350 = vmatprep.mubr.f32.mxu0 0.0
      %2351 = vmatmul.mubr.f32.gmra.mxu0 %v2165
      %v2352 = vpop.f32.mrf.mxu0
      %v2353 = vadd.f32 0.0, %v2352
      %v2354 = vpop.f32.mrf.mxu0
      %2355 = vmatprep.mubr.f32.mxu0 0.0
      %2356 = vmatmul.mubr.f32.gmra.mxu0 %v2166
      %v2357 = vpop.f32.mrf.mxu0
      %v2358 = vadd.f32 0.0, %v2357
      %v2359 = vpop.f32.mrf.mxu0
      %2360 = vmatprep.mubr.f32.mxu0 0.0
      %2361 = vmatmul.mubr.f32.gmra.mxu0 %v2167
      %v2362 = vpop.f32.mrf.mxu0
      %v2363 = vadd.f32 0.0, %v2362
      %v2364 = vpop.f32.mrf.mxu0
      %2365 = vmatprep.mubr.f32.mxu0 0.0
      %2366 = vmatmul.mubr.f32.gmra.mxu0 %v2168
      %v2367 = vpop.f32.mrf.mxu0
      %v2368 = vadd.f32 0.0, %v2367
      %v2369 = vpop.f32.mrf.mxu0
      %2370 = vmatprep.mubr.f32.mxu0 0.0
      %2371 = vmatmul.mubr.f32.gmra.mxu0 %v2169
      %v2372 = vpop.f32.mrf.mxu0
      %v2373 = vadd.f32 0.0, %v2372
      %v2374 = vpop.f32.mrf.mxu0
      %2375 = vmatprep.mubr.f32.mxu0 0.0
      %2376 = vmatmul.mubr.f32.gmra.mxu0 %v2170
      %v2377 = vpop.f32.mrf.mxu0
      %v2378 = vadd.f32 0.0, %v2377
      %v2379 = vpop.f32.mrf.mxu0
      %2380 = vmatprep.mubr.f32.mxu0 0.0
      %2381 = vmatmul.mubr.f32.gmra.mxu0 %v2171
      %v2382 = vpop.f32.mrf.mxu0
      %v2383 = vadd.f32 0.0, %v2382
      %v2384 = vpop.f32.mrf.mxu0
      %2385 = vmatprep.mubr.f32.mxu0 0.0
      %2386 = vmatmul.mubr.f32.gmra.mxu0 %v2172
      %v2387 = vpop.f32.mrf.mxu0
      %v2388 = vadd.f32 0.0, %v2387
      %v2389 = vpop.f32.mrf.mxu0
      %2390 = vmatprep.mubr.f32.mxu0 0.0
      %2391 = vmatmul.mubr.f32.gmra.mxu0 %v2173
      %v2392 = vpop.f32.mrf.mxu0
      %v2393 = vadd.f32 0.0, %v2392
      %v2394 = vpop.f32.mrf.mxu0
      %2395 = vmatprep.mubr.f32.mxu0 0.0
      %2396 = vmatmul.mubr.f32.gmra.mxu0 %v2174
      %v2397 = vpop.f32.mrf.mxu0
      %v2398 = vadd.f32 0.0, %v2397
      %v2399 = vpop.f32.mrf.mxu0
      %2400 = vmatprep.mubr.f32.mxu0 0.0
      %2401 = vmatmul.mubr.f32.gmra.mxu0 %v2175
      %v2402 = vpop.f32.mrf.mxu0
      %v2403 = vadd.f32 0.0, %v2402
      %v2404 = vpop.f32.mrf.mxu0
      %2405 = vmatprep.mubr.f32.mxu0 0.0
      %2406 = vmatmul.mubr.f32.gmra.mxu0 %v2176
      %v2407 = vpop.f32.mrf.mxu0
      %v2408 = vadd.f32 0.0, %v2407
      %v2409 = vpop.f32.mrf.mxu0
      %2410 = vmatprep.mubr.f32.mxu0 0.0
      %2411 = vmatmul.mubr.f32.gmra.mxu0 %v2177
      %v2412 = vpop.f32.mrf.mxu0
      %v2413 = vadd.f32 0.0, %v2412
      %v2414 = vpop.f32.mrf.mxu0
      %2415 = vmatprep.mubr.f32.mxu0 0.0
      %2416 = vmatmul.mubr.f32.gmra.mxu0 %v2178
      %v2417 = vpop.f32.mrf.mxu0
      %v2418 = vadd.f32 0.0, %v2417
      %v2419 = vpop.f32.mrf.mxu0
      %2420 = vdwg.mxu0
      %v2421 = vadd.f32 %v2112, %v2263
      %v2422 = vadd.f32 %v2113, %v2268
      %v2423 = vadd.f32 %v2114, %v2273
      %v2424 = vadd.f32 %v2115, %v2278
      %v2425 = vadd.f32 %v2116, %v2283
      %v2426 = vadd.f32 %v2117, %v2288
      %v2427 = vadd.f32 %v2118, %v2293
      %v2428 = vadd.f32 %v2119, %v2298
      %v2429 = vadd.f32 %v2120, %v2303
      %v2430 = vadd.f32 %v2121, %v2308
      %v2431 = vadd.f32 %v2122, %v2313
      %v2432 = vadd.f32 %v2123, %v2318
      %v2433 = vadd.f32 %v2124, %v2323
      %v2434 = vadd.f32 %v2125, %v2328
      %v2435 = vadd.f32 %v2126, %v2333
      %v2436 = vadd.f32 %v2127, %v2338
      %v2437 = vadd.f32 %v2128, %v2343
      %v2438 = vadd.f32 %v2129, %v2348
      %v2439 = vadd.f32 %v2130, %v2353
      %v2440 = vadd.f32 %v2131, %v2358
      %v2441 = vadd.f32 %v2132, %v2363
      %v2442 = vadd.f32 %v2133, %v2368
      %v2443 = vadd.f32 %v2134, %v2373
      %v2444 = vadd.f32 %v2135, %v2378
      %v2445 = vadd.f32 %v2136, %v2383
      %v2446 = vadd.f32 %v2137, %v2388
      %v2447 = vadd.f32 %v2138, %v2393
      %v2448 = vadd.f32 %v2139, %v2398
      %v2449 = vadd.f32 %v2140, %v2403
      %v2450 = vadd.f32 %v2141, %v2408
      %v2451 = vadd.f32 %v2142, %v2413
      %v2452 = vadd.f32 %v2143, %v2418
      %v2453 = vld [vmem:[%s2146 + $0x1] sm:$0xff]
      %v2454 = vld [vmem:[%s2146 + $0x9] sm:$0xff]
      %v2455 = vld [vmem:[%s2146 + $0x19] sm:$0xff]
      %v2456 = vld [vmem:[%s2146 + $0x21] sm:$0xff]
      %v2457 = vld [vmem:[%s2146 + $0x31] sm:$0xff]
      %v2458 = vld [vmem:[%s2146 + $0x39] sm:$0xff]
      %v2459 = vld [vmem:[%s2146 + $0x49] sm:$0xff]
      %v2460 = vld [vmem:[%s2146 + $0x51] sm:$0xff]
      %v2461 = vld [vmem:[%s2146 + $0x61] sm:$0xff]
      %v2462 = vld [vmem:[%s2146 + $0x69] sm:$0xff]
      %v2463 = vld [vmem:[%s2146 + $0x79] sm:$0xff]
      %v2464 = vld [vmem:[%s2146 + $0x81] sm:$0xff]
      %v2465 = vld [vmem:[%s2146 + $0x91] sm:$0xff]
      %v2466 = vld [vmem:[%s2146 + $0x99] sm:$0xff]
      %v2467 = vld [vmem:[%s2146 + $0xa9] sm:$0xff]
      %v2468 = vld [vmem:[%s2146 + $0xb1] sm:$0xff]
      %v2469 = vld [vmem:[%s2146 + $0xc1] sm:$0xff]
      %v2470 = vld [vmem:[%s2146 + $0xc9] sm:$0xff]
      %v2471 = vld [vmem:[%s2146 + $0xd9] sm:$0xff]
      %v2472 = vld [vmem:[%s2146 + $0xe1] sm:$0xff]
      %v2473 = vld [vmem:[%s2146 + $0xf1] sm:$0xff]
      %v2474 = vld [vmem:[%s2146 + $0xf9] sm:$0xff]
      %v2475 = vld [vmem:[%s2146 + $0x109] sm:$0xff]
      %v2476 = vld [vmem:[%s2146 + $0x111] sm:$0xff]
      %v2477 = vld [vmem:[%s2146 + $0x121] sm:$0xff]
      %v2478 = vld [vmem:[%s2146 + $0x129] sm:$0xff]
      %v2479 = vld [vmem:[%s2146 + $0x139] sm:$0xff]
      %v2480 = vld [vmem:[%s2146 + $0x141] sm:$0xff]
      %v2481 = vld [vmem:[%s2146 + $0x151] sm:$0xff]
      %v2482 = vld [vmem:[%s2146 + $0x159] sm:$0xff]
      %v2483 = vld [vmem:[%s2146 + $0x169] sm:$0xff]
      %v2484 = vld [vmem:[%s2146 + $0x171] sm:$0xff]
      %s2485 = scalar_lea.vmem %s1, 896
      %v2486 = vld [vmem:[%s2485] sm:$0xff]
      %v2487 = vld [vmem:[%s2485 + $0x8] sm:$0xff]
      %v2488 = vld [vmem:[%s2485 + $0x10] sm:$0xff]
      %v2489 = vld [vmem:[%s2485 + $0x18] sm:$0xff]
      %v2490 = vld [vmem:[%s2485 + $0x20] sm:$0xff]
      %v2491 = vld [vmem:[%s2485 + $0x28] sm:$0xff]
      %v2492 = vld [vmem:[%s2485 + $0x30] sm:$0xff]
      %v2493 = vld [vmem:[%s2485 + $0x38] sm:$0xff]
      %v2494 = vld [vmem:[%s2485 + $0x40] sm:$0xff]
      %v2495 = vld [vmem:[%s2485 + $0x48] sm:$0xff]
      %v2496 = vld [vmem:[%s2485 + $0x50] sm:$0xff]
      %v2497 = vld [vmem:[%s2485 + $0x58] sm:$0xff]
      %v2498 = vld [vmem:[%s2485 + $0x60] sm:$0xff]
      %v2499 = vld [vmem:[%s2485 + $0x68] sm:$0xff]
      %v2500 = vld [vmem:[%s2485 + $0x70] sm:$0xff]
      %v2501 = vld [vmem:[%s2485 + $0x78] sm:$0xff]
      %2502 = vmatprep.subr.mxu0 0.0
      %2503 = vmatpush1.msra.mxu0 %v2501
      %2504 = vmatprep.subr.mxu0 0.0
      %2505 = vmatpush1.msra.mxu0 %v2500
      %2506 = vmatprep.subr.mxu0 0.0
      %2507 = vmatpush1.msra.mxu0 %v2499
      %2508 = vmatprep.subr.mxu0 0.0
      %2509 = vmatpush1.msra.mxu0 %v2498
      %2510 = vmatprep.subr.mxu0 0.0
      %2511 = vmatpush1.msra.mxu0 %v2497
      %2512 = vmatprep.subr.mxu0 0.0
      %2513 = vmatpush1.msra.mxu0 %v2496
      %2514 = vmatprep.subr.mxu0 0.0
      %2515 = vmatpush1.msra.mxu0 %v2495
      %2516 = vmatprep.subr.mxu0 0.0
      %2517 = vmatpush1.msra.mxu0 %v2494
      %2518 = vmatprep.subr.mxu0 0.0
      %2519 = vmatpush1.msra.mxu0 %v2493
      %2520 = vmatprep.subr.mxu0 0.0
      %2521 = vmatpush1.msra.mxu0 %v2492
      %2522 = vmatprep.subr.mxu0 0.0
      %2523 = vmatpush1.msra.mxu0 %v2491
      %2524 = vmatprep.subr.mxu0 0.0
      %2525 = vmatpush1.msra.mxu0 %v2490
      %2526 = vmatprep.subr.mxu0 0.0
      %2527 = vmatpush1.msra.mxu0 %v2489
      %2528 = vmatprep.subr.mxu0 0.0
      %2529 = vmatpush1.msra.mxu0 %v2488
      %2530 = vmatprep.subr.mxu0 0.0
      %2531 = vmatpush1.msra.mxu0 %v2487
      %2532 = vmatprep.subr.mxu0 0.0
      %2533 = vmatpush1.msra.mxu0 %v2486
      %2534 = vmatprep.subr.mxu0 0.0
      %2535 = vmatpush2.msra.mxu0 0.0
      %2536 = vmatprep.subr.mxu0 0.0
      %2537 = vmatpush2.msra.mxu0 0.0
      %2538 = vmatprep.subr.mxu0 0.0
      %2539 = vmatpush2.msra.mxu0 0.0
      %2540 = vmatprep.subr.mxu0 0.0
      %2541 = vmatpush2.msra.mxu0 0.0
      %2542 = vmatprep.subr.mxu0 0.0
      %2543 = vmatpush2.msra.mxu0 0.0
      %2544 = vmatprep.subr.mxu0 0.0
      %2545 = vmatpush2.msra.mxu0 0.0
      %2546 = vmatprep.subr.mxu0 0.0
      %2547 = vmatpush2.msra.mxu0 0.0
      %2548 = vmatprep.subr.mxu0 0.0
      %2549 = vmatpush2.msra.mxu0 0.0
      %2550 = vmatprep.subr.mxu0 0.0
      %2551 = vmatpush2.msra.mxu0 0.0
      %2552 = vmatprep.subr.mxu0 0.0
      %2553 = vmatpush2.msra.mxu0 0.0
      %2554 = vmatprep.subr.mxu0 0.0
      %2555 = vmatpush2.msra.mxu0 0.0
      %2556 = vmatprep.subr.mxu0 0.0
      %2557 = vmatpush2.msra.mxu0 0.0
      %2558 = vmatprep.subr.mxu0 0.0
      %2559 = vmatpush2.msra.mxu0 0.0
      %2560 = vmatprep.subr.mxu0 0.0
      %2561 = vmatpush2.msra.mxu0 0.0
      %2562 = vmatprep.subr.mxu0 0.0
      %2563 = vmatpush2.msra.mxu0 0.0
      %2564 = vmatprep.subr.mxu0 0.0
      %2565 = vmatpush2.msra.mxu0 0.0
      %2566 = vmatprep.mubr.f32.mxu0 0.0
      %2567 = vmatmul.mubr.f32.gmra.mxu0 %v2453
      %v2568 = vpop.f32.mrf.mxu0
      %v2569 = vadd.f32 0.0, %v2568
      %v2570 = vpop.f32.mrf.mxu0
      %2571 = vmatprep.mubr.f32.mxu0 0.0
      %2572 = vmatmul.mubr.f32.gmra.mxu0 %v2454
      %v2573 = vpop.f32.mrf.mxu0
      %v2574 = vadd.f32 0.0, %v2573
      %v2575 = vpop.f32.mrf.mxu0
      %2576 = vmatprep.mubr.f32.mxu0 0.0
      %2577 = vmatmul.mubr.f32.gmra.mxu0 %v2455
      %v2578 = vpop.f32.mrf.mxu0
      %v2579 = vadd.f32 0.0, %v2578
      %v2580 = vpop.f32.mrf.mxu0
      %2581 = vmatprep.mubr.f32.mxu0 0.0
      %2582 = vmatmul.mubr.f32.gmra.mxu0 %v2456
      %v2583 = vpop.f32.mrf.mxu0
      %v2584 = vadd.f32 0.0, %v2583
      %v2585 = vpop.f32.mrf.mxu0
      %2586 = vmatprep.mubr.f32.mxu0 0.0
      %2587 = vmatmul.mubr.f32.gmra.mxu0 %v2457
      %v2588 = vpop.f32.mrf.mxu0
      %v2589 = vadd.f32 0.0, %v2588
      %v2590 = vpop.f32.mrf.mxu0
      %2591 = vmatprep.mubr.f32.mxu0 0.0
      %2592 = vmatmul.mubr.f32.gmra.mxu0 %v2458
      %v2593 = vpop.f32.mrf.mxu0
      %v2594 = vadd.f32 0.0, %v2593
      %v2595 = vpop.f32.mrf.mxu0
      %2596 = vmatprep.mubr.f32.mxu0 0.0
      %2597 = vmatmul.mubr.f32.gmra.mxu0 %v2459
      %v2598 = vpop.f32.mrf.mxu0
      %v2599 = vadd.f32 0.0, %v2598
      %v2600 = vpop.f32.mrf.mxu0
      %2601 = vmatprep.mubr.f32.mxu0 0.0
      %2602 = vmatmul.mubr.f32.gmra.mxu0 %v2460
      %v2603 = vpop.f32.mrf.mxu0
      %v2604 = vadd.f32 0.0, %v2603
      %v2605 = vpop.f32.mrf.mxu0
      %2606 = vmatprep.mubr.f32.mxu0 0.0
      %2607 = vmatmul.mubr.f32.gmra.mxu0 %v2461
      %v2608 = vpop.f32.mrf.mxu0
      %v2609 = vadd.f32 0.0, %v2608
      %v2610 = vpop.f32.mrf.mxu0
      %2611 = vmatprep.mubr.f32.mxu0 0.0
      %2612 = vmatmul.mubr.f32.gmra.mxu0 %v2462
      %v2613 = vpop.f32.mrf.mxu0
      %v2614 = vadd.f32 0.0, %v2613
      %v2615 = vpop.f32.mrf.mxu0
      %2616 = vmatprep.mubr.f32.mxu0 0.0
      %2617 = vmatmul.mubr.f32.gmra.mxu0 %v2463
      %v2618 = vpop.f32.mrf.mxu0
      %v2619 = vadd.f32 0.0, %v2618
      %v2620 = vpop.f32.mrf.mxu0
      %2621 = vmatprep.mubr.f32.mxu0 0.0
      %2622 = vmatmul.mubr.f32.gmra.mxu0 %v2464
      %v2623 = vpop.f32.mrf.mxu0
      %v2624 = vadd.f32 0.0, %v2623
      %v2625 = vpop.f32.mrf.mxu0
      %2626 = vmatprep.mubr.f32.mxu0 0.0
      %2627 = vmatmul.mubr.f32.gmra.mxu0 %v2465
      %v2628 = vpop.f32.mrf.mxu0
      %v2629 = vadd.f32 0.0, %v2628
      %v2630 = vpop.f32.mrf.mxu0
      %2631 = vmatprep.mubr.f32.mxu0 0.0
      %2632 = vmatmul.mubr.f32.gmra.mxu0 %v2466
      %v2633 = vpop.f32.mrf.mxu0
      %v2634 = vadd.f32 0.0, %v2633
      %v2635 = vpop.f32.mrf.mxu0
      %2636 = vmatprep.mubr.f32.mxu0 0.0
      %2637 = vmatmul.mubr.f32.gmra.mxu0 %v2467
      %v2638 = vpop.f32.mrf.mxu0
      %v2639 = vadd.f32 0.0, %v2638
      %v2640 = vpop.f32.mrf.mxu0
      %2641 = vmatprep.mubr.f32.mxu0 0.0
      %2642 = vmatmul.mubr.f32.gmra.mxu0 %v2468
      %v2643 = vpop.f32.mrf.mxu0
      %v2644 = vadd.f32 0.0, %v2643
      %v2645 = vpop.f32.mrf.mxu0
      %2646 = vmatprep.mubr.f32.mxu0 0.0
      %2647 = vmatmul.mubr.f32.gmra.mxu0 %v2469
      %v2648 = vpop.f32.mrf.mxu0
      %v2649 = vadd.f32 0.0, %v2648
      %v2650 = vpop.f32.mrf.mxu0
      %2651 = vmatprep.mubr.f32.mxu0 0.0
      %2652 = vmatmul.mubr.f32.gmra.mxu0 %v2470
      %v2653 = vpop.f32.mrf.mxu0
      %v2654 = vadd.f32 0.0, %v2653
      %v2655 = vpop.f32.mrf.mxu0
      %2656 = vmatprep.mubr.f32.mxu0 0.0
      %2657 = vmatmul.mubr.f32.gmra.mxu0 %v2471
      %v2658 = vpop.f32.mrf.mxu0
      %v2659 = vadd.f32 0.0, %v2658
      %v2660 = vpop.f32.mrf.mxu0
      %2661 = vmatprep.mubr.f32.mxu0 0.0
      %2662 = vmatmul.mubr.f32.gmra.mxu0 %v2472
      %v2663 = vpop.f32.mrf.mxu0
      %v2664 = vadd.f32 0.0, %v2663
      %v2665 = vpop.f32.mrf.mxu0
      %2666 = vmatprep.mubr.f32.mxu0 0.0
      %2667 = vmatmul.mubr.f32.gmra.mxu0 %v2473
      %v2668 = vpop.f32.mrf.mxu0
      %v2669 = vadd.f32 0.0, %v2668
      %v2670 = vpop.f32.mrf.mxu0
      %2671 = vmatprep.mubr.f32.mxu0 0.0
      %2672 = vmatmul.mubr.f32.gmra.mxu0 %v2474
      %v2673 = vpop.f32.mrf.mxu0
      %v2674 = vadd.f32 0.0, %v2673
      %v2675 = vpop.f32.mrf.mxu0
      %2676 = vmatprep.mubr.f32.mxu0 0.0
      %2677 = vmatmul.mubr.f32.gmra.mxu0 %v2475
      %v2678 = vpop.f32.mrf.mxu0
      %v2679 = vadd.f32 0.0, %v2678
      %v2680 = vpop.f32.mrf.mxu0
      %2681 = vmatprep.mubr.f32.mxu0 0.0
      %2682 = vmatmul.mubr.f32.gmra.mxu0 %v2476
      %v2683 = vpop.f32.mrf.mxu0
      %v2684 = vadd.f32 0.0, %v2683
      %v2685 = vpop.f32.mrf.mxu0
      %2686 = vmatprep.mubr.f32.mxu0 0.0
      %2687 = vmatmul.mubr.f32.gmra.mxu0 %v2477
      %v2688 = vpop.f32.mrf.mxu0
      %v2689 = vadd.f32 0.0, %v2688
      %v2690 = vpop.f32.mrf.mxu0
      %2691 = vmatprep.mubr.f32.mxu0 0.0
      %2692 = vmatmul.mubr.f32.gmra.mxu0 %v2478
      %v2693 = vpop.f32.mrf.mxu0
      %v2694 = vadd.f32 0.0, %v2693
      %v2695 = vpop.f32.mrf.mxu0
      %2696 = vmatprep.mubr.f32.mxu0 0.0
      %2697 = vmatmul.mubr.f32.gmra.mxu0 %v2479
      %v2698 = vpop.f32.mrf.mxu0
      %v2699 = vadd.f32 0.0, %v2698
      %v2700 = vpop.f32.mrf.mxu0
      %2701 = vmatprep.mubr.f32.mxu0 0.0
      %2702 = vmatmul.mubr.f32.gmra.mxu0 %v2480
      %v2703 = vpop.f32.mrf.mxu0
      %v2704 = vadd.f32 0.0, %v2703
      %v2705 = vpop.f32.mrf.mxu0
      %2706 = vmatprep.mubr.f32.mxu0 0.0
      %2707 = vmatmul.mubr.f32.gmra.mxu0 %v2481
      %v2708 = vpop.f32.mrf.mxu0
      %v2709 = vadd.f32 0.0, %v2708
      %v2710 = vpop.f32.mrf.mxu0
      %2711 = vmatprep.mubr.f32.mxu0 0.0
      %2712 = vmatmul.mubr.f32.gmra.mxu0 %v2482
      %v2713 = vpop.f32.mrf.mxu0
      %v2714 = vadd.f32 0.0, %v2713
      %v2715 = vpop.f32.mrf.mxu0
      %2716 = vmatprep.mubr.f32.mxu0 0.0
      %2717 = vmatmul.mubr.f32.gmra.mxu0 %v2483
      %v2718 = vpop.f32.mrf.mxu0
      %v2719 = vadd.f32 0.0, %v2718
      %v2720 = vpop.f32.mrf.mxu0
      %2721 = vmatprep.mubr.f32.mxu0 0.0
      %2722 = vmatmul.mubr.f32.gmra.mxu0 %v2484
      %v2723 = vpop.f32.mrf.mxu0
      %v2724 = vadd.f32 0.0, %v2723
      %v2725 = vpop.f32.mrf.mxu0
      %2726 = vdwg.mxu0
      %v2727 = vadd.f32 %v2421, %v2569
      %v2728 = vadd.f32 %v2422, %v2574
      %v2729 = vadd.f32 %v2423, %v2579
      %v2730 = vadd.f32 %v2424, %v2584
      %v2731 = vadd.f32 %v2425, %v2589
      %v2732 = vadd.f32 %v2426, %v2594
      %v2733 = vadd.f32 %v2427, %v2599
      %v2734 = vadd.f32 %v2428, %v2604
      %v2735 = vadd.f32 %v2429, %v2609
      %v2736 = vadd.f32 %v2430, %v2614
      %v2737 = vadd.f32 %v2431, %v2619
      %v2738 = vadd.f32 %v2432, %v2624
      %v2739 = vadd.f32 %v2433, %v2629
      %v2740 = vadd.f32 %v2434, %v2634
      %v2741 = vadd.f32 %v2435, %v2639
      %v2742 = vadd.f32 %v2436, %v2644
      %v2743 = vadd.f32 %v2437, %v2649
      %v2744 = vadd.f32 %v2438, %v2654
      %v2745 = vadd.f32 %v2439, %v2659
      %v2746 = vadd.f32 %v2440, %v2664
      %v2747 = vadd.f32 %v2441, %v2669
      %v2748 = vadd.f32 %v2442, %v2674
      %v2749 = vadd.f32 %v2443, %v2679
      %v2750 = vadd.f32 %v2444, %v2684
      %v2751 = vadd.f32 %v2445, %v2689
      %v2752 = vadd.f32 %v2446, %v2694
      %v2753 = vadd.f32 %v2447, %v2699
      %v2754 = vadd.f32 %v2448, %v2704
      %v2755 = vadd.f32 %v2449, %v2709
      %v2756 = vadd.f32 %v2450, %v2714
      %v2757 = vadd.f32 %v2451, %v2719
      %v2758 = vadd.f32 %v2452, %v2724
      %v2759 = vld [vmem:[%s2146 + $0x2] sm:$0xff]
      %v2760 = vld [vmem:[%s2146 + $0xa] sm:$0xff]
      %v2761 = vld [vmem:[%s2146 + $0x1a] sm:$0xff]
      %v2762 = vld [vmem:[%s2146 + $0x22] sm:$0xff]
      %v2763 = vld [vmem:[%s2146 + $0x32] sm:$0xff]
      %v2764 = vld [vmem:[%s2146 + $0x3a] sm:$0xff]
      %v2765 = vld [vmem:[%s2146 + $0x4a] sm:$0xff]
      %v2766 = vld [vmem:[%s2146 + $0x52] sm:$0xff]
      %v2767 = vld [vmem:[%s2146 + $0x62] sm:$0xff]
      %v2768 = vld [vmem:[%s2146 + $0x6a] sm:$0xff]
      %v2769 = vld [vmem:[%s2146 + $0x7a] sm:$0xff]
      %v2770 = vld [vmem:[%s2146 + $0x82] sm:$0xff]
      %v2771 = vld [vmem:[%s2146 + $0x92] sm:$0xff]
      %v2772 = vld [vmem:[%s2146 + $0x9a] sm:$0xff]
      %v2773 = vld [vmem:[%s2146 + $0xaa] sm:$0xff]
      %v2774 = vld [vmem:[%s2146 + $0xb2] sm:$0xff]
      %v2775 = vld [vmem:[%s2146 + $0xc2] sm:$0xff]
      %v2776 = vld [vmem:[%s2146 + $0xca] sm:$0xff]
      %v2777 = vld [vmem:[%s2146 + $0xda] sm:$0xff]
      %v2778 = vld [vmem:[%s2146 + $0xe2] sm:$0xff]
      %v2779 = vld [vmem:[%s2146 + $0xf2] sm:$0xff]
      %v2780 = vld [vmem:[%s2146 + $0xfa] sm:$0xff]
      %v2781 = vld [vmem:[%s2146 + $0x10a] sm:$0xff]
      %v2782 = vld [vmem:[%s2146 + $0x112] sm:$0xff]
      %v2783 = vld [vmem:[%s2146 + $0x122] sm:$0xff]
      %v2784 = vld [vmem:[%s2146 + $0x12a] sm:$0xff]
      %v2785 = vld [vmem:[%s2146 + $0x13a] sm:$0xff]
      %v2786 = vld [vmem:[%s2146 + $0x142] sm:$0xff]
      %v2787 = vld [vmem:[%s2146 + $0x152] sm:$0xff]
      %v2788 = vld [vmem:[%s2146 + $0x15a] sm:$0xff]
      %v2789 = vld [vmem:[%s2146 + $0x16a] sm:$0xff]
      %v2790 = vld [vmem:[%s2146 + $0x172] sm:$0xff]
      %s2791 = scalar_lea.vmem %s1, 1024
      %v2792 = vld [vmem:[%s2791] sm:$0xff]
      %v2793 = vld [vmem:[%s2791 + $0x8] sm:$0xff]
      %v2794 = vld [vmem:[%s2791 + $0x10] sm:$0xff]
      %v2795 = vld [vmem:[%s2791 + $0x18] sm:$0xff]
      %v2796 = vld [vmem:[%s2791 + $0x20] sm:$0xff]
      %v2797 = vld [vmem:[%s2791 + $0x28] sm:$0xff]
      %v2798 = vld [vmem:[%s2791 + $0x30] sm:$0xff]
      %v2799 = vld [vmem:[%s2791 + $0x38] sm:$0xff]
      %v2800 = vld [vmem:[%s2791 + $0x40] sm:$0xff]
      %v2801 = vld [vmem:[%s2791 + $0x48] sm:$0xff]
      %v2802 = vld [vmem:[%s2791 + $0x50] sm:$0xff]
      %v2803 = vld [vmem:[%s2791 + $0x58] sm:$0xff]
      %v2804 = vld [vmem:[%s2791 + $0x60] sm:$0xff]
      %v2805 = vld [vmem:[%s2791 + $0x68] sm:$0xff]
      %v2806 = vld [vmem:[%s2791 + $0x70] sm:$0xff]
      %v2807 = vld [vmem:[%s2791 + $0x78] sm:$0xff]
      %2808 = vmatprep.subr.mxu0 0.0
      %2809 = vmatpush1.msra.mxu0 %v2807
      %2810 = vmatprep.subr.mxu0 0.0
      %2811 = vmatpush1.msra.mxu0 %v2806
      %2812 = vmatprep.subr.mxu0 0.0
      %2813 = vmatpush1.msra.mxu0 %v2805
      %2814 = vmatprep.subr.mxu0 0.0
      %2815 = vmatpush1.msra.mxu0 %v2804
      %2816 = vmatprep.subr.mxu0 0.0
      %2817 = vmatpush1.msra.mxu0 %v2803
      %2818 = vmatprep.subr.mxu0 0.0
      %2819 = vmatpush1.msra.mxu0 %v2802
      %2820 = vmatprep.subr.mxu0 0.0
      %2821 = vmatpush1.msra.mxu0 %v2801
      %2822 = vmatprep.subr.mxu0 0.0
      %2823 = vmatpush1.msra.mxu0 %v2800
      %2824 = vmatprep.subr.mxu0 0.0
      %2825 = vmatpush1.msra.mxu0 %v2799
      %2826 = vmatprep.subr.mxu0 0.0
      %2827 = vmatpush1.msra.mxu0 %v2798
      %2828 = vmatprep.subr.mxu0 0.0
      %2829 = vmatpush1.msra.mxu0 %v2797
      %2830 = vmatprep.subr.mxu0 0.0
      %2831 = vmatpush1.msra.mxu0 %v2796
      %2832 = vmatprep.subr.mxu0 0.0
      %2833 = vmatpush1.msra.mxu0 %v2795
      %2834 = vmatprep.subr.mxu0 0.0
      %2835 = vmatpush1.msra.mxu0 %v2794
      %2836 = vmatprep.subr.mxu0 0.0
      %2837 = vmatpush1.msra.mxu0 %v2793
      %2838 = vmatprep.subr.mxu0 0.0
      %2839 = vmatpush1.msra.mxu0 %v2792
      %2840 = vmatprep.subr.mxu0 0.0
      %2841 = vmatpush2.msra.mxu0 0.0
      %2842 = vmatprep.subr.mxu0 0.0
      %2843 = vmatpush2.msra.mxu0 0.0
      %2844 = vmatprep.subr.mxu0 0.0
      %2845 = vmatpush2.msra.mxu0 0.0
      %2846 = vmatprep.subr.mxu0 0.0
      %2847 = vmatpush2.msra.mxu0 0.0
      %2848 = vmatprep.subr.mxu0 0.0
      %2849 = vmatpush2.msra.mxu0 0.0
      %2850 = vmatprep.subr.mxu0 0.0
      %2851 = vmatpush2.msra.mxu0 0.0
      %2852 = vmatprep.subr.mxu0 0.0
      %2853 = vmatpush2.msra.mxu0 0.0
      %2854 = vmatprep.subr.mxu0 0.0
      %2855 = vmatpush2.msra.mxu0 0.0
      %2856 = vmatprep.subr.mxu0 0.0
      %2857 = vmatpush2.msra.mxu0 0.0
      %2858 = vmatprep.subr.mxu0 0.0
      %2859 = vmatpush2.msra.mxu0 0.0
      %2860 = vmatprep.subr.mxu0 0.0
      %2861 = vmatpush2.msra.mxu0 0.0
      %2862 = vmatprep.subr.mxu0 0.0
      %2863 = vmatpush2.msra.mxu0 0.0
      %2864 = vmatprep.subr.mxu0 0.0
      %2865 = vmatpush2.msra.mxu0 0.0
      %2866 = vmatprep.subr.mxu0 0.0
      %2867 = vmatpush2.msra.mxu0 0.0
      %2868 = vmatprep.subr.mxu0 0.0
      %2869 = vmatpush2.msra.mxu0 0.0
      %2870 = vmatprep.subr.mxu0 0.0
      %2871 = vmatpush2.msra.mxu0 0.0
      %2872 = vmatprep.mubr.f32.mxu0 0.0
      %2873 = vmatmul.mubr.f32.gmra.mxu0 %v2759
      %v2874 = vpop.f32.mrf.mxu0
      %v2875 = vadd.f32 0.0, %v2874
      %v2876 = vpop.f32.mrf.mxu0
      %2877 = vmatprep.mubr.f32.mxu0 0.0
      %2878 = vmatmul.mubr.f32.gmra.mxu0 %v2760
      %v2879 = vpop.f32.mrf.mxu0
      %v2880 = vadd.f32 0.0, %v2879
      %v2881 = vpop.f32.mrf.mxu0
      %2882 = vmatprep.mubr.f32.mxu0 0.0
      %2883 = vmatmul.mubr.f32.gmra.mxu0 %v2761
      %v2884 = vpop.f32.mrf.mxu0
      %v2885 = vadd.f32 0.0, %v2884
      %v2886 = vpop.f32.mrf.mxu0
      %2887 = vmatprep.mubr.f32.mxu0 0.0
      %2888 = vmatmul.mubr.f32.gmra.mxu0 %v2762
      %v2889 = vpop.f32.mrf.mxu0
      %v2890 = vadd.f32 0.0, %v2889
      %v2891 = vpop.f32.mrf.mxu0
      %2892 = vmatprep.mubr.f32.mxu0 0.0
      %2893 = vmatmul.mubr.f32.gmra.mxu0 %v2763
      %v2894 = vpop.f32.mrf.mxu0
      %v2895 = vadd.f32 0.0, %v2894
      %v2896 = vpop.f32.mrf.mxu0
      %2897 = vmatprep.mubr.f32.mxu0 0.0
      %2898 = vmatmul.mubr.f32.gmra.mxu0 %v2764
      %v2899 = vpop.f32.mrf.mxu0
      %v2900 = vadd.f32 0.0, %v2899
      %v2901 = vpop.f32.mrf.mxu0
      %2902 = vmatprep.mubr.f32.mxu0 0.0
      %2903 = vmatmul.mubr.f32.gmra.mxu0 %v2765
      %v2904 = vpop.f32.mrf.mxu0
      %v2905 = vadd.f32 0.0, %v2904
      %v2906 = vpop.f32.mrf.mxu0
      %2907 = vmatprep.mubr.f32.mxu0 0.0
      %2908 = vmatmul.mubr.f32.gmra.mxu0 %v2766
      %v2909 = vpop.f32.mrf.mxu0
      %v2910 = vadd.f32 0.0, %v2909
      %v2911 = vpop.f32.mrf.mxu0
      %2912 = vmatprep.mubr.f32.mxu0 0.0
      %2913 = vmatmul.mubr.f32.gmra.mxu0 %v2767
      %v2914 = vpop.f32.mrf.mxu0
      %v2915 = vadd.f32 0.0, %v2914
      %v2916 = vpop.f32.mrf.mxu0
      %2917 = vmatprep.mubr.f32.mxu0 0.0
      %2918 = vmatmul.mubr.f32.gmra.mxu0 %v2768
      %v2919 = vpop.f32.mrf.mxu0
      %v2920 = vadd.f32 0.0, %v2919
      %v2921 = vpop.f32.mrf.mxu0
      %2922 = vmatprep.mubr.f32.mxu0 0.0
      %2923 = vmatmul.mubr.f32.gmra.mxu0 %v2769
      %v2924 = vpop.f32.mrf.mxu0
      %v2925 = vadd.f32 0.0, %v2924
      %v2926 = vpop.f32.mrf.mxu0
      %2927 = vmatprep.mubr.f32.mxu0 0.0
      %2928 = vmatmul.mubr.f32.gmra.mxu0 %v2770
      %v2929 = vpop.f32.mrf.mxu0
      %v2930 = vadd.f32 0.0, %v2929
      %v2931 = vpop.f32.mrf.mxu0
      %2932 = vmatprep.mubr.f32.mxu0 0.0
      %2933 = vmatmul.mubr.f32.gmra.mxu0 %v2771
      %v2934 = vpop.f32.mrf.mxu0
      %v2935 = vadd.f32 0.0, %v2934
      %v2936 = vpop.f32.mrf.mxu0
      %2937 = vmatprep.mubr.f32.mxu0 0.0
      %2938 = vmatmul.mubr.f32.gmra.mxu0 %v2772
      %v2939 = vpop.f32.mrf.mxu0
      %v2940 = vadd.f32 0.0, %v2939
      %v2941 = vpop.f32.mrf.mxu0
      %2942 = vmatprep.mubr.f32.mxu0 0.0
      %2943 = vmatmul.mubr.f32.gmra.mxu0 %v2773
      %v2944 = vpop.f32.mrf.mxu0
      %v2945 = vadd.f32 0.0, %v2944
      %v2946 = vpop.f32.mrf.mxu0
      %2947 = vmatprep.mubr.f32.mxu0 0.0
      %2948 = vmatmul.mubr.f32.gmra.mxu0 %v2774
      %v2949 = vpop.f32.mrf.mxu0
      %v2950 = vadd.f32 0.0, %v2949
      %v2951 = vpop.f32.mrf.mxu0
      %2952 = vmatprep.mubr.f32.mxu0 0.0
      %2953 = vmatmul.mubr.f32.gmra.mxu0 %v2775
      %v2954 = vpop.f32.mrf.mxu0
      %v2955 = vadd.f32 0.0, %v2954
      %v2956 = vpop.f32.mrf.mxu0
      %2957 = vmatprep.mubr.f32.mxu0 0.0
      %2958 = vmatmul.mubr.f32.gmra.mxu0 %v2776
      %v2959 = vpop.f32.mrf.mxu0
      %v2960 = vadd.f32 0.0, %v2959
      %v2961 = vpop.f32.mrf.mxu0
      %2962 = vmatprep.mubr.f32.mxu0 0.0
      %2963 = vmatmul.mubr.f32.gmra.mxu0 %v2777
      %v2964 = vpop.f32.mrf.mxu0
      %v2965 = vadd.f32 0.0, %v2964
      %v2966 = vpop.f32.mrf.mxu0
      %2967 = vmatprep.mubr.f32.mxu0 0.0
      %2968 = vmatmul.mubr.f32.gmra.mxu0 %v2778
      %v2969 = vpop.f32.mrf.mxu0
      %v2970 = vadd.f32 0.0, %v2969
      %v2971 = vpop.f32.mrf.mxu0
      %2972 = vmatprep.mubr.f32.mxu0 0.0
      %2973 = vmatmul.mubr.f32.gmra.mxu0 %v2779
      %v2974 = vpop.f32.mrf.mxu0
      %v2975 = vadd.f32 0.0, %v2974
      %v2976 = vpop.f32.mrf.mxu0
      %2977 = vmatprep.mubr.f32.mxu0 0.0
      %2978 = vmatmul.mubr.f32.gmra.mxu0 %v2780
      %v2979 = vpop.f32.mrf.mxu0
      %v2980 = vadd.f32 0.0, %v2979
      %v2981 = vpop.f32.mrf.mxu0
      %2982 = vmatprep.mubr.f32.mxu0 0.0
      %2983 = vmatmul.mubr.f32.gmra.mxu0 %v2781
      %v2984 = vpop.f32.mrf.mxu0
      %v2985 = vadd.f32 0.0, %v2984
      %v2986 = vpop.f32.mrf.mxu0
      %2987 = vmatprep.mubr.f32.mxu0 0.0
      %2988 = vmatmul.mubr.f32.gmra.mxu0 %v2782
      %v2989 = vpop.f32.mrf.mxu0
      %v2990 = vadd.f32 0.0, %v2989
      %v2991 = vpop.f32.mrf.mxu0
      %2992 = vmatprep.mubr.f32.mxu0 0.0
      %2993 = vmatmul.mubr.f32.gmra.mxu0 %v2783
      %v2994 = vpop.f32.mrf.mxu0
      %v2995 = vadd.f32 0.0, %v2994
      %v2996 = vpop.f32.mrf.mxu0
      %2997 = vmatprep.mubr.f32.mxu0 0.0
      %2998 = vmatmul.mubr.f32.gmra.mxu0 %v2784
      %v2999 = vpop.f32.mrf.mxu0
      %v3000 = vadd.f32 0.0, %v2999
      %v3001 = vpop.f32.mrf.mxu0
      %3002 = vmatprep.mubr.f32.mxu0 0.0
      %3003 = vmatmul.mubr.f32.gmra.mxu0 %v2785
      %v3004 = vpop.f32.mrf.mxu0
      %v3005 = vadd.f32 0.0, %v3004
      %v3006 = vpop.f32.mrf.mxu0
      %3007 = vmatprep.mubr.f32.mxu0 0.0
      %3008 = vmatmul.mubr.f32.gmra.mxu0 %v2786
      %v3009 = vpop.f32.mrf.mxu0
      %v3010 = vadd.f32 0.0, %v3009
      %v3011 = vpop.f32.mrf.mxu0
      %3012 = vmatprep.mubr.f32.mxu0 0.0
      %3013 = vmatmul.mubr.f32.gmra.mxu0 %v2787
      %v3014 = vpop.f32.mrf.mxu0
      %v3015 = vadd.f32 0.0, %v3014
      %v3016 = vpop.f32.mrf.mxu0
      %3017 = vmatprep.mubr.f32.mxu0 0.0
      %3018 = vmatmul.mubr.f32.gmra.mxu0 %v2788
      %v3019 = vpop.f32.mrf.mxu0
      %v3020 = vadd.f32 0.0, %v3019
      %v3021 = vpop.f32.mrf.mxu0
      %3022 = vmatprep.mubr.f32.mxu0 0.0
      %3023 = vmatmul.mubr.f32.gmra.mxu0 %v2789
      %v3024 = vpop.f32.mrf.mxu0
      %v3025 = vadd.f32 0.0, %v3024
      %v3026 = vpop.f32.mrf.mxu0
      %3027 = vmatprep.mubr.f32.mxu0 0.0
      %3028 = vmatmul.mubr.f32.gmra.mxu0 %v2790
      %v3029 = vpop.f32.mrf.mxu0
      %v3030 = vadd.f32 0.0, %v3029
      %v3031 = vpop.f32.mrf.mxu0
      %3032 = vdwg.mxu0
      %v3033 = vadd.f32 %v2727, %v2875
      %v3034 = vadd.f32 %v2728, %v2880
      %v3035 = vadd.f32 %v2729, %v2885
      %v3036 = vadd.f32 %v2730, %v2890
      %v3037 = vadd.f32 %v2731, %v2895
      %v3038 = vadd.f32 %v2732, %v2900
      %v3039 = vadd.f32 %v2733, %v2905
      %v3040 = vadd.f32 %v2734, %v2910
      %v3041 = vadd.f32 %v2735, %v2915
      %v3042 = vadd.f32 %v2736, %v2920
      %v3043 = vadd.f32 %v2737, %v2925
      %v3044 = vadd.f32 %v2738, %v2930
      %v3045 = vadd.f32 %v2739, %v2935
      %v3046 = vadd.f32 %v2740, %v2940
      %v3047 = vadd.f32 %v2741, %v2945
      %v3048 = vadd.f32 %v2742, %v2950
      %v3049 = vadd.f32 %v2743, %v2955
      %v3050 = vadd.f32 %v2744, %v2960
      %v3051 = vadd.f32 %v2745, %v2965
      %v3052 = vadd.f32 %v2746, %v2970
      %v3053 = vadd.f32 %v2747, %v2975
      %v3054 = vadd.f32 %v2748, %v2980
      %v3055 = vadd.f32 %v2749, %v2985
      %v3056 = vadd.f32 %v2750, %v2990
      %v3057 = vadd.f32 %v2751, %v2995
      %v3058 = vadd.f32 %v2752, %v3000
      %v3059 = vadd.f32 %v2753, %v3005
      %v3060 = vadd.f32 %v2754, %v3010
      %v3061 = vadd.f32 %v2755, %v3015
      %v3062 = vadd.f32 %v2756, %v3020
      %v3063 = vadd.f32 %v2757, %v3025
      %v3064 = vadd.f32 %v2758, %v3030
      %v3065 = vld [vmem:[%s2] sm:$0x1]
      %v3067 = vlaneseq
      %v3068 = vshrl.u32 %v3067, 7
      %v3069 = vsub.s32 0, %v3068
      %v3070 = vrot.slane %v3065, %v3069
      %v3072 = vmul.f32 %v3033, %v3070
      %v3073 = vmul.f32 %v3034, %v3070
      %v3074 = vmul.f32 %v3035, %v3070
      %v3075 = vmul.f32 %v3036, %v3070
      %v3076 = vmul.f32 %v3037, %v3070
      %v3077 = vmul.f32 %v3038, %v3070
      %v3078 = vmul.f32 %v3039, %v3070
      %v3079 = vmul.f32 %v3040, %v3070
      %v3080 = vmul.f32 %v3041, %v3070
      %v3081 = vmul.f32 %v3042, %v3070
      %v3082 = vmul.f32 %v3043, %v3070
      %v3083 = vmul.f32 %v3044, %v3070
      %v3084 = vmul.f32 %v3045, %v3070
      %v3085 = vmul.f32 %v3046, %v3070
      %v3086 = vmul.f32 %v3047, %v3070
      %v3087 = vmul.f32 %v3048, %v3070
      %v3088 = vmul.f32 %v3049, %v3070
      %v3089 = vmul.f32 %v3050, %v3070
      %v3090 = vmul.f32 %v3051, %v3070
      %v3091 = vmul.f32 %v3052, %v3070
      %v3092 = vmul.f32 %v3053, %v3070
      %v3093 = vmul.f32 %v3054, %v3070
      %v3094 = vmul.f32 %v3055, %v3070
      %v3095 = vmul.f32 %v3056, %v3070
      %v3096 = vmul.f32 %v3057, %v3070
      %v3097 = vmul.f32 %v3058, %v3070
      %v3098 = vmul.f32 %v3059, %v3070
      %v3099 = vmul.f32 %v3060, %v3070
      %v3100 = vmul.f32 %v3061, %v3070
      %v3101 = vmul.f32 %v3062, %v3070
      %v3102 = vmul.f32 %v3063, %v3070
      %v3103 = vmul.f32 %v3064, %v3070
      %v3104 = vld [vmem:[%s3] sm:$0x1]
      %v3106 = vlaneseq
      %v3107 = vshrl.u32 %v3106, 7
      %v3108 = vsub.s32 0, %v3107
      %v3109 = vrot.slane %v3104, %v3108
      %v3111 = vadd.f32 %v3072, %v3109
      %v3112 = vadd.f32 %v3073, %v3109
      %v3113 = vadd.f32 %v3074, %v3109
      %v3114 = vadd.f32 %v3075, %v3109
      %v3115 = vadd.f32 %v3076, %v3109
      %v3116 = vadd.f32 %v3077, %v3109
      %v3117 = vadd.f32 %v3078, %v3109
      %v3118 = vadd.f32 %v3079, %v3109
      %v3119 = vadd.f32 %v3080, %v3109
      %v3120 = vadd.f32 %v3081, %v3109
      %v3121 = vadd.f32 %v3082, %v3109
      %v3122 = vadd.f32 %v3083, %v3109
      %v3123 = vadd.f32 %v3084, %v3109
      %v3124 = vadd.f32 %v3085, %v3109
      %v3125 = vadd.f32 %v3086, %v3109
      %v3126 = vadd.f32 %v3087, %v3109
      %v3127 = vadd.f32 %v3088, %v3109
      %v3128 = vadd.f32 %v3089, %v3109
      %v3129 = vadd.f32 %v3090, %v3109
      %v3130 = vadd.f32 %v3091, %v3109
      %v3131 = vadd.f32 %v3092, %v3109
      %v3132 = vadd.f32 %v3093, %v3109
      %v3133 = vadd.f32 %v3094, %v3109
      %v3134 = vadd.f32 %v3095, %v3109
      %v3135 = vadd.f32 %v3096, %v3109
      %v3136 = vadd.f32 %v3097, %v3109
      %v3137 = vadd.f32 %v3098, %v3109
      %v3138 = vadd.f32 %v3099, %v3109
      %v3139 = vadd.f32 %v3100, %v3109
      %v3140 = vadd.f32 %v3101, %v3109
      %v3141 = vadd.f32 %v3102, %v3109
      %v3142 = vadd.f32 %v3103, %v3109
      %3143 = vst [vmem:[%s246] sm:$0xff] %v3111
      %3144 = vst [vmem:[%s246 + $0x8] sm:$0xff] %v3112
      %3145 = vst [vmem:[%s246 + $0x10] sm:$0xff] %v3113
      %3146 = vst [vmem:[%s246 + $0x18] sm:$0xff] %v3114
      %3147 = vst [vmem:[%s246 + $0x20] sm:$0xff] %v3115
      %3148 = vst [vmem:[%s246 + $0x28] sm:$0xff] %v3116
      %3149 = vst [vmem:[%s246 + $0x30] sm:$0xff] %v3117
      %3150 = vst [vmem:[%s246 + $0x38] sm:$0xff] %v3118
      %3151 = vst [vmem:[%s246 + $0x40] sm:$0xff] %v3119
      %3152 = vst [vmem:[%s246 + $0x48] sm:$0xff] %v3120
      %3153 = vst [vmem:[%s246 + $0x50] sm:$0xff] %v3121
      %3154 = vst [vmem:[%s246 + $0x58] sm:$0xff] %v3122
      %3155 = vst [vmem:[%s246 + $0x60] sm:$0xff] %v3123
      %3156 = vst [vmem:[%s246 + $0x68] sm:$0xff] %v3124
      %3157 = vst [vmem:[%s246 + $0x70] sm:$0xff] %v3125
      %3158 = vst [vmem:[%s246 + $0x78] sm:$0xff] %v3126
      %3159 = vst [vmem:[%s246 + $0x80] sm:$0xff] %v3127
      %3160 = vst [vmem:[%s246 + $0x88] sm:$0xff] %v3128
      %3161 = vst [vmem:[%s246 + $0x90] sm:$0xff] %v3129
      %3162 = vst [vmem:[%s246 + $0x98] sm:$0xff] %v3130
      %3163 = vst [vmem:[%s246 + $0xa0] sm:$0xff] %v3131
      %3164 = vst [vmem:[%s246 + $0xa8] sm:$0xff] %v3132
      %3165 = vst [vmem:[%s246 + $0xb0] sm:$0xff] %v3133
      %3166 = vst [vmem:[%s246 + $0xb8] sm:$0xff] %v3134
      %3167 = vst [vmem:[%s246 + $0xc0] sm:$0xff] %v3135
      %3168 = vst [vmem:[%s246 + $0xc8] sm:$0xff] %v3136
      %3169 = vst [vmem:[%s246 + $0xd0] sm:$0xff] %v3137
      %3170 = vst [vmem:[%s246 + $0xd8] sm:$0xff] %v3138
      %3171 = vst [vmem:[%s246 + $0xe0] sm:$0xff] %v3139
      %3172 = vst [vmem:[%s246 + $0xe8] sm:$0xff] %v3140
      %3173 = vst [vmem:[%s246 + $0xf0] sm:$0xff] %v3141
      %3174 = vst [vmem:[%s246 + $0xf8] sm:$0xff] %v3142
      %p3175 = scmp.eq.s32.totalorder %s21, 0
      %p3176 = scmp.eq.s32.totalorder %s22, 0
      %p3177 = pnand %p3175, %p3176
      %p3178 = pneg %p3177
      // Predicated region
      $region37: #{bottleneck_forward.6} parent=35 // pred_check
        _
      $region38: #{bottleneck_forward.6} parent=35 // pred_check_branch
        %3180 = sbr.rel (%p3177) target = $region40
      $region39: #{bottleneck_forward.6} parent=35 // pred_region
        %3181 = vst [vmem:[%s5] sm:$0x3] 0.0
      $region40: #{bottleneck_forward.6} parent=35 // pred_fallthru
        _
      %v3182 = vld [vmem:[%s5] sm:$0x1]
      %v3183 = vadd.f32 %v3111, %v3112
      %v3184 = vadd.f32 %v3183, %v3113
      %v3185 = vadd.f32 %v3184, %v3114
      %v3186 = vadd.f32 %v3185, %v3115
      %v3187 = vadd.f32 %v3186, %v3116
      %v3188 = vadd.f32 %v3187, %v3117
      %v3189 = vadd.f32 %v3188, %v3118
      %v3190 = vadd.f32 %v3189, %v3119
      %v3191 = vadd.f32 %v3190, %v3120
      %v3192 = vadd.f32 %v3191, %v3121
      %v3193 = vadd.f32 %v3192, %v3122
      %v3194 = vadd.f32 %v3193, %v3123
      %v3195 = vadd.f32 %v3194, %v3124
      %v3196 = vadd.f32 %v3195, %v3125
      %v3197 = vadd.f32 %v3196, %v3126
      %v3198 = vadd.f32 %v3197, %v3127
      %v3199 = vadd.f32 %v3198, %v3128
      %v3200 = vadd.f32 %v3199, %v3129
      %v3201 = vadd.f32 %v3200, %v3130
      %v3202 = vadd.f32 %v3201, %v3131
      %v3203 = vadd.f32 %v3202, %v3132
      %v3204 = vadd.f32 %v3203, %v3133
      %v3205 = vadd.f32 %v3204, %v3134
      %v3206 = vadd.f32 %v3205, %v3135
      %v3207 = vadd.f32 %v3206, %v3136
      %v3208 = vadd.f32 %v3207, %v3137
      %v3209 = vadd.f32 %v3208, %v3138
      %v3210 = vadd.f32 %v3209, %v3139
      %v3211 = vadd.f32 %v3210, %v3140
      %v3212 = vadd.f32 %v3211, %v3141
      %v3213 = vadd.f32 %v3212, %v3142
      %v3214 = vrot.slane %v3213, 4
      %v3215 = vadd.f32 %v3213, %v3214
      %v3216 = vrot.slane %v3215, 2
      %v3217 = vadd.f32 %v3215, %v3216
      %v3218 = vrot.slane %v3217, 1
      %v3219 = vadd.f32 %v3217, %v3218
      %v3220 = vadd.f32 %v3182, %v3219
      %3221 = vst [vmem:[%s5] sm:$0x1] %v3220
      %v3222 = vld [vmem:[%s5 + $0x1] sm:$0x1]
      %v3223 = vmul.f32 %v3111, %v3111
      %v3224 = vmul.f32 %v3112, %v3112
      %v3225 = vmul.f32 %v3113, %v3113
      %v3226 = vmul.f32 %v3114, %v3114
      %v3227 = vmul.f32 %v3115, %v3115
      %v3228 = vmul.f32 %v3116, %v3116
      %v3229 = vmul.f32 %v3117, %v3117
      %v3230 = vmul.f32 %v3118, %v3118
      %v3231 = vmul.f32 %v3119, %v3119
      %v3232 = vmul.f32 %v3120, %v3120
      %v3233 = vmul.f32 %v3121, %v3121
      %v3234 = vmul.f32 %v3122, %v3122
      %v3235 = vmul.f32 %v3123, %v3123
      %v3236 = vmul.f32 %v3124, %v3124
      %v3237 = vmul.f32 %v3125, %v3125
      %v3238 = vmul.f32 %v3126, %v3126
      %v3239 = vmul.f32 %v3127, %v3127
      %v3240 = vmul.f32 %v3128, %v3128
      %v3241 = vmul.f32 %v3129, %v3129
      %v3242 = vmul.f32 %v3130, %v3130
      %v3243 = vmul.f32 %v3131, %v3131
      %v3244 = vmul.f32 %v3132, %v3132
      %v3245 = vmul.f32 %v3133, %v3133
      %v3246 = vmul.f32 %v3134, %v3134
      %v3247 = vmul.f32 %v3135, %v3135
      %v3248 = vmul.f32 %v3136, %v3136
      %v3249 = vmul.f32 %v3137, %v3137
      %v3250 = vmul.f32 %v3138, %v3138
      %v3251 = vmul.f32 %v3139, %v3139
      %v3252 = vmul.f32 %v3140, %v3140
      %v3253 = vmul.f32 %v3141, %v3141
      %v3254 = vmul.f32 %v3142, %v3142
      %v3255 = vadd.f32 %v3223, %v3224
      %v3256 = vadd.f32 %v3255, %v3225
      %v3257 = vadd.f32 %v3256, %v3226
      %v3258 = vadd.f32 %v3257, %v3227
      %v3259 = vadd.f32 %v3258, %v3228
      %v3260 = vadd.f32 %v3259, %v3229
      %v3261 = vadd.f32 %v3260, %v3230
      %v3262 = vadd.f32 %v3261, %v3231
      %v3263 = vadd.f32 %v3262, %v3232
      %v3264 = vadd.f32 %v3263, %v3233
      %v3265 = vadd.f32 %v3264, %v3234
      %v3266 = vadd.f32 %v3265, %v3235
      %v3267 = vadd.f32 %v3266, %v3236
      %v3268 = vadd.f32 %v3267, %v3237
      %v3269 = vadd.f32 %v3268, %v3238
      %v3270 = vadd.f32 %v3269, %v3239
      %v3271 = vadd.f32 %v3270, %v3240
      %v3272 = vadd.f32 %v3271, %v3241
      %v3273 = vadd.f32 %v3272, %v3242
      %v3274 = vadd.f32 %v3273, %v3243
      %v3275 = vadd.f32 %v3274, %v3244
      %v3276 = vadd.f32 %v3275, %v3245
      %v3277 = vadd.f32 %v3276, %v3246
      %v3278 = vadd.f32 %v3277, %v3247
      %v3279 = vadd.f32 %v3278, %v3248
      %v3280 = vadd.f32 %v3279, %v3249
      %v3281 = vadd.f32 %v3280, %v3250
      %v3282 = vadd.f32 %v3281, %v3251
      %v3283 = vadd.f32 %v3282, %v3252
      %v3284 = vadd.f32 %v3283, %v3253
      %v3285 = vadd.f32 %v3284, %v3254
      %v3286 = vrot.slane %v3285, 4
      %v3287 = vadd.f32 %v3285, %v3286
      %v3288 = vrot.slane %v3287, 2
      %v3289 = vadd.f32 %v3287, %v3288
      %v3290 = vrot.slane %v3289, 1
      %v3291 = vadd.f32 %v3289, %v3290
      %v3292 = vadd.f32 %v3222, %v3291
      %3293 = vst [vmem:[%s5 + $0x1] sm:$0x1] %v3292
      %s3294 = smul.u32 16, %s22
      %p3295 = scmp.lt.s32.totalorder %s21, 1
      %s3296 = scalar_select %p3295, %s21, 1
      %p3297 = scmp.lt.s32.totalorder %s3294, 15
      %s3298 = scalar_select %p3297, %s3294, 15
      %s3299 = smul.addr %s3298, 2
      %s3300 = smul.addr %s3296, 32
      %s3301 = sadd.s32 %s3299, %s3300
      %s3302 = smul.addr %s3301, 8
      %s3303 = scalar_lea.vmem %s4, %s3302
      // Predicated region
      $region41: #{bottleneck_forward.6} parent=35 // pred_check
        %p3304 = pneg %p138
      $region42: #{bottleneck_forward.6} parent=35 // pred_check_branch
        %3306 = sbr.rel (%p3304) target = $region44
      $region43: #{bottleneck_forward.6} parent=35 // pred_region
        %s3307 = smul.u32 16, %s22
      $region44: #{bottleneck_forward.6} parent=35 // pred_fallthru
        _
      // Predicated region
      $region45: #{bottleneck_forward.6} parent=35 // pred_check
        %p3308 = pneg %p159
      $region46: #{bottleneck_forward.6} parent=35 // pred_check_branch
        %3310 = sbr.rel (%p3308) target = $region48
      $region47: #{bottleneck_forward.6} parent=35 // pred_region
        _
      $region48: #{bottleneck_forward.6} parent=35 // pred_fallthru
        _
      // Predicated region
      $region49: #{bottleneck_forward.6} parent=35 // pred_check
        %p3311 = pneg %p159
      $region50: #{bottleneck_forward.6} parent=35 // pred_check_branch
        %3313 = sbr.rel (%p3311) target = $region52
      $region51: #{bottleneck_forward.6} parent=35 // pred_region
        _
      $region52: #{bottleneck_forward.6} parent=35 // pred_fallthru
        _
    $region36: #{bottleneck_forward.6} parent=5 // pred_fallthru
      _
    %p3314 = scmp.le.s32.totalorder 2, %s12
    // Predicated region
    $region53: #{bottleneck_forward.6} parent=5 // pred_check
      %p3315 = pneg %p3314
    $region54: #{bottleneck_forward.6} parent=5 // pred_check_branch
      %3317 = sbr.rel (%p3315) target = $region56
    $region55: #{bottleneck_forward.6} parent=5 // pred_region
      %s3318 = ssub.s32 %s12, 2
      // Predicated region
      $region57: #{bottleneck_forward.6} parent=55 // pred_check
        %p3319 = pneg %p144
      $region58: #{bottleneck_forward.6} parent=55 // pred_check_branch
        %3321 = sbr.rel (%p3319) target = $region60
      $region59: #{bottleneck_forward.6} parent=55 // pred_region
        %s3322 = smul.u32 16, %s24
        %p3323 = scmp.lt.s32.totalorder %s23, 1
        %s3324 = scalar_select %p3323, %s23, 1
        %p3325 = scmp.lt.s32.totalorder %s3322, 15
        %s3326 = scalar_select %p3325, %s3322, 15
        %s3327 = smul.addr %s3326, 2
        %s3328 = smul.addr %s3324, 32
        %s3329 = sadd.s32 %s3327, %s3328
        %s3330 = smul.addr %s3329, 8
        %s3331 = scalar_lea.vmem %s4, %s3330
      $region60: #{bottleneck_forward.6} parent=55 // pred_fallthru
        _
    $region56: #{bottleneck_forward.6} parent=5 // pred_fallthru
      _
  $region6: #{bottleneck_forward.6} parent=0 // loop_footer
    %s16 = sadd.s32 1, %s12
  $region7: #{bottleneck_forward.6} parent=0 // loop_footer_branch
    %11 = sbr.rel target = $region3
  $region8: #{bottleneck_forward.6} parent=0 // loop_exit
    _

</llo_original>
